<compile_context>
chip_gen: v6e
topology: v6e:2x2x1
jax: 0.10.0
libtpu: 0.0.40
codegen_flags: <defaults>
</compile_context>

<pallas_src>
import functools
from typing import NamedTuple

import numpy as np

import jax
import jax.numpy as jnp
from jax.experimental import pallas as pl
from jax.experimental.pallas import tpu as pltpu


class Meta(NamedTuple):
    ih: int
    iw: int
    cin: int
    period: int      # s1 * s2 = 8 : input-H phase period packed into one row
    n_slots: int     # number of 8-row slots of input H (== #even conv1 rows)
    w0p: int         # padded per-input-row lane width (iw*cin -> multiple of 128)
    oh1_odd: int     # number of odd conv1 output rows (== n_slots - 1)
    oh2: int
    k2: int
    k3: int


def _round128(v):
    return -(-v // 128) * 128


# ----------------------------------------------------------------------------
# 2*atan(x) in f32 (Cephes rational approximation, exact divides).
# Only applied to the final (TILE_B, 1) logits, so its cost is negligible.
# TODO(synk): swap for jnp.arctan once lax.atan lowering is guaranteed in Mosaic.
# ----------------------------------------------------------------------------
def _atan_times_2(x):
    x = x.astype(jnp.float32)
    sign = jnp.where(x < 0.0, jnp.float32(-1.0), jnp.float32(1.0))
    ax = jnp.abs(x)
    big = ax > jnp.float32(2.414213562373095)            # tan(3*pi/8)
    mid = jnp.logical_and(ax > jnp.float32(0.4142135623730950), jnp.logical_not(big))
    xr = jnp.where(big, -1.0 / jnp.where(big, ax, jnp.float32(1.0)),
                   jnp.where(mid, (ax - 1.0) / (ax + 1.0), ax))
    y0 = jnp.where(big, jnp.float32(np.pi / 2),
                   jnp.where(mid, jnp.float32(np.pi / 4), jnp.float32(0.0)))
    z = xr * xr
    poly = (((jnp.float32(8.05374449538e-2) * z - jnp.float32(1.38776856032e-1)) * z
             + jnp.float32(1.99777106478e-1)) * z
            - jnp.float32(3.33329491539e-1)) * z * xr + xr
    return jnp.float32(2.0) * sign * (y0 + poly)


# ----------------------------------------------------------------------------
# Fused whole-network kernel (one grid step == TILE_B images).
# ----------------------------------------------------------------------------
def _comma_ai_kernel(x_ref, t1_ref, b1_ref, t2_ref, b2_ref, t3_ref, b3_ref,
                     fc1w_ref, fc1b_ref, fc2w_ref, fc2b_ref, o_ref,
                     *, tb, n_slots, oh1_odd, oh2, k2, k3, half):
    f32, bf16 = jnp.float32, jnp.bfloat16

    def mm(lhs, w_ref):                      # bf16 MXU matmul, f32 accumulation
        return jnp.dot(lhs, w_ref[...], preferred_element_type=f32)

    def bias_relu_bf16(acc, b_ref):          # f32 epilogue, cast to bf16 exactly once
        return jnp.maximum(acc + b_ref[...], 0.0).astype(bf16)

    # Rows arrive (slot-major, image-minor); each row packs one full conv1
    # receptive-field stripe: period(=8) input rows x padded (w, c) lanes.
    x = x_ref[...]                                                   # (S*tb, 8*w0p) bf16

    # conv1, even output rows (oy1 = 2m): taps == the 8 phases of slot m.
    a1e = bias_relu_bf16(mm(x, t1_ref), b1_ref)                      # (n_slots*tb, 256)
    # conv1, odd output rows (oy1 = 2m+1): phases 4..7 of slot m ++ 0..3 of slot m+1.
    lhs_odd = jnp.concatenate([x[: oh1_odd * tb, half:],
                               x[tb: n_slots * tb, :half]], axis=-1)
    a1o = bias_relu_bf16(mm(lhs_odd, t1_ref), b1_ref)                # (oh1_odd*tb, 256)

    # conv2: ONE deep-K matmul; LHS = k2 tap slices interleaved from even/odd slabs.
    r2 = oh2 * tb
    taps2 = []
    for ky in range(k2):
        src = a1e if ky % 2 == 0 else a1o
        off = (ky // 2) * tb
        taps2.append(src[off: off + r2])
    a2 = bias_relu_bf16(mm(jnp.concatenate(taps2, axis=-1), t2_ref), b2_ref)  # (oh2*tb, 256)

    # conv3 (1x1 spatial output): LHS = first k3 activation rows of each image.
    lhs3 = jnp.concatenate([a2[ky * tb: (ky + 1) * tb] for ky in range(k3)], axis=-1)
    a3 = bias_relu_bf16(mm(lhs3, t3_ref), b3_ref)                    # (tb, 128)

    # fc1 + ReLU, fc2 (+ scalar bias from SMEM), 2*atan.
    h = bias_relu_bf16(mm(a3, fc1w_ref), fc1b_ref)                   # (tb, 512)
    y = mm(h, fc2w_ref) + fc2b_ref[0, 0]                             # (tb, 1) f32
    o_ref[...] = _atan_times_2(y).astype(o_ref.dtype)


# ----------------------------------------------------------------------------
# One-time host-side weight repacking (tap-stacked, 128-lane-padded Toeplitz).
# ----------------------------------------------------------------------------
def pack_params(params, image_hw):
    ih, iw = image_hw
    cfg = (("conv1", 8, 4), ("conv2", 5, 2), ("conv3", 5, 2))

    layers = []
    h, w, c = ih, iw, 3
    for name, k, s in cfg:
        wgt = np.asarray(params[name + "_w"], np.float32)
        bias = np.asarray(params[name + "_b"], np.float32)
        cout = int(wgt.shape[0])
        assert wgt.shape == (cout, c, k, k), (name, wgt.shape)
        oh, ow = (h - k) // s + 1, (w - k) // s + 1
        layers.append((name, wgt, bias, k, s, c, cout, oh, ow))
        h, w, c = oh, ow, cout
    assert h == 1 and w == 1, "fused kernel assumes conv3 output is 1x1 (fc1_size == 64)"
    # TODO(synk): fold the NCHW-flatten permutation into fc1 packing to support
    #             conv3 outputs larger than 1x1 (general comma.ai fc1_size).

    packed = {}
    w0p = _round128(iw * 3)                   # padded per-row lane width into conv1
    prev_wp = w0p
    for idx, (name, wgt, bias, k, s, cin, cout, oh, ow) in enumerate(layers):
        owp = _round128(ow * cout)
        # Tap-stacked block-Toeplitz: K = k * prev_wp (all kernel-row taps stacked
        # along the contraction dim -> one deep-K MXU matmul per conv), N padded.
        toep = np.zeros((k * prev_wp, owp), np.float32)
        for ky in range(k):
            for ox in range(ow):
                for kx in range(k):
                    col = s * ox + kx
                    toep[ky * prev_wp + col * cin: ky * prev_wp + (col + 1) * cin,
                         ox * cout: (ox + 1) * cout] = wgt[:, :, ky, kx].T
        bp = np.zeros((1, owp), np.float32)
        bp[0, :ow * cout] = np.tile(bias, ow)
        packed[f"t{idx + 1}"] = jnp.asarray(toep, jnp.bfloat16)
        packed[f"b{idx + 1}"] = jnp.asarray(bp)
        prev_wp = owp

    # Fully connected layers (fc1 K padded to conv3's padded output width).
    cout3 = layers[2][6]
    fc1_w = np.asarray(params["fc1_w"], np.float32)                  # (512, fc1_size)
    assert fc1_w.shape[1] == cout3, "fc1_size must equal conv3 channel count (1x1 output)"
    fc1p = np.zeros((prev_wp, fc1_w.shape[0]), np.float32)
    fc1p[:cout3, :] = fc1_w.T
    packed["fc1w"] = jnp.asarray(fc1p, jnp.bfloat16)
    packed["fc1b"] = jnp.asarray(np.asarray(params["fc1_b"], np.float32)[None, :])
    packed["fc2w"] = jnp.asarray(np.asarray(params["fc2_w"], np.float32).T, jnp.bfloat16)
    packed["fc2b"] = jnp.asarray(np.asarray(params["fc2_b"], np.float32).reshape(1, 1))

    # Structural checks for the even/odd conv1 phase decomposition.
    _, _, _, k1, s1, _, _, oh1, _ = layers[0]
    _, _, _, k2, s2, _, _, oh2, _ = layers[1]
    _, _, _, k3, s3, _, _, oh3, _ = layers[2]
    period = s1 * s2
    assert (k1, s1, k2, s2, k3, s3) == (8, 4, 5, 2, 5, 2), "phase split assumes module strides/kernels"
    assert oh1 % 2 == 1, "even/odd split assumes an odd conv1 output height"
    n_slots = (oh1 + 1) // 2
    oh1_odd = oh1 // 2
    assert n_slots * period >= (oh1 - 1) * s1 + k1          # slots cover conv1 receptive field
    assert (oh2 - 1) + (k2 - 1) // 2 <= n_slots - 1         # even-tap slots exist
    assert (oh2 - 1) + (k2 - 2) // 2 <= oh1_odd - 1         # odd-tap slots exist
    assert k3 <= oh2 and oh3 == 1

    meta = Meta(ih=ih, iw=iw, cin=3, period=period, n_slots=n_slots, w0p=w0p,
                oh1_odd=oh1_odd, oh2=oh2, k2=k2, k3=k3)
    return packed, meta


# ----------------------------------------------------------------------------
# Forward pass wrapper: batch-tiled single fused pallas_call.
# ----------------------------------------------------------------------------
def comma_ai_forward(packed, x, meta, tile_b=16):
    assert tile_b % 16 == 0, "tile_b must be a multiple of 16 (bf16 sublane tile)"
    m = meta
    n = x.shape[0]
    nblk = -(-n // tile_b)
    n_pad = nblk * tile_b
    sp = m.n_slots * m.period
    lanes = m.period * m.w0p

    # One-time input layout glue (plain XLA, outside the kernel):
    # NCHW -> (img, h, w*c), pad lanes to w0p / H to n_slots*period, cast to bf16,
    # then order rows (block, slot, image-in-block) so every grid step reads one
    # contiguous (n_slots*tile_b, period*w0p) slab with image-minor ordering.
    xt = jnp.transpose(x, (0, 2, 3, 1)).reshape(n, m.ih, m.iw * m.cin)
    xt = xt[:, :sp, :]
    xt = jnp.pad(xt, ((0, n_pad - n), (0, max(0, sp - m.ih)),
                      (0, m.w0p - m.iw * m.cin))).astype(jnp.bfloat16)
    xt = xt.reshape(nblk, tile_b, m.n_slots, lanes)
    xt = xt.transpose(0, 2, 1, 3).reshape(nblk * m.n_slots * tile_b, lanes)

    kernel = functools.partial(
        _comma_ai_kernel, tb=tile_b, n_slots=m.n_slots, oh1_odd=m.oh1_odd,
        oh2=m.oh2, k2=m.k2, k3=m.k3, half=(m.period // 2) * m.w0p)

    weights = (packed["t1"], packed["b1"], packed["t2"], packed["b2"],
               packed["t3"], packed["b3"], packed["fc1w"], packed["fc1b"],
               packed["fc2w"])

    def const_spec(a):      # whole-array block, constant index map -> DMA'd once
        return pl.BlockSpec(a.shape, lambda i: (0,) * a.ndim)

    in_specs = [pl.BlockSpec((m.n_slots * tile_b, lanes), lambda i: (i, 0))]
    in_specs += [const_spec(a) for a in weights]
    in_specs.append(pl.BlockSpec(memory_space=pltpu.MemorySpace.SMEM))  # scalar fc2 bias

    out = pl.pallas_call(
        kernel,
        out_shape=jax.ShapeDtypeStruct((n_pad, 1), jnp.float32),
        grid=(nblk,),
        in_specs=in_specs,
        out_specs=pl.BlockSpec((tile_b, 1), lambda i: (i, 0)),
        compiler_params=pltpu.CompilerParams(
            dimension_semantics=("parallel",),
            vmem_limit_bytes=48 * 1024 * 1024),   # v7x (64 MiB) safe; ~8 MiB used at tile_b=16
    )(xt, *weights, packed["fc2b"])
    return out[:n]


# ----------------------------------------------------------------------------
# Params / pure-JAX reference / driver
# ----------------------------------------------------------------------------
def init_params(key, fc1_size):
    ks = jax.random.split(key, 10)
    s = jnp.float32(0.05)
    return {
        "conv1_w": jax.random.normal(ks[0], (16, 3, 8, 8), jnp.float32) * s,
        "conv1_b": jax.random.normal(ks[1], (16,), jnp.float32) * s,
        "conv2_w": jax.random.normal(ks[2], (32, 16, 5, 5), jnp.float32) * s,
        "conv2_b": jax.random.normal(ks[3], (32,), jnp.float32) * s,
        "conv3_w": jax.random.normal(ks[4], (64, 32, 5, 5), jnp.float32) * s,
        "conv3_b": jax.random.normal(ks[5], (64,), jnp.float32) * s,
        "fc1_w": jax.random.normal(ks[6], (512, fc1_size), jnp.float32) * s,
        "fc1_b": jax.random.normal(ks[7], (512,), jnp.float32) * s,
        "fc2_w": jax.random.normal(ks[8], (1, 512), jnp.float32) * s,
        "fc2_b": jax.random.normal(ks[9], (1,), jnp.float32) * s,
    }


def comma_ai_reference(params, x):
    """Pure-JAX reference mirroring the PyTorch module (for correctness checking)."""
    dn = ("NCHW", "OIHW", "NCHW")
    out = x
    for name, stride in (("conv1", 4), ("conv2", 2), ("conv3", 2)):
        out = jax.lax.conv_general_dilated(out, params[name + "_w"],
                                           window_strides=(stride, stride),
                                           padding="VALID", dimension_numbers=dn)
        out = jnp.maximum(out + params[name + "_b"][None, :, None, None], 0.0)
    out = out.reshape(out.shape[0], -1)
    out = jnp.maximum(out @ params["fc1_w"].T + params["fc1_b"], 0.0)
    out = out @ params["fc2_w"].T + params["fc2_b"]
    return jnp.arctan(out) * 2.0


if __name__ == "__main__":
    # (b,3,64,64) -> conv1 (b,16,15,15) -> conv2 (b,32,6,6) -> conv3 (b,64,1,1)
    # => fc1_size = 64.  batch=20 pads to 32 -> grid=(2,) at tile_b=16, so the
    # batch-tiled parallel grid path is exercised.
    key = jax.random.PRNGKey(0)
    kx, kp = jax.random.split(key)
    batch = 20
    x = jax.random.normal(kx, (batch, 3, 64, 64), jnp.float32)
    params = init_params(kp, fc1_size=64)

    packed, meta = pack_params(params, image_hw=(64, 64))
    fwd = jax.jit(comma_ai_forward, static_argnames=("meta", "tile_b"))
    out = fwd(packed, x, meta=meta, tile_b=16)
    jax.block_until_ready(out)
    assert out.shape == (batch, 1), out.shape

    ref = comma_ai_reference(params, x)
    # bf16 MXU inputs vs f32 reference -> ~1e-2 absolute agreement expected.
    np.testing.assert_allclose(np.asarray(out), np.asarray(ref), rtol=0.1, atol=0.02)
    print("KERNEL_OK")
</pallas_src>

<mosaic_0001>
module attributes {stable_mosaic.version = 11 : i64} {
  func.func @_comma_ai_kernel(%arg0: i32, %arg1: memref<128x2048xbf16, #tpu.memory_space<vmem>>, %arg2: memref<2048x256xbf16, #tpu.memory_space<vmem>>, %arg3: memref<1x256xf32, #tpu.memory_space<vmem>>, %arg4: memref<1280x256xbf16, #tpu.memory_space<vmem>>, %arg5: memref<1x256xf32, #tpu.memory_space<vmem>>, %arg6: memref<1280x128xbf16, #tpu.memory_space<vmem>>, %arg7: memref<1x128xf32, #tpu.memory_space<vmem>>, %arg8: memref<128x512xbf16, #tpu.memory_space<vmem>>, %arg9: memref<1x512xf32, #tpu.memory_space<vmem>>, %arg10: memref<512x1xbf16, #tpu.memory_space<vmem>>, %arg11: memref<1x1xf32, #tpu.memory_space<smem>>, %arg12: memref<16x1xf32, #tpu.memory_space<vmem>>) attributes {dimension_semantics = [#tpu.dimension_semantics<parallel>], iteration_bounds = array<i64: 2>, scalar_prefetch = 0 : i64, scratch_operands = 0 : i64, tpu.core_type = #tpu.core_type<tc>, window_params = [{transform_indices = @transform_0, window_bounds = array<i64: 128, 2048>}, {pipeline_mode = #tpu.pipeline_mode<synchronous>, transform_indices = @transform_1, window_bounds = array<i64: 2048, 256>}, {pipeline_mode = #tpu.pipeline_mode<synchronous>, transform_indices = @transform_2, window_bounds = array<i64: 1, 256>}, {pipeline_mode = #tpu.pipeline_mode<synchronous>, transform_indices = @transform_3, window_bounds = array<i64: 1280, 256>}, {pipeline_mode = #tpu.pipeline_mode<synchronous>, transform_indices = @transform_4, window_bounds = array<i64: 1, 256>}, {pipeline_mode = #tpu.pipeline_mode<synchronous>, transform_indices = @transform_5, window_bounds = array<i64: 1280, 128>}, {pipeline_mode = #tpu.pipeline_mode<synchronous>, transform_indices = @transform_6, window_bounds = array<i64: 1, 128>}, {pipeline_mode = #tpu.pipeline_mode<synchronous>, transform_indices = @transform_7, window_bounds = array<i64: 128, 512>}, {pipeline_mode = #tpu.pipeline_mode<synchronous>, transform_indices = @transform_8, window_bounds = array<i64: 1, 512>}, {pipeline_mode = #tpu.pipeline_mode<synchronous>, transform_indices = @transform_9, window_bounds = array<i64: 512, 1>}, {transform_indices = @transform_10, window_bounds = array<i64: 1, 1>}, {transform_indices = @transform_11, window_bounds = array<i64: 16, 1>}]} {
    %c0 = arith.constant 0 : index
    %c0_0 = arith.constant 0 : index
    %0 = vector.load %arg1[%c0, %c0_0] : memref<128x2048xbf16, #tpu.memory_space<vmem>>, vector<128x2048xbf16>
    %c0_1 = arith.constant 0 : index
    %c0_2 = arith.constant 0 : index
    %1 = vector.load %arg2[%c0_1, %c0_2] : memref<2048x256xbf16, #tpu.memory_space<vmem>>, vector<2048x256xbf16>
    %cst = arith.constant dense<0.000000e+00> : vector<128x256xf32>
    %2 = tpu.matmul %0, %1, %cst {dimension_numbers = #tpu.dot_dimension_numbers<[1], [0], [0], [1], [0, 0, 1, 1], [], []>} : vector<128x2048xbf16>, vector<2048x256xbf16>, vector<128x256xf32> -> vector<128x256xf32>
    %c0_3 = arith.constant 0 : index
    %c0_4 = arith.constant 0 : index
    %3 = vector.load %arg3[%c0_3, %c0_4] : memref<1x256xf32, #tpu.memory_space<vmem>>, vector<1x256xf32>
    %4 = vector.broadcast %3 : vector<1x256xf32> to vector<128x256xf32>
    %5 = arith.addf %2, %4 : vector<128x256xf32>
    %cst_5 = arith.constant 0.000000e+00 : f32
    %6 = vector.broadcast %cst_5 : f32 to vector<128x256xf32>
    %7 = arith.maximumf %5, %6 : vector<128x256xf32>
    %8 = arith.truncf %7 : vector<128x256xf32> to vector<128x256xbf16>
    %9 = vector.extract_strided_slice %0 {offsets = [0, 1024], sizes = [112, 1024], strides = [1, 1]} : vector<128x2048xbf16> to vector<112x1024xbf16>
    %10 = vector.extract_strided_slice %0 {offsets = [16, 0], sizes = [112, 1024], strides = [1, 1]} : vector<128x2048xbf16> to vector<112x1024xbf16>
    %11 = tpu.concatenate %9, %10 in 1 : vector<112x1024xbf16>, vector<112x1024xbf16> -> vector<112x2048xbf16>
    %c0_6 = arith.constant 0 : index
    %c0_7 = arith.constant 0 : index
    %12 = vector.load %arg2[%c0_6, %c0_7] : memref<2048x256xbf16, #tpu.memory_space<vmem>>, vector<2048x256xbf16>
    %cst_8 = arith.constant dense<0.000000e+00> : vector<112x256xf32>
    %13 = tpu.matmul %11, %12, %cst_8 {dimension_numbers = #tpu.dot_dimension_numbers<[1], [0], [0], [1], [0, 0, 1, 1], [], []>} : vector<112x2048xbf16>, vector<2048x256xbf16>, vector<112x256xf32> -> vector<112x256xf32>
    %c0_9 = arith.constant 0 : index
    %c0_10 = arith.constant 0 : index
    %14 = vector.load %arg3[%c0_9, %c0_10] : memref<1x256xf32, #tpu.memory_space<vmem>>, vector<1x256xf32>
    %15 = vector.broadcast %14 : vector<1x256xf32> to vector<112x256xf32>
    %16 = arith.addf %13, %15 : vector<112x256xf32>
    %cst_11 = arith.constant 0.000000e+00 : f32
    %17 = vector.broadcast %cst_11 : f32 to vector<112x256xf32>
    %18 = arith.maximumf %16, %17 : vector<112x256xf32>
    %19 = arith.truncf %18 : vector<112x256xf32> to vector<112x256xbf16>
    %20 = vector.extract_strided_slice %8 {offsets = [0, 0], sizes = [96, 256], strides = [1, 1]} : vector<128x256xbf16> to vector<96x256xbf16>
    %21 = vector.extract_strided_slice %19 {offsets = [0, 0], sizes = [96, 256], strides = [1, 1]} : vector<112x256xbf16> to vector<96x256xbf16>
    %22 = vector.extract_strided_slice %8 {offsets = [16, 0], sizes = [96, 256], strides = [1, 1]} : vector<128x256xbf16> to vector<96x256xbf16>
    %23 = vector.extract_strided_slice %19 {offsets = [16, 0], sizes = [96, 256], strides = [1, 1]} : vector<112x256xbf16> to vector<96x256xbf16>
    %24 = vector.extract_strided_slice %8 {offsets = [32, 0], sizes = [96, 256], strides = [1, 1]} : vector<128x256xbf16> to vector<96x256xbf16>
    %25 = tpu.concatenate %20, %21, %22, %23, %24 in 1 : vector<96x256xbf16>, vector<96x256xbf16>, vector<96x256xbf16>, vector<96x256xbf16>, vector<96x256xbf16> -> vector<96x1280xbf16>
    %c0_12 = arith.constant 0 : index
    %c0_13 = arith.constant 0 : index
    %26 = vector.load %arg4[%c0_12, %c0_13] : memref<1280x256xbf16, #tpu.memory_space<vmem>>, vector<1280x256xbf16>
    %cst_14 = arith.constant dense<0.000000e+00> : vector<96x256xf32>
    %27 = tpu.matmul %25, %26, %cst_14 {dimension_numbers = #tpu.dot_dimension_numbers<[1], [0], [0], [1], [0, 0, 1, 1], [], []>} : vector<96x1280xbf16>, vector<1280x256xbf16>, vector<96x256xf32> -> vector<96x256xf32>
    %c0_15 = arith.constant 0 : index
    %c0_16 = arith.constant 0 : index
    %28 = vector.load %arg5[%c0_15, %c0_16] : memref<1x256xf32, #tpu.memory_space<vmem>>, vector<1x256xf32>
    %29 = vector.broadcast %28 : vector<1x256xf32> to vector<96x256xf32>
    %30 = arith.addf %27, %29 : vector<96x256xf32>
    %cst_17 = arith.constant 0.000000e+00 : f32
    %31 = vector.broadcast %cst_17 : f32 to vector<96x256xf32>
    %32 = arith.maximumf %30, %31 : vector<96x256xf32>
    %33 = arith.truncf %32 : vector<96x256xf32> to vector<96x256xbf16>
    %34 = vector.extract_strided_slice %33 {offsets = [0, 0], sizes = [16, 256], strides = [1, 1]} : vector<96x256xbf16> to vector<16x256xbf16>
    %35 = vector.extract_strided_slice %33 {offsets = [16, 0], sizes = [16, 256], strides = [1, 1]} : vector<96x256xbf16> to vector<16x256xbf16>
    %36 = vector.extract_strided_slice %33 {offsets = [32, 0], sizes = [16, 256], strides = [1, 1]} : vector<96x256xbf16> to vector<16x256xbf16>
    %37 = vector.extract_strided_slice %33 {offsets = [48, 0], sizes = [16, 256], strides = [1, 1]} : vector<96x256xbf16> to vector<16x256xbf16>
    %38 = vector.extract_strided_slice %33 {offsets = [64, 0], sizes = [16, 256], strides = [1, 1]} : vector<96x256xbf16> to vector<16x256xbf16>
    %39 = tpu.concatenate %34, %35, %36, %37, %38 in 1 : vector<16x256xbf16>, vector<16x256xbf16>, vector<16x256xbf16>, vector<16x256xbf16>, vector<16x256xbf16> -> vector<16x1280xbf16>
    %c0_18 = arith.constant 0 : index
    %c0_19 = arith.constant 0 : index
    %40 = vector.load %arg6[%c0_18, %c0_19] : memref<1280x128xbf16, #tpu.memory_space<vmem>>, vector<1280x128xbf16>
    %cst_20 = arith.constant dense<0.000000e+00> : vector<16x128xf32>
    %41 = tpu.matmul %39, %40, %cst_20 {dimension_numbers = #tpu.dot_dimension_numbers<[1], [0], [0], [1], [0, 0, 1, 1], [], []>} : vector<16x1280xbf16>, vector<1280x128xbf16>, vector<16x128xf32> -> vector<16x128xf32>
    %c0_21 = arith.constant 0 : index
    %c0_22 = arith.constant 0 : index
    %42 = vector.load %arg7[%c0_21, %c0_22] : memref<1x128xf32, #tpu.memory_space<vmem>>, vector<1x128xf32>
    %43 = vector.broadcast %42 : vector<1x128xf32> to vector<16x128xf32>
    %44 = arith.addf %41, %43 : vector<16x128xf32>
    %cst_23 = arith.constant 0.000000e+00 : f32
    %45 = vector.broadcast %cst_23 : f32 to vector<16x128xf32>
    %46 = arith.maximumf %44, %45 : vector<16x128xf32>
    %47 = arith.truncf %46 : vector<16x128xf32> to vector<16x128xbf16>
    %c0_24 = arith.constant 0 : index
    %c0_25 = arith.constant 0 : index
    %48 = vector.load %arg8[%c0_24, %c0_25] : memref<128x512xbf16, #tpu.memory_space<vmem>>, vector<128x512xbf16>
    %cst_26 = arith.constant dense<0.000000e+00> : vector<16x512xf32>
    %49 = tpu.matmul %47, %48, %cst_26 {dimension_numbers = #tpu.dot_dimension_numbers<[1], [0], [0], [1], [0, 0, 1, 1], [], []>} : vector<16x128xbf16>, vector<128x512xbf16>, vector<16x512xf32> -> vector<16x512xf32>
    %c0_27 = arith.constant 0 : index
    %c0_28 = arith.constant 0 : index
    %50 = vector.load %arg9[%c0_27, %c0_28] : memref<1x512xf32, #tpu.memory_space<vmem>>, vector<1x512xf32>
    %51 = vector.broadcast %50 : vector<1x512xf32> to vector<16x512xf32>
    %52 = arith.addf %49, %51 : vector<16x512xf32>
    %cst_29 = arith.constant 0.000000e+00 : f32
    %53 = vector.broadcast %cst_29 : f32 to vector<16x512xf32>
    %54 = arith.maximumf %52, %53 : vector<16x512xf32>
    %55 = arith.truncf %54 : vector<16x512xf32> to vector<16x512xbf16>
    %c0_30 = arith.constant 0 : index
    %c0_31 = arith.constant 0 : index
    %56 = vector.load %arg10[%c0_30, %c0_31] : memref<512x1xbf16, #tpu.memory_space<vmem>>, vector<512x1xbf16>
    %cst_32 = arith.constant dense<0.000000e+00> : vector<16x1xf32>
    %57 = tpu.matmul %55, %56, %cst_32 {dimension_numbers = #tpu.dot_dimension_numbers<[1], [0], [0], [1], [0, 0, 1, 1], [], []>} : vector<16x512xbf16>, vector<512x1xbf16>, vector<16x1xf32> -> vector<16x1xf32>
    %c0_33 = arith.constant 0 : index
    %c0_34 = arith.constant 0 : index
    %58 = memref.load %arg11[%c0_33, %c0_34] : memref<1x1xf32, #tpu.memory_space<smem>>
    %59 = vector.broadcast %58 : f32 to vector<16x1xf32>
    %60 = arith.addf %57, %59 : vector<16x1xf32>
    %cst_35 = arith.constant 0.000000e+00 : f32
    %61 = vector.broadcast %cst_35 : f32 to vector<16x1xf32>
    %62 = arith.cmpf olt, %60, %61 : vector<16x1xf32>
    %cst_36 = arith.constant -1.000000e+00 : f32
    %cst_37 = arith.constant 1.000000e+00 : f32
    %63 = vector.broadcast %cst_36 : f32 to vector<16x1xf32>
    %64 = vector.broadcast %cst_37 : f32 to vector<16x1xf32>
    %65 = arith.select %62, %63, %64 : vector<16x1xi1>, vector<16x1xf32>
    %66 = math.absf %60 : vector<16x1xf32>
    %cst_38 = arith.constant 2.41421366 : f32
    %67 = vector.broadcast %cst_38 : f32 to vector<16x1xf32>
    %68 = arith.cmpf ogt, %66, %67 : vector<16x1xf32>
    %cst_39 = arith.constant 0.414213568 : f32
    %69 = vector.broadcast %cst_39 : f32 to vector<16x1xf32>
    %70 = arith.cmpf ogt, %66, %69 : vector<16x1xf32>
    %cst_40 = arith.constant dense<true> : vector<16x1xi1>
    %71 = arith.xori %68, %cst_40 : vector<16x1xi1>
    %72 = arith.andi %70, %71 : vector<16x1xi1>
    %cst_41 = arith.constant 1.000000e+00 : f32
    %73 = vector.broadcast %cst_41 : f32 to vector<16x1xf32>
    %74 = arith.select %68, %66, %73 : vector<16x1xi1>, vector<16x1xf32>
    %cst_42 = arith.constant -1.000000e+00 : f32
    %75 = vector.broadcast %cst_42 : f32 to vector<16x1xf32>
    %76 = arith.divf %75, %74 : vector<16x1xf32>
    %cst_43 = arith.constant 1.000000e+00 : f32
    %77 = vector.broadcast %cst_43 : f32 to vector<16x1xf32>
    %78 = arith.subf %66, %77 : vector<16x1xf32>
    %cst_44 = arith.constant 1.000000e+00 : f32
    %79 = vector.broadcast %cst_44 : f32 to vector<16x1xf32>
    %80 = arith.addf %66, %79 : vector<16x1xf32>
    %81 = arith.divf %78, %80 : vector<16x1xf32>
    %82 = arith.select %72, %81, %66 : vector<16x1xi1>, vector<16x1xf32>
    %83 = arith.select %68, %76, %82 : vector<16x1xi1>, vector<16x1xf32>
    %cst_45 = arith.constant 0.785398185 : f32
    %cst_46 = arith.constant 0.000000e+00 : f32
    %84 = vector.broadcast %cst_45 : f32 to vector<16x1xf32>
    %85 = vector.broadcast %cst_46 : f32 to vector<16x1xf32>
    %86 = arith.select %72, %84, %85 : vector<16x1xi1>, vector<16x1xf32>
    %cst_47 = arith.constant 1.57079637 : f32
    %87 = vector.broadcast %cst_47 : f32 to vector<16x1xf32>
    %88 = arith.select %68, %87, %86 : vector<16x1xi1>, vector<16x1xf32>
    %89 = arith.mulf %83, %83 : vector<16x1xf32>
    %cst_48 = arith.constant 0.0805374458 : f32
    %90 = vector.broadcast %cst_48 : f32 to vector<16x1xf32>
    %91 = arith.mulf %90, %89 : vector<16x1xf32>
    %cst_49 = arith.constant 0.138776854 : f32
    %92 = vector.broadcast %cst_49 : f32 to vector<16x1xf32>
    %93 = arith.subf %91, %92 : vector<16x1xf32>
    %94 = arith.mulf %93, %89 : vector<16x1xf32>
    %cst_50 = arith.constant 0.199777111 : f32
    %95 = vector.broadcast %cst_50 : f32 to vector<16x1xf32>
    %96 = arith.addf %94, %95 : vector<16x1xf32>
    %97 = arith.mulf %96, %89 : vector<16x1xf32>
    %cst_51 = arith.constant 0.333329499 : f32
    %98 = vector.broadcast %cst_51 : f32 to vector<16x1xf32>
    %99 = arith.subf %97, %98 : vector<16x1xf32>
    %100 = arith.mulf %99, %89 : vector<16x1xf32>
    %101 = arith.mulf %100, %83 : vector<16x1xf32>
    %102 = arith.addf %101, %83 : vector<16x1xf32>
    %cst_52 = arith.constant 2.000000e+00 : f32
    %103 = vector.broadcast %cst_52 : f32 to vector<16x1xf32>
    %104 = arith.mulf %103, %65 : vector<16x1xf32>
    %105 = arith.addf %88, %102 : vector<16x1xf32>
    %106 = arith.mulf %104, %105 : vector<16x1xf32>
    %c0_53 = arith.constant 0 : index
    %c0_54 = arith.constant 0 : index
    %107 = vector.load %arg12[%c0_53, %c0_54] : memref<16x1xf32, #tpu.memory_space<vmem>>, vector<16x1xf32>
    tpu.vector_store %arg12[%c0_53, %c0_54], %106 {strides = array<i32>} : memref<16x1xf32, #tpu.memory_space<vmem>>, vector<16x1xf32>,
    return
  }
  func.func @transform_0(%arg0: i32) -> (i32, i32) {
    %c0_i32 = arith.constant 0 : i32
    %c0_i32_0 = arith.constant 0 : i32
    return %arg0, %c0_i32 : i32, i32
  }
  func.func @transform_1(%arg0: i32) -> (i32, i32) {
    %c0_i32 = arith.constant 0 : i32
    %c0_i32_0 = arith.constant 0 : i32
    %c0_i32_1 = arith.constant 0 : i32
    return %c0_i32, %c0_i32_0 : i32, i32
  }
  func.func @transform_2(%arg0: i32) -> (i32, i32) {
    %c0_i32 = arith.constant 0 : i32
    %c0_i32_0 = arith.constant 0 : i32
    %c0_i32_1 = arith.constant 0 : i32
    return %c0_i32, %c0_i32_0 : i32, i32
  }
  func.func @transform_3(%arg0: i32) -> (i32, i32) {
    %c0_i32 = arith.constant 0 : i32
    %c0_i32_0 = arith.constant 0 : i32
    %c0_i32_1 = arith.constant 0 : i32
    return %c0_i32, %c0_i32_0 : i32, i32
  }
  func.func @transform_4(%arg0: i32) -> (i32, i32) {
    %c0_i32 = arith.constant 0 : i32
    %c0_i32_0 = arith.constant 0 : i32
    %c0_i32_1 = arith.constant 0 : i32
    return %c0_i32, %c0_i32_0 : i32, i32
  }
  func.func @transform_5(%arg0: i32) -> (i32, i32) {
    %c0_i32 = arith.constant 0 : i32
    %c0_i32_0 = arith.constant 0 : i32
    %c0_i32_1 = arith.constant 0 : i32
    return %c0_i32, %c0_i32_0 : i32, i32
  }
  func.func @transform_6(%arg0: i32) -> (i32, i32) {
    %c0_i32 = arith.constant 0 : i32
    %c0_i32_0 = arith.constant 0 : i32
    %c0_i32_1 = arith.constant 0 : i32
    return %c0_i32, %c0_i32_0 : i32, i32
  }
  func.func @transform_7(%arg0: i32) -> (i32, i32) {
    %c0_i32 = arith.constant 0 : i32
    %c0_i32_0 = arith.constant 0 : i32
    %c0_i32_1 = arith.constant 0 : i32
    return %c0_i32, %c0_i32_0 : i32, i32
  }
  func.func @transform_8(%arg0: i32) -> (i32, i32) {
    %c0_i32 = arith.constant 0 : i32
    %c0_i32_0 = arith.constant 0 : i32
    %c0_i32_1 = arith.constant 0 : i32
    return %c0_i32, %c0_i32_0 : i32, i32
  }
  func.func @transform_9(%arg0: i32) -> (i32, i32) {
    %c0_i32 = arith.constant 0 : i32
    %c0_i32_0 = arith.constant 0 : i32
    %c0_i32_1 = arith.constant 0 : i32
    return %c0_i32, %c0_i32_0 : i32, i32
  }
  func.func @transform_10(%arg0: i32) -> (i32, i32) {
    %c0_i32 = arith.constant 0 : i32
    %c0_i32_0 = arith.constant 0 : i32
    %c0_i32_1 = arith.constant 0 : i32
    return %c0_i32, %c0_i32_0 : i32, i32
  }
  func.func @transform_11(%arg0: i32) -> (i32, i32) {
    %c0_i32 = arith.constant 0 : i32
    %c0_i32_0 = arith.constant 0 : i32
    return %arg0, %c0_i32 : i32, i32
  }
}

</mosaic_0001>

<llo_original>
// kernel: comma_ai_forward.1
$region0: #{comma_ai_forward.1}
  #allocation0 [shape = 'u32[]', space=smem, size = 0x4, offset = 0x4, fixed_abs, tag = 'smem constant byte address 0x4 - core index']
  #allocation1 [shape = 'u32[144,128]{1,0:T(1,128)}', space=vmem, size = 0x12000, scoped, tag = 'internal scratch']
  #allocation2 [shape = 'f32[1,1]{1,0:T(1,128)S(6)}', space=smem, size = 0x200, scoped, tag = 'scoped memory for comma_ai_forward.1']
  %s0 = inlined_call_operand.vmem [shape: bf16[256,2048], index: 0, kind: input, shape index: {}]
  %s1 = inlined_call_operand.vmem [shape: bf16[2048,256], index: 1, kind: input, shape index: {}]
  %s2 = inlined_call_operand.vmem [shape: f32[1,256], index: 2, kind: input, shape index: {}]
  %s3 = inlined_call_operand.vmem [shape: bf16[1280,256], index: 3, kind: input, shape index: {}]
  %s4 = inlined_call_operand.vmem [shape: f32[1,256], index: 4, kind: input, shape index: {}]
  %s5 = inlined_call_operand.vmem [shape: bf16[1280,128], index: 5, kind: input, shape index: {}]
  %s6 = inlined_call_operand.vmem [shape: f32[1,128], index: 6, kind: input, shape index: {}]
  %s7 = inlined_call_operand.vmem [shape: bf16[128,512], index: 7, kind: input, shape index: {}]
  %s8 = inlined_call_operand.vmem [shape: f32[1,512], index: 8, kind: input, shape index: {}]
  %s9 = inlined_call_operand.vmem [shape: bf16[512,1], index: 9, kind: input, shape index: {}]
  %s10 = inlined_call_operand.<no memory space> [shape: f32[1,1], index: 10, kind: input, shape index: {}]
  %s11 = inlined_call_operand.vmem [shape: f32[32,1], index: 11, kind: output, shape index: {}]
  %s12 = sld [smem:[#allocation0]]
  $region77: #{comma_ai_forward.1} parent=0
    _
  %s14 = ssub.s32 1, %s12
  %s15 = scalar_select 0, %s14, %s12
  %16 = sst [smem:[#allocation2]] %s10
  loop: start=0, step=1, limit=4
  $region2: #{comma_ai_forward.1} parent=0 // loop_pre_header
    _
  $region3: #{comma_ai_forward.1} parent=0 // loop_header
    %s18 = sphi 0, %s22
    %p19 = scmp.ge.s32.totalorder %s18, 4
    %s28 = sphi 0, %s30
    %s31 = sphi 0, %s28
    %s32 = sphi 0, %s31
    %s48 = sphi 0, %s32
    %s52 = sphi 0, %s52
    %s54 = sphi 0, %s52
    %s55 = sphi 0, %s54
    %s69 = sphi 0, %s55
    %s73 = sphi 0, %s73
    %s75 = sphi 0, %s73
    %s76 = sphi 0, %s75
    %s90 = sphi 0, %s76
    %s94 = sphi 0, %s94
    %s96 = sphi 0, %s94
    %s97 = sphi 0, %s96
    %s111 = sphi 0, %s97
    %s115 = sphi 0, %s115
    %s117 = sphi 0, %s115
    %s118 = sphi 0, %s117
    %s132 = sphi 0, %s118
    %s136 = sphi 0, %s136
    %s138 = sphi 0, %s136
    %s139 = sphi 0, %s138
    %s153 = sphi 0, %s139
    %s157 = sphi 0, %s157
    %s159 = sphi 0, %s157
    %s160 = sphi 0, %s159
    %s174 = sphi 0, %s160
    %s178 = sphi 0, %s178
    %s180 = sphi 0, %s178
    %s181 = sphi 0, %s180
    %s195 = sphi 0, %s181
    %s199 = sphi 0, %s199
    %s201 = sphi 0, %s199
    %s202 = sphi 0, %s201
    %s216 = sphi 0, %s202
    %s220 = sphi 0, %s220
    %s222 = sphi 0, %s220
    %s223 = sphi 0, %s222
    %s237 = sphi 0, %s223
    %s241 = sphi 0, %s241
    %s243 = sphi 0, %s241
    %s244 = sphi 0, %s243
    %s258 = sphi 0, %s244
    %s264 = sphi 0, %s266
    %s267 = sphi 0, %s264
    %s268 = sphi 0, %s267
    %s284 = sphi 0, %s268
  $region4: #{comma_ai_forward.1} parent=0 // loop_header_branch
    %21 = sbr.rel (%p19) target = $region8
  $region5: #{comma_ai_forward.1} parent=0 // loop_body
    %s23 = ssub.s32 %s18, 1
    %s24 = ssub.s32 %s18, 2
    %s25 = sadd.s32 %s18, 1
    %s26 = ssub.s32 %s18, %s25
    %p27 = scmp.eq.s32.totalorder %s26, 0
    %s29 = sadd.s32 %s28, 1
    %s30 = scalar_select %p27, %s28, %s29
    %p33 = pneg %p27
    %p34 = scmp.eq.s32.totalorder %s18, 1
    %p35 = por %p33, %p34
    %p36 = scmp.ne.s32.totalorder %s28, %s31
    %p37 = scmp.eq.s32.totalorder %s18, 0
    %p38 = por %p36, %p37
    %p39 = scmp.ne.s32.totalorder %s28, %s31
    %p40 = scmp.eq.s32.totalorder %s23, 1
    %p41 = por %p39, %p40
    %p42 = scmp.ne.s32.totalorder %s31, %s32
    %p43 = scmp.eq.s32.totalorder %s23, 0
    %p44 = por %p42, %p43
    %p45 = scmp.ne.s32.totalorder %s31, %s32
    %p46 = scmp.eq.s32.totalorder %s24, 1
    %p47 = por %p45, %p46
    %p49 = scmp.ne.s32.totalorder %s32, %s48
    %p50 = scmp.eq.s32.totalorder %s24, 0
    %p51 = por %p49, %p50
    %s53 = sadd.s32 %s52, 1
    %p56 = scmp.eq.s32.totalorder %s18, 1
    %p57 = scmp.ne.s32.totalorder %s52, %s54
    %p58 = scmp.eq.s32.totalorder %s18, 0
    %p59 = por %p57, %p58
    %p60 = scmp.ne.s32.totalorder %s52, %s54
    %p61 = scmp.eq.s32.totalorder %s23, 1
    %p62 = por %p60, %p61
    %p63 = scmp.ne.s32.totalorder %s54, %s55
    %p64 = scmp.eq.s32.totalorder %s23, 0
    %p65 = por %p63, %p64
    %p66 = scmp.ne.s32.totalorder %s54, %s55
    %p67 = scmp.eq.s32.totalorder %s24, 1
    %p68 = por %p66, %p67
    %p70 = scmp.ne.s32.totalorder %s55, %s69
    %p71 = scmp.eq.s32.totalorder %s24, 0
    %p72 = por %p70, %p71
    %s74 = sadd.s32 %s73, 1
    %p77 = scmp.eq.s32.totalorder %s18, 1
    %p78 = scmp.ne.s32.totalorder %s73, %s75
    %p79 = scmp.eq.s32.totalorder %s18, 0
    %p80 = por %p78, %p79
    %p81 = scmp.ne.s32.totalorder %s73, %s75
    %p82 = scmp.eq.s32.totalorder %s23, 1
    %p83 = por %p81, %p82
    %p84 = scmp.ne.s32.totalorder %s75, %s76
    %p85 = scmp.eq.s32.totalorder %s23, 0
    %p86 = por %p84, %p85
    %p87 = scmp.ne.s32.totalorder %s75, %s76
    %p88 = scmp.eq.s32.totalorder %s24, 1
    %p89 = por %p87, %p88
    %p91 = scmp.ne.s32.totalorder %s76, %s90
    %p92 = scmp.eq.s32.totalorder %s24, 0
    %p93 = por %p91, %p92
    %s95 = sadd.s32 %s94, 1
    %p98 = scmp.eq.s32.totalorder %s18, 1
    %p99 = scmp.ne.s32.totalorder %s94, %s96
    %p100 = scmp.eq.s32.totalorder %s18, 0
    %p101 = por %p99, %p100
    %p102 = scmp.ne.s32.totalorder %s94, %s96
    %p103 = scmp.eq.s32.totalorder %s23, 1
    %p104 = por %p102, %p103
    %p105 = scmp.ne.s32.totalorder %s96, %s97
    %p106 = scmp.eq.s32.totalorder %s23, 0
    %p107 = por %p105, %p106
    %p108 = scmp.ne.s32.totalorder %s96, %s97
    %p109 = scmp.eq.s32.totalorder %s24, 1
    %p110 = por %p108, %p109
    %p112 = scmp.ne.s32.totalorder %s97, %s111
    %p113 = scmp.eq.s32.totalorder %s24, 0
    %p114 = por %p112, %p113
    %s116 = sadd.s32 %s115, 1
    %p119 = scmp.eq.s32.totalorder %s18, 1
    %p120 = scmp.ne.s32.totalorder %s115, %s117
    %p121 = scmp.eq.s32.totalorder %s18, 0
    %p122 = por %p120, %p121
    %p123 = scmp.ne.s32.totalorder %s115, %s117
    %p124 = scmp.eq.s32.totalorder %s23, 1
    %p125 = por %p123, %p124
    %p126 = scmp.ne.s32.totalorder %s117, %s118
    %p127 = scmp.eq.s32.totalorder %s23, 0
    %p128 = por %p126, %p127
    %p129 = scmp.ne.s32.totalorder %s117, %s118
    %p130 = scmp.eq.s32.totalorder %s24, 1
    %p131 = por %p129, %p130
    %p133 = scmp.ne.s32.totalorder %s118, %s132
    %p134 = scmp.eq.s32.totalorder %s24, 0
    %p135 = por %p133, %p134
    %s137 = sadd.s32 %s136, 1
    %p140 = scmp.eq.s32.totalorder %s18, 1
    %p141 = scmp.ne.s32.totalorder %s136, %s138
    %p142 = scmp.eq.s32.totalorder %s18, 0
    %p143 = por %p141, %p142
    %p144 = scmp.ne.s32.totalorder %s136, %s138
    %p145 = scmp.eq.s32.totalorder %s23, 1
    %p146 = por %p144, %p145
    %p147 = scmp.ne.s32.totalorder %s138, %s139
    %p148 = scmp.eq.s32.totalorder %s23, 0
    %p149 = por %p147, %p148
    %p150 = scmp.ne.s32.totalorder %s138, %s139
    %p151 = scmp.eq.s32.totalorder %s24, 1
    %p152 = por %p150, %p151
    %p154 = scmp.ne.s32.totalorder %s139, %s153
    %p155 = scmp.eq.s32.totalorder %s24, 0
    %p156 = por %p154, %p155
    %s158 = sadd.s32 %s157, 1
    %p161 = scmp.eq.s32.totalorder %s18, 1
    %p162 = scmp.ne.s32.totalorder %s157, %s159
    %p163 = scmp.eq.s32.totalorder %s18, 0
    %p164 = por %p162, %p163
    %p165 = scmp.ne.s32.totalorder %s157, %s159
    %p166 = scmp.eq.s32.totalorder %s23, 1
    %p167 = por %p165, %p166
    %p168 = scmp.ne.s32.totalorder %s159, %s160
    %p169 = scmp.eq.s32.totalorder %s23, 0
    %p170 = por %p168, %p169
    %p171 = scmp.ne.s32.totalorder %s159, %s160
    %p172 = scmp.eq.s32.totalorder %s24, 1
    %p173 = por %p171, %p172
    %p175 = scmp.ne.s32.totalorder %s160, %s174
    %p176 = scmp.eq.s32.totalorder %s24, 0
    %p177 = por %p175, %p176
    %s179 = sadd.s32 %s178, 1
    %p182 = scmp.eq.s32.totalorder %s18, 1
    %p183 = scmp.ne.s32.totalorder %s178, %s180
    %p184 = scmp.eq.s32.totalorder %s18, 0
    %p185 = por %p183, %p184
    %p186 = scmp.ne.s32.totalorder %s178, %s180
    %p187 = scmp.eq.s32.totalorder %s23, 1
    %p188 = por %p186, %p187
    %p189 = scmp.ne.s32.totalorder %s180, %s181
    %p190 = scmp.eq.s32.totalorder %s23, 0
    %p191 = por %p189, %p190
    %p192 = scmp.ne.s32.totalorder %s180, %s181
    %p193 = scmp.eq.s32.totalorder %s24, 1
    %p194 = por %p192, %p193
    %p196 = scmp.ne.s32.totalorder %s181, %s195
    %p197 = scmp.eq.s32.totalorder %s24, 0
    %p198 = por %p196, %p197
    %s200 = sadd.s32 %s199, 1
    %p203 = scmp.eq.s32.totalorder %s18, 1
    %p204 = scmp.ne.s32.totalorder %s199, %s201
    %p205 = scmp.eq.s32.totalorder %s18, 0
    %p206 = por %p204, %p205
    %p207 = scmp.ne.s32.totalorder %s199, %s201
    %p208 = scmp.eq.s32.totalorder %s23, 1
    %p209 = por %p207, %p208
    %p210 = scmp.ne.s32.totalorder %s201, %s202
    %p211 = scmp.eq.s32.totalorder %s23, 0
    %p212 = por %p210, %p211
    %p213 = scmp.ne.s32.totalorder %s201, %s202
    %p214 = scmp.eq.s32.totalorder %s24, 1
    %p215 = por %p213, %p214
    %p217 = scmp.ne.s32.totalorder %s202, %s216
    %p218 = scmp.eq.s32.totalorder %s24, 0
    %p219 = por %p217, %p218
    %s221 = sadd.s32 %s220, 1
    %p224 = scmp.eq.s32.totalorder %s18, 1
    %p225 = scmp.ne.s32.totalorder %s220, %s222
    %p226 = scmp.eq.s32.totalorder %s18, 0
    %p227 = por %p225, %p226
    %p228 = scmp.ne.s32.totalorder %s220, %s222
    %p229 = scmp.eq.s32.totalorder %s23, 1
    %p230 = por %p228, %p229
    %p231 = scmp.ne.s32.totalorder %s222, %s223
    %p232 = scmp.eq.s32.totalorder %s23, 0
    %p233 = por %p231, %p232
    %p234 = scmp.ne.s32.totalorder %s222, %s223
    %p235 = scmp.eq.s32.totalorder %s24, 1
    %p236 = por %p234, %p235
    %p238 = scmp.ne.s32.totalorder %s223, %s237
    %p239 = scmp.eq.s32.totalorder %s24, 0
    %p240 = por %p238, %p239
    %s242 = sadd.s32 %s241, 1
    %p245 = scmp.eq.s32.totalorder %s18, 1
    %p246 = scmp.ne.s32.totalorder %s241, %s243
    %p247 = scmp.eq.s32.totalorder %s18, 0
    %p248 = por %p246, %p247
    %p249 = scmp.ne.s32.totalorder %s241, %s243
    %p250 = scmp.eq.s32.totalorder %s23, 1
    %p251 = por %p249, %p250
    %p252 = scmp.ne.s32.totalorder %s243, %s244
    %p253 = scmp.eq.s32.totalorder %s23, 0
    %p254 = por %p252, %p253
    %p255 = scmp.ne.s32.totalorder %s243, %s244
    %p256 = scmp.eq.s32.totalorder %s24, 1
    %p257 = por %p255, %p256
    %p259 = scmp.ne.s32.totalorder %s244, %s258
    %p260 = scmp.eq.s32.totalorder %s24, 0
    %p261 = por %p259, %p260
    %s262 = ssub.s32 %s18, %s25
    %p263 = scmp.eq.s32.totalorder %s262, 0
    %s265 = sadd.s32 %s264, 1
    %s266 = scalar_select %p263, %s264, %s265
    %p269 = pneg %p263
    %p270 = scmp.eq.s32.totalorder %s18, 1
    %p271 = por %p269, %p270
    %p272 = scmp.ne.s32.totalorder %s264, %s267
    %p273 = scmp.eq.s32.totalorder %s18, 0
    %p274 = por %p272, %p273
    %p275 = scmp.ne.s32.totalorder %s264, %s267
    %p276 = scmp.eq.s32.totalorder %s23, 1
    %p277 = por %p275, %p276
    %p278 = scmp.ne.s32.totalorder %s267, %s268
    %p279 = scmp.eq.s32.totalorder %s23, 0
    %p280 = por %p278, %p279
    %p281 = scmp.ne.s32.totalorder %s267, %s268
    %p282 = scmp.eq.s32.totalorder %s24, 1
    %p283 = por %p281, %p282
    %p285 = scmp.ne.s32.totalorder %s268, %s284
    %p286 = scmp.eq.s32.totalorder %s24, 0
    %p287 = por %p285, %p286
    %p288 = scmp.le.s32.totalorder 1, %s18
    %p289 = scmp.lt.s32.totalorder %s18, 3
    %p290 = pnand %p288, %p289
    %p291 = pneg %p290
    // Predicated region
    $region9: #{comma_ai_forward.1} parent=5 // pred_check
      _
    $region10: #{comma_ai_forward.1} parent=5 // pred_check_branch
      %293 = sbr.rel (%p290) target = $region12
    $region11: #{comma_ai_forward.1} parent=5 // pred_region
      %s294 = ssub.s32 %s18, 1
      // Predicated region
      $region13: #{comma_ai_forward.1} parent=11 // pred_check
        %p295 = pneg %p65
      $region14: #{comma_ai_forward.1} parent=11 // pred_check_branch
        %297 = sbr.rel (%p295) target = $region16
      $region15: #{comma_ai_forward.1} parent=11 // pred_region
        _
      $region16: #{comma_ai_forward.1} parent=11 // pred_fallthru
        _
      // Predicated region
      $region17: #{comma_ai_forward.1} parent=11 // pred_check
        %p298 = pneg %p86
      $region18: #{comma_ai_forward.1} parent=11 // pred_check_branch
        %300 = sbr.rel (%p298) target = $region20
      $region19: #{comma_ai_forward.1} parent=11 // pred_region
        _
      $region20: #{comma_ai_forward.1} parent=11 // pred_fallthru
        _
      // Predicated region
      $region21: #{comma_ai_forward.1} parent=11 // pred_check
        %p301 = pneg %p107
      $region22: #{comma_ai_forward.1} parent=11 // pred_check_branch
        %303 = sbr.rel (%p301) target = $region24
      $region23: #{comma_ai_forward.1} parent=11 // pred_region
        _
      $region24: #{comma_ai_forward.1} parent=11 // pred_fallthru
        _
      // Predicated region
      $region25: #{comma_ai_forward.1} parent=11 // pred_check
        %p304 = pneg %p128
      $region26: #{comma_ai_forward.1} parent=11 // pred_check_branch
        %306 = sbr.rel (%p304) target = $region28
      $region27: #{comma_ai_forward.1} parent=11 // pred_region
        _
      $region28: #{comma_ai_forward.1} parent=11 // pred_fallthru
        _
      // Predicated region
      $region29: #{comma_ai_forward.1} parent=11 // pred_check
        %p307 = pneg %p149
      $region30: #{comma_ai_forward.1} parent=11 // pred_check_branch
        %309 = sbr.rel (%p307) target = $region32
      $region31: #{comma_ai_forward.1} parent=11 // pred_region
        _
      $region32: #{comma_ai_forward.1} parent=11 // pred_fallthru
        _
      // Predicated region
      $region33: #{comma_ai_forward.1} parent=11 // pred_check
        %p310 = pneg %p170
      $region34: #{comma_ai_forward.1} parent=11 // pred_check_branch
        %312 = sbr.rel (%p310) target = $region36
      $region35: #{comma_ai_forward.1} parent=11 // pred_region
        _
      $region36: #{comma_ai_forward.1} parent=11 // pred_fallthru
        _
      // Predicated region
      $region37: #{comma_ai_forward.1} parent=11 // pred_check
        %p313 = pneg %p191
      $region38: #{comma_ai_forward.1} parent=11 // pred_check_branch
        %315 = sbr.rel (%p313) target = $region40
      $region39: #{comma_ai_forward.1} parent=11 // pred_region
        _
      $region40: #{comma_ai_forward.1} parent=11 // pred_fallthru
        _
      // Predicated region
      $region41: #{comma_ai_forward.1} parent=11 // pred_check
        %p316 = pneg %p212
      $region42: #{comma_ai_forward.1} parent=11 // pred_check_branch
        %318 = sbr.rel (%p316) target = $region44
      $region43: #{comma_ai_forward.1} parent=11 // pred_region
        _
      $region44: #{comma_ai_forward.1} parent=11 // pred_fallthru
        _
      // Predicated region
      $region45: #{comma_ai_forward.1} parent=11 // pred_check
        %p319 = pneg %p233
      $region46: #{comma_ai_forward.1} parent=11 // pred_check_branch
        %321 = sbr.rel (%p319) target = $region48
      $region47: #{comma_ai_forward.1} parent=11 // pred_region
        _
      $region48: #{comma_ai_forward.1} parent=11 // pred_fallthru
        _
      // Predicated region
      $region49: #{comma_ai_forward.1} parent=11 // pred_check
        %p322 = pneg %p254
      $region50: #{comma_ai_forward.1} parent=11 // pred_check_branch
        %324 = sbr.rel (%p322) target = $region52
      $region51: #{comma_ai_forward.1} parent=11 // pred_region
        _
      $region52: #{comma_ai_forward.1} parent=11 // pred_fallthru
        _
    $region12: #{comma_ai_forward.1} parent=5 // pred_fallthru
      _
    %p325 = scmp.lt.s32.totalorder %s18, 2
    // Predicated region
    $region53: #{comma_ai_forward.1} parent=5 // pred_check
      %p326 = pneg %p325
    $region54: #{comma_ai_forward.1} parent=5 // pred_check_branch
      %328 = sbr.rel (%p326) target = $region56
    $region55: #{comma_ai_forward.1} parent=5 // pred_region
      // Predicated region
      $region57: #{comma_ai_forward.1} parent=55 // pred_check
        %p329 = pneg %p38
      $region58: #{comma_ai_forward.1} parent=55 // pred_check_branch
        %331 = sbr.rel (%p329) target = $region60
      $region59: #{comma_ai_forward.1} parent=55 // pred_region
        %s332 = smul.u32 16, %s18
        %p333 = scmp.lt.s32.totalorder %s332, 31
        %s334 = scalar_select %p333, %s332, 31
        %s335 = smul.addr %s334, 16
        %s336 = smul.addr %s335, 4
        %s337 = scalar_lea.vmem %s0, %s336
        %s338 = smul.u32 16, %s18
      $region60: #{comma_ai_forward.1} parent=55 // pred_fallthru
        _
    $region56: #{comma_ai_forward.1} parent=5 // pred_fallthru
      _
    %p339 = scmp.le.s32.totalorder 1, %s18
    %p340 = scmp.lt.s32.totalorder %s18, 3
    %p341 = pnand %p339, %p340
    %p342 = pneg %p341
    // Predicated region
    $region61: #{comma_ai_forward.1} parent=5 // pred_check
      _
    $region62: #{comma_ai_forward.1} parent=5 // pred_check_branch
      %344 = sbr.rel (%p341) target = $region64
    $region63: #{comma_ai_forward.1} parent=5 // pred_region
      %s345 = ssub.s32 %s18, 1
      %s346 = smul.u32 16, %s23
      %p347 = scmp.lt.s32.totalorder %s346, 31
      %s348 = scalar_select %p347, %s346, 31
      %s349 = smul.addr %s348, 16
      %s350 = smul.addr %s349, 4
      %s351 = scalar_lea.vmem %s0, %s350
      %p352 = pneg %p44
      %p353 = pneg %p41
      %p354 = pneg %p65
      %p355 = pneg %p62
      %p356 = pneg %p86
      %p357 = pneg %p83
      %p358 = pneg %p107
      %p359 = pneg %p104
      %p360 = pneg %p128
      %p361 = pneg %p125
      %p362 = pneg %p149
      %p363 = pneg %p146
      %p364 = pneg %p170
      %p365 = pneg %p167
      %p366 = pneg %p191
      %p367 = pneg %p188
      %p368 = pneg %p212
      %p369 = pneg %p209
      %p370 = pneg %p233
      %p371 = pneg %p230
      %p372 = pneg %p254
      %p373 = pneg %p251
      %p374 = pneg %p280
      %p375 = pneg %p277
      %s376 = smul.u32 2, %s23
      %p377 = scmp.lt.s32.totalorder %s376, 3
      %s378 = scalar_select %p377, %s376, 3
      %s379 = smul.addr %s378, 8
      %s380 = scalar_lea.vmem %s11, %s379
      %s381 = smul.u32 16, %s23
      %p382 = scmp.lt.s32.totalorder %s381, 31
      %s383 = scalar_select %p382, %s381, 31
      %s384 = smul.addr %s383, 16
      %s385 = smul.addr %s384, 4
      %s386 = scalar_lea.vmem %s0, %s385
      %s387 = smul.u32 16, %s23
      %s388 = smul.u32 2, %s23
      %p389 = scmp.lt.s32.totalorder %s388, 3
      %s390 = scalar_select %p389, %s388, 3
      %s391 = smul.addr %s390, 8
      %s392 = scalar_lea.vmem %s11, %s391
      %s393 = smul.u32 2, %s23
      %v395 = vld [vmem:[%s386] sm:$0xff]
      %v396 = vld [vmem:[%s386 + $0x8] sm:$0xff]
      %v397 = vld [vmem:[%s386 + $0x10] sm:$0xff]
      %v398 = vld [vmem:[%s386 + $0x18] sm:$0xff]
      %v399 = vld [vmem:[%s386 + $0x20] sm:$0xff]
      %v400 = vld [vmem:[%s386 + $0x28] sm:$0xff]
      %v401 = vld [vmem:[%s386 + $0x30] sm:$0xff]
      %v402 = vld [vmem:[%s386 + $0x38] sm:$0xff]
      %v403 = vld [vmem:[%s386 + $0x40] sm:$0xff]
      %v404 = vld [vmem:[%s386 + $0x48] sm:$0xff]
      %v405 = vld [vmem:[%s386 + $0x50] sm:$0xff]
      %v406 = vld [vmem:[%s386 + $0x58] sm:$0xff]
      %v407 = vld [vmem:[%s386 + $0x60] sm:$0xff]
      %v408 = vld [vmem:[%s386 + $0x68] sm:$0xff]
      %v409 = vld [vmem:[%s386 + $0x70] sm:$0xff]
      %v410 = vld [vmem:[%s386 + $0x78] sm:$0xff]
      %v411 = vld [vmem:[%s386 + $0x80] sm:$0xff]
      %v412 = vld [vmem:[%s386 + $0x88] sm:$0xff]
      %v413 = vld [vmem:[%s386 + $0x90] sm:$0xff]
      %v414 = vld [vmem:[%s386 + $0x98] sm:$0xff]
      %v415 = vld [vmem:[%s386 + $0xa0] sm:$0xff]
      %v416 = vld [vmem:[%s386 + $0xa8] sm:$0xff]
      %v417 = vld [vmem:[%s386 + $0xb0] sm:$0xff]
      %v418 = vld [vmem:[%s386 + $0xb8] sm:$0xff]
      %v419 = vld [vmem:[%s386 + $0xc0] sm:$0xff]
      %v420 = vld [vmem:[%s386 + $0xc8] sm:$0xff]
      %v421 = vld [vmem:[%s386 + $0xd0] sm:$0xff]
      %v422 = vld [vmem:[%s386 + $0xd8] sm:$0xff]
      %v423 = vld [vmem:[%s386 + $0xe0] sm:$0xff]
      %v424 = vld [vmem:[%s386 + $0xe8] sm:$0xff]
      %v425 = vld [vmem:[%s386 + $0xf0] sm:$0xff]
      %v426 = vld [vmem:[%s386 + $0xf8] sm:$0xff]
      %v427 = vld [vmem:[%s386 + $0x100] sm:$0xff]
      %v428 = vld [vmem:[%s386 + $0x108] sm:$0xff]
      %v429 = vld [vmem:[%s386 + $0x110] sm:$0xff]
      %v430 = vld [vmem:[%s386 + $0x118] sm:$0xff]
      %v431 = vld [vmem:[%s386 + $0x120] sm:$0xff]
      %v432 = vld [vmem:[%s386 + $0x128] sm:$0xff]
      %v433 = vld [vmem:[%s386 + $0x130] sm:$0xff]
      %v434 = vld [vmem:[%s386 + $0x138] sm:$0xff]
      %v435 = vld [vmem:[%s386 + $0x140] sm:$0xff]
      %v436 = vld [vmem:[%s386 + $0x148] sm:$0xff]
      %v437 = vld [vmem:[%s386 + $0x150] sm:$0xff]
      %v438 = vld [vmem:[%s386 + $0x158] sm:$0xff]
      %v439 = vld [vmem:[%s386 + $0x160] sm:$0xff]
      %v440 = vld [vmem:[%s386 + $0x168] sm:$0xff]
      %v441 = vld [vmem:[%s386 + $0x170] sm:$0xff]
      %v442 = vld [vmem:[%s386 + $0x178] sm:$0xff]
      %v443 = vld [vmem:[%s386 + $0x180] sm:$0xff]
      %v444 = vld [vmem:[%s386 + $0x188] sm:$0xff]
      %v445 = vld [vmem:[%s386 + $0x190] sm:$0xff]
      %v446 = vld [vmem:[%s386 + $0x198] sm:$0xff]
      %v447 = vld [vmem:[%s386 + $0x1a0] sm:$0xff]
      %v448 = vld [vmem:[%s386 + $0x1a8] sm:$0xff]
      %v449 = vld [vmem:[%s386 + $0x1b0] sm:$0xff]
      %v450 = vld [vmem:[%s386 + $0x1b8] sm:$0xff]
      %v451 = vld [vmem:[%s386 + $0x1c0] sm:$0xff]
      %v452 = vld [vmem:[%s386 + $0x1c8] sm:$0xff]
      %v453 = vld [vmem:[%s386 + $0x1d0] sm:$0xff]
      %v454 = vld [vmem:[%s386 + $0x1d8] sm:$0xff]
      %v455 = vld [vmem:[%s386 + $0x1e0] sm:$0xff]
      %v456 = vld [vmem:[%s386 + $0x1e8] sm:$0xff]
      %v457 = vld [vmem:[%s386 + $0x1f0] sm:$0xff]
      %v458 = vld [vmem:[%s386 + $0x1f8] sm:$0xff]
      %v459 = vld [vmem:[%s386 + $0x200] sm:$0xff]
      %v460 = vld [vmem:[%s386 + $0x208] sm:$0xff]
      %v461 = vld [vmem:[%s386 + $0x210] sm:$0xff]
      %v462 = vld [vmem:[%s386 + $0x218] sm:$0xff]
      %v463 = vld [vmem:[%s386 + $0x220] sm:$0xff]
      %v464 = vld [vmem:[%s386 + $0x228] sm:$0xff]
      %v465 = vld [vmem:[%s386 + $0x230] sm:$0xff]
      %v466 = vld [vmem:[%s386 + $0x238] sm:$0xff]
      %v467 = vld [vmem:[%s386 + $0x240] sm:$0xff]
      %v468 = vld [vmem:[%s386 + $0x248] sm:$0xff]
      %v469 = vld [vmem:[%s386 + $0x250] sm:$0xff]
      %v470 = vld [vmem:[%s386 + $0x258] sm:$0xff]
      %v471 = vld [vmem:[%s386 + $0x260] sm:$0xff]
      %v472 = vld [vmem:[%s386 + $0x268] sm:$0xff]
      %v473 = vld [vmem:[%s386 + $0x270] sm:$0xff]
      %v474 = vld [vmem:[%s386 + $0x278] sm:$0xff]
      %v475 = vld [vmem:[%s386 + $0x280] sm:$0xff]
      %v476 = vld [vmem:[%s386 + $0x288] sm:$0xff]
      %v477 = vld [vmem:[%s386 + $0x290] sm:$0xff]
      %v478 = vld [vmem:[%s386 + $0x298] sm:$0xff]
      %v479 = vld [vmem:[%s386 + $0x2a0] sm:$0xff]
      %v480 = vld [vmem:[%s386 + $0x2a8] sm:$0xff]
      %v481 = vld [vmem:[%s386 + $0x2b0] sm:$0xff]
      %v482 = vld [vmem:[%s386 + $0x2b8] sm:$0xff]
      %v483 = vld [vmem:[%s386 + $0x2c0] sm:$0xff]
      %v484 = vld [vmem:[%s386 + $0x2c8] sm:$0xff]
      %v485 = vld [vmem:[%s386 + $0x2d0] sm:$0xff]
      %v486 = vld [vmem:[%s386 + $0x2d8] sm:$0xff]
      %v487 = vld [vmem:[%s386 + $0x2e0] sm:$0xff]
      %v488 = vld [vmem:[%s386 + $0x2e8] sm:$0xff]
      %v489 = vld [vmem:[%s386 + $0x2f0] sm:$0xff]
      %v490 = vld [vmem:[%s386 + $0x2f8] sm:$0xff]
      %v491 = vld [vmem:[%s386 + $0x300] sm:$0xff]
      %v492 = vld [vmem:[%s386 + $0x308] sm:$0xff]
      %v493 = vld [vmem:[%s386 + $0x310] sm:$0xff]
      %v494 = vld [vmem:[%s386 + $0x318] sm:$0xff]
      %v495 = vld [vmem:[%s386 + $0x320] sm:$0xff]
      %v496 = vld [vmem:[%s386 + $0x328] sm:$0xff]
      %v497 = vld [vmem:[%s386 + $0x330] sm:$0xff]
      %v498 = vld [vmem:[%s386 + $0x338] sm:$0xff]
      %v499 = vld [vmem:[%s386 + $0x340] sm:$0xff]
      %v500 = vld [vmem:[%s386 + $0x348] sm:$0xff]
      %v501 = vld [vmem:[%s386 + $0x350] sm:$0xff]
      %v502 = vld [vmem:[%s386 + $0x358] sm:$0xff]
      %v503 = vld [vmem:[%s386 + $0x360] sm:$0xff]
      %v504 = vld [vmem:[%s386 + $0x368] sm:$0xff]
      %v505 = vld [vmem:[%s386 + $0x370] sm:$0xff]
      %v506 = vld [vmem:[%s386 + $0x378] sm:$0xff]
      %v507 = vld [vmem:[%s386 + $0x380] sm:$0xff]
      %v508 = vld [vmem:[%s386 + $0x388] sm:$0xff]
      %v509 = vld [vmem:[%s386 + $0x390] sm:$0xff]
      %v510 = vld [vmem:[%s386 + $0x398] sm:$0xff]
      %v511 = vld [vmem:[%s386 + $0x3a0] sm:$0xff]
      %v512 = vld [vmem:[%s386 + $0x3a8] sm:$0xff]
      %v513 = vld [vmem:[%s386 + $0x3b0] sm:$0xff]
      %v514 = vld [vmem:[%s386 + $0x3b8] sm:$0xff]
      %v515 = vld [vmem:[%s386 + $0x3c0] sm:$0xff]
      %v516 = vld [vmem:[%s386 + $0x3c8] sm:$0xff]
      %v517 = vld [vmem:[%s386 + $0x3d0] sm:$0xff]
      %v518 = vld [vmem:[%s386 + $0x3d8] sm:$0xff]
      %v519 = vld [vmem:[%s386 + $0x3e0] sm:$0xff]
      %v520 = vld [vmem:[%s386 + $0x3e8] sm:$0xff]
      %v521 = vld [vmem:[%s386 + $0x3f0] sm:$0xff]
      %v522 = vld [vmem:[%s386 + $0x3f8] sm:$0xff]
      %v523 = vld [vmem:[%s1] sm:$0xff]
      %v524 = vld [vmem:[%s1 + $0x8] sm:$0xff]
      %v525 = vld [vmem:[%s1 + $0x10] sm:$0xff]
      %v526 = vld [vmem:[%s1 + $0x18] sm:$0xff]
      %v527 = vld [vmem:[%s1 + $0x20] sm:$0xff]
      %v528 = vld [vmem:[%s1 + $0x28] sm:$0xff]
      %v529 = vld [vmem:[%s1 + $0x30] sm:$0xff]
      %v530 = vld [vmem:[%s1 + $0x38] sm:$0xff]
      %v531 = vld [vmem:[%s1 + $0x40] sm:$0xff]
      %v532 = vld [vmem:[%s1 + $0x48] sm:$0xff]
      %v533 = vld [vmem:[%s1 + $0x50] sm:$0xff]
      %v534 = vld [vmem:[%s1 + $0x58] sm:$0xff]
      %v535 = vld [vmem:[%s1 + $0x60] sm:$0xff]
      %v536 = vld [vmem:[%s1 + $0x68] sm:$0xff]
      %v537 = vld [vmem:[%s1 + $0x70] sm:$0xff]
      %v538 = vld [vmem:[%s1 + $0x78] sm:$0xff]
      %v539 = vld [vmem:[%s1 + $0x80] sm:$0xff]
      %v540 = vld [vmem:[%s1 + $0x88] sm:$0xff]
      %v541 = vld [vmem:[%s1 + $0x90] sm:$0xff]
      %v542 = vld [vmem:[%s1 + $0x98] sm:$0xff]
      %v543 = vld [vmem:[%s1 + $0xa0] sm:$0xff]
      %v544 = vld [vmem:[%s1 + $0xa8] sm:$0xff]
      %v545 = vld [vmem:[%s1 + $0xb0] sm:$0xff]
      %v546 = vld [vmem:[%s1 + $0xb8] sm:$0xff]
      %v547 = vld [vmem:[%s1 + $0xc0] sm:$0xff]
      %v548 = vld [vmem:[%s1 + $0xc8] sm:$0xff]
      %v549 = vld [vmem:[%s1 + $0xd0] sm:$0xff]
      %v550 = vld [vmem:[%s1 + $0xd8] sm:$0xff]
      %v551 = vld [vmem:[%s1 + $0xe0] sm:$0xff]
      %v552 = vld [vmem:[%s1 + $0xe8] sm:$0xff]
      %v553 = vld [vmem:[%s1 + $0xf0] sm:$0xff]
      %v554 = vld [vmem:[%s1 + $0xf8] sm:$0xff]
      %v555 = vld [vmem:[%s1 + $0x100] sm:$0xff]
      %v556 = vld [vmem:[%s1 + $0x108] sm:$0xff]
      %v557 = vld [vmem:[%s1 + $0x110] sm:$0xff]
      %v558 = vld [vmem:[%s1 + $0x118] sm:$0xff]
      %v559 = vld [vmem:[%s1 + $0x120] sm:$0xff]
      %v560 = vld [vmem:[%s1 + $0x128] sm:$0xff]
      %v561 = vld [vmem:[%s1 + $0x130] sm:$0xff]
      %v562 = vld [vmem:[%s1 + $0x138] sm:$0xff]
      %v563 = vld [vmem:[%s1 + $0x140] sm:$0xff]
      %v564 = vld [vmem:[%s1 + $0x148] sm:$0xff]
      %v565 = vld [vmem:[%s1 + $0x150] sm:$0xff]
      %v566 = vld [vmem:[%s1 + $0x158] sm:$0xff]
      %v567 = vld [vmem:[%s1 + $0x160] sm:$0xff]
      %v568 = vld [vmem:[%s1 + $0x168] sm:$0xff]
      %v569 = vld [vmem:[%s1 + $0x170] sm:$0xff]
      %v570 = vld [vmem:[%s1 + $0x178] sm:$0xff]
      %v571 = vld [vmem:[%s1 + $0x180] sm:$0xff]
      %v572 = vld [vmem:[%s1 + $0x188] sm:$0xff]
      %v573 = vld [vmem:[%s1 + $0x190] sm:$0xff]
      %v574 = vld [vmem:[%s1 + $0x198] sm:$0xff]
      %v575 = vld [vmem:[%s1 + $0x1a0] sm:$0xff]
      %v576 = vld [vmem:[%s1 + $0x1a8] sm:$0xff]
      %v577 = vld [vmem:[%s1 + $0x1b0] sm:$0xff]
      %v578 = vld [vmem:[%s1 + $0x1b8] sm:$0xff]
      %v579 = vld [vmem:[%s1 + $0x1c0] sm:$0xff]
      %v580 = vld [vmem:[%s1 + $0x1c8] sm:$0xff]
      %v581 = vld [vmem:[%s1 + $0x1d0] sm:$0xff]
      %v582 = vld [vmem:[%s1 + $0x1d8] sm:$0xff]
      %v583 = vld [vmem:[%s1 + $0x1e0] sm:$0xff]
      %v584 = vld [vmem:[%s1 + $0x1e8] sm:$0xff]
      %v585 = vld [vmem:[%s1 + $0x1f0] sm:$0xff]
      %v586 = vld [vmem:[%s1 + $0x1f8] sm:$0xff]
      %v587 = vld [vmem:[%s1 + $0x200] sm:$0xff]
      %v588 = vld [vmem:[%s1 + $0x208] sm:$0xff]
      %v589 = vld [vmem:[%s1 + $0x210] sm:$0xff]
      %v590 = vld [vmem:[%s1 + $0x218] sm:$0xff]
      %v591 = vld [vmem:[%s1 + $0x220] sm:$0xff]
      %v592 = vld [vmem:[%s1 + $0x228] sm:$0xff]
      %v593 = vld [vmem:[%s1 + $0x230] sm:$0xff]
      %v594 = vld [vmem:[%s1 + $0x238] sm:$0xff]
      %v595 = vld [vmem:[%s1 + $0x240] sm:$0xff]
      %v596 = vld [vmem:[%s1 + $0x248] sm:$0xff]
      %v597 = vld [vmem:[%s1 + $0x250] sm:$0xff]
      %v598 = vld [vmem:[%s1 + $0x258] sm:$0xff]
      %v599 = vld [vmem:[%s1 + $0x260] sm:$0xff]
      %v600 = vld [vmem:[%s1 + $0x268] sm:$0xff]
      %v601 = vld [vmem:[%s1 + $0x270] sm:$0xff]
      %v602 = vld [vmem:[%s1 + $0x278] sm:$0xff]
      %v603 = vld [vmem:[%s1 + $0x280] sm:$0xff]
      %v604 = vld [vmem:[%s1 + $0x288] sm:$0xff]
      %v605 = vld [vmem:[%s1 + $0x290] sm:$0xff]
      %v606 = vld [vmem:[%s1 + $0x298] sm:$0xff]
      %v607 = vld [vmem:[%s1 + $0x2a0] sm:$0xff]
      %v608 = vld [vmem:[%s1 + $0x2a8] sm:$0xff]
      %v609 = vld [vmem:[%s1 + $0x2b0] sm:$0xff]
      %v610 = vld [vmem:[%s1 + $0x2b8] sm:$0xff]
      %v611 = vld [vmem:[%s1 + $0x2c0] sm:$0xff]
      %v612 = vld [vmem:[%s1 + $0x2c8] sm:$0xff]
      %v613 = vld [vmem:[%s1 + $0x2d0] sm:$0xff]
      %v614 = vld [vmem:[%s1 + $0x2d8] sm:$0xff]
      %v615 = vld [vmem:[%s1 + $0x2e0] sm:$0xff]
      %v616 = vld [vmem:[%s1 + $0x2e8] sm:$0xff]
      %v617 = vld [vmem:[%s1 + $0x2f0] sm:$0xff]
      %v618 = vld [vmem:[%s1 + $0x2f8] sm:$0xff]
      %v619 = vld [vmem:[%s1 + $0x300] sm:$0xff]
      %v620 = vld [vmem:[%s1 + $0x308] sm:$0xff]
      %v621 = vld [vmem:[%s1 + $0x310] sm:$0xff]
      %v622 = vld [vmem:[%s1 + $0x318] sm:$0xff]
      %v623 = vld [vmem:[%s1 + $0x320] sm:$0xff]
      %v624 = vld [vmem:[%s1 + $0x328] sm:$0xff]
      %v625 = vld [vmem:[%s1 + $0x330] sm:$0xff]
      %v626 = vld [vmem:[%s1 + $0x338] sm:$0xff]
      %v627 = vld [vmem:[%s1 + $0x340] sm:$0xff]
      %v628 = vld [vmem:[%s1 + $0x348] sm:$0xff]
      %v629 = vld [vmem:[%s1 + $0x350] sm:$0xff]
      %v630 = vld [vmem:[%s1 + $0x358] sm:$0xff]
      %v631 = vld [vmem:[%s1 + $0x360] sm:$0xff]
      %v632 = vld [vmem:[%s1 + $0x368] sm:$0xff]
      %v633 = vld [vmem:[%s1 + $0x370] sm:$0xff]
      %v634 = vld [vmem:[%s1 + $0x378] sm:$0xff]
      %v635 = vld [vmem:[%s1 + $0x380] sm:$0xff]
      %v636 = vld [vmem:[%s1 + $0x388] sm:$0xff]
      %v637 = vld [vmem:[%s1 + $0x390] sm:$0xff]
      %v638 = vld [vmem:[%s1 + $0x398] sm:$0xff]
      %v639 = vld [vmem:[%s1 + $0x3a0] sm:$0xff]
      %v640 = vld [vmem:[%s1 + $0x3a8] sm:$0xff]
      %v641 = vld [vmem:[%s1 + $0x3b0] sm:$0xff]
      %v642 = vld [vmem:[%s1 + $0x3b8] sm:$0xff]
      %v643 = vld [vmem:[%s1 + $0x3c0] sm:$0xff]
      %v644 = vld [vmem:[%s1 + $0x3c8] sm:$0xff]
      %v645 = vld [vmem:[%s1 + $0x3d0] sm:$0xff]
      %v646 = vld [vmem:[%s1 + $0x3d8] sm:$0xff]
      %v647 = vld [vmem:[%s1 + $0x3e0] sm:$0xff]
      %v648 = vld [vmem:[%s1 + $0x3e8] sm:$0xff]
      %v649 = vld [vmem:[%s1 + $0x3f0] sm:$0xff]
      %v650 = vld [vmem:[%s1 + $0x3f8] sm:$0xff]
      %v651 = vld [vmem:[%s1 + $0x400] sm:$0xff]
      %v652 = vld [vmem:[%s1 + $0x408] sm:$0xff]
      %v653 = vld [vmem:[%s1 + $0x410] sm:$0xff]
      %v654 = vld [vmem:[%s1 + $0x418] sm:$0xff]
      %v655 = vld [vmem:[%s1 + $0x420] sm:$0xff]
      %v656 = vld [vmem:[%s1 + $0x428] sm:$0xff]
      %v657 = vld [vmem:[%s1 + $0x430] sm:$0xff]
      %v658 = vld [vmem:[%s1 + $0x438] sm:$0xff]
      %v659 = vld [vmem:[%s1 + $0x440] sm:$0xff]
      %v660 = vld [vmem:[%s1 + $0x448] sm:$0xff]
      %v661 = vld [vmem:[%s1 + $0x450] sm:$0xff]
      %v662 = vld [vmem:[%s1 + $0x458] sm:$0xff]
      %v663 = vld [vmem:[%s1 + $0x460] sm:$0xff]
      %v664 = vld [vmem:[%s1 + $0x468] sm:$0xff]
      %v665 = vld [vmem:[%s1 + $0x470] sm:$0xff]
      %v666 = vld [vmem:[%s1 + $0x478] sm:$0xff]
      %v667 = vld [vmem:[%s1 + $0x480] sm:$0xff]
      %v668 = vld [vmem:[%s1 + $0x488] sm:$0xff]
      %v669 = vld [vmem:[%s1 + $0x490] sm:$0xff]
      %v670 = vld [vmem:[%s1 + $0x498] sm:$0xff]
      %v671 = vld [vmem:[%s1 + $0x4a0] sm:$0xff]
      %v672 = vld [vmem:[%s1 + $0x4a8] sm:$0xff]
      %v673 = vld [vmem:[%s1 + $0x4b0] sm:$0xff]
      %v674 = vld [vmem:[%s1 + $0x4b8] sm:$0xff]
      %v675 = vld [vmem:[%s1 + $0x4c0] sm:$0xff]
      %v676 = vld [vmem:[%s1 + $0x4c8] sm:$0xff]
      %v677 = vld [vmem:[%s1 + $0x4d0] sm:$0xff]
      %v678 = vld [vmem:[%s1 + $0x4d8] sm:$0xff]
      %v679 = vld [vmem:[%s1 + $0x4e0] sm:$0xff]
      %v680 = vld [vmem:[%s1 + $0x4e8] sm:$0xff]
      %v681 = vld [vmem:[%s1 + $0x4f0] sm:$0xff]
      %v682 = vld [vmem:[%s1 + $0x4f8] sm:$0xff]
      %v683 = vld [vmem:[%s1 + $0x500] sm:$0xff]
      %v684 = vld [vmem:[%s1 + $0x508] sm:$0xff]
      %v685 = vld [vmem:[%s1 + $0x510] sm:$0xff]
      %v686 = vld [vmem:[%s1 + $0x518] sm:$0xff]
      %v687 = vld [vmem:[%s1 + $0x520] sm:$0xff]
      %v688 = vld [vmem:[%s1 + $0x528] sm:$0xff]
      %v689 = vld [vmem:[%s1 + $0x530] sm:$0xff]
      %v690 = vld [vmem:[%s1 + $0x538] sm:$0xff]
      %v691 = vld [vmem:[%s1 + $0x540] sm:$0xff]
      %v692 = vld [vmem:[%s1 + $0x548] sm:$0xff]
      %v693 = vld [vmem:[%s1 + $0x550] sm:$0xff]
      %v694 = vld [vmem:[%s1 + $0x558] sm:$0xff]
      %v695 = vld [vmem:[%s1 + $0x560] sm:$0xff]
      %v696 = vld [vmem:[%s1 + $0x568] sm:$0xff]
      %v697 = vld [vmem:[%s1 + $0x570] sm:$0xff]
      %v698 = vld [vmem:[%s1 + $0x578] sm:$0xff]
      %v699 = vld [vmem:[%s1 + $0x580] sm:$0xff]
      %v700 = vld [vmem:[%s1 + $0x588] sm:$0xff]
      %v701 = vld [vmem:[%s1 + $0x590] sm:$0xff]
      %v702 = vld [vmem:[%s1 + $0x598] sm:$0xff]
      %v703 = vld [vmem:[%s1 + $0x5a0] sm:$0xff]
      %v704 = vld [vmem:[%s1 + $0x5a8] sm:$0xff]
      %v705 = vld [vmem:[%s1 + $0x5b0] sm:$0xff]
      %v706 = vld [vmem:[%s1 + $0x5b8] sm:$0xff]
      %v707 = vld [vmem:[%s1 + $0x5c0] sm:$0xff]
      %v708 = vld [vmem:[%s1 + $0x5c8] sm:$0xff]
      %v709 = vld [vmem:[%s1 + $0x5d0] sm:$0xff]
      %v710 = vld [vmem:[%s1 + $0x5d8] sm:$0xff]
      %v711 = vld [vmem:[%s1 + $0x5e0] sm:$0xff]
      %v712 = vld [vmem:[%s1 + $0x5e8] sm:$0xff]
      %v713 = vld [vmem:[%s1 + $0x5f0] sm:$0xff]
      %v714 = vld [vmem:[%s1 + $0x5f8] sm:$0xff]
      %v715 = vld [vmem:[%s1 + $0x600] sm:$0xff]
      %v716 = vld [vmem:[%s1 + $0x608] sm:$0xff]
      %v717 = vld [vmem:[%s1 + $0x610] sm:$0xff]
      %v718 = vld [vmem:[%s1 + $0x618] sm:$0xff]
      %v719 = vld [vmem:[%s1 + $0x620] sm:$0xff]
      %v720 = vld [vmem:[%s1 + $0x628] sm:$0xff]
      %v721 = vld [vmem:[%s1 + $0x630] sm:$0xff]
      %v722 = vld [vmem:[%s1 + $0x638] sm:$0xff]
      %v723 = vld [vmem:[%s1 + $0x640] sm:$0xff]
      %v724 = vld [vmem:[%s1 + $0x648] sm:$0xff]
      %v725 = vld [vmem:[%s1 + $0x650] sm:$0xff]
      %v726 = vld [vmem:[%s1 + $0x658] sm:$0xff]
      %v727 = vld [vmem:[%s1 + $0x660] sm:$0xff]
      %v728 = vld [vmem:[%s1 + $0x668] sm:$0xff]
      %v729 = vld [vmem:[%s1 + $0x670] sm:$0xff]
      %v730 = vld [vmem:[%s1 + $0x678] sm:$0xff]
      %v731 = vld [vmem:[%s1 + $0x680] sm:$0xff]
      %v732 = vld [vmem:[%s1 + $0x688] sm:$0xff]
      %v733 = vld [vmem:[%s1 + $0x690] sm:$0xff]
      %v734 = vld [vmem:[%s1 + $0x698] sm:$0xff]
      %v735 = vld [vmem:[%s1 + $0x6a0] sm:$0xff]
      %v736 = vld [vmem:[%s1 + $0x6a8] sm:$0xff]
      %v737 = vld [vmem:[%s1 + $0x6b0] sm:$0xff]
      %v738 = vld [vmem:[%s1 + $0x6b8] sm:$0xff]
      %v739 = vld [vmem:[%s1 + $0x6c0] sm:$0xff]
      %v740 = vld [vmem:[%s1 + $0x6c8] sm:$0xff]
      %v741 = vld [vmem:[%s1 + $0x6d0] sm:$0xff]
      %v742 = vld [vmem:[%s1 + $0x6d8] sm:$0xff]
      %v743 = vld [vmem:[%s1 + $0x6e0] sm:$0xff]
      %v744 = vld [vmem:[%s1 + $0x6e8] sm:$0xff]
      %v745 = vld [vmem:[%s1 + $0x6f0] sm:$0xff]
      %v746 = vld [vmem:[%s1 + $0x6f8] sm:$0xff]
      %v747 = vld [vmem:[%s1 + $0x700] sm:$0xff]
      %v748 = vld [vmem:[%s1 + $0x708] sm:$0xff]
      %v749 = vld [vmem:[%s1 + $0x710] sm:$0xff]
      %v750 = vld [vmem:[%s1 + $0x718] sm:$0xff]
      %v751 = vld [vmem:[%s1 + $0x720] sm:$0xff]
      %v752 = vld [vmem:[%s1 + $0x728] sm:$0xff]
      %v753 = vld [vmem:[%s1 + $0x730] sm:$0xff]
      %v754 = vld [vmem:[%s1 + $0x738] sm:$0xff]
      %v755 = vld [vmem:[%s1 + $0x740] sm:$0xff]
      %v756 = vld [vmem:[%s1 + $0x748] sm:$0xff]
      %v757 = vld [vmem:[%s1 + $0x750] sm:$0xff]
      %v758 = vld [vmem:[%s1 + $0x758] sm:$0xff]
      %v759 = vld [vmem:[%s1 + $0x760] sm:$0xff]
      %v760 = vld [vmem:[%s1 + $0x768] sm:$0xff]
      %v761 = vld [vmem:[%s1 + $0x770] sm:$0xff]
      %v762 = vld [vmem:[%s1 + $0x778] sm:$0xff]
      %v763 = vld [vmem:[%s1 + $0x780] sm:$0xff]
      %v764 = vld [vmem:[%s1 + $0x788] sm:$0xff]
      %v765 = vld [vmem:[%s1 + $0x790] sm:$0xff]
      %v766 = vld [vmem:[%s1 + $0x798] sm:$0xff]
      %v767 = vld [vmem:[%s1 + $0x7a0] sm:$0xff]
      %v768 = vld [vmem:[%s1 + $0x7a8] sm:$0xff]
      %v769 = vld [vmem:[%s1 + $0x7b0] sm:$0xff]
      %v770 = vld [vmem:[%s1 + $0x7b8] sm:$0xff]
      %v771 = vld [vmem:[%s1 + $0x7c0] sm:$0xff]
      %v772 = vld [vmem:[%s1 + $0x7c8] sm:$0xff]
      %v773 = vld [vmem:[%s1 + $0x7d0] sm:$0xff]
      %v774 = vld [vmem:[%s1 + $0x7d8] sm:$0xff]
      %v775 = vld [vmem:[%s1 + $0x7e0] sm:$0xff]
      %v776 = vld [vmem:[%s1 + $0x7e8] sm:$0xff]
      %v777 = vld [vmem:[%s1 + $0x7f0] sm:$0xff]
      %v778 = vld [vmem:[%s1 + $0x7f8] sm:$0xff]
      %v779 = vld [vmem:[%s2] sm:$0x3]
      %v781 = vlaneseq
      %v782 = vshrl.u32 %v781, 7
      %v783 = vsub.s32 0, %v782
      %v784 = vrot.slane %v779, %v783
      %v785 = vlaneseq
      %v786 = vshrl.u32 %v785, 7
      %v787 = vsub.s32 1, %v786
      %v788 = vrot.slane %v779, %v787
      %v919 = vunpack.c.l.b16 %v395
      %v920 = vunpack.c.h.b16 %v395
      %v921 = vunpack.c.l.b16 %v396
      %v922 = vunpack.c.h.b16 %v396
      %v923 = vunpack.c.l.b16 %v397
      %v924 = vunpack.c.h.b16 %v397
      %v925 = vunpack.c.l.b16 %v398
      %v926 = vunpack.c.h.b16 %v398
      %v927 = vunpack.c.l.b16 %v399
      %v928 = vunpack.c.h.b16 %v399
      %v929 = vunpack.c.l.b16 %v400
      %v930 = vunpack.c.h.b16 %v400
      %v931 = vunpack.c.l.b16 %v401
      %v932 = vunpack.c.h.b16 %v401
      %v933 = vunpack.c.l.b16 %v402
      %v934 = vunpack.c.h.b16 %v402
      %v935 = vunpack.c.l.b16 %v403
      %v936 = vunpack.c.h.b16 %v403
      %v937 = vunpack.c.l.b16 %v404
      %v938 = vunpack.c.h.b16 %v404
      %v939 = vunpack.c.l.b16 %v405
      %v940 = vunpack.c.h.b16 %v405
      %v941 = vunpack.c.l.b16 %v406
      %v942 = vunpack.c.h.b16 %v406
      %v943 = vunpack.c.l.b16 %v407
      %v944 = vunpack.c.h.b16 %v407
      %v945 = vunpack.c.l.b16 %v408
      %v946 = vunpack.c.h.b16 %v408
      %v947 = vunpack.c.l.b16 %v409
      %v948 = vunpack.c.h.b16 %v409
      %v949 = vunpack.c.l.b16 %v410
      %v950 = vunpack.c.h.b16 %v410
      %v951 = vunpack.c.l.b16 %v411
      %v952 = vunpack.c.h.b16 %v411
      %v953 = vunpack.c.l.b16 %v412
      %v954 = vunpack.c.h.b16 %v412
      %v955 = vunpack.c.l.b16 %v413
      %v956 = vunpack.c.h.b16 %v413
      %v957 = vunpack.c.l.b16 %v414
      %v958 = vunpack.c.h.b16 %v414
      %v959 = vunpack.c.l.b16 %v415
      %v960 = vunpack.c.h.b16 %v415
      %v961 = vunpack.c.l.b16 %v416
      %v962 = vunpack.c.h.b16 %v416
      %v963 = vunpack.c.l.b16 %v417
      %v964 = vunpack.c.h.b16 %v417
      %v965 = vunpack.c.l.b16 %v418
      %v966 = vunpack.c.h.b16 %v418
      %v967 = vunpack.c.l.b16 %v419
      %v968 = vunpack.c.h.b16 %v419
      %v969 = vunpack.c.l.b16 %v420
      %v970 = vunpack.c.h.b16 %v420
      %v971 = vunpack.c.l.b16 %v421
      %v972 = vunpack.c.h.b16 %v421
      %v973 = vunpack.c.l.b16 %v422
      %v974 = vunpack.c.h.b16 %v422
      %v975 = vunpack.c.l.b16 %v423
      %v976 = vunpack.c.h.b16 %v423
      %v977 = vunpack.c.l.b16 %v424
      %v978 = vunpack.c.h.b16 %v424
      %v979 = vunpack.c.l.b16 %v425
      %v980 = vunpack.c.h.b16 %v425
      %v981 = vunpack.c.l.b16 %v426
      %v982 = vunpack.c.h.b16 %v426
      %v983 = vunpack.c.l.b16 %v427
      %v984 = vunpack.c.h.b16 %v427
      %v985 = vunpack.c.l.b16 %v428
      %v986 = vunpack.c.h.b16 %v428
      %v987 = vunpack.c.l.b16 %v429
      %v988 = vunpack.c.h.b16 %v429
      %v989 = vunpack.c.l.b16 %v430
      %v990 = vunpack.c.h.b16 %v430
      %v991 = vunpack.c.l.b16 %v431
      %v992 = vunpack.c.h.b16 %v431
      %v993 = vunpack.c.l.b16 %v432
      %v994 = vunpack.c.h.b16 %v432
      %v995 = vunpack.c.l.b16 %v433
      %v996 = vunpack.c.h.b16 %v433
      %v997 = vunpack.c.l.b16 %v434
      %v998 = vunpack.c.h.b16 %v434
      %v999 = vunpack.c.l.b16 %v435
      %v1000 = vunpack.c.h.b16 %v435
      %v1001 = vunpack.c.l.b16 %v436
      %v1002 = vunpack.c.h.b16 %v436
      %v1003 = vunpack.c.l.b16 %v437
      %v1004 = vunpack.c.h.b16 %v437
      %v1005 = vunpack.c.l.b16 %v438
      %v1006 = vunpack.c.h.b16 %v438
      %v1007 = vunpack.c.l.b16 %v439
      %v1008 = vunpack.c.h.b16 %v439
      %v1009 = vunpack.c.l.b16 %v440
      %v1010 = vunpack.c.h.b16 %v440
      %v1011 = vunpack.c.l.b16 %v441
      %v1012 = vunpack.c.h.b16 %v441
      %v1013 = vunpack.c.l.b16 %v442
      %v1014 = vunpack.c.h.b16 %v442
      %v1015 = vunpack.c.l.b16 %v443
      %v1016 = vunpack.c.h.b16 %v443
      %v1017 = vunpack.c.l.b16 %v444
      %v1018 = vunpack.c.h.b16 %v444
      %v1019 = vunpack.c.l.b16 %v445
      %v1020 = vunpack.c.h.b16 %v445
      %v1021 = vunpack.c.l.b16 %v446
      %v1022 = vunpack.c.h.b16 %v446
      %v1023 = vunpack.c.l.b16 %v447
      %v1024 = vunpack.c.h.b16 %v447
      %v1025 = vunpack.c.l.b16 %v448
      %v1026 = vunpack.c.h.b16 %v448
      %v1027 = vunpack.c.l.b16 %v449
      %v1028 = vunpack.c.h.b16 %v449
      %v1029 = vunpack.c.l.b16 %v450
      %v1030 = vunpack.c.h.b16 %v450
      %v1031 = vunpack.c.l.b16 %v451
      %v1032 = vunpack.c.h.b16 %v451
      %v1033 = vunpack.c.l.b16 %v452
      %v1034 = vunpack.c.h.b16 %v452
      %v1035 = vunpack.c.l.b16 %v453
      %v1036 = vunpack.c.h.b16 %v453
      %v1037 = vunpack.c.l.b16 %v454
      %v1038 = vunpack.c.h.b16 %v454
      %v1039 = vunpack.c.l.b16 %v455
      %v1040 = vunpack.c.h.b16 %v455
      %v1041 = vunpack.c.l.b16 %v456
      %v1042 = vunpack.c.h.b16 %v456
      %v1043 = vunpack.c.l.b16 %v457
      %v1044 = vunpack.c.h.b16 %v457
      %v1045 = vunpack.c.l.b16 %v458
      %v1046 = vunpack.c.h.b16 %v458
      %v1047 = vunpack.c.l.b16 %v459
      %v1048 = vunpack.c.h.b16 %v459
      %v1049 = vunpack.c.l.b16 %v460
      %v1050 = vunpack.c.h.b16 %v460
      %v1051 = vunpack.c.l.b16 %v461
      %v1052 = vunpack.c.h.b16 %v461
      %v1053 = vunpack.c.l.b16 %v462
      %v1054 = vunpack.c.h.b16 %v462
      %v1055 = vunpack.c.l.b16 %v463
      %v1056 = vunpack.c.h.b16 %v463
      %v1057 = vunpack.c.l.b16 %v464
      %v1058 = vunpack.c.h.b16 %v464
      %v1059 = vunpack.c.l.b16 %v465
      %v1060 = vunpack.c.h.b16 %v465
      %v1061 = vunpack.c.l.b16 %v466
      %v1062 = vunpack.c.h.b16 %v466
      %v1063 = vunpack.c.l.b16 %v467
      %v1064 = vunpack.c.h.b16 %v467
      %v1065 = vunpack.c.l.b16 %v468
      %v1066 = vunpack.c.h.b16 %v468
      %v1067 = vunpack.c.l.b16 %v469
      %v1068 = vunpack.c.h.b16 %v469
      %v1069 = vunpack.c.l.b16 %v470
      %v1070 = vunpack.c.h.b16 %v470
      %v1071 = vunpack.c.l.b16 %v471
      %v1072 = vunpack.c.h.b16 %v471
      %v1073 = vunpack.c.l.b16 %v472
      %v1074 = vunpack.c.h.b16 %v472
      %v1075 = vunpack.c.l.b16 %v473
      %v1076 = vunpack.c.h.b16 %v473
      %v1077 = vunpack.c.l.b16 %v474
      %v1078 = vunpack.c.h.b16 %v474
      %v1079 = vunpack.c.l.b16 %v475
      %v1080 = vunpack.c.h.b16 %v475
      %v1081 = vunpack.c.l.b16 %v476
      %v1082 = vunpack.c.h.b16 %v476
      %v1083 = vunpack.c.l.b16 %v477
      %v1084 = vunpack.c.h.b16 %v477
      %v1085 = vunpack.c.l.b16 %v478
      %v1086 = vunpack.c.h.b16 %v478
      %v1087 = vunpack.c.l.b16 %v479
      %v1088 = vunpack.c.h.b16 %v479
      %v1089 = vunpack.c.l.b16 %v480
      %v1090 = vunpack.c.h.b16 %v480
      %v1091 = vunpack.c.l.b16 %v481
      %v1092 = vunpack.c.h.b16 %v481
      %v1093 = vunpack.c.l.b16 %v482
      %v1094 = vunpack.c.h.b16 %v482
      %v1095 = vunpack.c.l.b16 %v483
      %v1096 = vunpack.c.h.b16 %v483
      %v1097 = vunpack.c.l.b16 %v484
      %v1098 = vunpack.c.h.b16 %v484
      %v1099 = vunpack.c.l.b16 %v485
      %v1100 = vunpack.c.h.b16 %v485
      %v1101 = vunpack.c.l.b16 %v486
      %v1102 = vunpack.c.h.b16 %v486
      %v1103 = vunpack.c.l.b16 %v487
      %v1104 = vunpack.c.h.b16 %v487
      %v1105 = vunpack.c.l.b16 %v488
      %v1106 = vunpack.c.h.b16 %v488
      %v1107 = vunpack.c.l.b16 %v489
      %v1108 = vunpack.c.h.b16 %v489
      %v1109 = vunpack.c.l.b16 %v490
      %v1110 = vunpack.c.h.b16 %v490
      %v1111 = vunpack.c.l.b16 %v491
      %v1112 = vunpack.c.h.b16 %v491
      %v1113 = vunpack.c.l.b16 %v492
      %v1114 = vunpack.c.h.b16 %v492
      %v1115 = vunpack.c.l.b16 %v493
      %v1116 = vunpack.c.h.b16 %v493
      %v1117 = vunpack.c.l.b16 %v494
      %v1118 = vunpack.c.h.b16 %v494
      %v1119 = vunpack.c.l.b16 %v495
      %v1120 = vunpack.c.h.b16 %v495
      %v1121 = vunpack.c.l.b16 %v496
      %v1122 = vunpack.c.h.b16 %v496
      %v1123 = vunpack.c.l.b16 %v497
      %v1124 = vunpack.c.h.b16 %v497
      %v1125 = vunpack.c.l.b16 %v498
      %v1126 = vunpack.c.h.b16 %v498
      %v1127 = vunpack.c.l.b16 %v499
      %v1128 = vunpack.c.h.b16 %v499
      %v1129 = vunpack.c.l.b16 %v500
      %v1130 = vunpack.c.h.b16 %v500
      %v1131 = vunpack.c.l.b16 %v501
      %v1132 = vunpack.c.h.b16 %v501
      %v1133 = vunpack.c.l.b16 %v502
      %v1134 = vunpack.c.h.b16 %v502
      %v1135 = vunpack.c.l.b16 %v503
      %v1136 = vunpack.c.h.b16 %v503
      %v1137 = vunpack.c.l.b16 %v504
      %v1138 = vunpack.c.h.b16 %v504
      %v1139 = vunpack.c.l.b16 %v505
      %v1140 = vunpack.c.h.b16 %v505
      %v1141 = vunpack.c.l.b16 %v506
      %v1142 = vunpack.c.h.b16 %v506
      %v1143 = vunpack.c.l.b16 %v507
      %v1144 = vunpack.c.h.b16 %v507
      %v1145 = vunpack.c.l.b16 %v508
      %v1146 = vunpack.c.h.b16 %v508
      %v1147 = vunpack.c.l.b16 %v509
      %v1148 = vunpack.c.h.b16 %v509
      %v1149 = vunpack.c.l.b16 %v510
      %v1150 = vunpack.c.h.b16 %v510
      %v1151 = vunpack.c.l.b16 %v511
      %v1152 = vunpack.c.h.b16 %v511
      %v1153 = vunpack.c.l.b16 %v512
      %v1154 = vunpack.c.h.b16 %v512
      %v1155 = vunpack.c.l.b16 %v513
      %v1156 = vunpack.c.h.b16 %v513
      %v1157 = vunpack.c.l.b16 %v514
      %v1158 = vunpack.c.h.b16 %v514
      %v1159 = vunpack.c.l.b16 %v515
      %v1160 = vunpack.c.h.b16 %v515
      %v1161 = vunpack.c.l.b16 %v516
      %v1162 = vunpack.c.h.b16 %v516
      %v1163 = vunpack.c.l.b16 %v517
      %v1164 = vunpack.c.h.b16 %v517
      %v1165 = vunpack.c.l.b16 %v518
      %v1166 = vunpack.c.h.b16 %v518
      %v1167 = vunpack.c.l.b16 %v519
      %v1168 = vunpack.c.h.b16 %v519
      %v1169 = vunpack.c.l.b16 %v520
      %v1170 = vunpack.c.h.b16 %v520
      %v1171 = vunpack.c.l.b16 %v521
      %v1172 = vunpack.c.h.b16 %v521
      %v1173 = vunpack.c.l.b16 %v522
      %v1174 = vunpack.c.h.b16 %v522
      %v1175 = vpack.c.b16 %v935, %v919
      %v1176 = vpack.c.b16 %v936, %v920
      %v1177 = vpack.c.b16 %v937, %v921
      %v1178 = vpack.c.b16 %v938, %v922
      %v1179 = vpack.c.b16 %v939, %v923
      %v1180 = vpack.c.b16 %v940, %v924
      %v1181 = vpack.c.b16 %v941, %v925
      %v1182 = vpack.c.b16 %v942, %v926
      %v1183 = vpack.c.b16 %v943, %v927
      %v1184 = vpack.c.b16 %v944, %v928
      %v1185 = vpack.c.b16 %v945, %v929
      %v1186 = vpack.c.b16 %v946, %v930
      %v1187 = vpack.c.b16 %v947, %v931
      %v1188 = vpack.c.b16 %v948, %v932
      %v1189 = vpack.c.b16 %v949, %v933
      %v1190 = vpack.c.b16 %v950, %v934
      %v1191 = vpack.c.b16 %v967, %v951
      %v1192 = vpack.c.b16 %v968, %v952
      %v1193 = vpack.c.b16 %v969, %v953
      %v1194 = vpack.c.b16 %v970, %v954
      %v1195 = vpack.c.b16 %v971, %v955
      %v1196 = vpack.c.b16 %v972, %v956
      %v1197 = vpack.c.b16 %v973, %v957
      %v1198 = vpack.c.b16 %v974, %v958
      %v1199 = vpack.c.b16 %v975, %v959
      %v1200 = vpack.c.b16 %v976, %v960
      %v1201 = vpack.c.b16 %v977, %v961
      %v1202 = vpack.c.b16 %v978, %v962
      %v1203 = vpack.c.b16 %v979, %v963
      %v1204 = vpack.c.b16 %v980, %v964
      %v1205 = vpack.c.b16 %v981, %v965
      %v1206 = vpack.c.b16 %v982, %v966
      %v1207 = vpack.c.b16 %v999, %v983
      %v1208 = vpack.c.b16 %v1000, %v984
      %v1209 = vpack.c.b16 %v1001, %v985
      %v1210 = vpack.c.b16 %v1002, %v986
      %v1211 = vpack.c.b16 %v1003, %v987
      %v1212 = vpack.c.b16 %v1004, %v988
      %v1213 = vpack.c.b16 %v1005, %v989
      %v1214 = vpack.c.b16 %v1006, %v990
      %v1215 = vpack.c.b16 %v1007, %v991
      %v1216 = vpack.c.b16 %v1008, %v992
      %v1217 = vpack.c.b16 %v1009, %v993
      %v1218 = vpack.c.b16 %v1010, %v994
      %v1219 = vpack.c.b16 %v1011, %v995
      %v1220 = vpack.c.b16 %v1012, %v996
      %v1221 = vpack.c.b16 %v1013, %v997
      %v1222 = vpack.c.b16 %v1014, %v998
      %v1223 = vpack.c.b16 %v1031, %v1015
      %v1224 = vpack.c.b16 %v1032, %v1016
      %v1225 = vpack.c.b16 %v1033, %v1017
      %v1226 = vpack.c.b16 %v1034, %v1018
      %v1227 = vpack.c.b16 %v1035, %v1019
      %v1228 = vpack.c.b16 %v1036, %v1020
      %v1229 = vpack.c.b16 %v1037, %v1021
      %v1230 = vpack.c.b16 %v1038, %v1022
      %v1231 = vpack.c.b16 %v1039, %v1023
      %v1232 = vpack.c.b16 %v1040, %v1024
      %v1233 = vpack.c.b16 %v1041, %v1025
      %v1234 = vpack.c.b16 %v1042, %v1026
      %v1235 = vpack.c.b16 %v1043, %v1027
      %v1236 = vpack.c.b16 %v1044, %v1028
      %v1237 = vpack.c.b16 %v1045, %v1029
      %v1238 = vpack.c.b16 %v1046, %v1030
      %v1239 = vpack.c.b16 %v1063, %v1047
      %v1240 = vpack.c.b16 %v1064, %v1048
      %v1241 = vpack.c.b16 %v1065, %v1049
      %v1242 = vpack.c.b16 %v1066, %v1050
      %v1243 = vpack.c.b16 %v1067, %v1051
      %v1244 = vpack.c.b16 %v1068, %v1052
      %v1245 = vpack.c.b16 %v1069, %v1053
      %v1246 = vpack.c.b16 %v1070, %v1054
      %v1247 = vpack.c.b16 %v1071, %v1055
      %v1248 = vpack.c.b16 %v1072, %v1056
      %v1249 = vpack.c.b16 %v1073, %v1057
      %v1250 = vpack.c.b16 %v1074, %v1058
      %v1251 = vpack.c.b16 %v1075, %v1059
      %v1252 = vpack.c.b16 %v1076, %v1060
      %v1253 = vpack.c.b16 %v1077, %v1061
      %v1254 = vpack.c.b16 %v1078, %v1062
      %v1255 = vpack.c.b16 %v1095, %v1079
      %v1256 = vpack.c.b16 %v1096, %v1080
      %v1257 = vpack.c.b16 %v1097, %v1081
      %v1258 = vpack.c.b16 %v1098, %v1082
      %v1259 = vpack.c.b16 %v1099, %v1083
      %v1260 = vpack.c.b16 %v1100, %v1084
      %v1261 = vpack.c.b16 %v1101, %v1085
      %v1262 = vpack.c.b16 %v1102, %v1086
      %v1263 = vpack.c.b16 %v1103, %v1087
      %v1264 = vpack.c.b16 %v1104, %v1088
      %v1265 = vpack.c.b16 %v1105, %v1089
      %v1266 = vpack.c.b16 %v1106, %v1090
      %v1267 = vpack.c.b16 %v1107, %v1091
      %v1268 = vpack.c.b16 %v1108, %v1092
      %v1269 = vpack.c.b16 %v1109, %v1093
      %v1270 = vpack.c.b16 %v1110, %v1094
      %v1271 = vpack.c.b16 %v1127, %v1111
      %v1272 = vpack.c.b16 %v1128, %v1112
      %v1273 = vpack.c.b16 %v1129, %v1113
      %v1274 = vpack.c.b16 %v1130, %v1114
      %v1275 = vpack.c.b16 %v1131, %v1115
      %v1276 = vpack.c.b16 %v1132, %v1116
      %v1277 = vpack.c.b16 %v1133, %v1117
      %v1278 = vpack.c.b16 %v1134, %v1118
      %v1279 = vpack.c.b16 %v1135, %v1119
      %v1280 = vpack.c.b16 %v1136, %v1120
      %v1281 = vpack.c.b16 %v1137, %v1121
      %v1282 = vpack.c.b16 %v1138, %v1122
      %v1283 = vpack.c.b16 %v1139, %v1123
      %v1284 = vpack.c.b16 %v1140, %v1124
      %v1285 = vpack.c.b16 %v1141, %v1125
      %v1286 = vpack.c.b16 %v1142, %v1126
      %v1287 = vpack.c.b16 %v1159, %v1143
      %v1288 = vpack.c.b16 %v1160, %v1144
      %v1289 = vpack.c.b16 %v1161, %v1145
      %v1290 = vpack.c.b16 %v1162, %v1146
      %v1291 = vpack.c.b16 %v1163, %v1147
      %v1292 = vpack.c.b16 %v1164, %v1148
      %v1293 = vpack.c.b16 %v1165, %v1149
      %v1294 = vpack.c.b16 %v1166, %v1150
      %v1295 = vpack.c.b16 %v1167, %v1151
      %v1296 = vpack.c.b16 %v1168, %v1152
      %v1297 = vpack.c.b16 %v1169, %v1153
      %v1298 = vpack.c.b16 %v1170, %v1154
      %v1299 = vpack.c.b16 %v1171, %v1155
      %v1300 = vpack.c.b16 %v1172, %v1156
      %v1301 = vpack.c.b16 %v1173, %v1157
      %v1302 = vpack.c.b16 %v1174, %v1158
      %v1687 = vunpack.c.l.b16 %v523
      %v1688 = vunpack.c.h.b16 %v523
      %v1689 = vunpack.c.l.b16 %v524
      %v1690 = vunpack.c.h.b16 %v524
      %v1691 = vunpack.c.l.b16 %v525
      %v1692 = vunpack.c.h.b16 %v525
      %v1693 = vunpack.c.l.b16 %v526
      %v1694 = vunpack.c.h.b16 %v526
      %v1695 = vunpack.c.l.b16 %v527
      %v1696 = vunpack.c.h.b16 %v527
      %v1697 = vunpack.c.l.b16 %v528
      %v1698 = vunpack.c.h.b16 %v528
      %v1699 = vunpack.c.l.b16 %v529
      %v1700 = vunpack.c.h.b16 %v529
      %v1701 = vunpack.c.l.b16 %v530
      %v1702 = vunpack.c.h.b16 %v530
      %v1703 = vunpack.c.l.b16 %v531
      %v1704 = vunpack.c.h.b16 %v531
      %v1705 = vunpack.c.l.b16 %v532
      %v1706 = vunpack.c.h.b16 %v532
      %v1707 = vunpack.c.l.b16 %v533
      %v1708 = vunpack.c.h.b16 %v533
      %v1709 = vunpack.c.l.b16 %v534
      %v1710 = vunpack.c.h.b16 %v534
      %v1711 = vunpack.c.l.b16 %v535
      %v1712 = vunpack.c.h.b16 %v535
      %v1713 = vunpack.c.l.b16 %v536
      %v1714 = vunpack.c.h.b16 %v536
      %v1715 = vunpack.c.l.b16 %v537
      %v1716 = vunpack.c.h.b16 %v537
      %v1717 = vunpack.c.l.b16 %v538
      %v1718 = vunpack.c.h.b16 %v538
      %v1719 = vunpack.c.l.b16 %v539
      %v1720 = vunpack.c.h.b16 %v539
      %v1721 = vunpack.c.l.b16 %v540
      %v1722 = vunpack.c.h.b16 %v540
      %v1723 = vunpack.c.l.b16 %v541
      %v1724 = vunpack.c.h.b16 %v541
      %v1725 = vunpack.c.l.b16 %v542
      %v1726 = vunpack.c.h.b16 %v542
      %v1727 = vunpack.c.l.b16 %v543
      %v1728 = vunpack.c.h.b16 %v543
      %v1729 = vunpack.c.l.b16 %v544
      %v1730 = vunpack.c.h.b16 %v544
      %v1731 = vunpack.c.l.b16 %v545
      %v1732 = vunpack.c.h.b16 %v545
      %v1733 = vunpack.c.l.b16 %v546
      %v1734 = vunpack.c.h.b16 %v546
      %v1735 = vunpack.c.l.b16 %v547
      %v1736 = vunpack.c.h.b16 %v547
      %v1737 = vunpack.c.l.b16 %v548
      %v1738 = vunpack.c.h.b16 %v548
      %v1739 = vunpack.c.l.b16 %v549
      %v1740 = vunpack.c.h.b16 %v549
      %v1741 = vunpack.c.l.b16 %v550
      %v1742 = vunpack.c.h.b16 %v550
      %v1743 = vunpack.c.l.b16 %v551
      %v1744 = vunpack.c.h.b16 %v551
      %v1745 = vunpack.c.l.b16 %v552
      %v1746 = vunpack.c.h.b16 %v552
      %v1747 = vunpack.c.l.b16 %v553
      %v1748 = vunpack.c.h.b16 %v553
      %v1749 = vunpack.c.l.b16 %v554
      %v1750 = vunpack.c.h.b16 %v554
      %v1751 = vunpack.c.l.b16 %v555
      %v1752 = vunpack.c.h.b16 %v555
      %v1753 = vunpack.c.l.b16 %v556
      %v1754 = vunpack.c.h.b16 %v556
      %v1755 = vunpack.c.l.b16 %v557
      %v1756 = vunpack.c.h.b16 %v557
      %v1757 = vunpack.c.l.b16 %v558
      %v1758 = vunpack.c.h.b16 %v558
      %v1759 = vunpack.c.l.b16 %v559
      %v1760 = vunpack.c.h.b16 %v559
      %v1761 = vunpack.c.l.b16 %v560
      %v1762 = vunpack.c.h.b16 %v560
      %v1763 = vunpack.c.l.b16 %v561
      %v1764 = vunpack.c.h.b16 %v561
      %v1765 = vunpack.c.l.b16 %v562
      %v1766 = vunpack.c.h.b16 %v562
      %v1767 = vunpack.c.l.b16 %v563
      %v1768 = vunpack.c.h.b16 %v563
      %v1769 = vunpack.c.l.b16 %v564
      %v1770 = vunpack.c.h.b16 %v564
      %v1771 = vunpack.c.l.b16 %v565
      %v1772 = vunpack.c.h.b16 %v565
      %v1773 = vunpack.c.l.b16 %v566
      %v1774 = vunpack.c.h.b16 %v566
      %v1775 = vunpack.c.l.b16 %v567
      %v1776 = vunpack.c.h.b16 %v567
      %v1777 = vunpack.c.l.b16 %v568
      %v1778 = vunpack.c.h.b16 %v568
      %v1779 = vunpack.c.l.b16 %v569
      %v1780 = vunpack.c.h.b16 %v569
      %v1781 = vunpack.c.l.b16 %v570
      %v1782 = vunpack.c.h.b16 %v570
      %v1783 = vunpack.c.l.b16 %v571
      %v1784 = vunpack.c.h.b16 %v571
      %v1785 = vunpack.c.l.b16 %v572
      %v1786 = vunpack.c.h.b16 %v572
      %v1787 = vunpack.c.l.b16 %v573
      %v1788 = vunpack.c.h.b16 %v573
      %v1789 = vunpack.c.l.b16 %v574
      %v1790 = vunpack.c.h.b16 %v574
      %v1791 = vunpack.c.l.b16 %v575
      %v1792 = vunpack.c.h.b16 %v575
      %v1793 = vunpack.c.l.b16 %v576
      %v1794 = vunpack.c.h.b16 %v576
      %v1795 = vunpack.c.l.b16 %v577
      %v1796 = vunpack.c.h.b16 %v577
      %v1797 = vunpack.c.l.b16 %v578
      %v1798 = vunpack.c.h.b16 %v578
      %v1799 = vunpack.c.l.b16 %v579
      %v1800 = vunpack.c.h.b16 %v579
      %v1801 = vunpack.c.l.b16 %v580
      %v1802 = vunpack.c.h.b16 %v580
      %v1803 = vunpack.c.l.b16 %v581
      %v1804 = vunpack.c.h.b16 %v581
      %v1805 = vunpack.c.l.b16 %v582
      %v1806 = vunpack.c.h.b16 %v582
      %v1807 = vunpack.c.l.b16 %v583
      %v1808 = vunpack.c.h.b16 %v583
      %v1809 = vunpack.c.l.b16 %v584
      %v1810 = vunpack.c.h.b16 %v584
      %v1811 = vunpack.c.l.b16 %v585
      %v1812 = vunpack.c.h.b16 %v585
      %v1813 = vunpack.c.l.b16 %v586
      %v1814 = vunpack.c.h.b16 %v586
      %v1815 = vunpack.c.l.b16 %v587
      %v1816 = vunpack.c.h.b16 %v587
      %v1817 = vunpack.c.l.b16 %v588
      %v1818 = vunpack.c.h.b16 %v588
      %v1819 = vunpack.c.l.b16 %v589
      %v1820 = vunpack.c.h.b16 %v589
      %v1821 = vunpack.c.l.b16 %v590
      %v1822 = vunpack.c.h.b16 %v590
      %v1823 = vunpack.c.l.b16 %v591
      %v1824 = vunpack.c.h.b16 %v591
      %v1825 = vunpack.c.l.b16 %v592
      %v1826 = vunpack.c.h.b16 %v592
      %v1827 = vunpack.c.l.b16 %v593
      %v1828 = vunpack.c.h.b16 %v593
      %v1829 = vunpack.c.l.b16 %v594
      %v1830 = vunpack.c.h.b16 %v594
      %v1831 = vunpack.c.l.b16 %v595
      %v1832 = vunpack.c.h.b16 %v595
      %v1833 = vunpack.c.l.b16 %v596
      %v1834 = vunpack.c.h.b16 %v596
      %v1835 = vunpack.c.l.b16 %v597
      %v1836 = vunpack.c.h.b16 %v597
      %v1837 = vunpack.c.l.b16 %v598
      %v1838 = vunpack.c.h.b16 %v598
      %v1839 = vunpack.c.l.b16 %v599
      %v1840 = vunpack.c.h.b16 %v599
      %v1841 = vunpack.c.l.b16 %v600
      %v1842 = vunpack.c.h.b16 %v600
      %v1843 = vunpack.c.l.b16 %v601
      %v1844 = vunpack.c.h.b16 %v601
      %v1845 = vunpack.c.l.b16 %v602
      %v1846 = vunpack.c.h.b16 %v602
      %v1847 = vunpack.c.l.b16 %v603
      %v1848 = vunpack.c.h.b16 %v603
      %v1849 = vunpack.c.l.b16 %v604
      %v1850 = vunpack.c.h.b16 %v604
      %v1851 = vunpack.c.l.b16 %v605
      %v1852 = vunpack.c.h.b16 %v605
      %v1853 = vunpack.c.l.b16 %v606
      %v1854 = vunpack.c.h.b16 %v606
      %v1855 = vunpack.c.l.b16 %v607
      %v1856 = vunpack.c.h.b16 %v607
      %v1857 = vunpack.c.l.b16 %v608
      %v1858 = vunpack.c.h.b16 %v608
      %v1859 = vunpack.c.l.b16 %v609
      %v1860 = vunpack.c.h.b16 %v609
      %v1861 = vunpack.c.l.b16 %v610
      %v1862 = vunpack.c.h.b16 %v610
      %v1863 = vunpack.c.l.b16 %v611
      %v1864 = vunpack.c.h.b16 %v611
      %v1865 = vunpack.c.l.b16 %v612
      %v1866 = vunpack.c.h.b16 %v612
      %v1867 = vunpack.c.l.b16 %v613
      %v1868 = vunpack.c.h.b16 %v613
      %v1869 = vunpack.c.l.b16 %v614
      %v1870 = vunpack.c.h.b16 %v614
      %v1871 = vunpack.c.l.b16 %v615
      %v1872 = vunpack.c.h.b16 %v615
      %v1873 = vunpack.c.l.b16 %v616
      %v1874 = vunpack.c.h.b16 %v616
      %v1875 = vunpack.c.l.b16 %v617
      %v1876 = vunpack.c.h.b16 %v617
      %v1877 = vunpack.c.l.b16 %v618
      %v1878 = vunpack.c.h.b16 %v618
      %v1879 = vunpack.c.l.b16 %v619
      %v1880 = vunpack.c.h.b16 %v619
      %v1881 = vunpack.c.l.b16 %v620
      %v1882 = vunpack.c.h.b16 %v620
      %v1883 = vunpack.c.l.b16 %v621
      %v1884 = vunpack.c.h.b16 %v621
      %v1885 = vunpack.c.l.b16 %v622
      %v1886 = vunpack.c.h.b16 %v622
      %v1887 = vunpack.c.l.b16 %v623
      %v1888 = vunpack.c.h.b16 %v623
      %v1889 = vunpack.c.l.b16 %v624
      %v1890 = vunpack.c.h.b16 %v624
      %v1891 = vunpack.c.l.b16 %v625
      %v1892 = vunpack.c.h.b16 %v625
      %v1893 = vunpack.c.l.b16 %v626
      %v1894 = vunpack.c.h.b16 %v626
      %v1895 = vunpack.c.l.b16 %v627
      %v1896 = vunpack.c.h.b16 %v627
      %v1897 = vunpack.c.l.b16 %v628
      %v1898 = vunpack.c.h.b16 %v628
      %v1899 = vunpack.c.l.b16 %v629
      %v1900 = vunpack.c.h.b16 %v629
      %v1901 = vunpack.c.l.b16 %v630
      %v1902 = vunpack.c.h.b16 %v630
      %v1903 = vunpack.c.l.b16 %v631
      %v1904 = vunpack.c.h.b16 %v631
      %v1905 = vunpack.c.l.b16 %v632
      %v1906 = vunpack.c.h.b16 %v632
      %v1907 = vunpack.c.l.b16 %v633
      %v1908 = vunpack.c.h.b16 %v633
      %v1909 = vunpack.c.l.b16 %v634
      %v1910 = vunpack.c.h.b16 %v634
      %v1911 = vunpack.c.l.b16 %v635
      %v1912 = vunpack.c.h.b16 %v635
      %v1913 = vunpack.c.l.b16 %v636
      %v1914 = vunpack.c.h.b16 %v636
      %v1915 = vunpack.c.l.b16 %v637
      %v1916 = vunpack.c.h.b16 %v637
      %v1917 = vunpack.c.l.b16 %v638
      %v1918 = vunpack.c.h.b16 %v638
      %v1919 = vunpack.c.l.b16 %v639
      %v1920 = vunpack.c.h.b16 %v639
      %v1921 = vunpack.c.l.b16 %v640
      %v1922 = vunpack.c.h.b16 %v640
      %v1923 = vunpack.c.l.b16 %v641
      %v1924 = vunpack.c.h.b16 %v641
      %v1925 = vunpack.c.l.b16 %v642
      %v1926 = vunpack.c.h.b16 %v642
      %v1927 = vunpack.c.l.b16 %v643
      %v1928 = vunpack.c.h.b16 %v643
      %v1929 = vunpack.c.l.b16 %v644
      %v1930 = vunpack.c.h.b16 %v644
      %v1931 = vunpack.c.l.b16 %v645
      %v1932 = vunpack.c.h.b16 %v645
      %v1933 = vunpack.c.l.b16 %v646
      %v1934 = vunpack.c.h.b16 %v646
      %v1935 = vunpack.c.l.b16 %v647
      %v1936 = vunpack.c.h.b16 %v647
      %v1937 = vunpack.c.l.b16 %v648
      %v1938 = vunpack.c.h.b16 %v648
      %v1939 = vunpack.c.l.b16 %v649
      %v1940 = vunpack.c.h.b16 %v649
      %v1941 = vunpack.c.l.b16 %v650
      %v1942 = vunpack.c.h.b16 %v650
      %v1943 = vunpack.c.l.b16 %v651
      %v1944 = vunpack.c.h.b16 %v651
      %v1945 = vunpack.c.l.b16 %v652
      %v1946 = vunpack.c.h.b16 %v652
      %v1947 = vunpack.c.l.b16 %v653
      %v1948 = vunpack.c.h.b16 %v653
      %v1949 = vunpack.c.l.b16 %v654
      %v1950 = vunpack.c.h.b16 %v654
      %v1951 = vunpack.c.l.b16 %v655
      %v1952 = vunpack.c.h.b16 %v655
      %v1953 = vunpack.c.l.b16 %v656
      %v1954 = vunpack.c.h.b16 %v656
      %v1955 = vunpack.c.l.b16 %v657
      %v1956 = vunpack.c.h.b16 %v657
      %v1957 = vunpack.c.l.b16 %v658
      %v1958 = vunpack.c.h.b16 %v658
      %v1959 = vunpack.c.l.b16 %v659
      %v1960 = vunpack.c.h.b16 %v659
      %v1961 = vunpack.c.l.b16 %v660
      %v1962 = vunpack.c.h.b16 %v660
      %v1963 = vunpack.c.l.b16 %v661
      %v1964 = vunpack.c.h.b16 %v661
      %v1965 = vunpack.c.l.b16 %v662
      %v1966 = vunpack.c.h.b16 %v662
      %v1967 = vunpack.c.l.b16 %v663
      %v1968 = vunpack.c.h.b16 %v663
      %v1969 = vunpack.c.l.b16 %v664
      %v1970 = vunpack.c.h.b16 %v664
      %v1971 = vunpack.c.l.b16 %v665
      %v1972 = vunpack.c.h.b16 %v665
      %v1973 = vunpack.c.l.b16 %v666
      %v1974 = vunpack.c.h.b16 %v666
      %v1975 = vunpack.c.l.b16 %v667
      %v1976 = vunpack.c.h.b16 %v667
      %v1977 = vunpack.c.l.b16 %v668
      %v1978 = vunpack.c.h.b16 %v668
      %v1979 = vunpack.c.l.b16 %v669
      %v1980 = vunpack.c.h.b16 %v669
      %v1981 = vunpack.c.l.b16 %v670
      %v1982 = vunpack.c.h.b16 %v670
      %v1983 = vunpack.c.l.b16 %v671
      %v1984 = vunpack.c.h.b16 %v671
      %v1985 = vunpack.c.l.b16 %v672
      %v1986 = vunpack.c.h.b16 %v672
      %v1987 = vunpack.c.l.b16 %v673
      %v1988 = vunpack.c.h.b16 %v673
      %v1989 = vunpack.c.l.b16 %v674
      %v1990 = vunpack.c.h.b16 %v674
      %v1991 = vunpack.c.l.b16 %v675
      %v1992 = vunpack.c.h.b16 %v675
      %v1993 = vunpack.c.l.b16 %v676
      %v1994 = vunpack.c.h.b16 %v676
      %v1995 = vunpack.c.l.b16 %v677
      %v1996 = vunpack.c.h.b16 %v677
      %v1997 = vunpack.c.l.b16 %v678
      %v1998 = vunpack.c.h.b16 %v678
      %v1999 = vunpack.c.l.b16 %v679
      %v2000 = vunpack.c.h.b16 %v679
      %v2001 = vunpack.c.l.b16 %v680
      %v2002 = vunpack.c.h.b16 %v680
      %v2003 = vunpack.c.l.b16 %v681
      %v2004 = vunpack.c.h.b16 %v681
      %v2005 = vunpack.c.l.b16 %v682
      %v2006 = vunpack.c.h.b16 %v682
      %v2007 = vunpack.c.l.b16 %v683
      %v2008 = vunpack.c.h.b16 %v683
      %v2009 = vunpack.c.l.b16 %v684
      %v2010 = vunpack.c.h.b16 %v684
      %v2011 = vunpack.c.l.b16 %v685
      %v2012 = vunpack.c.h.b16 %v685
      %v2013 = vunpack.c.l.b16 %v686
      %v2014 = vunpack.c.h.b16 %v686
      %v2015 = vunpack.c.l.b16 %v687
      %v2016 = vunpack.c.h.b16 %v687
      %v2017 = vunpack.c.l.b16 %v688
      %v2018 = vunpack.c.h.b16 %v688
      %v2019 = vunpack.c.l.b16 %v689
      %v2020 = vunpack.c.h.b16 %v689
      %v2021 = vunpack.c.l.b16 %v690
      %v2022 = vunpack.c.h.b16 %v690
      %v2023 = vunpack.c.l.b16 %v691
      %v2024 = vunpack.c.h.b16 %v691
      %v2025 = vunpack.c.l.b16 %v692
      %v2026 = vunpack.c.h.b16 %v692
      %v2027 = vunpack.c.l.b16 %v693
      %v2028 = vunpack.c.h.b16 %v693
      %v2029 = vunpack.c.l.b16 %v694
      %v2030 = vunpack.c.h.b16 %v694
      %v2031 = vunpack.c.l.b16 %v695
      %v2032 = vunpack.c.h.b16 %v695
      %v2033 = vunpack.c.l.b16 %v696
      %v2034 = vunpack.c.h.b16 %v696
      %v2035 = vunpack.c.l.b16 %v697
      %v2036 = vunpack.c.h.b16 %v697
      %v2037 = vunpack.c.l.b16 %v698
      %v2038 = vunpack.c.h.b16 %v698
      %v2039 = vunpack.c.l.b16 %v699
      %v2040 = vunpack.c.h.b16 %v699
      %v2041 = vunpack.c.l.b16 %v700
      %v2042 = vunpack.c.h.b16 %v700
      %v2043 = vunpack.c.l.b16 %v701
      %v2044 = vunpack.c.h.b16 %v701
      %v2045 = vunpack.c.l.b16 %v702
      %v2046 = vunpack.c.h.b16 %v702
      %v2047 = vunpack.c.l.b16 %v703
      %v2048 = vunpack.c.h.b16 %v703
      %v2049 = vunpack.c.l.b16 %v704
      %v2050 = vunpack.c.h.b16 %v704
      %v2051 = vunpack.c.l.b16 %v705
      %v2052 = vunpack.c.h.b16 %v705
      %v2053 = vunpack.c.l.b16 %v706
      %v2054 = vunpack.c.h.b16 %v706
      %v2055 = vunpack.c.l.b16 %v707
      %v2056 = vunpack.c.h.b16 %v707
      %v2057 = vunpack.c.l.b16 %v708
      %v2058 = vunpack.c.h.b16 %v708
      %v2059 = vunpack.c.l.b16 %v709
      %v2060 = vunpack.c.h.b16 %v709
      %v2061 = vunpack.c.l.b16 %v710
      %v2062 = vunpack.c.h.b16 %v710
      %v2063 = vunpack.c.l.b16 %v711
      %v2064 = vunpack.c.h.b16 %v711
      %v2065 = vunpack.c.l.b16 %v712
      %v2066 = vunpack.c.h.b16 %v712
      %v2067 = vunpack.c.l.b16 %v713
      %v2068 = vunpack.c.h.b16 %v713
      %v2069 = vunpack.c.l.b16 %v714
      %v2070 = vunpack.c.h.b16 %v714
      %v2071 = vunpack.c.l.b16 %v715
      %v2072 = vunpack.c.h.b16 %v715
      %v2073 = vunpack.c.l.b16 %v716
      %v2074 = vunpack.c.h.b16 %v716
      %v2075 = vunpack.c.l.b16 %v717
      %v2076 = vunpack.c.h.b16 %v717
      %v2077 = vunpack.c.l.b16 %v718
      %v2078 = vunpack.c.h.b16 %v718
      %v2079 = vunpack.c.l.b16 %v719
      %v2080 = vunpack.c.h.b16 %v719
      %v2081 = vunpack.c.l.b16 %v720
      %v2082 = vunpack.c.h.b16 %v720
      %v2083 = vunpack.c.l.b16 %v721
      %v2084 = vunpack.c.h.b16 %v721
      %v2085 = vunpack.c.l.b16 %v722
      %v2086 = vunpack.c.h.b16 %v722
      %v2087 = vunpack.c.l.b16 %v723
      %v2088 = vunpack.c.h.b16 %v723
      %v2089 = vunpack.c.l.b16 %v724
      %v2090 = vunpack.c.h.b16 %v724
      %v2091 = vunpack.c.l.b16 %v725
      %v2092 = vunpack.c.h.b16 %v725
      %v2093 = vunpack.c.l.b16 %v726
      %v2094 = vunpack.c.h.b16 %v726
      %v2095 = vunpack.c.l.b16 %v727
      %v2096 = vunpack.c.h.b16 %v727
      %v2097 = vunpack.c.l.b16 %v728
      %v2098 = vunpack.c.h.b16 %v728
      %v2099 = vunpack.c.l.b16 %v729
      %v2100 = vunpack.c.h.b16 %v729
      %v2101 = vunpack.c.l.b16 %v730
      %v2102 = vunpack.c.h.b16 %v730
      %v2103 = vunpack.c.l.b16 %v731
      %v2104 = vunpack.c.h.b16 %v731
      %v2105 = vunpack.c.l.b16 %v732
      %v2106 = vunpack.c.h.b16 %v732
      %v2107 = vunpack.c.l.b16 %v733
      %v2108 = vunpack.c.h.b16 %v733
      %v2109 = vunpack.c.l.b16 %v734
      %v2110 = vunpack.c.h.b16 %v734
      %v2111 = vunpack.c.l.b16 %v735
      %v2112 = vunpack.c.h.b16 %v735
      %v2113 = vunpack.c.l.b16 %v736
      %v2114 = vunpack.c.h.b16 %v736
      %v2115 = vunpack.c.l.b16 %v737
      %v2116 = vunpack.c.h.b16 %v737
      %v2117 = vunpack.c.l.b16 %v738
      %v2118 = vunpack.c.h.b16 %v738
      %v2119 = vunpack.c.l.b16 %v739
      %v2120 = vunpack.c.h.b16 %v739
      %v2121 = vunpack.c.l.b16 %v740
      %v2122 = vunpack.c.h.b16 %v740
      %v2123 = vunpack.c.l.b16 %v741
      %v2124 = vunpack.c.h.b16 %v741
      %v2125 = vunpack.c.l.b16 %v742
      %v2126 = vunpack.c.h.b16 %v742
      %v2127 = vunpack.c.l.b16 %v743
      %v2128 = vunpack.c.h.b16 %v743
      %v2129 = vunpack.c.l.b16 %v744
      %v2130 = vunpack.c.h.b16 %v744
      %v2131 = vunpack.c.l.b16 %v745
      %v2132 = vunpack.c.h.b16 %v745
      %v2133 = vunpack.c.l.b16 %v746
      %v2134 = vunpack.c.h.b16 %v746
      %v2135 = vunpack.c.l.b16 %v747
      %v2136 = vunpack.c.h.b16 %v747
      %v2137 = vunpack.c.l.b16 %v748
      %v2138 = vunpack.c.h.b16 %v748
      %v2139 = vunpack.c.l.b16 %v749
      %v2140 = vunpack.c.h.b16 %v749
      %v2141 = vunpack.c.l.b16 %v750
      %v2142 = vunpack.c.h.b16 %v750
      %v2143 = vunpack.c.l.b16 %v751
      %v2144 = vunpack.c.h.b16 %v751
      %v2145 = vunpack.c.l.b16 %v752
      %v2146 = vunpack.c.h.b16 %v752
      %v2147 = vunpack.c.l.b16 %v753
      %v2148 = vunpack.c.h.b16 %v753
      %v2149 = vunpack.c.l.b16 %v754
      %v2150 = vunpack.c.h.b16 %v754
      %v2151 = vunpack.c.l.b16 %v755
      %v2152 = vunpack.c.h.b16 %v755
      %v2153 = vunpack.c.l.b16 %v756
      %v2154 = vunpack.c.h.b16 %v756
      %v2155 = vunpack.c.l.b16 %v757
      %v2156 = vunpack.c.h.b16 %v757
      %v2157 = vunpack.c.l.b16 %v758
      %v2158 = vunpack.c.h.b16 %v758
      %v2159 = vunpack.c.l.b16 %v759
      %v2160 = vunpack.c.h.b16 %v759
      %v2161 = vunpack.c.l.b16 %v760
      %v2162 = vunpack.c.h.b16 %v760
      %v2163 = vunpack.c.l.b16 %v761
      %v2164 = vunpack.c.h.b16 %v761
      %v2165 = vunpack.c.l.b16 %v762
      %v2166 = vunpack.c.h.b16 %v762
      %v2167 = vunpack.c.l.b16 %v763
      %v2168 = vunpack.c.h.b16 %v763
      %v2169 = vunpack.c.l.b16 %v764
      %v2170 = vunpack.c.h.b16 %v764
      %v2171 = vunpack.c.l.b16 %v765
      %v2172 = vunpack.c.h.b16 %v765
      %v2173 = vunpack.c.l.b16 %v766
      %v2174 = vunpack.c.h.b16 %v766
      %v2175 = vunpack.c.l.b16 %v767
      %v2176 = vunpack.c.h.b16 %v767
      %v2177 = vunpack.c.l.b16 %v768
      %v2178 = vunpack.c.h.b16 %v768
      %v2179 = vunpack.c.l.b16 %v769
      %v2180 = vunpack.c.h.b16 %v769
      %v2181 = vunpack.c.l.b16 %v770
      %v2182 = vunpack.c.h.b16 %v770
      %v2183 = vunpack.c.l.b16 %v771
      %v2184 = vunpack.c.h.b16 %v771
      %v2185 = vunpack.c.l.b16 %v772
      %v2186 = vunpack.c.h.b16 %v772
      %v2187 = vunpack.c.l.b16 %v773
      %v2188 = vunpack.c.h.b16 %v773
      %v2189 = vunpack.c.l.b16 %v774
      %v2190 = vunpack.c.h.b16 %v774
      %v2191 = vunpack.c.l.b16 %v775
      %v2192 = vunpack.c.h.b16 %v775
      %v2193 = vunpack.c.l.b16 %v776
      %v2194 = vunpack.c.h.b16 %v776
      %v2195 = vunpack.c.l.b16 %v777
      %v2196 = vunpack.c.h.b16 %v777
      %v2197 = vunpack.c.l.b16 %v778
      %v2198 = vunpack.c.h.b16 %v778
      %v2199 = vpack.c.b16 %v1689, %v1687
      %v2200 = vpack.c.b16 %v1690, %v1688
      %v2201 = vpack.c.b16 %v1693, %v1691
      %v2202 = vpack.c.b16 %v1694, %v1692
      %v2203 = vpack.c.b16 %v1697, %v1695
      %v2204 = vpack.c.b16 %v1698, %v1696
      %v2205 = vpack.c.b16 %v1701, %v1699
      %v2206 = vpack.c.b16 %v1702, %v1700
      %v2207 = vpack.c.b16 %v1705, %v1703
      %v2208 = vpack.c.b16 %v1706, %v1704
      %v2209 = vpack.c.b16 %v1709, %v1707
      %v2210 = vpack.c.b16 %v1710, %v1708
      %v2211 = vpack.c.b16 %v1713, %v1711
      %v2212 = vpack.c.b16 %v1714, %v1712
      %v2213 = vpack.c.b16 %v1717, %v1715
      %v2214 = vpack.c.b16 %v1718, %v1716
      %v2215 = vpack.c.b16 %v1721, %v1719
      %v2216 = vpack.c.b16 %v1722, %v1720
      %v2217 = vpack.c.b16 %v1725, %v1723
      %v2218 = vpack.c.b16 %v1726, %v1724
      %v2219 = vpack.c.b16 %v1729, %v1727
      %v2220 = vpack.c.b16 %v1730, %v1728
      %v2221 = vpack.c.b16 %v1733, %v1731
      %v2222 = vpack.c.b16 %v1734, %v1732
      %v2223 = vpack.c.b16 %v1737, %v1735
      %v2224 = vpack.c.b16 %v1738, %v1736
      %v2225 = vpack.c.b16 %v1741, %v1739
      %v2226 = vpack.c.b16 %v1742, %v1740
      %v2227 = vpack.c.b16 %v1745, %v1743
      %v2228 = vpack.c.b16 %v1746, %v1744
      %v2229 = vpack.c.b16 %v1749, %v1747
      %v2230 = vpack.c.b16 %v1750, %v1748
      %v2231 = vpack.c.b16 %v1753, %v1751
      %v2232 = vpack.c.b16 %v1754, %v1752
      %v2233 = vpack.c.b16 %v1757, %v1755
      %v2234 = vpack.c.b16 %v1758, %v1756
      %v2235 = vpack.c.b16 %v1761, %v1759
      %v2236 = vpack.c.b16 %v1762, %v1760
      %v2237 = vpack.c.b16 %v1765, %v1763
      %v2238 = vpack.c.b16 %v1766, %v1764
      %v2239 = vpack.c.b16 %v1769, %v1767
      %v2240 = vpack.c.b16 %v1770, %v1768
      %v2241 = vpack.c.b16 %v1773, %v1771
      %v2242 = vpack.c.b16 %v1774, %v1772
      %v2243 = vpack.c.b16 %v1777, %v1775
      %v2244 = vpack.c.b16 %v1778, %v1776
      %v2245 = vpack.c.b16 %v1781, %v1779
      %v2246 = vpack.c.b16 %v1782, %v1780
      %v2247 = vpack.c.b16 %v1785, %v1783
      %v2248 = vpack.c.b16 %v1786, %v1784
      %v2249 = vpack.c.b16 %v1789, %v1787
      %v2250 = vpack.c.b16 %v1790, %v1788
      %v2251 = vpack.c.b16 %v1793, %v1791
      %v2252 = vpack.c.b16 %v1794, %v1792
      %v2253 = vpack.c.b16 %v1797, %v1795
      %v2254 = vpack.c.b16 %v1798, %v1796
      %v2255 = vpack.c.b16 %v1801, %v1799
      %v2256 = vpack.c.b16 %v1802, %v1800
      %v2257 = vpack.c.b16 %v1805, %v1803
      %v2258 = vpack.c.b16 %v1806, %v1804
      %v2259 = vpack.c.b16 %v1809, %v1807
      %v2260 = vpack.c.b16 %v1810, %v1808
      %v2261 = vpack.c.b16 %v1813, %v1811
      %v2262 = vpack.c.b16 %v1814, %v1812
      %v2263 = vpack.c.b16 %v1817, %v1815
      %v2264 = vpack.c.b16 %v1818, %v1816
      %v2265 = vpack.c.b16 %v1821, %v1819
      %v2266 = vpack.c.b16 %v1822, %v1820
      %v2267 = vpack.c.b16 %v1825, %v1823
      %v2268 = vpack.c.b16 %v1826, %v1824
      %v2269 = vpack.c.b16 %v1829, %v1827
      %v2270 = vpack.c.b16 %v1830, %v1828
      %v2271 = vpack.c.b16 %v1833, %v1831
      %v2272 = vpack.c.b16 %v1834, %v1832
      %v2273 = vpack.c.b16 %v1837, %v1835
      %v2274 = vpack.c.b16 %v1838, %v1836
      %v2275 = vpack.c.b16 %v1841, %v1839
      %v2276 = vpack.c.b16 %v1842, %v1840
      %v2277 = vpack.c.b16 %v1845, %v1843
      %v2278 = vpack.c.b16 %v1846, %v1844
      %v2279 = vpack.c.b16 %v1849, %v1847
      %v2280 = vpack.c.b16 %v1850, %v1848
      %v2281 = vpack.c.b16 %v1853, %v1851
      %v2282 = vpack.c.b16 %v1854, %v1852
      %v2283 = vpack.c.b16 %v1857, %v1855
      %v2284 = vpack.c.b16 %v1858, %v1856
      %v2285 = vpack.c.b16 %v1861, %v1859
      %v2286 = vpack.c.b16 %v1862, %v1860
      %v2287 = vpack.c.b16 %v1865, %v1863
      %v2288 = vpack.c.b16 %v1866, %v1864
      %v2289 = vpack.c.b16 %v1869, %v1867
      %v2290 = vpack.c.b16 %v1870, %v1868
      %v2291 = vpack.c.b16 %v1873, %v1871
      %v2292 = vpack.c.b16 %v1874, %v1872
      %v2293 = vpack.c.b16 %v1877, %v1875
      %v2294 = vpack.c.b16 %v1878, %v1876
      %v2295 = vpack.c.b16 %v1881, %v1879
      %v2296 = vpack.c.b16 %v1882, %v1880
      %v2297 = vpack.c.b16 %v1885, %v1883
      %v2298 = vpack.c.b16 %v1886, %v1884
      %v2299 = vpack.c.b16 %v1889, %v1887
      %v2300 = vpack.c.b16 %v1890, %v1888
      %v2301 = vpack.c.b16 %v1893, %v1891
      %v2302 = vpack.c.b16 %v1894, %v1892
      %v2303 = vpack.c.b16 %v1897, %v1895
      %v2304 = vpack.c.b16 %v1898, %v1896
      %v2305 = vpack.c.b16 %v1901, %v1899
      %v2306 = vpack.c.b16 %v1902, %v1900
      %v2307 = vpack.c.b16 %v1905, %v1903
      %v2308 = vpack.c.b16 %v1906, %v1904
      %v2309 = vpack.c.b16 %v1909, %v1907
      %v2310 = vpack.c.b16 %v1910, %v1908
      %v2311 = vpack.c.b16 %v1913, %v1911
      %v2312 = vpack.c.b16 %v1914, %v1912
      %v2313 = vpack.c.b16 %v1917, %v1915
      %v2314 = vpack.c.b16 %v1918, %v1916
      %v2315 = vpack.c.b16 %v1921, %v1919
      %v2316 = vpack.c.b16 %v1922, %v1920
      %v2317 = vpack.c.b16 %v1925, %v1923
      %v2318 = vpack.c.b16 %v1926, %v1924
      %v2319 = vpack.c.b16 %v1929, %v1927
      %v2320 = vpack.c.b16 %v1930, %v1928
      %v2321 = vpack.c.b16 %v1933, %v1931
      %v2322 = vpack.c.b16 %v1934, %v1932
      %v2323 = vpack.c.b16 %v1937, %v1935
      %v2324 = vpack.c.b16 %v1938, %v1936
      %v2325 = vpack.c.b16 %v1941, %v1939
      %v2326 = vpack.c.b16 %v1942, %v1940
      %v2327 = vpack.c.b16 %v1945, %v1943
      %v2328 = vpack.c.b16 %v1946, %v1944
      %v2329 = vpack.c.b16 %v1949, %v1947
      %v2330 = vpack.c.b16 %v1950, %v1948
      %v2331 = vpack.c.b16 %v1953, %v1951
      %v2332 = vpack.c.b16 %v1954, %v1952
      %v2333 = vpack.c.b16 %v1957, %v1955
      %v2334 = vpack.c.b16 %v1958, %v1956
      %v2335 = vpack.c.b16 %v1961, %v1959
      %v2336 = vpack.c.b16 %v1962, %v1960
      %v2337 = vpack.c.b16 %v1965, %v1963
      %v2338 = vpack.c.b16 %v1966, %v1964
      %v2339 = vpack.c.b16 %v1969, %v1967
      %v2340 = vpack.c.b16 %v1970, %v1968
      %v2341 = vpack.c.b16 %v1973, %v1971
      %v2342 = vpack.c.b16 %v1974, %v1972
      %v2343 = vpack.c.b16 %v1977, %v1975
      %v2344 = vpack.c.b16 %v1978, %v1976
      %v2345 = vpack.c.b16 %v1981, %v1979
      %v2346 = vpack.c.b16 %v1982, %v1980
      %v2347 = vpack.c.b16 %v1985, %v1983
      %v2348 = vpack.c.b16 %v1986, %v1984
      %v2349 = vpack.c.b16 %v1989, %v1987
      %v2350 = vpack.c.b16 %v1990, %v1988
      %v2351 = vpack.c.b16 %v1993, %v1991
      %v2352 = vpack.c.b16 %v1994, %v1992
      %v2353 = vpack.c.b16 %v1997, %v1995
      %v2354 = vpack.c.b16 %v1998, %v1996
      %v2355 = vpack.c.b16 %v2001, %v1999
      %v2356 = vpack.c.b16 %v2002, %v2000
      %v2357 = vpack.c.b16 %v2005, %v2003
      %v2358 = vpack.c.b16 %v2006, %v2004
      %v2359 = vpack.c.b16 %v2009, %v2007
      %v2360 = vpack.c.b16 %v2010, %v2008
      %v2361 = vpack.c.b16 %v2013, %v2011
      %v2362 = vpack.c.b16 %v2014, %v2012
      %v2363 = vpack.c.b16 %v2017, %v2015
      %v2364 = vpack.c.b16 %v2018, %v2016
      %v2365 = vpack.c.b16 %v2021, %v2019
      %v2366 = vpack.c.b16 %v2022, %v2020
      %v2367 = vpack.c.b16 %v2025, %v2023
      %v2368 = vpack.c.b16 %v2026, %v2024
      %v2369 = vpack.c.b16 %v2029, %v2027
      %v2370 = vpack.c.b16 %v2030, %v2028
      %v2371 = vpack.c.b16 %v2033, %v2031
      %v2372 = vpack.c.b16 %v2034, %v2032
      %v2373 = vpack.c.b16 %v2037, %v2035
      %v2374 = vpack.c.b16 %v2038, %v2036
      %v2375 = vpack.c.b16 %v2041, %v2039
      %v2376 = vpack.c.b16 %v2042, %v2040
      %v2377 = vpack.c.b16 %v2045, %v2043
      %v2378 = vpack.c.b16 %v2046, %v2044
      %v2379 = vpack.c.b16 %v2049, %v2047
      %v2380 = vpack.c.b16 %v2050, %v2048
      %v2381 = vpack.c.b16 %v2053, %v2051
      %v2382 = vpack.c.b16 %v2054, %v2052
      %v2383 = vpack.c.b16 %v2057, %v2055
      %v2384 = vpack.c.b16 %v2058, %v2056
      %v2385 = vpack.c.b16 %v2061, %v2059
      %v2386 = vpack.c.b16 %v2062, %v2060
      %v2387 = vpack.c.b16 %v2065, %v2063
      %v2388 = vpack.c.b16 %v2066, %v2064
      %v2389 = vpack.c.b16 %v2069, %v2067
      %v2390 = vpack.c.b16 %v2070, %v2068
      %v2391 = vpack.c.b16 %v2073, %v2071
      %v2392 = vpack.c.b16 %v2074, %v2072
      %v2393 = vpack.c.b16 %v2077, %v2075
      %v2394 = vpack.c.b16 %v2078, %v2076
      %v2395 = vpack.c.b16 %v2081, %v2079
      %v2396 = vpack.c.b16 %v2082, %v2080
      %v2397 = vpack.c.b16 %v2085, %v2083
      %v2398 = vpack.c.b16 %v2086, %v2084
      %v2399 = vpack.c.b16 %v2089, %v2087
      %v2400 = vpack.c.b16 %v2090, %v2088
      %v2401 = vpack.c.b16 %v2093, %v2091
      %v2402 = vpack.c.b16 %v2094, %v2092
      %v2403 = vpack.c.b16 %v2097, %v2095
      %v2404 = vpack.c.b16 %v2098, %v2096
      %v2405 = vpack.c.b16 %v2101, %v2099
      %v2406 = vpack.c.b16 %v2102, %v2100
      %v2407 = vpack.c.b16 %v2105, %v2103
      %v2408 = vpack.c.b16 %v2106, %v2104
      %v2409 = vpack.c.b16 %v2109, %v2107
      %v2410 = vpack.c.b16 %v2110, %v2108
      %v2411 = vpack.c.b16 %v2113, %v2111
      %v2412 = vpack.c.b16 %v2114, %v2112
      %v2413 = vpack.c.b16 %v2117, %v2115
      %v2414 = vpack.c.b16 %v2118, %v2116
      %v2415 = vpack.c.b16 %v2121, %v2119
      %v2416 = vpack.c.b16 %v2122, %v2120
      %v2417 = vpack.c.b16 %v2125, %v2123
      %v2418 = vpack.c.b16 %v2126, %v2124
      %v2419 = vpack.c.b16 %v2129, %v2127
      %v2420 = vpack.c.b16 %v2130, %v2128
      %v2421 = vpack.c.b16 %v2133, %v2131
      %v2422 = vpack.c.b16 %v2134, %v2132
      %v2423 = vpack.c.b16 %v2137, %v2135
      %v2424 = vpack.c.b16 %v2138, %v2136
      %v2425 = vpack.c.b16 %v2141, %v2139
      %v2426 = vpack.c.b16 %v2142, %v2140
      %v2427 = vpack.c.b16 %v2145, %v2143
      %v2428 = vpack.c.b16 %v2146, %v2144
      %v2429 = vpack.c.b16 %v2149, %v2147
      %v2430 = vpack.c.b16 %v2150, %v2148
      %v2431 = vpack.c.b16 %v2153, %v2151
      %v2432 = vpack.c.b16 %v2154, %v2152
      %v2433 = vpack.c.b16 %v2157, %v2155
      %v2434 = vpack.c.b16 %v2158, %v2156
      %v2435 = vpack.c.b16 %v2161, %v2159
      %v2436 = vpack.c.b16 %v2162, %v2160
      %v2437 = vpack.c.b16 %v2165, %v2163
      %v2438 = vpack.c.b16 %v2166, %v2164
      %v2439 = vpack.c.b16 %v2169, %v2167
      %v2440 = vpack.c.b16 %v2170, %v2168
      %v2441 = vpack.c.b16 %v2173, %v2171
      %v2442 = vpack.c.b16 %v2174, %v2172
      %v2443 = vpack.c.b16 %v2177, %v2175
      %v2444 = vpack.c.b16 %v2178, %v2176
      %v2445 = vpack.c.b16 %v2181, %v2179
      %v2446 = vpack.c.b16 %v2182, %v2180
      %v2447 = vpack.c.b16 %v2185, %v2183
      %v2448 = vpack.c.b16 %v2186, %v2184
      %v2449 = vpack.c.b16 %v2189, %v2187
      %v2450 = vpack.c.b16 %v2190, %v2188
      %v2451 = vpack.c.b16 %v2193, %v2191
      %v2452 = vpack.c.b16 %v2194, %v2192
      %v2453 = vpack.c.b16 %v2197, %v2195
      %v2454 = vpack.c.b16 %v2198, %v2196
      %2711 = vmatprep.subr.bf16.mxu0 %v2214
      %2712 = vmatpush1.bf16.msra.mxu0 %v2213
      %2713 = vmatprep.subr.bf16.mxu0 %v2212
      %2714 = vmatpush1.bf16.msra.mxu0 %v2211
      %2715 = vmatprep.subr.bf16.mxu0 %v2210
      %2716 = vmatpush1.bf16.msra.mxu0 %v2209
      %2717 = vmatprep.subr.bf16.mxu0 %v2208
      %2718 = vmatpush1.bf16.msra.mxu0 %v2207
      %2719 = vmatprep.subr.bf16.mxu0 %v2206
      %2720 = vmatpush1.bf16.msra.mxu0 %v2205
      %2721 = vmatprep.subr.bf16.mxu0 %v2204
      %2722 = vmatpush1.bf16.msra.mxu0 %v2203
      %2723 = vmatprep.subr.bf16.mxu0 %v2202
      %2724 = vmatpush1.bf16.msra.mxu0 %v2201
      %2725 = vmatprep.subr.bf16.mxu0 %v2200
      %2726 = vmatpush1.bf16.msra.mxu0 %v2199
      %2727 = vmatprep.subr.bf16.mxu0 %v2230
      %2728 = vmatpush2.bf16.msra.mxu0 %v2229
      %2729 = vmatprep.subr.bf16.mxu0 %v2228
      %2730 = vmatpush2.bf16.msra.mxu0 %v2227
      %2731 = vmatprep.subr.bf16.mxu0 %v2226
      %2732 = vmatpush2.bf16.msra.mxu0 %v2225
      %2733 = vmatprep.subr.bf16.mxu0 %v2224
      %2734 = vmatpush2.bf16.msra.mxu0 %v2223
      %2735 = vmatprep.subr.bf16.mxu0 %v2222
      %2736 = vmatpush2.bf16.msra.mxu0 %v2221
      %2737 = vmatprep.subr.bf16.mxu0 %v2220
      %2738 = vmatpush2.bf16.msra.mxu0 %v2219
      %2739 = vmatprep.subr.bf16.mxu0 %v2218
      %2740 = vmatpush2.bf16.msra.mxu0 %v2217
      %2741 = vmatprep.subr.bf16.mxu0 %v2216
      %2742 = vmatpush2.bf16.msra.mxu0 %v2215
      %2743 = vmatprep.mubr.bf16.mxu0 %v1176
      %2744 = vmatmul.mubr.bf16.gmra.mxu0 %v1175
      %v2745 = vpop.f32.mrf.mxu0
      %v2746 = vadd.f32 %v784, %v2745
      %v2747 = vpop.f32.mrf.mxu0
      %v2748 = vadd.f32 %v788, %v2747
      %v2749 = vpop.f32.mrf.mxu0
      %v2750 = vadd.f32 %v784, %v2749
      %v2751 = vpop.f32.mrf.mxu0
      %v2752 = vadd.f32 %v788, %v2751
      %2753 = vmatprep.mubr.bf16.mxu0 %v1192
      %2754 = vmatmul.mubr.bf16.gmra.mxu0 %v1191
      %v2755 = vpop.f32.mrf.mxu0
      %v2756 = vadd.f32 %v784, %v2755
      %v2757 = vpop.f32.mrf.mxu0
      %v2758 = vadd.f32 %v788, %v2757
      %v2759 = vpop.f32.mrf.mxu0
      %v2760 = vadd.f32 %v784, %v2759
      %v2761 = vpop.f32.mrf.mxu0
      %v2762 = vadd.f32 %v788, %v2761
      %2763 = vmatprep.mubr.bf16.mxu0 %v1208
      %2764 = vmatmul.mubr.bf16.gmra.mxu0 %v1207
      %v2765 = vpop.f32.mrf.mxu0
      %v2766 = vadd.f32 %v784, %v2765
      %v2767 = vpop.f32.mrf.mxu0
      %v2768 = vadd.f32 %v788, %v2767
      %v2769 = vpop.f32.mrf.mxu0
      %v2770 = vadd.f32 %v784, %v2769
      %v2771 = vpop.f32.mrf.mxu0
      %v2772 = vadd.f32 %v788, %v2771
      %2773 = vmatprep.mubr.bf16.mxu0 %v1224
      %2774 = vmatmul.mubr.bf16.gmra.mxu0 %v1223
      %v2775 = vpop.f32.mrf.mxu0
      %v2776 = vadd.f32 %v784, %v2775
      %v2777 = vpop.f32.mrf.mxu0
      %v2778 = vadd.f32 %v788, %v2777
      %v2779 = vpop.f32.mrf.mxu0
      %v2780 = vadd.f32 %v784, %v2779
      %v2781 = vpop.f32.mrf.mxu0
      %v2782 = vadd.f32 %v788, %v2781
      %2783 = vmatprep.mubr.bf16.mxu0 %v1240
      %2784 = vmatmul.mubr.bf16.gmra.mxu0 %v1239
      %v2785 = vpop.f32.mrf.mxu0
      %v2786 = vadd.f32 %v784, %v2785
      %v2787 = vpop.f32.mrf.mxu0
      %v2788 = vadd.f32 %v788, %v2787
      %v2789 = vpop.f32.mrf.mxu0
      %v2790 = vadd.f32 %v784, %v2789
      %v2791 = vpop.f32.mrf.mxu0
      %v2792 = vadd.f32 %v788, %v2791
      %2793 = vmatprep.mubr.bf16.mxu0 %v1256
      %2794 = vmatmul.mubr.bf16.gmra.mxu0 %v1255
      %v2795 = vpop.f32.mrf.mxu0
      %v2796 = vadd.f32 %v784, %v2795
      %v2797 = vpop.f32.mrf.mxu0
      %v2798 = vadd.f32 %v788, %v2797
      %v2799 = vpop.f32.mrf.mxu0
      %v2800 = vadd.f32 %v784, %v2799
      %v2801 = vpop.f32.mrf.mxu0
      %v2802 = vadd.f32 %v788, %v2801
      %2803 = vmatprep.mubr.bf16.mxu0 %v1272
      %2804 = vmatmul.mubr.bf16.gmra.mxu0 %v1271
      %v2805 = vpop.f32.mrf.mxu0
      %v2806 = vadd.f32 %v784, %v2805
      %v2807 = vpop.f32.mrf.mxu0
      %v2808 = vadd.f32 %v788, %v2807
      %v2809 = vpop.f32.mrf.mxu0
      %v2810 = vadd.f32 %v784, %v2809
      %v2811 = vpop.f32.mrf.mxu0
      %v2812 = vadd.f32 %v788, %v2811
      %2813 = vmatprep.mubr.bf16.mxu0 %v1288
      %2814 = vmatmul.mubr.bf16.gmra.mxu0 %v1287
      %v2815 = vpop.f32.mrf.mxu0
      %v2816 = vadd.f32 %v784, %v2815
      %v2817 = vpop.f32.mrf.mxu0
      %v2818 = vadd.f32 %v788, %v2817
      %v2819 = vpop.f32.mrf.mxu0
      %v2820 = vadd.f32 %v784, %v2819
      %v2821 = vpop.f32.mrf.mxu0
      %v2822 = vadd.f32 %v788, %v2821
      %2823 = vdwg.mxu0
      %2824 = vmatprep.subr.bf16.mxu0 %v2246
      %2825 = vmatpush1.bf16.msra.mxu0 %v2245
      %2826 = vmatprep.subr.bf16.mxu0 %v2244
      %2827 = vmatpush1.bf16.msra.mxu0 %v2243
      %2828 = vmatprep.subr.bf16.mxu0 %v2242
      %2829 = vmatpush1.bf16.msra.mxu0 %v2241
      %2830 = vmatprep.subr.bf16.mxu0 %v2240
      %2831 = vmatpush1.bf16.msra.mxu0 %v2239
      %2832 = vmatprep.subr.bf16.mxu0 %v2238
      %2833 = vmatpush1.bf16.msra.mxu0 %v2237
      %2834 = vmatprep.subr.bf16.mxu0 %v2236
      %2835 = vmatpush1.bf16.msra.mxu0 %v2235
      %2836 = vmatprep.subr.bf16.mxu0 %v2234
      %2837 = vmatpush1.bf16.msra.mxu0 %v2233
      %2838 = vmatprep.subr.bf16.mxu0 %v2232
      %2839 = vmatpush1.bf16.msra.mxu0 %v2231
      %2840 = vmatprep.subr.bf16.mxu0 %v2262
      %2841 = vmatpush2.bf16.msra.mxu0 %v2261
      %2842 = vmatprep.subr.bf16.mxu0 %v2260
      %2843 = vmatpush2.bf16.msra.mxu0 %v2259
      %2844 = vmatprep.subr.bf16.mxu0 %v2258
      %2845 = vmatpush2.bf16.msra.mxu0 %v2257
      %2846 = vmatprep.subr.bf16.mxu0 %v2256
      %2847 = vmatpush2.bf16.msra.mxu0 %v2255
      %2848 = vmatprep.subr.bf16.mxu0 %v2254
      %2849 = vmatpush2.bf16.msra.mxu0 %v2253
      %2850 = vmatprep.subr.bf16.mxu0 %v2252
      %2851 = vmatpush2.bf16.msra.mxu0 %v2251
      %2852 = vmatprep.subr.bf16.mxu0 %v2250
      %2853 = vmatpush2.bf16.msra.mxu0 %v2249
      %2854 = vmatprep.subr.bf16.mxu0 %v2248
      %2855 = vmatpush2.bf16.msra.mxu0 %v2247
      %2856 = vmatprep.mubr.bf16.mxu0 %v1178
      %2857 = vmatmul.mubr.bf16.gmra.mxu0 %v1177
      %v2858 = vpop.f32.mrf.mxu0
      %v2859 = vadd.f32 %v2746, %v2858
      %v2860 = vpop.f32.mrf.mxu0
      %v2861 = vadd.f32 %v2748, %v2860
      %v2862 = vpop.f32.mrf.mxu0
      %v2863 = vadd.f32 %v2750, %v2862
      %v2864 = vpop.f32.mrf.mxu0
      %v2865 = vadd.f32 %v2752, %v2864
      %2866 = vmatprep.mubr.bf16.mxu0 %v1194
      %2867 = vmatmul.mubr.bf16.gmra.mxu0 %v1193
      %v2868 = vpop.f32.mrf.mxu0
      %v2869 = vadd.f32 %v2756, %v2868
      %v2870 = vpop.f32.mrf.mxu0
      %v2871 = vadd.f32 %v2758, %v2870
      %v2872 = vpop.f32.mrf.mxu0
      %v2873 = vadd.f32 %v2760, %v2872
      %v2874 = vpop.f32.mrf.mxu0
      %v2875 = vadd.f32 %v2762, %v2874
      %2876 = vmatprep.mubr.bf16.mxu0 %v1210
      %2877 = vmatmul.mubr.bf16.gmra.mxu0 %v1209
      %v2878 = vpop.f32.mrf.mxu0
      %v2879 = vadd.f32 %v2766, %v2878
      %v2880 = vpop.f32.mrf.mxu0
      %v2881 = vadd.f32 %v2768, %v2880
      %v2882 = vpop.f32.mrf.mxu0
      %v2883 = vadd.f32 %v2770, %v2882
      %v2884 = vpop.f32.mrf.mxu0
      %v2885 = vadd.f32 %v2772, %v2884
      %2886 = vmatprep.mubr.bf16.mxu0 %v1226
      %2887 = vmatmul.mubr.bf16.gmra.mxu0 %v1225
      %v2888 = vpop.f32.mrf.mxu0
      %v2889 = vadd.f32 %v2776, %v2888
      %v2890 = vpop.f32.mrf.mxu0
      %v2891 = vadd.f32 %v2778, %v2890
      %v2892 = vpop.f32.mrf.mxu0
      %v2893 = vadd.f32 %v2780, %v2892
      %v2894 = vpop.f32.mrf.mxu0
      %v2895 = vadd.f32 %v2782, %v2894
      %2896 = vmatprep.mubr.bf16.mxu0 %v1242
      %2897 = vmatmul.mubr.bf16.gmra.mxu0 %v1241
      %v2898 = vpop.f32.mrf.mxu0
      %v2899 = vadd.f32 %v2786, %v2898
      %v2900 = vpop.f32.mrf.mxu0
      %v2901 = vadd.f32 %v2788, %v2900
      %v2902 = vpop.f32.mrf.mxu0
      %v2903 = vadd.f32 %v2790, %v2902
      %v2904 = vpop.f32.mrf.mxu0
      %v2905 = vadd.f32 %v2792, %v2904
      %2906 = vmatprep.mubr.bf16.mxu0 %v1258
      %2907 = vmatmul.mubr.bf16.gmra.mxu0 %v1257
      %v2908 = vpop.f32.mrf.mxu0
      %v2909 = vadd.f32 %v2796, %v2908
      %v2910 = vpop.f32.mrf.mxu0
      %v2911 = vadd.f32 %v2798, %v2910
      %v2912 = vpop.f32.mrf.mxu0
      %v2913 = vadd.f32 %v2800, %v2912
      %v2914 = vpop.f32.mrf.mxu0
      %v2915 = vadd.f32 %v2802, %v2914
      %2916 = vmatprep.mubr.bf16.mxu0 %v1274
      %2917 = vmatmul.mubr.bf16.gmra.mxu0 %v1273
      %v2918 = vpop.f32.mrf.mxu0
      %v2919 = vadd.f32 %v2806, %v2918
      %v2920 = vpop.f32.mrf.mxu0
      %v2921 = vadd.f32 %v2808, %v2920
      %v2922 = vpop.f32.mrf.mxu0
      %v2923 = vadd.f32 %v2810, %v2922
      %v2924 = vpop.f32.mrf.mxu0
      %v2925 = vadd.f32 %v2812, %v2924
      %2926 = vmatprep.mubr.bf16.mxu0 %v1290
      %2927 = vmatmul.mubr.bf16.gmra.mxu0 %v1289
      %v2928 = vpop.f32.mrf.mxu0
      %v2929 = vadd.f32 %v2816, %v2928
      %v2930 = vpop.f32.mrf.mxu0
      %v2931 = vadd.f32 %v2818, %v2930
      %v2932 = vpop.f32.mrf.mxu0
      %v2933 = vadd.f32 %v2820, %v2932
      %v2934 = vpop.f32.mrf.mxu0
      %v2935 = vadd.f32 %v2822, %v2934
      %2936 = vdwg.mxu0
      %2937 = vmatprep.subr.bf16.mxu0 %v2278
      %2938 = vmatpush1.bf16.msra.mxu0 %v2277
      %2939 = vmatprep.subr.bf16.mxu0 %v2276
      %2940 = vmatpush1.bf16.msra.mxu0 %v2275
      %2941 = vmatprep.subr.bf16.mxu0 %v2274
      %2942 = vmatpush1.bf16.msra.mxu0 %v2273
      %2943 = vmatprep.subr.bf16.mxu0 %v2272
      %2944 = vmatpush1.bf16.msra.mxu0 %v2271
      %2945 = vmatprep.subr.bf16.mxu0 %v2270
      %2946 = vmatpush1.bf16.msra.mxu0 %v2269
      %2947 = vmatprep.subr.bf16.mxu0 %v2268
      %2948 = vmatpush1.bf16.msra.mxu0 %v2267
      %2949 = vmatprep.subr.bf16.mxu0 %v2266
      %2950 = vmatpush1.bf16.msra.mxu0 %v2265
      %2951 = vmatprep.subr.bf16.mxu0 %v2264
      %2952 = vmatpush1.bf16.msra.mxu0 %v2263
      %2953 = vmatprep.subr.bf16.mxu0 %v2294
      %2954 = vmatpush2.bf16.msra.mxu0 %v2293
      %2955 = vmatprep.subr.bf16.mxu0 %v2292
      %2956 = vmatpush2.bf16.msra.mxu0 %v2291
      %2957 = vmatprep.subr.bf16.mxu0 %v2290
      %2958 = vmatpush2.bf16.msra.mxu0 %v2289
      %2959 = vmatprep.subr.bf16.mxu0 %v2288
      %2960 = vmatpush2.bf16.msra.mxu0 %v2287
      %2961 = vmatprep.subr.bf16.mxu0 %v2286
      %2962 = vmatpush2.bf16.msra.mxu0 %v2285
      %2963 = vmatprep.subr.bf16.mxu0 %v2284
      %2964 = vmatpush2.bf16.msra.mxu0 %v2283
      %2965 = vmatprep.subr.bf16.mxu0 %v2282
      %2966 = vmatpush2.bf16.msra.mxu0 %v2281
      %2967 = vmatprep.subr.bf16.mxu0 %v2280
      %2968 = vmatpush2.bf16.msra.mxu0 %v2279
      %2969 = vmatprep.mubr.bf16.mxu0 %v1180
      %2970 = vmatmul.mubr.bf16.gmra.mxu0 %v1179
      %v2971 = vpop.f32.mrf.mxu0
      %v2972 = vadd.f32 %v2859, %v2971
      %v2973 = vpop.f32.mrf.mxu0
      %v2974 = vadd.f32 %v2861, %v2973
      %v2975 = vpop.f32.mrf.mxu0
      %v2976 = vadd.f32 %v2863, %v2975
      %v2977 = vpop.f32.mrf.mxu0
      %v2978 = vadd.f32 %v2865, %v2977
      %2979 = vmatprep.mubr.bf16.mxu0 %v1196
      %2980 = vmatmul.mubr.bf16.gmra.mxu0 %v1195
      %v2981 = vpop.f32.mrf.mxu0
      %v2982 = vadd.f32 %v2869, %v2981
      %v2983 = vpop.f32.mrf.mxu0
      %v2984 = vadd.f32 %v2871, %v2983
      %v2985 = vpop.f32.mrf.mxu0
      %v2986 = vadd.f32 %v2873, %v2985
      %v2987 = vpop.f32.mrf.mxu0
      %v2988 = vadd.f32 %v2875, %v2987
      %2989 = vmatprep.mubr.bf16.mxu0 %v1212
      %2990 = vmatmul.mubr.bf16.gmra.mxu0 %v1211
      %v2991 = vpop.f32.mrf.mxu0
      %v2992 = vadd.f32 %v2879, %v2991
      %v2993 = vpop.f32.mrf.mxu0
      %v2994 = vadd.f32 %v2881, %v2993
      %v2995 = vpop.f32.mrf.mxu0
      %v2996 = vadd.f32 %v2883, %v2995
      %v2997 = vpop.f32.mrf.mxu0
      %v2998 = vadd.f32 %v2885, %v2997
      %2999 = vmatprep.mubr.bf16.mxu0 %v1228
      %3000 = vmatmul.mubr.bf16.gmra.mxu0 %v1227
      %v3001 = vpop.f32.mrf.mxu0
      %v3002 = vadd.f32 %v2889, %v3001
      %v3003 = vpop.f32.mrf.mxu0
      %v3004 = vadd.f32 %v2891, %v3003
      %v3005 = vpop.f32.mrf.mxu0
      %v3006 = vadd.f32 %v2893, %v3005
      %v3007 = vpop.f32.mrf.mxu0
      %v3008 = vadd.f32 %v2895, %v3007
      %3009 = vmatprep.mubr.bf16.mxu0 %v1244
      %3010 = vmatmul.mubr.bf16.gmra.mxu0 %v1243
      %v3011 = vpop.f32.mrf.mxu0
      %v3012 = vadd.f32 %v2899, %v3011
      %v3013 = vpop.f32.mrf.mxu0
      %v3014 = vadd.f32 %v2901, %v3013
      %v3015 = vpop.f32.mrf.mxu0
      %v3016 = vadd.f32 %v2903, %v3015
      %v3017 = vpop.f32.mrf.mxu0
      %v3018 = vadd.f32 %v2905, %v3017
      %3019 = vmatprep.mubr.bf16.mxu0 %v1260
      %3020 = vmatmul.mubr.bf16.gmra.mxu0 %v1259
      %v3021 = vpop.f32.mrf.mxu0
      %v3022 = vadd.f32 %v2909, %v3021
      %v3023 = vpop.f32.mrf.mxu0
      %v3024 = vadd.f32 %v2911, %v3023
      %v3025 = vpop.f32.mrf.mxu0
      %v3026 = vadd.f32 %v2913, %v3025
      %v3027 = vpop.f32.mrf.mxu0
      %v3028 = vadd.f32 %v2915, %v3027
      %3029 = vmatprep.mubr.bf16.mxu0 %v1276
      %3030 = vmatmul.mubr.bf16.gmra.mxu0 %v1275
      %v3031 = vpop.f32.mrf.mxu0
      %v3032 = vadd.f32 %v2919, %v3031
      %v3033 = vpop.f32.mrf.mxu0
      %v3034 = vadd.f32 %v2921, %v3033
      %v3035 = vpop.f32.mrf.mxu0
      %v3036 = vadd.f32 %v2923, %v3035
      %v3037 = vpop.f32.mrf.mxu0
      %v3038 = vadd.f32 %v2925, %v3037
      %3039 = vmatprep.mubr.bf16.mxu0 %v1292
      %3040 = vmatmul.mubr.bf16.gmra.mxu0 %v1291
      %v3041 = vpop.f32.mrf.mxu0
      %v3042 = vadd.f32 %v2929, %v3041
      %v3043 = vpop.f32.mrf.mxu0
      %v3044 = vadd.f32 %v2931, %v3043
      %v3045 = vpop.f32.mrf.mxu0
      %v3046 = vadd.f32 %v2933, %v3045
      %v3047 = vpop.f32.mrf.mxu0
      %v3048 = vadd.f32 %v2935, %v3047
      %3049 = vdwg.mxu0
      %3050 = vmatprep.subr.bf16.mxu0 %v2310
      %3051 = vmatpush1.bf16.msra.mxu0 %v2309
      %3052 = vmatprep.subr.bf16.mxu0 %v2308
      %3053 = vmatpush1.bf16.msra.mxu0 %v2307
      %3054 = vmatprep.subr.bf16.mxu0 %v2306
      %3055 = vmatpush1.bf16.msra.mxu0 %v2305
      %3056 = vmatprep.subr.bf16.mxu0 %v2304
      %3057 = vmatpush1.bf16.msra.mxu0 %v2303
      %3058 = vmatprep.subr.bf16.mxu0 %v2302
      %3059 = vmatpush1.bf16.msra.mxu0 %v2301
      %3060 = vmatprep.subr.bf16.mxu0 %v2300
      %3061 = vmatpush1.bf16.msra.mxu0 %v2299
      %3062 = vmatprep.subr.bf16.mxu0 %v2298
      %3063 = vmatpush1.bf16.msra.mxu0 %v2297
      %3064 = vmatprep.subr.bf16.mxu0 %v2296
      %3065 = vmatpush1.bf16.msra.mxu0 %v2295
      %3066 = vmatprep.subr.bf16.mxu0 %v2326
      %3067 = vmatpush2.bf16.msra.mxu0 %v2325
      %3068 = vmatprep.subr.bf16.mxu0 %v2324
      %3069 = vmatpush2.bf16.msra.mxu0 %v2323
      %3070 = vmatprep.subr.bf16.mxu0 %v2322
      %3071 = vmatpush2.bf16.msra.mxu0 %v2321
      %3072 = vmatprep.subr.bf16.mxu0 %v2320
      %3073 = vmatpush2.bf16.msra.mxu0 %v2319
      %3074 = vmatprep.subr.bf16.mxu0 %v2318
      %3075 = vmatpush2.bf16.msra.mxu0 %v2317
      %3076 = vmatprep.subr.bf16.mxu0 %v2316
      %3077 = vmatpush2.bf16.msra.mxu0 %v2315
      %3078 = vmatprep.subr.bf16.mxu0 %v2314
      %3079 = vmatpush2.bf16.msra.mxu0 %v2313
      %3080 = vmatprep.subr.bf16.mxu0 %v2312
      %3081 = vmatpush2.bf16.msra.mxu0 %v2311
      %3082 = vmatprep.mubr.bf16.mxu0 %v1182
      %3083 = vmatmul.mubr.bf16.gmra.mxu0 %v1181
      %v3084 = vpop.f32.mrf.mxu0
      %v3085 = vadd.f32 %v2972, %v3084
      %v3086 = vpop.f32.mrf.mxu0
      %v3087 = vadd.f32 %v2974, %v3086
      %v3088 = vpop.f32.mrf.mxu0
      %v3089 = vadd.f32 %v2976, %v3088
      %v3090 = vpop.f32.mrf.mxu0
      %v3091 = vadd.f32 %v2978, %v3090
      %3092 = vmatprep.mubr.bf16.mxu0 %v1198
      %3093 = vmatmul.mubr.bf16.gmra.mxu0 %v1197
      %v3094 = vpop.f32.mrf.mxu0
      %v3095 = vadd.f32 %v2982, %v3094
      %v3096 = vpop.f32.mrf.mxu0
      %v3097 = vadd.f32 %v2984, %v3096
      %v3098 = vpop.f32.mrf.mxu0
      %v3099 = vadd.f32 %v2986, %v3098
      %v3100 = vpop.f32.mrf.mxu0
      %v3101 = vadd.f32 %v2988, %v3100
      %3102 = vmatprep.mubr.bf16.mxu0 %v1214
      %3103 = vmatmul.mubr.bf16.gmra.mxu0 %v1213
      %v3104 = vpop.f32.mrf.mxu0
      %v3105 = vadd.f32 %v2992, %v3104
      %v3106 = vpop.f32.mrf.mxu0
      %v3107 = vadd.f32 %v2994, %v3106
      %v3108 = vpop.f32.mrf.mxu0
      %v3109 = vadd.f32 %v2996, %v3108
      %v3110 = vpop.f32.mrf.mxu0
      %v3111 = vadd.f32 %v2998, %v3110
      %3112 = vmatprep.mubr.bf16.mxu0 %v1230
      %3113 = vmatmul.mubr.bf16.gmra.mxu0 %v1229
      %v3114 = vpop.f32.mrf.mxu0
      %v3115 = vadd.f32 %v3002, %v3114
      %v3116 = vpop.f32.mrf.mxu0
      %v3117 = vadd.f32 %v3004, %v3116
      %v3118 = vpop.f32.mrf.mxu0
      %v3119 = vadd.f32 %v3006, %v3118
      %v3120 = vpop.f32.mrf.mxu0
      %v3121 = vadd.f32 %v3008, %v3120
      %3122 = vmatprep.mubr.bf16.mxu0 %v1246
      %3123 = vmatmul.mubr.bf16.gmra.mxu0 %v1245
      %v3124 = vpop.f32.mrf.mxu0
      %v3125 = vadd.f32 %v3012, %v3124
      %v3126 = vpop.f32.mrf.mxu0
      %v3127 = vadd.f32 %v3014, %v3126
      %v3128 = vpop.f32.mrf.mxu0
      %v3129 = vadd.f32 %v3016, %v3128
      %v3130 = vpop.f32.mrf.mxu0
      %v3131 = vadd.f32 %v3018, %v3130
      %3132 = vmatprep.mubr.bf16.mxu0 %v1262
      %3133 = vmatmul.mubr.bf16.gmra.mxu0 %v1261
      %v3134 = vpop.f32.mrf.mxu0
      %v3135 = vadd.f32 %v3022, %v3134
      %v3136 = vpop.f32.mrf.mxu0
      %v3137 = vadd.f32 %v3024, %v3136
      %v3138 = vpop.f32.mrf.mxu0
      %v3139 = vadd.f32 %v3026, %v3138
      %v3140 = vpop.f32.mrf.mxu0
      %v3141 = vadd.f32 %v3028, %v3140
      %3142 = vmatprep.mubr.bf16.mxu0 %v1278
      %3143 = vmatmul.mubr.bf16.gmra.mxu0 %v1277
      %v3144 = vpop.f32.mrf.mxu0
      %v3145 = vadd.f32 %v3032, %v3144
      %v3146 = vpop.f32.mrf.mxu0
      %v3147 = vadd.f32 %v3034, %v3146
      %v3148 = vpop.f32.mrf.mxu0
      %v3149 = vadd.f32 %v3036, %v3148
      %v3150 = vpop.f32.mrf.mxu0
      %v3151 = vadd.f32 %v3038, %v3150
      %3152 = vmatprep.mubr.bf16.mxu0 %v1294
      %3153 = vmatmul.mubr.bf16.gmra.mxu0 %v1293
      %v3154 = vpop.f32.mrf.mxu0
      %v3155 = vadd.f32 %v3042, %v3154
      %v3156 = vpop.f32.mrf.mxu0
      %v3157 = vadd.f32 %v3044, %v3156
      %v3158 = vpop.f32.mrf.mxu0
      %v3159 = vadd.f32 %v3046, %v3158
      %v3160 = vpop.f32.mrf.mxu0
      %v3161 = vadd.f32 %v3048, %v3160
      %3162 = vdwg.mxu0
      %3163 = vmatprep.subr.bf16.mxu0 %v2342
      %3164 = vmatpush1.bf16.msra.mxu0 %v2341
      %3165 = vmatprep.subr.bf16.mxu0 %v2340
      %3166 = vmatpush1.bf16.msra.mxu0 %v2339
      %3167 = vmatprep.subr.bf16.mxu0 %v2338
      %3168 = vmatpush1.bf16.msra.mxu0 %v2337
      %3169 = vmatprep.subr.bf16.mxu0 %v2336
      %3170 = vmatpush1.bf16.msra.mxu0 %v2335
      %3171 = vmatprep.subr.bf16.mxu0 %v2334
      %3172 = vmatpush1.bf16.msra.mxu0 %v2333
      %3173 = vmatprep.subr.bf16.mxu0 %v2332
      %3174 = vmatpush1.bf16.msra.mxu0 %v2331
      %3175 = vmatprep.subr.bf16.mxu0 %v2330
      %3176 = vmatpush1.bf16.msra.mxu0 %v2329
      %3177 = vmatprep.subr.bf16.mxu0 %v2328
      %3178 = vmatpush1.bf16.msra.mxu0 %v2327
      %3179 = vmatprep.subr.bf16.mxu0 %v2358
      %3180 = vmatpush2.bf16.msra.mxu0 %v2357
      %3181 = vmatprep.subr.bf16.mxu0 %v2356
      %3182 = vmatpush2.bf16.msra.mxu0 %v2355
      %3183 = vmatprep.subr.bf16.mxu0 %v2354
      %3184 = vmatpush2.bf16.msra.mxu0 %v2353
      %3185 = vmatprep.subr.bf16.mxu0 %v2352
      %3186 = vmatpush2.bf16.msra.mxu0 %v2351
      %3187 = vmatprep.subr.bf16.mxu0 %v2350
      %3188 = vmatpush2.bf16.msra.mxu0 %v2349
      %3189 = vmatprep.subr.bf16.mxu0 %v2348
      %3190 = vmatpush2.bf16.msra.mxu0 %v2347
      %3191 = vmatprep.subr.bf16.mxu0 %v2346
      %3192 = vmatpush2.bf16.msra.mxu0 %v2345
      %3193 = vmatprep.subr.bf16.mxu0 %v2344
      %3194 = vmatpush2.bf16.msra.mxu0 %v2343
      %3195 = vmatprep.mubr.bf16.mxu0 %v1184
      %3196 = vmatmul.mubr.bf16.gmra.mxu0 %v1183
      %v3197 = vpop.f32.mrf.mxu0
      %v3198 = vadd.f32 %v3085, %v3197
      %v3199 = vpop.f32.mrf.mxu0
      %v3200 = vadd.f32 %v3087, %v3199
      %v3201 = vpop.f32.mrf.mxu0
      %v3202 = vadd.f32 %v3089, %v3201
      %v3203 = vpop.f32.mrf.mxu0
      %v3204 = vadd.f32 %v3091, %v3203
      %3205 = vmatprep.mubr.bf16.mxu0 %v1200
      %3206 = vmatmul.mubr.bf16.gmra.mxu0 %v1199
      %v3207 = vpop.f32.mrf.mxu0
      %v3208 = vadd.f32 %v3095, %v3207
      %v3209 = vpop.f32.mrf.mxu0
      %v3210 = vadd.f32 %v3097, %v3209
      %v3211 = vpop.f32.mrf.mxu0
      %v3212 = vadd.f32 %v3099, %v3211
      %v3213 = vpop.f32.mrf.mxu0
      %v3214 = vadd.f32 %v3101, %v3213
      %3215 = vmatprep.mubr.bf16.mxu0 %v1216
      %3216 = vmatmul.mubr.bf16.gmra.mxu0 %v1215
      %v3217 = vpop.f32.mrf.mxu0
      %v3218 = vadd.f32 %v3105, %v3217
      %v3219 = vpop.f32.mrf.mxu0
      %v3220 = vadd.f32 %v3107, %v3219
      %v3221 = vpop.f32.mrf.mxu0
      %v3222 = vadd.f32 %v3109, %v3221
      %v3223 = vpop.f32.mrf.mxu0
      %v3224 = vadd.f32 %v3111, %v3223
      %3225 = vmatprep.mubr.bf16.mxu0 %v1232
      %3226 = vmatmul.mubr.bf16.gmra.mxu0 %v1231
      %v3227 = vpop.f32.mrf.mxu0
      %v3228 = vadd.f32 %v3115, %v3227
      %v3229 = vpop.f32.mrf.mxu0
      %v3230 = vadd.f32 %v3117, %v3229
      %v3231 = vpop.f32.mrf.mxu0
      %v3232 = vadd.f32 %v3119, %v3231
      %v3233 = vpop.f32.mrf.mxu0
      %v3234 = vadd.f32 %v3121, %v3233
      %3235 = vmatprep.mubr.bf16.mxu0 %v1248
      %3236 = vmatmul.mubr.bf16.gmra.mxu0 %v1247
      %v3237 = vpop.f32.mrf.mxu0
      %v3238 = vadd.f32 %v3125, %v3237
      %v3239 = vpop.f32.mrf.mxu0
      %v3240 = vadd.f32 %v3127, %v3239
      %v3241 = vpop.f32.mrf.mxu0
      %v3242 = vadd.f32 %v3129, %v3241
      %v3243 = vpop.f32.mrf.mxu0
      %v3244 = vadd.f32 %v3131, %v3243
      %3245 = vmatprep.mubr.bf16.mxu0 %v1264
      %3246 = vmatmul.mubr.bf16.gmra.mxu0 %v1263
      %v3247 = vpop.f32.mrf.mxu0
      %v3248 = vadd.f32 %v3135, %v3247
      %v3249 = vpop.f32.mrf.mxu0
      %v3250 = vadd.f32 %v3137, %v3249
      %v3251 = vpop.f32.mrf.mxu0
      %v3252 = vadd.f32 %v3139, %v3251
      %v3253 = vpop.f32.mrf.mxu0
      %v3254 = vadd.f32 %v3141, %v3253
      %3255 = vmatprep.mubr.bf16.mxu0 %v1280
      %3256 = vmatmul.mubr.bf16.gmra.mxu0 %v1279
      %v3257 = vpop.f32.mrf.mxu0
      %v3258 = vadd.f32 %v3145, %v3257
      %v3259 = vpop.f32.mrf.mxu0
      %v3260 = vadd.f32 %v3147, %v3259
      %v3261 = vpop.f32.mrf.mxu0
      %v3262 = vadd.f32 %v3149, %v3261
      %v3263 = vpop.f32.mrf.mxu0
      %v3264 = vadd.f32 %v3151, %v3263
      %3265 = vmatprep.mubr.bf16.mxu0 %v1296
      %3266 = vmatmul.mubr.bf16.gmra.mxu0 %v1295
      %v3267 = vpop.f32.mrf.mxu0
      %v3268 = vadd.f32 %v3155, %v3267
      %v3269 = vpop.f32.mrf.mxu0
      %v3270 = vadd.f32 %v3157, %v3269
      %v3271 = vpop.f32.mrf.mxu0
      %v3272 = vadd.f32 %v3159, %v3271
      %v3273 = vpop.f32.mrf.mxu0
      %v3274 = vadd.f32 %v3161, %v3273
      %3275 = vdwg.mxu0
      %3276 = vmatprep.subr.bf16.mxu0 %v2374
      %3277 = vmatpush1.bf16.msra.mxu0 %v2373
      %3278 = vmatprep.subr.bf16.mxu0 %v2372
      %3279 = vmatpush1.bf16.msra.mxu0 %v2371
      %3280 = vmatprep.subr.bf16.mxu0 %v2370
      %3281 = vmatpush1.bf16.msra.mxu0 %v2369
      %3282 = vmatprep.subr.bf16.mxu0 %v2368
      %3283 = vmatpush1.bf16.msra.mxu0 %v2367
      %3284 = vmatprep.subr.bf16.mxu0 %v2366
      %3285 = vmatpush1.bf16.msra.mxu0 %v2365
      %3286 = vmatprep.subr.bf16.mxu0 %v2364
      %3287 = vmatpush1.bf16.msra.mxu0 %v2363
      %3288 = vmatprep.subr.bf16.mxu0 %v2362
      %3289 = vmatpush1.bf16.msra.mxu0 %v2361
      %3290 = vmatprep.subr.bf16.mxu0 %v2360
      %3291 = vmatpush1.bf16.msra.mxu0 %v2359
      %3292 = vmatprep.subr.bf16.mxu0 %v2390
      %3293 = vmatpush2.bf16.msra.mxu0 %v2389
      %3294 = vmatprep.subr.bf16.mxu0 %v2388
      %3295 = vmatpush2.bf16.msra.mxu0 %v2387
      %3296 = vmatprep.subr.bf16.mxu0 %v2386
      %3297 = vmatpush2.bf16.msra.mxu0 %v2385
      %3298 = vmatprep.subr.bf16.mxu0 %v2384
      %3299 = vmatpush2.bf16.msra.mxu0 %v2383
      %3300 = vmatprep.subr.bf16.mxu0 %v2382
      %3301 = vmatpush2.bf16.msra.mxu0 %v2381
      %3302 = vmatprep.subr.bf16.mxu0 %v2380
      %3303 = vmatpush2.bf16.msra.mxu0 %v2379
      %3304 = vmatprep.subr.bf16.mxu0 %v2378
      %3305 = vmatpush2.bf16.msra.mxu0 %v2377
      %3306 = vmatprep.subr.bf16.mxu0 %v2376
      %3307 = vmatpush2.bf16.msra.mxu0 %v2375
      %3308 = vmatprep.mubr.bf16.mxu0 %v1186
      %3309 = vmatmul.mubr.bf16.gmra.mxu0 %v1185
      %v3310 = vpop.f32.mrf.mxu0
      %v3311 = vadd.f32 %v3198, %v3310
      %v3312 = vpop.f32.mrf.mxu0
      %v3313 = vadd.f32 %v3200, %v3312
      %v3314 = vpop.f32.mrf.mxu0
      %v3315 = vadd.f32 %v3202, %v3314
      %v3316 = vpop.f32.mrf.mxu0
      %v3317 = vadd.f32 %v3204, %v3316
      %3318 = vmatprep.mubr.bf16.mxu0 %v1202
      %3319 = vmatmul.mubr.bf16.gmra.mxu0 %v1201
      %v3320 = vpop.f32.mrf.mxu0
      %v3321 = vadd.f32 %v3208, %v3320
      %v3322 = vpop.f32.mrf.mxu0
      %v3323 = vadd.f32 %v3210, %v3322
      %v3324 = vpop.f32.mrf.mxu0
      %v3325 = vadd.f32 %v3212, %v3324
      %v3326 = vpop.f32.mrf.mxu0
      %v3327 = vadd.f32 %v3214, %v3326
      %3328 = vmatprep.mubr.bf16.mxu0 %v1218
      %3329 = vmatmul.mubr.bf16.gmra.mxu0 %v1217
      %v3330 = vpop.f32.mrf.mxu0
      %v3331 = vadd.f32 %v3218, %v3330
      %v3332 = vpop.f32.mrf.mxu0
      %v3333 = vadd.f32 %v3220, %v3332
      %v3334 = vpop.f32.mrf.mxu0
      %v3335 = vadd.f32 %v3222, %v3334
      %v3336 = vpop.f32.mrf.mxu0
      %v3337 = vadd.f32 %v3224, %v3336
      %3338 = vmatprep.mubr.bf16.mxu0 %v1234
      %3339 = vmatmul.mubr.bf16.gmra.mxu0 %v1233
      %v3340 = vpop.f32.mrf.mxu0
      %v3341 = vadd.f32 %v3228, %v3340
      %v3342 = vpop.f32.mrf.mxu0
      %v3343 = vadd.f32 %v3230, %v3342
      %v3344 = vpop.f32.mrf.mxu0
      %v3345 = vadd.f32 %v3232, %v3344
      %v3346 = vpop.f32.mrf.mxu0
      %v3347 = vadd.f32 %v3234, %v3346
      %3348 = vmatprep.mubr.bf16.mxu0 %v1250
      %3349 = vmatmul.mubr.bf16.gmra.mxu0 %v1249
      %v3350 = vpop.f32.mrf.mxu0
      %v3351 = vadd.f32 %v3238, %v3350
      %v3352 = vpop.f32.mrf.mxu0
      %v3353 = vadd.f32 %v3240, %v3352
      %v3354 = vpop.f32.mrf.mxu0
      %v3355 = vadd.f32 %v3242, %v3354
      %v3356 = vpop.f32.mrf.mxu0
      %v3357 = vadd.f32 %v3244, %v3356
      %3358 = vmatprep.mubr.bf16.mxu0 %v1266
      %3359 = vmatmul.mubr.bf16.gmra.mxu0 %v1265
      %v3360 = vpop.f32.mrf.mxu0
      %v3361 = vadd.f32 %v3248, %v3360
      %v3362 = vpop.f32.mrf.mxu0
      %v3363 = vadd.f32 %v3250, %v3362
      %v3364 = vpop.f32.mrf.mxu0
      %v3365 = vadd.f32 %v3252, %v3364
      %v3366 = vpop.f32.mrf.mxu0
      %v3367 = vadd.f32 %v3254, %v3366
      %3368 = vmatprep.mubr.bf16.mxu0 %v1282
      %3369 = vmatmul.mubr.bf16.gmra.mxu0 %v1281
      %v3370 = vpop.f32.mrf.mxu0
      %v3371 = vadd.f32 %v3258, %v3370
      %v3372 = vpop.f32.mrf.mxu0
      %v3373 = vadd.f32 %v3260, %v3372
      %v3374 = vpop.f32.mrf.mxu0
      %v3375 = vadd.f32 %v3262, %v3374
      %v3376 = vpop.f32.mrf.mxu0
      %v3377 = vadd.f32 %v3264, %v3376
      %3378 = vmatprep.mubr.bf16.mxu0 %v1298
      %3379 = vmatmul.mubr.bf16.gmra.mxu0 %v1297
      %v3380 = vpop.f32.mrf.mxu0
      %v3381 = vadd.f32 %v3268, %v3380
      %v3382 = vpop.f32.mrf.mxu0
      %v3383 = vadd.f32 %v3270, %v3382
      %v3384 = vpop.f32.mrf.mxu0
      %v3385 = vadd.f32 %v3272, %v3384
      %v3386 = vpop.f32.mrf.mxu0
      %v3387 = vadd.f32 %v3274, %v3386
      %3388 = vdwg.mxu0
      %3389 = vmatprep.subr.bf16.mxu0 %v2406
      %3390 = vmatpush1.bf16.msra.mxu0 %v2405
      %3391 = vmatprep.subr.bf16.mxu0 %v2404
      %3392 = vmatpush1.bf16.msra.mxu0 %v2403
      %3393 = vmatprep.subr.bf16.mxu0 %v2402
      %3394 = vmatpush1.bf16.msra.mxu0 %v2401
      %3395 = vmatprep.subr.bf16.mxu0 %v2400
      %3396 = vmatpush1.bf16.msra.mxu0 %v2399
      %3397 = vmatprep.subr.bf16.mxu0 %v2398
      %3398 = vmatpush1.bf16.msra.mxu0 %v2397
      %3399 = vmatprep.subr.bf16.mxu0 %v2396
      %3400 = vmatpush1.bf16.msra.mxu0 %v2395
      %3401 = vmatprep.subr.bf16.mxu0 %v2394
      %3402 = vmatpush1.bf16.msra.mxu0 %v2393
      %3403 = vmatprep.subr.bf16.mxu0 %v2392
      %3404 = vmatpush1.bf16.msra.mxu0 %v2391
      %3405 = vmatprep.subr.bf16.mxu0 %v2422
      %3406 = vmatpush2.bf16.msra.mxu0 %v2421
      %3407 = vmatprep.subr.bf16.mxu0 %v2420
      %3408 = vmatpush2.bf16.msra.mxu0 %v2419
      %3409 = vmatprep.subr.bf16.mxu0 %v2418
      %3410 = vmatpush2.bf16.msra.mxu0 %v2417
      %3411 = vmatprep.subr.bf16.mxu0 %v2416
      %3412 = vmatpush2.bf16.msra.mxu0 %v2415
      %3413 = vmatprep.subr.bf16.mxu0 %v2414
      %3414 = vmatpush2.bf16.msra.mxu0 %v2413
      %3415 = vmatprep.subr.bf16.mxu0 %v2412
      %3416 = vmatpush2.bf16.msra.mxu0 %v2411
      %3417 = vmatprep.subr.bf16.mxu0 %v2410
      %3418 = vmatpush2.bf16.msra.mxu0 %v2409
      %3419 = vmatprep.subr.bf16.mxu0 %v2408
      %3420 = vmatpush2.bf16.msra.mxu0 %v2407
      %3421 = vmatprep.mubr.bf16.mxu0 %v1188
      %3422 = vmatmul.mubr.bf16.gmra.mxu0 %v1187
      %v3423 = vpop.f32.mrf.mxu0
      %v3424 = vadd.f32 %v3311, %v3423
      %v3425 = vpop.f32.mrf.mxu0
      %v3426 = vadd.f32 %v3313, %v3425
      %v3427 = vpop.f32.mrf.mxu0
      %v3428 = vadd.f32 %v3315, %v3427
      %v3429 = vpop.f32.mrf.mxu0
      %v3430 = vadd.f32 %v3317, %v3429
      %3431 = vmatprep.mubr.bf16.mxu0 %v1204
      %3432 = vmatmul.mubr.bf16.gmra.mxu0 %v1203
      %v3433 = vpop.f32.mrf.mxu0
      %v3434 = vadd.f32 %v3321, %v3433
      %v3435 = vpop.f32.mrf.mxu0
      %v3436 = vadd.f32 %v3323, %v3435
      %v3437 = vpop.f32.mrf.mxu0
      %v3438 = vadd.f32 %v3325, %v3437
      %v3439 = vpop.f32.mrf.mxu0
      %v3440 = vadd.f32 %v3327, %v3439
      %3441 = vmatprep.mubr.bf16.mxu0 %v1220
      %3442 = vmatmul.mubr.bf16.gmra.mxu0 %v1219
      %v3443 = vpop.f32.mrf.mxu0
      %v3444 = vadd.f32 %v3331, %v3443
      %v3445 = vpop.f32.mrf.mxu0
      %v3446 = vadd.f32 %v3333, %v3445
      %v3447 = vpop.f32.mrf.mxu0
      %v3448 = vadd.f32 %v3335, %v3447
      %v3449 = vpop.f32.mrf.mxu0
      %v3450 = vadd.f32 %v3337, %v3449
      %3451 = vmatprep.mubr.bf16.mxu0 %v1236
      %3452 = vmatmul.mubr.bf16.gmra.mxu0 %v1235
      %v3453 = vpop.f32.mrf.mxu0
      %v3454 = vadd.f32 %v3341, %v3453
      %v3455 = vpop.f32.mrf.mxu0
      %v3456 = vadd.f32 %v3343, %v3455
      %v3457 = vpop.f32.mrf.mxu0
      %v3458 = vadd.f32 %v3345, %v3457
      %v3459 = vpop.f32.mrf.mxu0
      %v3460 = vadd.f32 %v3347, %v3459
      %3461 = vmatprep.mubr.bf16.mxu0 %v1252
      %3462 = vmatmul.mubr.bf16.gmra.mxu0 %v1251
      %v3463 = vpop.f32.mrf.mxu0
      %v3464 = vadd.f32 %v3351, %v3463
      %v3465 = vpop.f32.mrf.mxu0
      %v3466 = vadd.f32 %v3353, %v3465
      %v3467 = vpop.f32.mrf.mxu0
      %v3468 = vadd.f32 %v3355, %v3467
      %v3469 = vpop.f32.mrf.mxu0
      %v3470 = vadd.f32 %v3357, %v3469
      %3471 = vmatprep.mubr.bf16.mxu0 %v1268
      %3472 = vmatmul.mubr.bf16.gmra.mxu0 %v1267
      %v3473 = vpop.f32.mrf.mxu0
      %v3474 = vadd.f32 %v3361, %v3473
      %v3475 = vpop.f32.mrf.mxu0
      %v3476 = vadd.f32 %v3363, %v3475
      %v3477 = vpop.f32.mrf.mxu0
      %v3478 = vadd.f32 %v3365, %v3477
      %v3479 = vpop.f32.mrf.mxu0
      %v3480 = vadd.f32 %v3367, %v3479
      %3481 = vmatprep.mubr.bf16.mxu0 %v1284
      %3482 = vmatmul.mubr.bf16.gmra.mxu0 %v1283
      %v3483 = vpop.f32.mrf.mxu0
      %v3484 = vadd.f32 %v3371, %v3483
      %v3485 = vpop.f32.mrf.mxu0
      %v3486 = vadd.f32 %v3373, %v3485
      %v3487 = vpop.f32.mrf.mxu0
      %v3488 = vadd.f32 %v3375, %v3487
      %v3489 = vpop.f32.mrf.mxu0
      %v3490 = vadd.f32 %v3377, %v3489
      %3491 = vmatprep.mubr.bf16.mxu0 %v1300
      %3492 = vmatmul.mubr.bf16.gmra.mxu0 %v1299
      %v3493 = vpop.f32.mrf.mxu0
      %v3494 = vadd.f32 %v3381, %v3493
      %v3495 = vpop.f32.mrf.mxu0
      %v3496 = vadd.f32 %v3383, %v3495
      %v3497 = vpop.f32.mrf.mxu0
      %v3498 = vadd.f32 %v3385, %v3497
      %v3499 = vpop.f32.mrf.mxu0
      %v3500 = vadd.f32 %v3387, %v3499
      %3501 = vdwg.mxu0
      %3502 = vmatprep.subr.bf16.mxu0 %v2438
      %3503 = vmatpush1.bf16.msra.mxu0 %v2437
      %3504 = vmatprep.subr.bf16.mxu0 %v2436
      %3505 = vmatpush1.bf16.msra.mxu0 %v2435
      %3506 = vmatprep.subr.bf16.mxu0 %v2434
      %3507 = vmatpush1.bf16.msra.mxu0 %v2433
      %3508 = vmatprep.subr.bf16.mxu0 %v2432
      %3509 = vmatpush1.bf16.msra.mxu0 %v2431
      %3510 = vmatprep.subr.bf16.mxu0 %v2430
      %3511 = vmatpush1.bf16.msra.mxu0 %v2429
      %3512 = vmatprep.subr.bf16.mxu0 %v2428
      %3513 = vmatpush1.bf16.msra.mxu0 %v2427
      %3514 = vmatprep.subr.bf16.mxu0 %v2426
      %3515 = vmatpush1.bf16.msra.mxu0 %v2425
      %3516 = vmatprep.subr.bf16.mxu0 %v2424
      %3517 = vmatpush1.bf16.msra.mxu0 %v2423
      %3518 = vmatprep.subr.bf16.mxu0 %v2454
      %3519 = vmatpush2.bf16.msra.mxu0 %v2453
      %3520 = vmatprep.subr.bf16.mxu0 %v2452
      %3521 = vmatpush2.bf16.msra.mxu0 %v2451
      %3522 = vmatprep.subr.bf16.mxu0 %v2450
      %3523 = vmatpush2.bf16.msra.mxu0 %v2449
      %3524 = vmatprep.subr.bf16.mxu0 %v2448
      %3525 = vmatpush2.bf16.msra.mxu0 %v2447
      %3526 = vmatprep.subr.bf16.mxu0 %v2446
      %3527 = vmatpush2.bf16.msra.mxu0 %v2445
      %3528 = vmatprep.subr.bf16.mxu0 %v2444
      %3529 = vmatpush2.bf16.msra.mxu0 %v2443
      %3530 = vmatprep.subr.bf16.mxu0 %v2442
      %3531 = vmatpush2.bf16.msra.mxu0 %v2441
      %3532 = vmatprep.subr.bf16.mxu0 %v2440
      %3533 = vmatpush2.bf16.msra.mxu0 %v2439
      %3534 = vmatprep.mubr.bf16.mxu0 %v1190
      %3535 = vmatmul.mubr.bf16.gmra.mxu0 %v1189
      %v3536 = vpop.f32.mrf.mxu0
      %v3537 = vadd.f32 %v3424, %v3536
      %v3538 = vpop.f32.mrf.mxu0
      %v3539 = vadd.f32 %v3426, %v3538
      %v3540 = vpop.f32.mrf.mxu0
      %v3541 = vadd.f32 %v3428, %v3540
      %v3542 = vpop.f32.mrf.mxu0
      %v3543 = vadd.f32 %v3430, %v3542
      %3544 = vmatprep.mubr.bf16.mxu0 %v1206
      %3545 = vmatmul.mubr.bf16.gmra.mxu0 %v1205
      %v3546 = vpop.f32.mrf.mxu0
      %v3547 = vadd.f32 %v3434, %v3546
      %v3548 = vpop.f32.mrf.mxu0
      %v3549 = vadd.f32 %v3436, %v3548
      %v3550 = vpop.f32.mrf.mxu0
      %v3551 = vadd.f32 %v3438, %v3550
      %v3552 = vpop.f32.mrf.mxu0
      %v3553 = vadd.f32 %v3440, %v3552
      %3554 = vmatprep.mubr.bf16.mxu0 %v1222
      %3555 = vmatmul.mubr.bf16.gmra.mxu0 %v1221
      %v3556 = vpop.f32.mrf.mxu0
      %v3557 = vadd.f32 %v3444, %v3556
      %v3558 = vpop.f32.mrf.mxu0
      %v3559 = vadd.f32 %v3446, %v3558
      %v3560 = vpop.f32.mrf.mxu0
      %v3561 = vadd.f32 %v3448, %v3560
      %v3562 = vpop.f32.mrf.mxu0
      %v3563 = vadd.f32 %v3450, %v3562
      %3564 = vmatprep.mubr.bf16.mxu0 %v1238
      %3565 = vmatmul.mubr.bf16.gmra.mxu0 %v1237
      %v3566 = vpop.f32.mrf.mxu0
      %v3567 = vadd.f32 %v3454, %v3566
      %v3568 = vpop.f32.mrf.mxu0
      %v3569 = vadd.f32 %v3456, %v3568
      %v3570 = vpop.f32.mrf.mxu0
      %v3571 = vadd.f32 %v3458, %v3570
      %v3572 = vpop.f32.mrf.mxu0
      %v3573 = vadd.f32 %v3460, %v3572
      %3574 = vmatprep.mubr.bf16.mxu0 %v1254
      %3575 = vmatmul.mubr.bf16.gmra.mxu0 %v1253
      %v3576 = vpop.f32.mrf.mxu0
      %v3577 = vadd.f32 %v3464, %v3576
      %v3578 = vpop.f32.mrf.mxu0
      %v3579 = vadd.f32 %v3466, %v3578
      %v3580 = vpop.f32.mrf.mxu0
      %v3581 = vadd.f32 %v3468, %v3580
      %v3582 = vpop.f32.mrf.mxu0
      %v3583 = vadd.f32 %v3470, %v3582
      %3584 = vmatprep.mubr.bf16.mxu0 %v1270
      %3585 = vmatmul.mubr.bf16.gmra.mxu0 %v1269
      %v3586 = vpop.f32.mrf.mxu0
      %v3587 = vadd.f32 %v3474, %v3586
      %v3588 = vpop.f32.mrf.mxu0
      %v3589 = vadd.f32 %v3476, %v3588
      %v3590 = vpop.f32.mrf.mxu0
      %v3591 = vadd.f32 %v3478, %v3590
      %v3592 = vpop.f32.mrf.mxu0
      %v3593 = vadd.f32 %v3480, %v3592
      %3594 = vmatprep.mubr.bf16.mxu0 %v1286
      %3595 = vmatmul.mubr.bf16.gmra.mxu0 %v1285
      %v3596 = vpop.f32.mrf.mxu0
      %v3597 = vadd.f32 %v3484, %v3596
      %v3598 = vpop.f32.mrf.mxu0
      %v3599 = vadd.f32 %v3486, %v3598
      %v3600 = vpop.f32.mrf.mxu0
      %v3601 = vadd.f32 %v3488, %v3600
      %v3602 = vpop.f32.mrf.mxu0
      %v3603 = vadd.f32 %v3490, %v3602
      %3604 = vmatprep.mubr.bf16.mxu0 %v1302
      %3605 = vmatmul.mubr.bf16.gmra.mxu0 %v1301
      %v3606 = vpop.f32.mrf.mxu0
      %v3607 = vadd.f32 %v3494, %v3606
      %v3608 = vpop.f32.mrf.mxu0
      %v3609 = vadd.f32 %v3496, %v3608
      %v3610 = vpop.f32.mrf.mxu0
      %v3611 = vadd.f32 %v3498, %v3610
      %v3612 = vpop.f32.mrf.mxu0
      %v3613 = vadd.f32 %v3500, %v3612
      %3614 = vdwg.mxu0
      %v3615 = vmax.f32 %v3537, 0.0
      %v3616 = vmax.f32 %v3539, 0.0
      %v3617 = vmax.f32 %v3541, 0.0
      %v3618 = vmax.f32 %v3543, 0.0
      %v3619 = vmax.f32 %v3547, 0.0
      %v3620 = vmax.f32 %v3549, 0.0
      %v3621 = vmax.f32 %v3551, 0.0
      %v3622 = vmax.f32 %v3553, 0.0
      %v3623 = vmax.f32 %v3557, 0.0
      %v3624 = vmax.f32 %v3559, 0.0
      %v3625 = vmax.f32 %v3561, 0.0
      %v3626 = vmax.f32 %v3563, 0.0
      %v3627 = vmax.f32 %v3567, 0.0
      %v3628 = vmax.f32 %v3569, 0.0
      %v3629 = vmax.f32 %v3571, 0.0
      %v3630 = vmax.f32 %v3573, 0.0
      %v3631 = vmax.f32 %v3577, 0.0
      %v3632 = vmax.f32 %v3579, 0.0
      %v3633 = vmax.f32 %v3581, 0.0
      %v3634 = vmax.f32 %v3583, 0.0
      %v3635 = vmax.f32 %v3587, 0.0
      %v3636 = vmax.f32 %v3589, 0.0
      %v3637 = vmax.f32 %v3591, 0.0
      %v3638 = vmax.f32 %v3593, 0.0
      %v3639 = vmax.f32 %v3597, 0.0
      %v3640 = vmax.f32 %v3599, 0.0
      %v3641 = vmax.f32 %v3601, 0.0
      %v3642 = vmax.f32 %v3603, 0.0
      %v3643 = vmax.f32 %v3607, 0.0
      %v3644 = vmax.f32 %v3609, 0.0
      %v3645 = vmax.f32 %v3611, 0.0
      %v3646 = vmax.f32 %v3613, 0.0
      %v3647 = vpack.c.bf16 %v3617, %v3615
      %v3648 = vpack.c.bf16 %v3618, %v3616
      %v3649 = vpack.c.bf16 %v3621, %v3619
      %v3650 = vpack.c.bf16 %v3622, %v3620
      %v3651 = vpack.c.bf16 %v3625, %v3623
      %v3652 = vpack.c.bf16 %v3626, %v3624
      %v3653 = vpack.c.bf16 %v3629, %v3627
      %v3654 = vpack.c.bf16 %v3630, %v3628
      %v3655 = vpack.c.bf16 %v3633, %v3631
      %v3656 = vpack.c.bf16 %v3634, %v3632
      %v3657 = vpack.c.bf16 %v3637, %v3635
      %v3658 = vpack.c.bf16 %v3638, %v3636
      %v3659 = vpack.c.bf16 %v3641, %v3639
      %v3660 = vpack.c.bf16 %v3642, %v3640
      %v3661 = vpack.c.bf16 %v3645, %v3643
      %v3662 = vpack.c.bf16 %v3646, %v3644
      %3663 = vmatprep.subr.bf16.mxu0 %v2214
      %3664 = vmatpush1.bf16.msra.mxu0 %v2213
      %3665 = vmatprep.subr.bf16.mxu0 %v2212
      %3666 = vmatpush1.bf16.msra.mxu0 %v2211
      %3667 = vmatprep.subr.bf16.mxu0 %v2210
      %3668 = vmatpush1.bf16.msra.mxu0 %v2209
      %3669 = vmatprep.subr.bf16.mxu0 %v2208
      %3670 = vmatpush1.bf16.msra.mxu0 %v2207
      %3671 = vmatprep.subr.bf16.mxu0 %v2206
      %3672 = vmatpush1.bf16.msra.mxu0 %v2205
      %3673 = vmatprep.subr.bf16.mxu0 %v2204
      %3674 = vmatpush1.bf16.msra.mxu0 %v2203
      %3675 = vmatprep.subr.bf16.mxu0 %v2202
      %3676 = vmatpush1.bf16.msra.mxu0 %v2201
      %3677 = vmatprep.subr.bf16.mxu0 %v2200
      %3678 = vmatpush1.bf16.msra.mxu0 %v2199
      %3679 = vmatprep.subr.bf16.mxu0 %v2230
      %3680 = vmatpush2.bf16.msra.mxu0 %v2229
      %3681 = vmatprep.subr.bf16.mxu0 %v2228
      %3682 = vmatpush2.bf16.msra.mxu0 %v2227
      %3683 = vmatprep.subr.bf16.mxu0 %v2226
      %3684 = vmatpush2.bf16.msra.mxu0 %v2225
      %3685 = vmatprep.subr.bf16.mxu0 %v2224
      %3686 = vmatpush2.bf16.msra.mxu0 %v2223
      %3687 = vmatprep.subr.bf16.mxu0 %v2222
      %3688 = vmatpush2.bf16.msra.mxu0 %v2221
      %3689 = vmatprep.subr.bf16.mxu0 %v2220
      %3690 = vmatpush2.bf16.msra.mxu0 %v2219
      %3691 = vmatprep.subr.bf16.mxu0 %v2218
      %3692 = vmatpush2.bf16.msra.mxu0 %v2217
      %3693 = vmatprep.subr.bf16.mxu0 %v2216
      %3694 = vmatpush2.bf16.msra.mxu0 %v2215
      %3695 = vmatprep.mubr.bf16.mxu0 %v1184
      %3696 = vmatmul.mubr.bf16.gmra.mxu0 %v1183
      %v3697 = vpop.f32.mrf.mxu0
      %v3698 = vadd.f32 %v784, %v3697
      %v3699 = vpop.f32.mrf.mxu0
      %v3700 = vadd.f32 %v788, %v3699
      %v3701 = vpop.f32.mrf.mxu0
      %v3702 = vadd.f32 %v784, %v3701
      %v3703 = vpop.f32.mrf.mxu0
      %v3704 = vadd.f32 %v788, %v3703
      %3705 = vmatprep.mubr.bf16.mxu0 %v1200
      %3706 = vmatmul.mubr.bf16.gmra.mxu0 %v1199
      %v3707 = vpop.f32.mrf.mxu0
      %v3708 = vadd.f32 %v784, %v3707
      %v3709 = vpop.f32.mrf.mxu0
      %v3710 = vadd.f32 %v788, %v3709
      %v3711 = vpop.f32.mrf.mxu0
      %v3712 = vadd.f32 %v784, %v3711
      %v3713 = vpop.f32.mrf.mxu0
      %v3714 = vadd.f32 %v788, %v3713
      %3715 = vmatprep.mubr.bf16.mxu0 %v1216
      %3716 = vmatmul.mubr.bf16.gmra.mxu0 %v1215
      %v3717 = vpop.f32.mrf.mxu0
      %v3718 = vadd.f32 %v784, %v3717
      %v3719 = vpop.f32.mrf.mxu0
      %v3720 = vadd.f32 %v788, %v3719
      %v3721 = vpop.f32.mrf.mxu0
      %v3722 = vadd.f32 %v784, %v3721
      %v3723 = vpop.f32.mrf.mxu0
      %v3724 = vadd.f32 %v788, %v3723
      %3725 = vmatprep.mubr.bf16.mxu0 %v1232
      %3726 = vmatmul.mubr.bf16.gmra.mxu0 %v1231
      %v3727 = vpop.f32.mrf.mxu0
      %v3728 = vadd.f32 %v784, %v3727
      %v3729 = vpop.f32.mrf.mxu0
      %v3730 = vadd.f32 %v788, %v3729
      %v3731 = vpop.f32.mrf.mxu0
      %v3732 = vadd.f32 %v784, %v3731
      %v3733 = vpop.f32.mrf.mxu0
      %v3734 = vadd.f32 %v788, %v3733
      %3735 = vmatprep.mubr.bf16.mxu0 %v1248
      %3736 = vmatmul.mubr.bf16.gmra.mxu0 %v1247
      %v3737 = vpop.f32.mrf.mxu0
      %v3738 = vadd.f32 %v784, %v3737
      %v3739 = vpop.f32.mrf.mxu0
      %v3740 = vadd.f32 %v788, %v3739
      %v3741 = vpop.f32.mrf.mxu0
      %v3742 = vadd.f32 %v784, %v3741
      %v3743 = vpop.f32.mrf.mxu0
      %v3744 = vadd.f32 %v788, %v3743
      %3745 = vmatprep.mubr.bf16.mxu0 %v1264
      %3746 = vmatmul.mubr.bf16.gmra.mxu0 %v1263
      %v3747 = vpop.f32.mrf.mxu0
      %v3748 = vadd.f32 %v784, %v3747
      %v3749 = vpop.f32.mrf.mxu0
      %v3750 = vadd.f32 %v788, %v3749
      %v3751 = vpop.f32.mrf.mxu0
      %v3752 = vadd.f32 %v784, %v3751
      %v3753 = vpop.f32.mrf.mxu0
      %v3754 = vadd.f32 %v788, %v3753
      %3755 = vmatprep.mubr.bf16.mxu0 %v1280
      %3756 = vmatmul.mubr.bf16.gmra.mxu0 %v1279
      %v3757 = vpop.f32.mrf.mxu0
      %v3758 = vadd.f32 %v784, %v3757
      %v3759 = vpop.f32.mrf.mxu0
      %v3760 = vadd.f32 %v788, %v3759
      %v3761 = vpop.f32.mrf.mxu0
      %v3762 = vadd.f32 %v784, %v3761
      %v3763 = vpop.f32.mrf.mxu0
      %v3764 = vadd.f32 %v788, %v3763
      %3765 = vdwg.mxu0
      %3766 = vmatprep.subr.bf16.mxu0 %v2246
      %3767 = vmatpush1.bf16.msra.mxu0 %v2245
      %3768 = vmatprep.subr.bf16.mxu0 %v2244
      %3769 = vmatpush1.bf16.msra.mxu0 %v2243
      %3770 = vmatprep.subr.bf16.mxu0 %v2242
      %3771 = vmatpush1.bf16.msra.mxu0 %v2241
      %3772 = vmatprep.subr.bf16.mxu0 %v2240
      %3773 = vmatpush1.bf16.msra.mxu0 %v2239
      %3774 = vmatprep.subr.bf16.mxu0 %v2238
      %3775 = vmatpush1.bf16.msra.mxu0 %v2237
      %3776 = vmatprep.subr.bf16.mxu0 %v2236
      %3777 = vmatpush1.bf16.msra.mxu0 %v2235
      %3778 = vmatprep.subr.bf16.mxu0 %v2234
      %3779 = vmatpush1.bf16.msra.mxu0 %v2233
      %3780 = vmatprep.subr.bf16.mxu0 %v2232
      %3781 = vmatpush1.bf16.msra.mxu0 %v2231
      %3782 = vmatprep.subr.bf16.mxu0 %v2262
      %3783 = vmatpush2.bf16.msra.mxu0 %v2261
      %3784 = vmatprep.subr.bf16.mxu0 %v2260
      %3785 = vmatpush2.bf16.msra.mxu0 %v2259
      %3786 = vmatprep.subr.bf16.mxu0 %v2258
      %3787 = vmatpush2.bf16.msra.mxu0 %v2257
      %3788 = vmatprep.subr.bf16.mxu0 %v2256
      %3789 = vmatpush2.bf16.msra.mxu0 %v2255
      %3790 = vmatprep.subr.bf16.mxu0 %v2254
      %3791 = vmatpush2.bf16.msra.mxu0 %v2253
      %3792 = vmatprep.subr.bf16.mxu0 %v2252
      %3793 = vmatpush2.bf16.msra.mxu0 %v2251
      %3794 = vmatprep.subr.bf16.mxu0 %v2250
      %3795 = vmatpush2.bf16.msra.mxu0 %v2249
      %3796 = vmatprep.subr.bf16.mxu0 %v2248
      %3797 = vmatpush2.bf16.msra.mxu0 %v2247
      %3798 = vmatprep.mubr.bf16.mxu0 %v1186
      %3799 = vmatmul.mubr.bf16.gmra.mxu0 %v1185
      %v3800 = vpop.f32.mrf.mxu0
      %v3801 = vadd.f32 %v3698, %v3800
      %v3802 = vpop.f32.mrf.mxu0
      %v3803 = vadd.f32 %v3700, %v3802
      %v3804 = vpop.f32.mrf.mxu0
      %v3805 = vadd.f32 %v3702, %v3804
      %v3806 = vpop.f32.mrf.mxu0
      %v3807 = vadd.f32 %v3704, %v3806
      %3808 = vmatprep.mubr.bf16.mxu0 %v1202
      %3809 = vmatmul.mubr.bf16.gmra.mxu0 %v1201
      %v3810 = vpop.f32.mrf.mxu0
      %v3811 = vadd.f32 %v3708, %v3810
      %v3812 = vpop.f32.mrf.mxu0
      %v3813 = vadd.f32 %v3710, %v3812
      %v3814 = vpop.f32.mrf.mxu0
      %v3815 = vadd.f32 %v3712, %v3814
      %v3816 = vpop.f32.mrf.mxu0
      %v3817 = vadd.f32 %v3714, %v3816
      %3818 = vmatprep.mubr.bf16.mxu0 %v1218
      %3819 = vmatmul.mubr.bf16.gmra.mxu0 %v1217
      %v3820 = vpop.f32.mrf.mxu0
      %v3821 = vadd.f32 %v3718, %v3820
      %v3822 = vpop.f32.mrf.mxu0
      %v3823 = vadd.f32 %v3720, %v3822
      %v3824 = vpop.f32.mrf.mxu0
      %v3825 = vadd.f32 %v3722, %v3824
      %v3826 = vpop.f32.mrf.mxu0
      %v3827 = vadd.f32 %v3724, %v3826
      %3828 = vmatprep.mubr.bf16.mxu0 %v1234
      %3829 = vmatmul.mubr.bf16.gmra.mxu0 %v1233
      %v3830 = vpop.f32.mrf.mxu0
      %v3831 = vadd.f32 %v3728, %v3830
      %v3832 = vpop.f32.mrf.mxu0
      %v3833 = vadd.f32 %v3730, %v3832
      %v3834 = vpop.f32.mrf.mxu0
      %v3835 = vadd.f32 %v3732, %v3834
      %v3836 = vpop.f32.mrf.mxu0
      %v3837 = vadd.f32 %v3734, %v3836
      %3838 = vmatprep.mubr.bf16.mxu0 %v1250
      %3839 = vmatmul.mubr.bf16.gmra.mxu0 %v1249
      %v3840 = vpop.f32.mrf.mxu0
      %v3841 = vadd.f32 %v3738, %v3840
      %v3842 = vpop.f32.mrf.mxu0
      %v3843 = vadd.f32 %v3740, %v3842
      %v3844 = vpop.f32.mrf.mxu0
      %v3845 = vadd.f32 %v3742, %v3844
      %v3846 = vpop.f32.mrf.mxu0
      %v3847 = vadd.f32 %v3744, %v3846
      %3848 = vmatprep.mubr.bf16.mxu0 %v1266
      %3849 = vmatmul.mubr.bf16.gmra.mxu0 %v1265
      %v3850 = vpop.f32.mrf.mxu0
      %v3851 = vadd.f32 %v3748, %v3850
      %v3852 = vpop.f32.mrf.mxu0
      %v3853 = vadd.f32 %v3750, %v3852
      %v3854 = vpop.f32.mrf.mxu0
      %v3855 = vadd.f32 %v3752, %v3854
      %v3856 = vpop.f32.mrf.mxu0
      %v3857 = vadd.f32 %v3754, %v3856
      %3858 = vmatprep.mubr.bf16.mxu0 %v1282
      %3859 = vmatmul.mubr.bf16.gmra.mxu0 %v1281
      %v3860 = vpop.f32.mrf.mxu0
      %v3861 = vadd.f32 %v3758, %v3860
      %v3862 = vpop.f32.mrf.mxu0
      %v3863 = vadd.f32 %v3760, %v3862
      %v3864 = vpop.f32.mrf.mxu0
      %v3865 = vadd.f32 %v3762, %v3864
      %v3866 = vpop.f32.mrf.mxu0
      %v3867 = vadd.f32 %v3764, %v3866
      %3868 = vdwg.mxu0
      %3869 = vmatprep.subr.bf16.mxu0 %v2278
      %3870 = vmatpush1.bf16.msra.mxu0 %v2277
      %3871 = vmatprep.subr.bf16.mxu0 %v2276
      %3872 = vmatpush1.bf16.msra.mxu0 %v2275
      %3873 = vmatprep.subr.bf16.mxu0 %v2274
      %3874 = vmatpush1.bf16.msra.mxu0 %v2273
      %3875 = vmatprep.subr.bf16.mxu0 %v2272
      %3876 = vmatpush1.bf16.msra.mxu0 %v2271
      %3877 = vmatprep.subr.bf16.mxu0 %v2270
      %3878 = vmatpush1.bf16.msra.mxu0 %v2269
      %3879 = vmatprep.subr.bf16.mxu0 %v2268
      %3880 = vmatpush1.bf16.msra.mxu0 %v2267
      %3881 = vmatprep.subr.bf16.mxu0 %v2266
      %3882 = vmatpush1.bf16.msra.mxu0 %v2265
      %3883 = vmatprep.subr.bf16.mxu0 %v2264
      %3884 = vmatpush1.bf16.msra.mxu0 %v2263
      %3885 = vmatprep.subr.bf16.mxu0 %v2294
      %3886 = vmatpush2.bf16.msra.mxu0 %v2293
      %3887 = vmatprep.subr.bf16.mxu0 %v2292
      %3888 = vmatpush2.bf16.msra.mxu0 %v2291
      %3889 = vmatprep.subr.bf16.mxu0 %v2290
      %3890 = vmatpush2.bf16.msra.mxu0 %v2289
      %3891 = vmatprep.subr.bf16.mxu0 %v2288
      %3892 = vmatpush2.bf16.msra.mxu0 %v2287
      %3893 = vmatprep.subr.bf16.mxu0 %v2286
      %3894 = vmatpush2.bf16.msra.mxu0 %v2285
      %3895 = vmatprep.subr.bf16.mxu0 %v2284
      %3896 = vmatpush2.bf16.msra.mxu0 %v2283
      %3897 = vmatprep.subr.bf16.mxu0 %v2282
      %3898 = vmatpush2.bf16.msra.mxu0 %v2281
      %3899 = vmatprep.subr.bf16.mxu0 %v2280
      %3900 = vmatpush2.bf16.msra.mxu0 %v2279
      %3901 = vmatprep.mubr.bf16.mxu0 %v1188
      %3902 = vmatmul.mubr.bf16.gmra.mxu0 %v1187
      %v3903 = vpop.f32.mrf.mxu0
      %v3904 = vadd.f32 %v3801, %v3903
      %v3905 = vpop.f32.mrf.mxu0
      %v3906 = vadd.f32 %v3803, %v3905
      %v3907 = vpop.f32.mrf.mxu0
      %v3908 = vadd.f32 %v3805, %v3907
      %v3909 = vpop.f32.mrf.mxu0
      %v3910 = vadd.f32 %v3807, %v3909
      %3911 = vmatprep.mubr.bf16.mxu0 %v1204
      %3912 = vmatmul.mubr.bf16.gmra.mxu0 %v1203
      %v3913 = vpop.f32.mrf.mxu0
      %v3914 = vadd.f32 %v3811, %v3913
      %v3915 = vpop.f32.mrf.mxu0
      %v3916 = vadd.f32 %v3813, %v3915
      %v3917 = vpop.f32.mrf.mxu0
      %v3918 = vadd.f32 %v3815, %v3917
      %v3919 = vpop.f32.mrf.mxu0
      %v3920 = vadd.f32 %v3817, %v3919
      %3921 = vmatprep.mubr.bf16.mxu0 %v1220
      %3922 = vmatmul.mubr.bf16.gmra.mxu0 %v1219
      %v3923 = vpop.f32.mrf.mxu0
      %v3924 = vadd.f32 %v3821, %v3923
      %v3925 = vpop.f32.mrf.mxu0
      %v3926 = vadd.f32 %v3823, %v3925
      %v3927 = vpop.f32.mrf.mxu0
      %v3928 = vadd.f32 %v3825, %v3927
      %v3929 = vpop.f32.mrf.mxu0
      %v3930 = vadd.f32 %v3827, %v3929
      %3931 = vmatprep.mubr.bf16.mxu0 %v1236
      %3932 = vmatmul.mubr.bf16.gmra.mxu0 %v1235
      %v3933 = vpop.f32.mrf.mxu0
      %v3934 = vadd.f32 %v3831, %v3933
      %v3935 = vpop.f32.mrf.mxu0
      %v3936 = vadd.f32 %v3833, %v3935
      %v3937 = vpop.f32.mrf.mxu0
      %v3938 = vadd.f32 %v3835, %v3937
      %v3939 = vpop.f32.mrf.mxu0
      %v3940 = vadd.f32 %v3837, %v3939
      %3941 = vmatprep.mubr.bf16.mxu0 %v1252
      %3942 = vmatmul.mubr.bf16.gmra.mxu0 %v1251
      %v3943 = vpop.f32.mrf.mxu0
      %v3944 = vadd.f32 %v3841, %v3943
      %v3945 = vpop.f32.mrf.mxu0
      %v3946 = vadd.f32 %v3843, %v3945
      %v3947 = vpop.f32.mrf.mxu0
      %v3948 = vadd.f32 %v3845, %v3947
      %v3949 = vpop.f32.mrf.mxu0
      %v3950 = vadd.f32 %v3847, %v3949
      %3951 = vmatprep.mubr.bf16.mxu0 %v1268
      %3952 = vmatmul.mubr.bf16.gmra.mxu0 %v1267
      %v3953 = vpop.f32.mrf.mxu0
      %v3954 = vadd.f32 %v3851, %v3953
      %v3955 = vpop.f32.mrf.mxu0
      %v3956 = vadd.f32 %v3853, %v3955
      %v3957 = vpop.f32.mrf.mxu0
      %v3958 = vadd.f32 %v3855, %v3957
      %v3959 = vpop.f32.mrf.mxu0
      %v3960 = vadd.f32 %v3857, %v3959
      %3961 = vmatprep.mubr.bf16.mxu0 %v1284
      %3962 = vmatmul.mubr.bf16.gmra.mxu0 %v1283
      %v3963 = vpop.f32.mrf.mxu0
      %v3964 = vadd.f32 %v3861, %v3963
      %v3965 = vpop.f32.mrf.mxu0
      %v3966 = vadd.f32 %v3863, %v3965
      %v3967 = vpop.f32.mrf.mxu0
      %v3968 = vadd.f32 %v3865, %v3967
      %v3969 = vpop.f32.mrf.mxu0
      %v3970 = vadd.f32 %v3867, %v3969
      %3971 = vdwg.mxu0
      %3972 = vmatprep.subr.bf16.mxu0 %v2310
      %3973 = vmatpush1.bf16.msra.mxu0 %v2309
      %3974 = vmatprep.subr.bf16.mxu0 %v2308
      %3975 = vmatpush1.bf16.msra.mxu0 %v2307
      %3976 = vmatprep.subr.bf16.mxu0 %v2306
      %3977 = vmatpush1.bf16.msra.mxu0 %v2305
      %3978 = vmatprep.subr.bf16.mxu0 %v2304
      %3979 = vmatpush1.bf16.msra.mxu0 %v2303
      %3980 = vmatprep.subr.bf16.mxu0 %v2302
      %3981 = vmatpush1.bf16.msra.mxu0 %v2301
      %3982 = vmatprep.subr.bf16.mxu0 %v2300
      %3983 = vmatpush1.bf16.msra.mxu0 %v2299
      %3984 = vmatprep.subr.bf16.mxu0 %v2298
      %3985 = vmatpush1.bf16.msra.mxu0 %v2297
      %3986 = vmatprep.subr.bf16.mxu0 %v2296
      %3987 = vmatpush1.bf16.msra.mxu0 %v2295
      %3988 = vmatprep.subr.bf16.mxu0 %v2326
      %3989 = vmatpush2.bf16.msra.mxu0 %v2325
      %3990 = vmatprep.subr.bf16.mxu0 %v2324
      %3991 = vmatpush2.bf16.msra.mxu0 %v2323
      %3992 = vmatprep.subr.bf16.mxu0 %v2322
      %3993 = vmatpush2.bf16.msra.mxu0 %v2321
      %3994 = vmatprep.subr.bf16.mxu0 %v2320
      %3995 = vmatpush2.bf16.msra.mxu0 %v2319
      %3996 = vmatprep.subr.bf16.mxu0 %v2318
      %3997 = vmatpush2.bf16.msra.mxu0 %v2317
      %3998 = vmatprep.subr.bf16.mxu0 %v2316
      %3999 = vmatpush2.bf16.msra.mxu0 %v2315
      %4000 = vmatprep.subr.bf16.mxu0 %v2314
      %4001 = vmatpush2.bf16.msra.mxu0 %v2313
      %4002 = vmatprep.subr.bf16.mxu0 %v2312
      %4003 = vmatpush2.bf16.msra.mxu0 %v2311
      %4004 = vmatprep.mubr.bf16.mxu0 %v1190
      %4005 = vmatmul.mubr.bf16.gmra.mxu0 %v1189
      %v4006 = vpop.f32.mrf.mxu0
      %v4007 = vadd.f32 %v3904, %v4006
      %v4008 = vpop.f32.mrf.mxu0
      %v4009 = vadd.f32 %v3906, %v4008
      %v4010 = vpop.f32.mrf.mxu0
      %v4011 = vadd.f32 %v3908, %v4010
      %v4012 = vpop.f32.mrf.mxu0
      %v4013 = vadd.f32 %v3910, %v4012
      %4014 = vmatprep.mubr.bf16.mxu0 %v1206
      %4015 = vmatmul.mubr.bf16.gmra.mxu0 %v1205
      %v4016 = vpop.f32.mrf.mxu0
      %v4017 = vadd.f32 %v3914, %v4016
      %v4018 = vpop.f32.mrf.mxu0
      %v4019 = vadd.f32 %v3916, %v4018
      %v4020 = vpop.f32.mrf.mxu0
      %v4021 = vadd.f32 %v3918, %v4020
      %v4022 = vpop.f32.mrf.mxu0
      %v4023 = vadd.f32 %v3920, %v4022
      %4024 = vmatprep.mubr.bf16.mxu0 %v1222
      %4025 = vmatmul.mubr.bf16.gmra.mxu0 %v1221
      %v4026 = vpop.f32.mrf.mxu0
      %v4027 = vadd.f32 %v3924, %v4026
      %v4028 = vpop.f32.mrf.mxu0
      %v4029 = vadd.f32 %v3926, %v4028
      %v4030 = vpop.f32.mrf.mxu0
      %v4031 = vadd.f32 %v3928, %v4030
      %v4032 = vpop.f32.mrf.mxu0
      %v4033 = vadd.f32 %v3930, %v4032
      %4034 = vmatprep.mubr.bf16.mxu0 %v1238
      %4035 = vmatmul.mubr.bf16.gmra.mxu0 %v1237
      %v4036 = vpop.f32.mrf.mxu0
      %v4037 = vadd.f32 %v3934, %v4036
      %v4038 = vpop.f32.mrf.mxu0
      %v4039 = vadd.f32 %v3936, %v4038
      %v4040 = vpop.f32.mrf.mxu0
      %v4041 = vadd.f32 %v3938, %v4040
      %v4042 = vpop.f32.mrf.mxu0
      %v4043 = vadd.f32 %v3940, %v4042
      %4044 = vmatprep.mubr.bf16.mxu0 %v1254
      %4045 = vmatmul.mubr.bf16.gmra.mxu0 %v1253
      %v4046 = vpop.f32.mrf.mxu0
      %v4047 = vadd.f32 %v3944, %v4046
      %v4048 = vpop.f32.mrf.mxu0
      %v4049 = vadd.f32 %v3946, %v4048
      %v4050 = vpop.f32.mrf.mxu0
      %v4051 = vadd.f32 %v3948, %v4050
      %v4052 = vpop.f32.mrf.mxu0
      %v4053 = vadd.f32 %v3950, %v4052
      %4054 = vmatprep.mubr.bf16.mxu0 %v1270
      %4055 = vmatmul.mubr.bf16.gmra.mxu0 %v1269
      %v4056 = vpop.f32.mrf.mxu0
      %v4057 = vadd.f32 %v3954, %v4056
      %v4058 = vpop.f32.mrf.mxu0
      %v4059 = vadd.f32 %v3956, %v4058
      %v4060 = vpop.f32.mrf.mxu0
      %v4061 = vadd.f32 %v3958, %v4060
      %v4062 = vpop.f32.mrf.mxu0
      %v4063 = vadd.f32 %v3960, %v4062
      %4064 = vmatprep.mubr.bf16.mxu0 %v1286
      %4065 = vmatmul.mubr.bf16.gmra.mxu0 %v1285
      %v4066 = vpop.f32.mrf.mxu0
      %v4067 = vadd.f32 %v3964, %v4066
      %v4068 = vpop.f32.mrf.mxu0
      %v4069 = vadd.f32 %v3966, %v4068
      %v4070 = vpop.f32.mrf.mxu0
      %v4071 = vadd.f32 %v3968, %v4070
      %v4072 = vpop.f32.mrf.mxu0
      %v4073 = vadd.f32 %v3970, %v4072
      %4074 = vdwg.mxu0
      %4075 = vmatprep.subr.bf16.mxu0 %v2342
      %4076 = vmatpush1.bf16.msra.mxu0 %v2341
      %4077 = vmatprep.subr.bf16.mxu0 %v2340
      %4078 = vmatpush1.bf16.msra.mxu0 %v2339
      %4079 = vmatprep.subr.bf16.mxu0 %v2338
      %4080 = vmatpush1.bf16.msra.mxu0 %v2337
      %4081 = vmatprep.subr.bf16.mxu0 %v2336
      %4082 = vmatpush1.bf16.msra.mxu0 %v2335
      %4083 = vmatprep.subr.bf16.mxu0 %v2334
      %4084 = vmatpush1.bf16.msra.mxu0 %v2333
      %4085 = vmatprep.subr.bf16.mxu0 %v2332
      %4086 = vmatpush1.bf16.msra.mxu0 %v2331
      %4087 = vmatprep.subr.bf16.mxu0 %v2330
      %4088 = vmatpush1.bf16.msra.mxu0 %v2329
      %4089 = vmatprep.subr.bf16.mxu0 %v2328
      %4090 = vmatpush1.bf16.msra.mxu0 %v2327
      %4091 = vmatprep.subr.bf16.mxu0 %v2358
      %4092 = vmatpush2.bf16.msra.mxu0 %v2357
      %4093 = vmatprep.subr.bf16.mxu0 %v2356
      %4094 = vmatpush2.bf16.msra.mxu0 %v2355
      %4095 = vmatprep.subr.bf16.mxu0 %v2354
      %4096 = vmatpush2.bf16.msra.mxu0 %v2353
      %4097 = vmatprep.subr.bf16.mxu0 %v2352
      %4098 = vmatpush2.bf16.msra.mxu0 %v2351
      %4099 = vmatprep.subr.bf16.mxu0 %v2350
      %4100 = vmatpush2.bf16.msra.mxu0 %v2349
      %4101 = vmatprep.subr.bf16.mxu0 %v2348
      %4102 = vmatpush2.bf16.msra.mxu0 %v2347
      %4103 = vmatprep.subr.bf16.mxu0 %v2346
      %4104 = vmatpush2.bf16.msra.mxu0 %v2345
      %4105 = vmatprep.subr.bf16.mxu0 %v2344
      %4106 = vmatpush2.bf16.msra.mxu0 %v2343
      %4107 = vmatprep.mubr.bf16.mxu0 %v1192
      %4108 = vmatmul.mubr.bf16.gmra.mxu0 %v1191
      %v4109 = vpop.f32.mrf.mxu0
      %v4110 = vadd.f32 %v4007, %v4109
      %v4111 = vpop.f32.mrf.mxu0
      %v4112 = vadd.f32 %v4009, %v4111
      %v4113 = vpop.f32.mrf.mxu0
      %v4114 = vadd.f32 %v4011, %v4113
      %v4115 = vpop.f32.mrf.mxu0
      %v4116 = vadd.f32 %v4013, %v4115
      %4117 = vmatprep.mubr.bf16.mxu0 %v1208
      %4118 = vmatmul.mubr.bf16.gmra.mxu0 %v1207
      %v4119 = vpop.f32.mrf.mxu0
      %v4120 = vadd.f32 %v4017, %v4119
      %v4121 = vpop.f32.mrf.mxu0
      %v4122 = vadd.f32 %v4019, %v4121
      %v4123 = vpop.f32.mrf.mxu0
      %v4124 = vadd.f32 %v4021, %v4123
      %v4125 = vpop.f32.mrf.mxu0
      %v4126 = vadd.f32 %v4023, %v4125
      %4127 = vmatprep.mubr.bf16.mxu0 %v1224
      %4128 = vmatmul.mubr.bf16.gmra.mxu0 %v1223
      %v4129 = vpop.f32.mrf.mxu0
      %v4130 = vadd.f32 %v4027, %v4129
      %v4131 = vpop.f32.mrf.mxu0
      %v4132 = vadd.f32 %v4029, %v4131
      %v4133 = vpop.f32.mrf.mxu0
      %v4134 = vadd.f32 %v4031, %v4133
      %v4135 = vpop.f32.mrf.mxu0
      %v4136 = vadd.f32 %v4033, %v4135
      %4137 = vmatprep.mubr.bf16.mxu0 %v1240
      %4138 = vmatmul.mubr.bf16.gmra.mxu0 %v1239
      %v4139 = vpop.f32.mrf.mxu0
      %v4140 = vadd.f32 %v4037, %v4139
      %v4141 = vpop.f32.mrf.mxu0
      %v4142 = vadd.f32 %v4039, %v4141
      %v4143 = vpop.f32.mrf.mxu0
      %v4144 = vadd.f32 %v4041, %v4143
      %v4145 = vpop.f32.mrf.mxu0
      %v4146 = vadd.f32 %v4043, %v4145
      %4147 = vmatprep.mubr.bf16.mxu0 %v1256
      %4148 = vmatmul.mubr.bf16.gmra.mxu0 %v1255
      %v4149 = vpop.f32.mrf.mxu0
      %v4150 = vadd.f32 %v4047, %v4149
      %v4151 = vpop.f32.mrf.mxu0
      %v4152 = vadd.f32 %v4049, %v4151
      %v4153 = vpop.f32.mrf.mxu0
      %v4154 = vadd.f32 %v4051, %v4153
      %v4155 = vpop.f32.mrf.mxu0
      %v4156 = vadd.f32 %v4053, %v4155
      %4157 = vmatprep.mubr.bf16.mxu0 %v1272
      %4158 = vmatmul.mubr.bf16.gmra.mxu0 %v1271
      %v4159 = vpop.f32.mrf.mxu0
      %v4160 = vadd.f32 %v4057, %v4159
      %v4161 = vpop.f32.mrf.mxu0
      %v4162 = vadd.f32 %v4059, %v4161
      %v4163 = vpop.f32.mrf.mxu0
      %v4164 = vadd.f32 %v4061, %v4163
      %v4165 = vpop.f32.mrf.mxu0
      %v4166 = vadd.f32 %v4063, %v4165
      %4167 = vmatprep.mubr.bf16.mxu0 %v1288
      %4168 = vmatmul.mubr.bf16.gmra.mxu0 %v1287
      %v4169 = vpop.f32.mrf.mxu0
      %v4170 = vadd.f32 %v4067, %v4169
      %v4171 = vpop.f32.mrf.mxu0
      %v4172 = vadd.f32 %v4069, %v4171
      %v4173 = vpop.f32.mrf.mxu0
      %v4174 = vadd.f32 %v4071, %v4173
      %v4175 = vpop.f32.mrf.mxu0
      %v4176 = vadd.f32 %v4073, %v4175
      %4177 = vdwg.mxu0
      %4178 = vmatprep.subr.bf16.mxu0 %v2374
      %4179 = vmatpush1.bf16.msra.mxu0 %v2373
      %4180 = vmatprep.subr.bf16.mxu0 %v2372
      %4181 = vmatpush1.bf16.msra.mxu0 %v2371
      %4182 = vmatprep.subr.bf16.mxu0 %v2370
      %4183 = vmatpush1.bf16.msra.mxu0 %v2369
      %4184 = vmatprep.subr.bf16.mxu0 %v2368
      %4185 = vmatpush1.bf16.msra.mxu0 %v2367
      %4186 = vmatprep.subr.bf16.mxu0 %v2366
      %4187 = vmatpush1.bf16.msra.mxu0 %v2365
      %4188 = vmatprep.subr.bf16.mxu0 %v2364
      %4189 = vmatpush1.bf16.msra.mxu0 %v2363
      %4190 = vmatprep.subr.bf16.mxu0 %v2362
      %4191 = vmatpush1.bf16.msra.mxu0 %v2361
      %4192 = vmatprep.subr.bf16.mxu0 %v2360
      %4193 = vmatpush1.bf16.msra.mxu0 %v2359
      %4194 = vmatprep.subr.bf16.mxu0 %v2390
      %4195 = vmatpush2.bf16.msra.mxu0 %v2389
      %4196 = vmatprep.subr.bf16.mxu0 %v2388
      %4197 = vmatpush2.bf16.msra.mxu0 %v2387
      %4198 = vmatprep.subr.bf16.mxu0 %v2386
      %4199 = vmatpush2.bf16.msra.mxu0 %v2385
      %4200 = vmatprep.subr.bf16.mxu0 %v2384
      %4201 = vmatpush2.bf16.msra.mxu0 %v2383
      %4202 = vmatprep.subr.bf16.mxu0 %v2382
      %4203 = vmatpush2.bf16.msra.mxu0 %v2381
      %4204 = vmatprep.subr.bf16.mxu0 %v2380
      %4205 = vmatpush2.bf16.msra.mxu0 %v2379
      %4206 = vmatprep.subr.bf16.mxu0 %v2378
      %4207 = vmatpush2.bf16.msra.mxu0 %v2377
      %4208 = vmatprep.subr.bf16.mxu0 %v2376
      %4209 = vmatpush2.bf16.msra.mxu0 %v2375
      %4210 = vmatprep.mubr.bf16.mxu0 %v1194
      %4211 = vmatmul.mubr.bf16.gmra.mxu0 %v1193
      %v4212 = vpop.f32.mrf.mxu0
      %v4213 = vadd.f32 %v4110, %v4212
      %v4214 = vpop.f32.mrf.mxu0
      %v4215 = vadd.f32 %v4112, %v4214
      %v4216 = vpop.f32.mrf.mxu0
      %v4217 = vadd.f32 %v4114, %v4216
      %v4218 = vpop.f32.mrf.mxu0
      %v4219 = vadd.f32 %v4116, %v4218
      %4220 = vmatprep.mubr.bf16.mxu0 %v1210
      %4221 = vmatmul.mubr.bf16.gmra.mxu0 %v1209
      %v4222 = vpop.f32.mrf.mxu0
      %v4223 = vadd.f32 %v4120, %v4222
      %v4224 = vpop.f32.mrf.mxu0
      %v4225 = vadd.f32 %v4122, %v4224
      %v4226 = vpop.f32.mrf.mxu0
      %v4227 = vadd.f32 %v4124, %v4226
      %v4228 = vpop.f32.mrf.mxu0
      %v4229 = vadd.f32 %v4126, %v4228
      %4230 = vmatprep.mubr.bf16.mxu0 %v1226
      %4231 = vmatmul.mubr.bf16.gmra.mxu0 %v1225
      %v4232 = vpop.f32.mrf.mxu0
      %v4233 = vadd.f32 %v4130, %v4232
      %v4234 = vpop.f32.mrf.mxu0
      %v4235 = vadd.f32 %v4132, %v4234
      %v4236 = vpop.f32.mrf.mxu0
      %v4237 = vadd.f32 %v4134, %v4236
      %v4238 = vpop.f32.mrf.mxu0
      %v4239 = vadd.f32 %v4136, %v4238
      %4240 = vmatprep.mubr.bf16.mxu0 %v1242
      %4241 = vmatmul.mubr.bf16.gmra.mxu0 %v1241
      %v4242 = vpop.f32.mrf.mxu0
      %v4243 = vadd.f32 %v4140, %v4242
      %v4244 = vpop.f32.mrf.mxu0
      %v4245 = vadd.f32 %v4142, %v4244
      %v4246 = vpop.f32.mrf.mxu0
      %v4247 = vadd.f32 %v4144, %v4246
      %v4248 = vpop.f32.mrf.mxu0
      %v4249 = vadd.f32 %v4146, %v4248
      %4250 = vmatprep.mubr.bf16.mxu0 %v1258
      %4251 = vmatmul.mubr.bf16.gmra.mxu0 %v1257
      %v4252 = vpop.f32.mrf.mxu0
      %v4253 = vadd.f32 %v4150, %v4252
      %v4254 = vpop.f32.mrf.mxu0
      %v4255 = vadd.f32 %v4152, %v4254
      %v4256 = vpop.f32.mrf.mxu0
      %v4257 = vadd.f32 %v4154, %v4256
      %v4258 = vpop.f32.mrf.mxu0
      %v4259 = vadd.f32 %v4156, %v4258
      %4260 = vmatprep.mubr.bf16.mxu0 %v1274
      %4261 = vmatmul.mubr.bf16.gmra.mxu0 %v1273
      %v4262 = vpop.f32.mrf.mxu0
      %v4263 = vadd.f32 %v4160, %v4262
      %v4264 = vpop.f32.mrf.mxu0
      %v4265 = vadd.f32 %v4162, %v4264
      %v4266 = vpop.f32.mrf.mxu0
      %v4267 = vadd.f32 %v4164, %v4266
      %v4268 = vpop.f32.mrf.mxu0
      %v4269 = vadd.f32 %v4166, %v4268
      %4270 = vmatprep.mubr.bf16.mxu0 %v1290
      %4271 = vmatmul.mubr.bf16.gmra.mxu0 %v1289
      %v4272 = vpop.f32.mrf.mxu0
      %v4273 = vadd.f32 %v4170, %v4272
      %v4274 = vpop.f32.mrf.mxu0
      %v4275 = vadd.f32 %v4172, %v4274
      %v4276 = vpop.f32.mrf.mxu0
      %v4277 = vadd.f32 %v4174, %v4276
      %v4278 = vpop.f32.mrf.mxu0
      %v4279 = vadd.f32 %v4176, %v4278
      %4280 = vdwg.mxu0
      %4281 = vmatprep.subr.bf16.mxu0 %v2406
      %4282 = vmatpush1.bf16.msra.mxu0 %v2405
      %4283 = vmatprep.subr.bf16.mxu0 %v2404
      %4284 = vmatpush1.bf16.msra.mxu0 %v2403
      %4285 = vmatprep.subr.bf16.mxu0 %v2402
      %4286 = vmatpush1.bf16.msra.mxu0 %v2401
      %4287 = vmatprep.subr.bf16.mxu0 %v2400
      %4288 = vmatpush1.bf16.msra.mxu0 %v2399
      %4289 = vmatprep.subr.bf16.mxu0 %v2398
      %4290 = vmatpush1.bf16.msra.mxu0 %v2397
      %4291 = vmatprep.subr.bf16.mxu0 %v2396
      %4292 = vmatpush1.bf16.msra.mxu0 %v2395
      %4293 = vmatprep.subr.bf16.mxu0 %v2394
      %4294 = vmatpush1.bf16.msra.mxu0 %v2393
      %4295 = vmatprep.subr.bf16.mxu0 %v2392
      %4296 = vmatpush1.bf16.msra.mxu0 %v2391
      %4297 = vmatprep.subr.bf16.mxu0 %v2422
      %4298 = vmatpush2.bf16.msra.mxu0 %v2421
      %4299 = vmatprep.subr.bf16.mxu0 %v2420
      %4300 = vmatpush2.bf16.msra.mxu0 %v2419
      %4301 = vmatprep.subr.bf16.mxu0 %v2418
      %4302 = vmatpush2.bf16.msra.mxu0 %v2417
      %4303 = vmatprep.subr.bf16.mxu0 %v2416
      %4304 = vmatpush2.bf16.msra.mxu0 %v2415
      %4305 = vmatprep.subr.bf16.mxu0 %v2414
      %4306 = vmatpush2.bf16.msra.mxu0 %v2413
      %4307 = vmatprep.subr.bf16.mxu0 %v2412
      %4308 = vmatpush2.bf16.msra.mxu0 %v2411
      %4309 = vmatprep.subr.bf16.mxu0 %v2410
      %4310 = vmatpush2.bf16.msra.mxu0 %v2409
      %4311 = vmatprep.subr.bf16.mxu0 %v2408
      %4312 = vmatpush2.bf16.msra.mxu0 %v2407
      %4313 = vmatprep.mubr.bf16.mxu0 %v1196
      %4314 = vmatmul.mubr.bf16.gmra.mxu0 %v1195
      %v4315 = vpop.f32.mrf.mxu0
      %v4316 = vadd.f32 %v4213, %v4315
      %v4317 = vpop.f32.mrf.mxu0
      %v4318 = vadd.f32 %v4215, %v4317
      %v4319 = vpop.f32.mrf.mxu0
      %v4320 = vadd.f32 %v4217, %v4319
      %v4321 = vpop.f32.mrf.mxu0
      %v4322 = vadd.f32 %v4219, %v4321
      %4323 = vmatprep.mubr.bf16.mxu0 %v1212
      %4324 = vmatmul.mubr.bf16.gmra.mxu0 %v1211
      %v4325 = vpop.f32.mrf.mxu0
      %v4326 = vadd.f32 %v4223, %v4325
      %v4327 = vpop.f32.mrf.mxu0
      %v4328 = vadd.f32 %v4225, %v4327
      %v4329 = vpop.f32.mrf.mxu0
      %v4330 = vadd.f32 %v4227, %v4329
      %v4331 = vpop.f32.mrf.mxu0
      %v4332 = vadd.f32 %v4229, %v4331
      %4333 = vmatprep.mubr.bf16.mxu0 %v1228
      %4334 = vmatmul.mubr.bf16.gmra.mxu0 %v1227
      %v4335 = vpop.f32.mrf.mxu0
      %v4336 = vadd.f32 %v4233, %v4335
      %v4337 = vpop.f32.mrf.mxu0
      %v4338 = vadd.f32 %v4235, %v4337
      %v4339 = vpop.f32.mrf.mxu0
      %v4340 = vadd.f32 %v4237, %v4339
      %v4341 = vpop.f32.mrf.mxu0
      %v4342 = vadd.f32 %v4239, %v4341
      %4343 = vmatprep.mubr.bf16.mxu0 %v1244
      %4344 = vmatmul.mubr.bf16.gmra.mxu0 %v1243
      %v4345 = vpop.f32.mrf.mxu0
      %v4346 = vadd.f32 %v4243, %v4345
      %v4347 = vpop.f32.mrf.mxu0
      %v4348 = vadd.f32 %v4245, %v4347
      %v4349 = vpop.f32.mrf.mxu0
      %v4350 = vadd.f32 %v4247, %v4349
      %v4351 = vpop.f32.mrf.mxu0
      %v4352 = vadd.f32 %v4249, %v4351
      %4353 = vmatprep.mubr.bf16.mxu0 %v1260
      %4354 = vmatmul.mubr.bf16.gmra.mxu0 %v1259
      %v4355 = vpop.f32.mrf.mxu0
      %v4356 = vadd.f32 %v4253, %v4355
      %v4357 = vpop.f32.mrf.mxu0
      %v4358 = vadd.f32 %v4255, %v4357
      %v4359 = vpop.f32.mrf.mxu0
      %v4360 = vadd.f32 %v4257, %v4359
      %v4361 = vpop.f32.mrf.mxu0
      %v4362 = vadd.f32 %v4259, %v4361
      %4363 = vmatprep.mubr.bf16.mxu0 %v1276
      %4364 = vmatmul.mubr.bf16.gmra.mxu0 %v1275
      %v4365 = vpop.f32.mrf.mxu0
      %v4366 = vadd.f32 %v4263, %v4365
      %v4367 = vpop.f32.mrf.mxu0
      %v4368 = vadd.f32 %v4265, %v4367
      %v4369 = vpop.f32.mrf.mxu0
      %v4370 = vadd.f32 %v4267, %v4369
      %v4371 = vpop.f32.mrf.mxu0
      %v4372 = vadd.f32 %v4269, %v4371
      %4373 = vmatprep.mubr.bf16.mxu0 %v1292
      %4374 = vmatmul.mubr.bf16.gmra.mxu0 %v1291
      %v4375 = vpop.f32.mrf.mxu0
      %v4376 = vadd.f32 %v4273, %v4375
      %v4377 = vpop.f32.mrf.mxu0
      %v4378 = vadd.f32 %v4275, %v4377
      %v4379 = vpop.f32.mrf.mxu0
      %v4380 = vadd.f32 %v4277, %v4379
      %v4381 = vpop.f32.mrf.mxu0
      %v4382 = vadd.f32 %v4279, %v4381
      %4383 = vdwg.mxu0
      %4384 = vmatprep.subr.bf16.mxu0 %v2438
      %4385 = vmatpush1.bf16.msra.mxu0 %v2437
      %4386 = vmatprep.subr.bf16.mxu0 %v2436
      %4387 = vmatpush1.bf16.msra.mxu0 %v2435
      %4388 = vmatprep.subr.bf16.mxu0 %v2434
      %4389 = vmatpush1.bf16.msra.mxu0 %v2433
      %4390 = vmatprep.subr.bf16.mxu0 %v2432
      %4391 = vmatpush1.bf16.msra.mxu0 %v2431
      %4392 = vmatprep.subr.bf16.mxu0 %v2430
      %4393 = vmatpush1.bf16.msra.mxu0 %v2429
      %4394 = vmatprep.subr.bf16.mxu0 %v2428
      %4395 = vmatpush1.bf16.msra.mxu0 %v2427
      %4396 = vmatprep.subr.bf16.mxu0 %v2426
      %4397 = vmatpush1.bf16.msra.mxu0 %v2425
      %4398 = vmatprep.subr.bf16.mxu0 %v2424
      %4399 = vmatpush1.bf16.msra.mxu0 %v2423
      %4400 = vmatprep.subr.bf16.mxu0 %v2454
      %4401 = vmatpush2.bf16.msra.mxu0 %v2453
      %4402 = vmatprep.subr.bf16.mxu0 %v2452
      %4403 = vmatpush2.bf16.msra.mxu0 %v2451
      %4404 = vmatprep.subr.bf16.mxu0 %v2450
      %4405 = vmatpush2.bf16.msra.mxu0 %v2449
      %4406 = vmatprep.subr.bf16.mxu0 %v2448
      %4407 = vmatpush2.bf16.msra.mxu0 %v2447
      %4408 = vmatprep.subr.bf16.mxu0 %v2446
      %4409 = vmatpush2.bf16.msra.mxu0 %v2445
      %4410 = vmatprep.subr.bf16.mxu0 %v2444
      %4411 = vmatpush2.bf16.msra.mxu0 %v2443
      %4412 = vmatprep.subr.bf16.mxu0 %v2442
      %4413 = vmatpush2.bf16.msra.mxu0 %v2441
      %4414 = vmatprep.subr.bf16.mxu0 %v2440
      %4415 = vmatpush2.bf16.msra.mxu0 %v2439
      %4416 = vmatprep.mubr.bf16.mxu0 %v1198
      %4417 = vmatmul.mubr.bf16.gmra.mxu0 %v1197
      %v4418 = vpop.f32.mrf.mxu0
      %v4419 = vadd.f32 %v4316, %v4418
      %v4420 = vpop.f32.mrf.mxu0
      %v4421 = vadd.f32 %v4318, %v4420
      %v4422 = vpop.f32.mrf.mxu0
      %v4423 = vadd.f32 %v4320, %v4422
      %v4424 = vpop.f32.mrf.mxu0
      %v4425 = vadd.f32 %v4322, %v4424
      %4426 = vmatprep.mubr.bf16.mxu0 %v1214
      %4427 = vmatmul.mubr.bf16.gmra.mxu0 %v1213
      %v4428 = vpop.f32.mrf.mxu0
      %v4429 = vadd.f32 %v4326, %v4428
      %v4430 = vpop.f32.mrf.mxu0
      %v4431 = vadd.f32 %v4328, %v4430
      %v4432 = vpop.f32.mrf.mxu0
      %v4433 = vadd.f32 %v4330, %v4432
      %v4434 = vpop.f32.mrf.mxu0
      %v4435 = vadd.f32 %v4332, %v4434
      %4436 = vmatprep.mubr.bf16.mxu0 %v1230
      %4437 = vmatmul.mubr.bf16.gmra.mxu0 %v1229
      %v4438 = vpop.f32.mrf.mxu0
      %v4439 = vadd.f32 %v4336, %v4438
      %v4440 = vpop.f32.mrf.mxu0
      %v4441 = vadd.f32 %v4338, %v4440
      %v4442 = vpop.f32.mrf.mxu0
      %v4443 = vadd.f32 %v4340, %v4442
      %v4444 = vpop.f32.mrf.mxu0
      %v4445 = vadd.f32 %v4342, %v4444
      %4446 = vmatprep.mubr.bf16.mxu0 %v1246
      %4447 = vmatmul.mubr.bf16.gmra.mxu0 %v1245
      %v4448 = vpop.f32.mrf.mxu0
      %v4449 = vadd.f32 %v4346, %v4448
      %v4450 = vpop.f32.mrf.mxu0
      %v4451 = vadd.f32 %v4348, %v4450
      %v4452 = vpop.f32.mrf.mxu0
      %v4453 = vadd.f32 %v4350, %v4452
      %v4454 = vpop.f32.mrf.mxu0
      %v4455 = vadd.f32 %v4352, %v4454
      %4456 = vmatprep.mubr.bf16.mxu0 %v1262
      %4457 = vmatmul.mubr.bf16.gmra.mxu0 %v1261
      %v4458 = vpop.f32.mrf.mxu0
      %v4459 = vadd.f32 %v4356, %v4458
      %v4460 = vpop.f32.mrf.mxu0
      %v4461 = vadd.f32 %v4358, %v4460
      %v4462 = vpop.f32.mrf.mxu0
      %v4463 = vadd.f32 %v4360, %v4462
      %v4464 = vpop.f32.mrf.mxu0
      %v4465 = vadd.f32 %v4362, %v4464
      %4466 = vmatprep.mubr.bf16.mxu0 %v1278
      %4467 = vmatmul.mubr.bf16.gmra.mxu0 %v1277
      %v4468 = vpop.f32.mrf.mxu0
      %v4469 = vadd.f32 %v4366, %v4468
      %v4470 = vpop.f32.mrf.mxu0
      %v4471 = vadd.f32 %v4368, %v4470
      %v4472 = vpop.f32.mrf.mxu0
      %v4473 = vadd.f32 %v4370, %v4472
      %v4474 = vpop.f32.mrf.mxu0
      %v4475 = vadd.f32 %v4372, %v4474
      %4476 = vmatprep.mubr.bf16.mxu0 %v1294
      %4477 = vmatmul.mubr.bf16.gmra.mxu0 %v1293
      %v4478 = vpop.f32.mrf.mxu0
      %v4479 = vadd.f32 %v4376, %v4478
      %v4480 = vpop.f32.mrf.mxu0
      %v4481 = vadd.f32 %v4378, %v4480
      %v4482 = vpop.f32.mrf.mxu0
      %v4483 = vadd.f32 %v4380, %v4482
      %v4484 = vpop.f32.mrf.mxu0
      %v4485 = vadd.f32 %v4382, %v4484
      %4486 = vdwg.mxu0
      %v4487 = vmax.f32 %v4419, 0.0
      %v4488 = vmax.f32 %v4421, 0.0
      %v4489 = vmax.f32 %v4423, 0.0
      %v4490 = vmax.f32 %v4425, 0.0
      %v4491 = vmax.f32 %v4429, 0.0
      %v4492 = vmax.f32 %v4431, 0.0
      %v4493 = vmax.f32 %v4433, 0.0
      %v4494 = vmax.f32 %v4435, 0.0
      %v4495 = vmax.f32 %v4439, 0.0
      %v4496 = vmax.f32 %v4441, 0.0
      %v4497 = vmax.f32 %v4443, 0.0
      %v4498 = vmax.f32 %v4445, 0.0
      %v4499 = vmax.f32 %v4449, 0.0
      %v4500 = vmax.f32 %v4451, 0.0
      %v4501 = vmax.f32 %v4453, 0.0
      %v4502 = vmax.f32 %v4455, 0.0
      %v4503 = vmax.f32 %v4459, 0.0
      %v4504 = vmax.f32 %v4461, 0.0
      %v4505 = vmax.f32 %v4463, 0.0
      %v4506 = vmax.f32 %v4465, 0.0
      %v4507 = vmax.f32 %v4469, 0.0
      %v4508 = vmax.f32 %v4471, 0.0
      %v4509 = vmax.f32 %v4473, 0.0
      %v4510 = vmax.f32 %v4475, 0.0
      %v4511 = vmax.f32 %v4479, 0.0
      %v4512 = vmax.f32 %v4481, 0.0
      %v4513 = vmax.f32 %v4483, 0.0
      %v4514 = vmax.f32 %v4485, 0.0
      %v4515 = vpack.c.bf16 %v4489, %v4487
      %v4516 = vpack.c.bf16 %v4490, %v4488
      %v4517 = vpack.c.bf16 %v4493, %v4491
      %v4518 = vpack.c.bf16 %v4494, %v4492
      %v4519 = vpack.c.bf16 %v4497, %v4495
      %v4520 = vpack.c.bf16 %v4498, %v4496
      %v4521 = vpack.c.bf16 %v4501, %v4499
      %v4522 = vpack.c.bf16 %v4502, %v4500
      %v4523 = vpack.c.bf16 %v4505, %v4503
      %v4524 = vpack.c.bf16 %v4506, %v4504
      %v4525 = vpack.c.bf16 %v4509, %v4507
      %v4526 = vpack.c.bf16 %v4510, %v4508
      %v4527 = vpack.c.bf16 %v4513, %v4511
      %v4528 = vpack.c.bf16 %v4514, %v4512
      %v4529 = vld [vmem:[%s3] sm:$0xff]
      %v4530 = vld [vmem:[%s3 + $0x8] sm:$0xff]
      %v4531 = vld [vmem:[%s3 + $0x10] sm:$0xff]
      %v4532 = vld [vmem:[%s3 + $0x18] sm:$0xff]
      %v4533 = vld [vmem:[%s3 + $0x20] sm:$0xff]
      %v4534 = vld [vmem:[%s3 + $0x28] sm:$0xff]
      %v4535 = vld [vmem:[%s3 + $0x30] sm:$0xff]
      %v4536 = vld [vmem:[%s3 + $0x38] sm:$0xff]
      %v4537 = vld [vmem:[%s3 + $0x40] sm:$0xff]
      %v4538 = vld [vmem:[%s3 + $0x48] sm:$0xff]
      %v4539 = vld [vmem:[%s3 + $0x50] sm:$0xff]
      %v4540 = vld [vmem:[%s3 + $0x58] sm:$0xff]
      %v4541 = vld [vmem:[%s3 + $0x60] sm:$0xff]
      %v4542 = vld [vmem:[%s3 + $0x68] sm:$0xff]
      %v4543 = vld [vmem:[%s3 + $0x70] sm:$0xff]
      %v4544 = vld [vmem:[%s3 + $0x78] sm:$0xff]
      %v4545 = vld [vmem:[%s3 + $0x80] sm:$0xff]
      %v4546 = vld [vmem:[%s3 + $0x88] sm:$0xff]
      %v4547 = vld [vmem:[%s3 + $0x90] sm:$0xff]
      %v4548 = vld [vmem:[%s3 + $0x98] sm:$0xff]
      %v4549 = vld [vmem:[%s3 + $0xa0] sm:$0xff]
      %v4550 = vld [vmem:[%s3 + $0xa8] sm:$0xff]
      %v4551 = vld [vmem:[%s3 + $0xb0] sm:$0xff]
      %v4552 = vld [vmem:[%s3 + $0xb8] sm:$0xff]
      %v4553 = vld [vmem:[%s3 + $0xc0] sm:$0xff]
      %v4554 = vld [vmem:[%s3 + $0xc8] sm:$0xff]
      %v4555 = vld [vmem:[%s3 + $0xd0] sm:$0xff]
      %v4556 = vld [vmem:[%s3 + $0xd8] sm:$0xff]
      %v4557 = vld [vmem:[%s3 + $0xe0] sm:$0xff]
      %v4558 = vld [vmem:[%s3 + $0xe8] sm:$0xff]
      %v4559 = vld [vmem:[%s3 + $0xf0] sm:$0xff]
      %v4560 = vld [vmem:[%s3 + $0xf8] sm:$0xff]
      %v4561 = vld [vmem:[%s3 + $0x100] sm:$0xff]
      %v4562 = vld [vmem:[%s3 + $0x108] sm:$0xff]
      %v4563 = vld [vmem:[%s3 + $0x110] sm:$0xff]
      %v4564 = vld [vmem:[%s3 + $0x118] sm:$0xff]
      %v4565 = vld [vmem:[%s3 + $0x120] sm:$0xff]
      %v4566 = vld [vmem:[%s3 + $0x128] sm:$0xff]
      %v4567 = vld [vmem:[%s3 + $0x130] sm:$0xff]
      %v4568 = vld [vmem:[%s3 + $0x138] sm:$0xff]
      %v4569 = vld [vmem:[%s3 + $0x140] sm:$0xff]
      %v4570 = vld [vmem:[%s3 + $0x148] sm:$0xff]
      %v4571 = vld [vmem:[%s3 + $0x150] sm:$0xff]
      %v4572 = vld [vmem:[%s3 + $0x158] sm:$0xff]
      %v4573 = vld [vmem:[%s3 + $0x160] sm:$0xff]
      %v4574 = vld [vmem:[%s3 + $0x168] sm:$0xff]
      %v4575 = vld [vmem:[%s3 + $0x170] sm:$0xff]
      %v4576 = vld [vmem:[%s3 + $0x178] sm:$0xff]
      %v4577 = vld [vmem:[%s3 + $0x180] sm:$0xff]
      %v4578 = vld [vmem:[%s3 + $0x188] sm:$0xff]
      %v4579 = vld [vmem:[%s3 + $0x190] sm:$0xff]
      %v4580 = vld [vmem:[%s3 + $0x198] sm:$0xff]
      %v4581 = vld [vmem:[%s3 + $0x1a0] sm:$0xff]
      %v4582 = vld [vmem:[%s3 + $0x1a8] sm:$0xff]
      %v4583 = vld [vmem:[%s3 + $0x1b0] sm:$0xff]
      %v4584 = vld [vmem:[%s3 + $0x1b8] sm:$0xff]
      %v4585 = vld [vmem:[%s3 + $0x1c0] sm:$0xff]
      %v4586 = vld [vmem:[%s3 + $0x1c8] sm:$0xff]
      %v4587 = vld [vmem:[%s3 + $0x1d0] sm:$0xff]
      %v4588 = vld [vmem:[%s3 + $0x1d8] sm:$0xff]
      %v4589 = vld [vmem:[%s3 + $0x1e0] sm:$0xff]
      %v4590 = vld [vmem:[%s3 + $0x1e8] sm:$0xff]
      %v4591 = vld [vmem:[%s3 + $0x1f0] sm:$0xff]
      %v4592 = vld [vmem:[%s3 + $0x1f8] sm:$0xff]
      %v4593 = vld [vmem:[%s3 + $0x200] sm:$0xff]
      %v4594 = vld [vmem:[%s3 + $0x208] sm:$0xff]
      %v4595 = vld [vmem:[%s3 + $0x210] sm:$0xff]
      %v4596 = vld [vmem:[%s3 + $0x218] sm:$0xff]
      %v4597 = vld [vmem:[%s3 + $0x220] sm:$0xff]
      %v4598 = vld [vmem:[%s3 + $0x228] sm:$0xff]
      %v4599 = vld [vmem:[%s3 + $0x230] sm:$0xff]
      %v4600 = vld [vmem:[%s3 + $0x238] sm:$0xff]
      %v4601 = vld [vmem:[%s3 + $0x240] sm:$0xff]
      %v4602 = vld [vmem:[%s3 + $0x248] sm:$0xff]
      %v4603 = vld [vmem:[%s3 + $0x250] sm:$0xff]
      %v4604 = vld [vmem:[%s3 + $0x258] sm:$0xff]
      %v4605 = vld [vmem:[%s3 + $0x260] sm:$0xff]
      %v4606 = vld [vmem:[%s3 + $0x268] sm:$0xff]
      %v4607 = vld [vmem:[%s3 + $0x270] sm:$0xff]
      %v4608 = vld [vmem:[%s3 + $0x278] sm:$0xff]
      %v4609 = vld [vmem:[%s3 + $0x280] sm:$0xff]
      %v4610 = vld [vmem:[%s3 + $0x288] sm:$0xff]
      %v4611 = vld [vmem:[%s3 + $0x290] sm:$0xff]
      %v4612 = vld [vmem:[%s3 + $0x298] sm:$0xff]
      %v4613 = vld [vmem:[%s3 + $0x2a0] sm:$0xff]
      %v4614 = vld [vmem:[%s3 + $0x2a8] sm:$0xff]
      %v4615 = vld [vmem:[%s3 + $0x2b0] sm:$0xff]
      %v4616 = vld [vmem:[%s3 + $0x2b8] sm:$0xff]
      %v4617 = vld [vmem:[%s3 + $0x2c0] sm:$0xff]
      %v4618 = vld [vmem:[%s3 + $0x2c8] sm:$0xff]
      %v4619 = vld [vmem:[%s3 + $0x2d0] sm:$0xff]
      %v4620 = vld [vmem:[%s3 + $0x2d8] sm:$0xff]
      %v4621 = vld [vmem:[%s3 + $0x2e0] sm:$0xff]
      %v4622 = vld [vmem:[%s3 + $0x2e8] sm:$0xff]
      %v4623 = vld [vmem:[%s3 + $0x2f0] sm:$0xff]
      %v4624 = vld [vmem:[%s3 + $0x2f8] sm:$0xff]
      %v4625 = vld [vmem:[%s3 + $0x300] sm:$0xff]
      %v4626 = vld [vmem:[%s3 + $0x308] sm:$0xff]
      %v4627 = vld [vmem:[%s3 + $0x310] sm:$0xff]
      %v4628 = vld [vmem:[%s3 + $0x318] sm:$0xff]
      %v4629 = vld [vmem:[%s3 + $0x320] sm:$0xff]
      %v4630 = vld [vmem:[%s3 + $0x328] sm:$0xff]
      %v4631 = vld [vmem:[%s3 + $0x330] sm:$0xff]
      %v4632 = vld [vmem:[%s3 + $0x338] sm:$0xff]
      %v4633 = vld [vmem:[%s3 + $0x340] sm:$0xff]
      %v4634 = vld [vmem:[%s3 + $0x348] sm:$0xff]
      %v4635 = vld [vmem:[%s3 + $0x350] sm:$0xff]
      %v4636 = vld [vmem:[%s3 + $0x358] sm:$0xff]
      %v4637 = vld [vmem:[%s3 + $0x360] sm:$0xff]
      %v4638 = vld [vmem:[%s3 + $0x368] sm:$0xff]
      %v4639 = vld [vmem:[%s3 + $0x370] sm:$0xff]
      %v4640 = vld [vmem:[%s3 + $0x378] sm:$0xff]
      %v4641 = vld [vmem:[%s3 + $0x380] sm:$0xff]
      %v4642 = vld [vmem:[%s3 + $0x388] sm:$0xff]
      %v4643 = vld [vmem:[%s3 + $0x390] sm:$0xff]
      %v4644 = vld [vmem:[%s3 + $0x398] sm:$0xff]
      %v4645 = vld [vmem:[%s3 + $0x3a0] sm:$0xff]
      %v4646 = vld [vmem:[%s3 + $0x3a8] sm:$0xff]
      %v4647 = vld [vmem:[%s3 + $0x3b0] sm:$0xff]
      %v4648 = vld [vmem:[%s3 + $0x3b8] sm:$0xff]
      %v4649 = vld [vmem:[%s3 + $0x3c0] sm:$0xff]
      %v4650 = vld [vmem:[%s3 + $0x3c8] sm:$0xff]
      %v4651 = vld [vmem:[%s3 + $0x3d0] sm:$0xff]
      %v4652 = vld [vmem:[%s3 + $0x3d8] sm:$0xff]
      %v4653 = vld [vmem:[%s3 + $0x3e0] sm:$0xff]
      %v4654 = vld [vmem:[%s3 + $0x3e8] sm:$0xff]
      %v4655 = vld [vmem:[%s3 + $0x3f0] sm:$0xff]
      %v4656 = vld [vmem:[%s3 + $0x3f8] sm:$0xff]
      %v4657 = vld [vmem:[%s3 + $0x400] sm:$0xff]
      %v4658 = vld [vmem:[%s3 + $0x408] sm:$0xff]
      %v4659 = vld [vmem:[%s3 + $0x410] sm:$0xff]
      %v4660 = vld [vmem:[%s3 + $0x418] sm:$0xff]
      %v4661 = vld [vmem:[%s3 + $0x420] sm:$0xff]
      %v4662 = vld [vmem:[%s3 + $0x428] sm:$0xff]
      %v4663 = vld [vmem:[%s3 + $0x430] sm:$0xff]
      %v4664 = vld [vmem:[%s3 + $0x438] sm:$0xff]
      %v4665 = vld [vmem:[%s3 + $0x440] sm:$0xff]
      %v4666 = vld [vmem:[%s3 + $0x448] sm:$0xff]
      %v4667 = vld [vmem:[%s3 + $0x450] sm:$0xff]
      %v4668 = vld [vmem:[%s3 + $0x458] sm:$0xff]
      %v4669 = vld [vmem:[%s3 + $0x460] sm:$0xff]
      %v4670 = vld [vmem:[%s3 + $0x468] sm:$0xff]
      %v4671 = vld [vmem:[%s3 + $0x470] sm:$0xff]
      %v4672 = vld [vmem:[%s3 + $0x478] sm:$0xff]
      %v4673 = vld [vmem:[%s3 + $0x480] sm:$0xff]
      %v4674 = vld [vmem:[%s3 + $0x488] sm:$0xff]
      %v4675 = vld [vmem:[%s3 + $0x490] sm:$0xff]
      %v4676 = vld [vmem:[%s3 + $0x498] sm:$0xff]
      %v4677 = vld [vmem:[%s3 + $0x4a0] sm:$0xff]
      %v4678 = vld [vmem:[%s3 + $0x4a8] sm:$0xff]
      %v4679 = vld [vmem:[%s3 + $0x4b0] sm:$0xff]
      %v4680 = vld [vmem:[%s3 + $0x4b8] sm:$0xff]
      %v4681 = vld [vmem:[%s3 + $0x4c0] sm:$0xff]
      %v4682 = vld [vmem:[%s3 + $0x4c8] sm:$0xff]
      %v4683 = vld [vmem:[%s3 + $0x4d0] sm:$0xff]
      %v4684 = vld [vmem:[%s3 + $0x4d8] sm:$0xff]
      %v4685 = vld [vmem:[%s3 + $0x4e0] sm:$0xff]
      %v4686 = vld [vmem:[%s3 + $0x4e8] sm:$0xff]
      %v4687 = vld [vmem:[%s3 + $0x4f0] sm:$0xff]
      %v4688 = vld [vmem:[%s3 + $0x4f8] sm:$0xff]
      %v4689 = vld [vmem:[%s4] sm:$0x3]
      %v4691 = vlaneseq
      %v4692 = vshrl.u32 %v4691, 7
      %v4693 = vsub.s32 0, %v4692
      %v4694 = vrot.slane %v4689, %v4693
      %v4695 = vlaneseq
      %v4696 = vshrl.u32 %v4695, 7
      %v4697 = vsub.s32 1, %v4696
      %v4698 = vrot.slane %v4689, %v4697
      %v4861 = vunpack.c.l.b16 %v4529
      %v4862 = vunpack.c.h.b16 %v4529
      %v4863 = vunpack.c.l.b16 %v4530
      %v4864 = vunpack.c.h.b16 %v4530
      %v4865 = vunpack.c.l.b16 %v4531
      %v4866 = vunpack.c.h.b16 %v4531
      %v4867 = vunpack.c.l.b16 %v4532
      %v4868 = vunpack.c.h.b16 %v4532
      %v4869 = vunpack.c.l.b16 %v4533
      %v4870 = vunpack.c.h.b16 %v4533
      %v4871 = vunpack.c.l.b16 %v4534
      %v4872 = vunpack.c.h.b16 %v4534
      %v4873 = vunpack.c.l.b16 %v4535
      %v4874 = vunpack.c.h.b16 %v4535
      %v4875 = vunpack.c.l.b16 %v4536
      %v4876 = vunpack.c.h.b16 %v4536
      %v4877 = vunpack.c.l.b16 %v4537
      %v4878 = vunpack.c.h.b16 %v4537
      %v4879 = vunpack.c.l.b16 %v4538
      %v4880 = vunpack.c.h.b16 %v4538
      %v4881 = vunpack.c.l.b16 %v4539
      %v4882 = vunpack.c.h.b16 %v4539
      %v4883 = vunpack.c.l.b16 %v4540
      %v4884 = vunpack.c.h.b16 %v4540
      %v4885 = vunpack.c.l.b16 %v4541
      %v4886 = vunpack.c.h.b16 %v4541
      %v4887 = vunpack.c.l.b16 %v4542
      %v4888 = vunpack.c.h.b16 %v4542
      %v4889 = vunpack.c.l.b16 %v4543
      %v4890 = vunpack.c.h.b16 %v4543
      %v4891 = vunpack.c.l.b16 %v4544
      %v4892 = vunpack.c.h.b16 %v4544
      %v4893 = vunpack.c.l.b16 %v4545
      %v4894 = vunpack.c.h.b16 %v4545
      %v4895 = vunpack.c.l.b16 %v4546
      %v4896 = vunpack.c.h.b16 %v4546
      %v4897 = vunpack.c.l.b16 %v4547
      %v4898 = vunpack.c.h.b16 %v4547
      %v4899 = vunpack.c.l.b16 %v4548
      %v4900 = vunpack.c.h.b16 %v4548
      %v4901 = vunpack.c.l.b16 %v4549
      %v4902 = vunpack.c.h.b16 %v4549
      %v4903 = vunpack.c.l.b16 %v4550
      %v4904 = vunpack.c.h.b16 %v4550
      %v4905 = vunpack.c.l.b16 %v4551
      %v4906 = vunpack.c.h.b16 %v4551
      %v4907 = vunpack.c.l.b16 %v4552
      %v4908 = vunpack.c.h.b16 %v4552
      %v4909 = vunpack.c.l.b16 %v4553
      %v4910 = vunpack.c.h.b16 %v4553
      %v4911 = vunpack.c.l.b16 %v4554
      %v4912 = vunpack.c.h.b16 %v4554
      %v4913 = vunpack.c.l.b16 %v4555
      %v4914 = vunpack.c.h.b16 %v4555
      %v4915 = vunpack.c.l.b16 %v4556
      %v4916 = vunpack.c.h.b16 %v4556
      %v4917 = vunpack.c.l.b16 %v4557
      %v4918 = vunpack.c.h.b16 %v4557
      %v4919 = vunpack.c.l.b16 %v4558
      %v4920 = vunpack.c.h.b16 %v4558
      %v4921 = vunpack.c.l.b16 %v4559
      %v4922 = vunpack.c.h.b16 %v4559
      %v4923 = vunpack.c.l.b16 %v4560
      %v4924 = vunpack.c.h.b16 %v4560
      %v4925 = vunpack.c.l.b16 %v4561
      %v4926 = vunpack.c.h.b16 %v4561
      %v4927 = vunpack.c.l.b16 %v4562
      %v4928 = vunpack.c.h.b16 %v4562
      %v4929 = vunpack.c.l.b16 %v4563
      %v4930 = vunpack.c.h.b16 %v4563
      %v4931 = vunpack.c.l.b16 %v4564
      %v4932 = vunpack.c.h.b16 %v4564
      %v4933 = vunpack.c.l.b16 %v4565
      %v4934 = vunpack.c.h.b16 %v4565
      %v4935 = vunpack.c.l.b16 %v4566
      %v4936 = vunpack.c.h.b16 %v4566
      %v4937 = vunpack.c.l.b16 %v4567
      %v4938 = vunpack.c.h.b16 %v4567
      %v4939 = vunpack.c.l.b16 %v4568
      %v4940 = vunpack.c.h.b16 %v4568
      %v4941 = vunpack.c.l.b16 %v4569
      %v4942 = vunpack.c.h.b16 %v4569
      %v4943 = vunpack.c.l.b16 %v4570
      %v4944 = vunpack.c.h.b16 %v4570
      %v4945 = vunpack.c.l.b16 %v4571
      %v4946 = vunpack.c.h.b16 %v4571
      %v4947 = vunpack.c.l.b16 %v4572
      %v4948 = vunpack.c.h.b16 %v4572
      %v4949 = vunpack.c.l.b16 %v4573
      %v4950 = vunpack.c.h.b16 %v4573
      %v4951 = vunpack.c.l.b16 %v4574
      %v4952 = vunpack.c.h.b16 %v4574
      %v4953 = vunpack.c.l.b16 %v4575
      %v4954 = vunpack.c.h.b16 %v4575
      %v4955 = vunpack.c.l.b16 %v4576
      %v4956 = vunpack.c.h.b16 %v4576
      %v4957 = vunpack.c.l.b16 %v4577
      %v4958 = vunpack.c.h.b16 %v4577
      %v4959 = vunpack.c.l.b16 %v4578
      %v4960 = vunpack.c.h.b16 %v4578
      %v4961 = vunpack.c.l.b16 %v4579
      %v4962 = vunpack.c.h.b16 %v4579
      %v4963 = vunpack.c.l.b16 %v4580
      %v4964 = vunpack.c.h.b16 %v4580
      %v4965 = vunpack.c.l.b16 %v4581
      %v4966 = vunpack.c.h.b16 %v4581
      %v4967 = vunpack.c.l.b16 %v4582
      %v4968 = vunpack.c.h.b16 %v4582
      %v4969 = vunpack.c.l.b16 %v4583
      %v4970 = vunpack.c.h.b16 %v4583
      %v4971 = vunpack.c.l.b16 %v4584
      %v4972 = vunpack.c.h.b16 %v4584
      %v4973 = vunpack.c.l.b16 %v4585
      %v4974 = vunpack.c.h.b16 %v4585
      %v4975 = vunpack.c.l.b16 %v4586
      %v4976 = vunpack.c.h.b16 %v4586
      %v4977 = vunpack.c.l.b16 %v4587
      %v4978 = vunpack.c.h.b16 %v4587
      %v4979 = vunpack.c.l.b16 %v4588
      %v4980 = vunpack.c.h.b16 %v4588
      %v4981 = vunpack.c.l.b16 %v4589
      %v4982 = vunpack.c.h.b16 %v4589
      %v4983 = vunpack.c.l.b16 %v4590
      %v4984 = vunpack.c.h.b16 %v4590
      %v4985 = vunpack.c.l.b16 %v4591
      %v4986 = vunpack.c.h.b16 %v4591
      %v4987 = vunpack.c.l.b16 %v4592
      %v4988 = vunpack.c.h.b16 %v4592
      %v4989 = vunpack.c.l.b16 %v4593
      %v4990 = vunpack.c.h.b16 %v4593
      %v4991 = vunpack.c.l.b16 %v4594
      %v4992 = vunpack.c.h.b16 %v4594
      %v4993 = vunpack.c.l.b16 %v4595
      %v4994 = vunpack.c.h.b16 %v4595
      %v4995 = vunpack.c.l.b16 %v4596
      %v4996 = vunpack.c.h.b16 %v4596
      %v4997 = vunpack.c.l.b16 %v4597
      %v4998 = vunpack.c.h.b16 %v4597
      %v4999 = vunpack.c.l.b16 %v4598
      %v5000 = vunpack.c.h.b16 %v4598
      %v5001 = vunpack.c.l.b16 %v4599
      %v5002 = vunpack.c.h.b16 %v4599
      %v5003 = vunpack.c.l.b16 %v4600
      %v5004 = vunpack.c.h.b16 %v4600
      %v5005 = vunpack.c.l.b16 %v4601
      %v5006 = vunpack.c.h.b16 %v4601
      %v5007 = vunpack.c.l.b16 %v4602
      %v5008 = vunpack.c.h.b16 %v4602
      %v5009 = vunpack.c.l.b16 %v4603
      %v5010 = vunpack.c.h.b16 %v4603
      %v5011 = vunpack.c.l.b16 %v4604
      %v5012 = vunpack.c.h.b16 %v4604
      %v5013 = vunpack.c.l.b16 %v4605
      %v5014 = vunpack.c.h.b16 %v4605
      %v5015 = vunpack.c.l.b16 %v4606
      %v5016 = vunpack.c.h.b16 %v4606
      %v5017 = vunpack.c.l.b16 %v4607
      %v5018 = vunpack.c.h.b16 %v4607
      %v5019 = vunpack.c.l.b16 %v4608
      %v5020 = vunpack.c.h.b16 %v4608
      %v5021 = vunpack.c.l.b16 %v4609
      %v5022 = vunpack.c.h.b16 %v4609
      %v5023 = vunpack.c.l.b16 %v4610
      %v5024 = vunpack.c.h.b16 %v4610
      %v5025 = vunpack.c.l.b16 %v4611
      %v5026 = vunpack.c.h.b16 %v4611
      %v5027 = vunpack.c.l.b16 %v4612
      %v5028 = vunpack.c.h.b16 %v4612
      %v5029 = vunpack.c.l.b16 %v4613
      %v5030 = vunpack.c.h.b16 %v4613
      %v5031 = vunpack.c.l.b16 %v4614
      %v5032 = vunpack.c.h.b16 %v4614
      %v5033 = vunpack.c.l.b16 %v4615
      %v5034 = vunpack.c.h.b16 %v4615
      %v5035 = vunpack.c.l.b16 %v4616
      %v5036 = vunpack.c.h.b16 %v4616
      %v5037 = vunpack.c.l.b16 %v4617
      %v5038 = vunpack.c.h.b16 %v4617
      %v5039 = vunpack.c.l.b16 %v4618
      %v5040 = vunpack.c.h.b16 %v4618
      %v5041 = vunpack.c.l.b16 %v4619
      %v5042 = vunpack.c.h.b16 %v4619
      %v5043 = vunpack.c.l.b16 %v4620
      %v5044 = vunpack.c.h.b16 %v4620
      %v5045 = vunpack.c.l.b16 %v4621
      %v5046 = vunpack.c.h.b16 %v4621
      %v5047 = vunpack.c.l.b16 %v4622
      %v5048 = vunpack.c.h.b16 %v4622
      %v5049 = vunpack.c.l.b16 %v4623
      %v5050 = vunpack.c.h.b16 %v4623
      %v5051 = vunpack.c.l.b16 %v4624
      %v5052 = vunpack.c.h.b16 %v4624
      %v5053 = vunpack.c.l.b16 %v4625
      %v5054 = vunpack.c.h.b16 %v4625
      %v5055 = vunpack.c.l.b16 %v4626
      %v5056 = vunpack.c.h.b16 %v4626
      %v5057 = vunpack.c.l.b16 %v4627
      %v5058 = vunpack.c.h.b16 %v4627
      %v5059 = vunpack.c.l.b16 %v4628
      %v5060 = vunpack.c.h.b16 %v4628
      %v5061 = vunpack.c.l.b16 %v4629
      %v5062 = vunpack.c.h.b16 %v4629
      %v5063 = vunpack.c.l.b16 %v4630
      %v5064 = vunpack.c.h.b16 %v4630
      %v5065 = vunpack.c.l.b16 %v4631
      %v5066 = vunpack.c.h.b16 %v4631
      %v5067 = vunpack.c.l.b16 %v4632
      %v5068 = vunpack.c.h.b16 %v4632
      %v5069 = vunpack.c.l.b16 %v4633
      %v5070 = vunpack.c.h.b16 %v4633
      %v5071 = vunpack.c.l.b16 %v4634
      %v5072 = vunpack.c.h.b16 %v4634
      %v5073 = vunpack.c.l.b16 %v4635
      %v5074 = vunpack.c.h.b16 %v4635
      %v5075 = vunpack.c.l.b16 %v4636
      %v5076 = vunpack.c.h.b16 %v4636
      %v5077 = vunpack.c.l.b16 %v4637
      %v5078 = vunpack.c.h.b16 %v4637
      %v5079 = vunpack.c.l.b16 %v4638
      %v5080 = vunpack.c.h.b16 %v4638
      %v5081 = vunpack.c.l.b16 %v4639
      %v5082 = vunpack.c.h.b16 %v4639
      %v5083 = vunpack.c.l.b16 %v4640
      %v5084 = vunpack.c.h.b16 %v4640
      %v5085 = vunpack.c.l.b16 %v4641
      %v5086 = vunpack.c.h.b16 %v4641
      %v5087 = vunpack.c.l.b16 %v4642
      %v5088 = vunpack.c.h.b16 %v4642
      %v5089 = vunpack.c.l.b16 %v4643
      %v5090 = vunpack.c.h.b16 %v4643
      %v5091 = vunpack.c.l.b16 %v4644
      %v5092 = vunpack.c.h.b16 %v4644
      %v5093 = vunpack.c.l.b16 %v4645
      %v5094 = vunpack.c.h.b16 %v4645
      %v5095 = vunpack.c.l.b16 %v4646
      %v5096 = vunpack.c.h.b16 %v4646
      %v5097 = vunpack.c.l.b16 %v4647
      %v5098 = vunpack.c.h.b16 %v4647
      %v5099 = vunpack.c.l.b16 %v4648
      %v5100 = vunpack.c.h.b16 %v4648
      %v5101 = vunpack.c.l.b16 %v4649
      %v5102 = vunpack.c.h.b16 %v4649
      %v5103 = vunpack.c.l.b16 %v4650
      %v5104 = vunpack.c.h.b16 %v4650
      %v5105 = vunpack.c.l.b16 %v4651
      %v5106 = vunpack.c.h.b16 %v4651
      %v5107 = vunpack.c.l.b16 %v4652
      %v5108 = vunpack.c.h.b16 %v4652
      %v5109 = vunpack.c.l.b16 %v4653
      %v5110 = vunpack.c.h.b16 %v4653
      %v5111 = vunpack.c.l.b16 %v4654
      %v5112 = vunpack.c.h.b16 %v4654
      %v5113 = vunpack.c.l.b16 %v4655
      %v5114 = vunpack.c.h.b16 %v4655
      %v5115 = vunpack.c.l.b16 %v4656
      %v5116 = vunpack.c.h.b16 %v4656
      %v5117 = vunpack.c.l.b16 %v4657
      %v5118 = vunpack.c.h.b16 %v4657
      %v5119 = vunpack.c.l.b16 %v4658
      %v5120 = vunpack.c.h.b16 %v4658
      %v5121 = vunpack.c.l.b16 %v4659
      %v5122 = vunpack.c.h.b16 %v4659
      %v5123 = vunpack.c.l.b16 %v4660
      %v5124 = vunpack.c.h.b16 %v4660
      %v5125 = vunpack.c.l.b16 %v4661
      %v5126 = vunpack.c.h.b16 %v4661
      %v5127 = vunpack.c.l.b16 %v4662
      %v5128 = vunpack.c.h.b16 %v4662
      %v5129 = vunpack.c.l.b16 %v4663
      %v5130 = vunpack.c.h.b16 %v4663
      %v5131 = vunpack.c.l.b16 %v4664
      %v5132 = vunpack.c.h.b16 %v4664
      %v5133 = vunpack.c.l.b16 %v4665
      %v5134 = vunpack.c.h.b16 %v4665
      %v5135 = vunpack.c.l.b16 %v4666
      %v5136 = vunpack.c.h.b16 %v4666
      %v5137 = vunpack.c.l.b16 %v4667
      %v5138 = vunpack.c.h.b16 %v4667
      %v5139 = vunpack.c.l.b16 %v4668
      %v5140 = vunpack.c.h.b16 %v4668
      %v5141 = vunpack.c.l.b16 %v4669
      %v5142 = vunpack.c.h.b16 %v4669
      %v5143 = vunpack.c.l.b16 %v4670
      %v5144 = vunpack.c.h.b16 %v4670
      %v5145 = vunpack.c.l.b16 %v4671
      %v5146 = vunpack.c.h.b16 %v4671
      %v5147 = vunpack.c.l.b16 %v4672
      %v5148 = vunpack.c.h.b16 %v4672
      %v5149 = vunpack.c.l.b16 %v4673
      %v5150 = vunpack.c.h.b16 %v4673
      %v5151 = vunpack.c.l.b16 %v4674
      %v5152 = vunpack.c.h.b16 %v4674
      %v5153 = vunpack.c.l.b16 %v4675
      %v5154 = vunpack.c.h.b16 %v4675
      %v5155 = vunpack.c.l.b16 %v4676
      %v5156 = vunpack.c.h.b16 %v4676
      %v5157 = vunpack.c.l.b16 %v4677
      %v5158 = vunpack.c.h.b16 %v4677
      %v5159 = vunpack.c.l.b16 %v4678
      %v5160 = vunpack.c.h.b16 %v4678
      %v5161 = vunpack.c.l.b16 %v4679
      %v5162 = vunpack.c.h.b16 %v4679
      %v5163 = vunpack.c.l.b16 %v4680
      %v5164 = vunpack.c.h.b16 %v4680
      %v5165 = vunpack.c.l.b16 %v4681
      %v5166 = vunpack.c.h.b16 %v4681
      %v5167 = vunpack.c.l.b16 %v4682
      %v5168 = vunpack.c.h.b16 %v4682
      %v5169 = vunpack.c.l.b16 %v4683
      %v5170 = vunpack.c.h.b16 %v4683
      %v5171 = vunpack.c.l.b16 %v4684
      %v5172 = vunpack.c.h.b16 %v4684
      %v5173 = vunpack.c.l.b16 %v4685
      %v5174 = vunpack.c.h.b16 %v4685
      %v5175 = vunpack.c.l.b16 %v4686
      %v5176 = vunpack.c.h.b16 %v4686
      %v5177 = vunpack.c.l.b16 %v4687
      %v5178 = vunpack.c.h.b16 %v4687
      %v5179 = vunpack.c.l.b16 %v4688
      %v5180 = vunpack.c.h.b16 %v4688
      %v5181 = vpack.c.b16 %v4863, %v4861
      %v5182 = vpack.c.b16 %v4864, %v4862
      %v5183 = vpack.c.b16 %v4867, %v4865
      %v5184 = vpack.c.b16 %v4868, %v4866
      %v5185 = vpack.c.b16 %v4871, %v4869
      %v5186 = vpack.c.b16 %v4872, %v4870
      %v5187 = vpack.c.b16 %v4875, %v4873
      %v5188 = vpack.c.b16 %v4876, %v4874
      %v5189 = vpack.c.b16 %v4879, %v4877
      %v5190 = vpack.c.b16 %v4880, %v4878
      %v5191 = vpack.c.b16 %v4883, %v4881
      %v5192 = vpack.c.b16 %v4884, %v4882
      %v5193 = vpack.c.b16 %v4887, %v4885
      %v5194 = vpack.c.b16 %v4888, %v4886
      %v5195 = vpack.c.b16 %v4891, %v4889
      %v5196 = vpack.c.b16 %v4892, %v4890
      %v5197 = vpack.c.b16 %v4895, %v4893
      %v5198 = vpack.c.b16 %v4896, %v4894
      %v5199 = vpack.c.b16 %v4899, %v4897
      %v5200 = vpack.c.b16 %v4900, %v4898
      %v5201 = vpack.c.b16 %v4903, %v4901
      %v5202 = vpack.c.b16 %v4904, %v4902
      %v5203 = vpack.c.b16 %v4907, %v4905
      %v5204 = vpack.c.b16 %v4908, %v4906
      %v5205 = vpack.c.b16 %v4911, %v4909
      %v5206 = vpack.c.b16 %v4912, %v4910
      %v5207 = vpack.c.b16 %v4915, %v4913
      %v5208 = vpack.c.b16 %v4916, %v4914
      %v5209 = vpack.c.b16 %v4919, %v4917
      %v5210 = vpack.c.b16 %v4920, %v4918
      %v5211 = vpack.c.b16 %v4923, %v4921
      %v5212 = vpack.c.b16 %v4924, %v4922
      %v5213 = vpack.c.b16 %v4927, %v4925
      %v5214 = vpack.c.b16 %v4928, %v4926
      %v5215 = vpack.c.b16 %v4931, %v4929
      %v5216 = vpack.c.b16 %v4932, %v4930
      %v5217 = vpack.c.b16 %v4935, %v4933
      %v5218 = vpack.c.b16 %v4936, %v4934
      %v5219 = vpack.c.b16 %v4939, %v4937
      %v5220 = vpack.c.b16 %v4940, %v4938
      %v5221 = vpack.c.b16 %v4943, %v4941
      %v5222 = vpack.c.b16 %v4944, %v4942
      %v5223 = vpack.c.b16 %v4947, %v4945
      %v5224 = vpack.c.b16 %v4948, %v4946
      %v5225 = vpack.c.b16 %v4951, %v4949
      %v5226 = vpack.c.b16 %v4952, %v4950
      %v5227 = vpack.c.b16 %v4955, %v4953
      %v5228 = vpack.c.b16 %v4956, %v4954
      %v5229 = vpack.c.b16 %v4959, %v4957
      %v5230 = vpack.c.b16 %v4960, %v4958
      %v5231 = vpack.c.b16 %v4963, %v4961
      %v5232 = vpack.c.b16 %v4964, %v4962
      %v5233 = vpack.c.b16 %v4967, %v4965
      %v5234 = vpack.c.b16 %v4968, %v4966
      %v5235 = vpack.c.b16 %v4971, %v4969
      %v5236 = vpack.c.b16 %v4972, %v4970
      %v5237 = vpack.c.b16 %v4975, %v4973
      %v5238 = vpack.c.b16 %v4976, %v4974
      %v5239 = vpack.c.b16 %v4979, %v4977
      %v5240 = vpack.c.b16 %v4980, %v4978
      %v5241 = vpack.c.b16 %v4983, %v4981
      %v5242 = vpack.c.b16 %v4984, %v4982
      %v5243 = vpack.c.b16 %v4987, %v4985
      %v5244 = vpack.c.b16 %v4988, %v4986
      %v5245 = vpack.c.b16 %v4991, %v4989
      %v5246 = vpack.c.b16 %v4992, %v4990
      %v5247 = vpack.c.b16 %v4995, %v4993
      %v5248 = vpack.c.b16 %v4996, %v4994
      %v5249 = vpack.c.b16 %v4999, %v4997
      %v5250 = vpack.c.b16 %v5000, %v4998
      %v5251 = vpack.c.b16 %v5003, %v5001
      %v5252 = vpack.c.b16 %v5004, %v5002
      %v5253 = vpack.c.b16 %v5007, %v5005
      %v5254 = vpack.c.b16 %v5008, %v5006
      %v5255 = vpack.c.b16 %v5011, %v5009
      %v5256 = vpack.c.b16 %v5012, %v5010
      %v5257 = vpack.c.b16 %v5015, %v5013
      %v5258 = vpack.c.b16 %v5016, %v5014
      %v5259 = vpack.c.b16 %v5019, %v5017
      %v5260 = vpack.c.b16 %v5020, %v5018
      %v5261 = vpack.c.b16 %v5023, %v5021
      %v5262 = vpack.c.b16 %v5024, %v5022
      %v5263 = vpack.c.b16 %v5027, %v5025
      %v5264 = vpack.c.b16 %v5028, %v5026
      %v5265 = vpack.c.b16 %v5031, %v5029
      %v5266 = vpack.c.b16 %v5032, %v5030
      %v5267 = vpack.c.b16 %v5035, %v5033
      %v5268 = vpack.c.b16 %v5036, %v5034
      %v5269 = vpack.c.b16 %v5039, %v5037
      %v5270 = vpack.c.b16 %v5040, %v5038
      %v5271 = vpack.c.b16 %v5043, %v5041
      %v5272 = vpack.c.b16 %v5044, %v5042
      %v5273 = vpack.c.b16 %v5047, %v5045
      %v5274 = vpack.c.b16 %v5048, %v5046
      %v5275 = vpack.c.b16 %v5051, %v5049
      %v5276 = vpack.c.b16 %v5052, %v5050
      %v5277 = vpack.c.b16 %v5055, %v5053
      %v5278 = vpack.c.b16 %v5056, %v5054
      %v5279 = vpack.c.b16 %v5059, %v5057
      %v5280 = vpack.c.b16 %v5060, %v5058
      %v5281 = vpack.c.b16 %v5063, %v5061
      %v5282 = vpack.c.b16 %v5064, %v5062
      %v5283 = vpack.c.b16 %v5067, %v5065
      %v5284 = vpack.c.b16 %v5068, %v5066
      %v5285 = vpack.c.b16 %v5071, %v5069
      %v5286 = vpack.c.b16 %v5072, %v5070
      %v5287 = vpack.c.b16 %v5075, %v5073
      %v5288 = vpack.c.b16 %v5076, %v5074
      %v5289 = vpack.c.b16 %v5079, %v5077
      %v5290 = vpack.c.b16 %v5080, %v5078
      %v5291 = vpack.c.b16 %v5083, %v5081
      %v5292 = vpack.c.b16 %v5084, %v5082
      %v5293 = vpack.c.b16 %v5087, %v5085
      %v5294 = vpack.c.b16 %v5088, %v5086
      %v5295 = vpack.c.b16 %v5091, %v5089
      %v5296 = vpack.c.b16 %v5092, %v5090
      %v5297 = vpack.c.b16 %v5095, %v5093
      %v5298 = vpack.c.b16 %v5096, %v5094
      %v5299 = vpack.c.b16 %v5099, %v5097
      %v5300 = vpack.c.b16 %v5100, %v5098
      %v5301 = vpack.c.b16 %v5103, %v5101
      %v5302 = vpack.c.b16 %v5104, %v5102
      %v5303 = vpack.c.b16 %v5107, %v5105
      %v5304 = vpack.c.b16 %v5108, %v5106
      %v5305 = vpack.c.b16 %v5111, %v5109
      %v5306 = vpack.c.b16 %v5112, %v5110
      %v5307 = vpack.c.b16 %v5115, %v5113
      %v5308 = vpack.c.b16 %v5116, %v5114
      %v5309 = vpack.c.b16 %v5119, %v5117
      %v5310 = vpack.c.b16 %v5120, %v5118
      %v5311 = vpack.c.b16 %v5123, %v5121
      %v5312 = vpack.c.b16 %v5124, %v5122
      %v5313 = vpack.c.b16 %v5127, %v5125
      %v5314 = vpack.c.b16 %v5128, %v5126
      %v5315 = vpack.c.b16 %v5131, %v5129
      %v5316 = vpack.c.b16 %v5132, %v5130
      %v5317 = vpack.c.b16 %v5135, %v5133
      %v5318 = vpack.c.b16 %v5136, %v5134
      %v5319 = vpack.c.b16 %v5139, %v5137
      %v5320 = vpack.c.b16 %v5140, %v5138
      %v5321 = vpack.c.b16 %v5143, %v5141
      %v5322 = vpack.c.b16 %v5144, %v5142
      %v5323 = vpack.c.b16 %v5147, %v5145
      %v5324 = vpack.c.b16 %v5148, %v5146
      %v5325 = vpack.c.b16 %v5151, %v5149
      %v5326 = vpack.c.b16 %v5152, %v5150
      %v5327 = vpack.c.b16 %v5155, %v5153
      %v5328 = vpack.c.b16 %v5156, %v5154
      %v5329 = vpack.c.b16 %v5159, %v5157
      %v5330 = vpack.c.b16 %v5160, %v5158
      %v5331 = vpack.c.b16 %v5163, %v5161
      %v5332 = vpack.c.b16 %v5164, %v5162
      %v5333 = vpack.c.b16 %v5167, %v5165
      %v5334 = vpack.c.b16 %v5168, %v5166
      %v5335 = vpack.c.b16 %v5171, %v5169
      %v5336 = vpack.c.b16 %v5172, %v5170
      %v5337 = vpack.c.b16 %v5175, %v5173
      %v5338 = vpack.c.b16 %v5176, %v5174
      %v5339 = vpack.c.b16 %v5179, %v5177
      %v5340 = vpack.c.b16 %v5180, %v5178
      %5501 = vmatprep.subr.bf16.mxu0 %v5196
      %5502 = vmatpush1.bf16.msra.mxu0 %v5195
      %5503 = vmatprep.subr.bf16.mxu0 %v5194
      %5504 = vmatpush1.bf16.msra.mxu0 %v5193
      %5505 = vmatprep.subr.bf16.mxu0 %v5192
      %5506 = vmatpush1.bf16.msra.mxu0 %v5191
      %5507 = vmatprep.subr.bf16.mxu0 %v5190
      %5508 = vmatpush1.bf16.msra.mxu0 %v5189
      %5509 = vmatprep.subr.bf16.mxu0 %v5188
      %5510 = vmatpush1.bf16.msra.mxu0 %v5187
      %5511 = vmatprep.subr.bf16.mxu0 %v5186
      %5512 = vmatpush1.bf16.msra.mxu0 %v5185
      %5513 = vmatprep.subr.bf16.mxu0 %v5184
      %5514 = vmatpush1.bf16.msra.mxu0 %v5183
      %5515 = vmatprep.subr.bf16.mxu0 %v5182
      %5516 = vmatpush1.bf16.msra.mxu0 %v5181
      %5517 = vmatprep.subr.bf16.mxu0 %v5212
      %5518 = vmatpush2.bf16.msra.mxu0 %v5211
      %5519 = vmatprep.subr.bf16.mxu0 %v5210
      %5520 = vmatpush2.bf16.msra.mxu0 %v5209
      %5521 = vmatprep.subr.bf16.mxu0 %v5208
      %5522 = vmatpush2.bf16.msra.mxu0 %v5207
      %5523 = vmatprep.subr.bf16.mxu0 %v5206
      %5524 = vmatpush2.bf16.msra.mxu0 %v5205
      %5525 = vmatprep.subr.bf16.mxu0 %v5204
      %5526 = vmatpush2.bf16.msra.mxu0 %v5203
      %5527 = vmatprep.subr.bf16.mxu0 %v5202
      %5528 = vmatpush2.bf16.msra.mxu0 %v5201
      %5529 = vmatprep.subr.bf16.mxu0 %v5200
      %5530 = vmatpush2.bf16.msra.mxu0 %v5199
      %5531 = vmatprep.subr.bf16.mxu0 %v5198
      %5532 = vmatpush2.bf16.msra.mxu0 %v5197
      %5533 = vmatprep.mubr.bf16.mxu0 %v3648
      %5534 = vmatmul.mubr.bf16.gmra.mxu0 %v3647
      %v5535 = vpop.f32.mrf.mxu0
      %v5536 = vadd.f32 %v4694, %v5535
      %v5537 = vpop.f32.mrf.mxu0
      %v5538 = vadd.f32 %v4698, %v5537
      %v5539 = vpop.f32.mrf.mxu0
      %v5540 = vadd.f32 %v4694, %v5539
      %v5541 = vpop.f32.mrf.mxu0
      %v5542 = vadd.f32 %v4698, %v5541
      %5543 = vmatprep.mubr.bf16.mxu0 %v3650
      %5544 = vmatmul.mubr.bf16.gmra.mxu0 %v3649
      %v5545 = vpop.f32.mrf.mxu0
      %v5546 = vadd.f32 %v4694, %v5545
      %v5547 = vpop.f32.mrf.mxu0
      %v5548 = vadd.f32 %v4698, %v5547
      %v5549 = vpop.f32.mrf.mxu0
      %v5550 = vadd.f32 %v4694, %v5549
      %v5551 = vpop.f32.mrf.mxu0
      %v5552 = vadd.f32 %v4698, %v5551
      %5553 = vmatprep.mubr.bf16.mxu0 %v3652
      %5554 = vmatmul.mubr.bf16.gmra.mxu0 %v3651
      %v5555 = vpop.f32.mrf.mxu0
      %v5556 = vadd.f32 %v4694, %v5555
      %v5557 = vpop.f32.mrf.mxu0
      %v5558 = vadd.f32 %v4698, %v5557
      %v5559 = vpop.f32.mrf.mxu0
      %v5560 = vadd.f32 %v4694, %v5559
      %v5561 = vpop.f32.mrf.mxu0
      %v5562 = vadd.f32 %v4698, %v5561
      %5563 = vmatprep.mubr.bf16.mxu0 %v3654
      %5564 = vmatmul.mubr.bf16.gmra.mxu0 %v3653
      %v5565 = vpop.f32.mrf.mxu0
      %v5566 = vadd.f32 %v4694, %v5565
      %v5567 = vpop.f32.mrf.mxu0
      %v5568 = vadd.f32 %v4698, %v5567
      %v5569 = vpop.f32.mrf.mxu0
      %v5570 = vadd.f32 %v4694, %v5569
      %v5571 = vpop.f32.mrf.mxu0
      %v5572 = vadd.f32 %v4698, %v5571
      %5573 = vmatprep.mubr.bf16.mxu0 %v3656
      %5574 = vmatmul.mubr.bf16.gmra.mxu0 %v3655
      %v5575 = vpop.f32.mrf.mxu0
      %v5576 = vadd.f32 %v4694, %v5575
      %v5577 = vpop.f32.mrf.mxu0
      %v5578 = vadd.f32 %v4698, %v5577
      %v5579 = vpop.f32.mrf.mxu0
      %v5580 = vadd.f32 %v4694, %v5579
      %v5581 = vpop.f32.mrf.mxu0
      %v5582 = vadd.f32 %v4698, %v5581
      %5583 = vmatprep.mubr.bf16.mxu0 %v3658
      %5584 = vmatmul.mubr.bf16.gmra.mxu0 %v3657
      %v5585 = vpop.f32.mrf.mxu0
      %v5586 = vpop.f32.mrf.mxu0
      %v5587 = vpop.f32.mrf.mxu0
      %v5588 = vpop.f32.mrf.mxu0
      %5589 = vdwg.mxu0
      %5590 = vmatprep.subr.bf16.mxu0 %v5228
      %5591 = vmatpush1.bf16.msra.mxu0 %v5227
      %5592 = vmatprep.subr.bf16.mxu0 %v5226
      %5593 = vmatpush1.bf16.msra.mxu0 %v5225
      %5594 = vmatprep.subr.bf16.mxu0 %v5224
      %5595 = vmatpush1.bf16.msra.mxu0 %v5223
      %5596 = vmatprep.subr.bf16.mxu0 %v5222
      %5597 = vmatpush1.bf16.msra.mxu0 %v5221
      %5598 = vmatprep.subr.bf16.mxu0 %v5220
      %5599 = vmatpush1.bf16.msra.mxu0 %v5219
      %5600 = vmatprep.subr.bf16.mxu0 %v5218
      %5601 = vmatpush1.bf16.msra.mxu0 %v5217
      %5602 = vmatprep.subr.bf16.mxu0 %v5216
      %5603 = vmatpush1.bf16.msra.mxu0 %v5215
      %5604 = vmatprep.subr.bf16.mxu0 %v5214
      %5605 = vmatpush1.bf16.msra.mxu0 %v5213
      %5606 = vmatprep.subr.bf16.mxu0 %v5244
      %5607 = vmatpush2.bf16.msra.mxu0 %v5243
      %5608 = vmatprep.subr.bf16.mxu0 %v5242
      %5609 = vmatpush2.bf16.msra.mxu0 %v5241
      %5610 = vmatprep.subr.bf16.mxu0 %v5240
      %5611 = vmatpush2.bf16.msra.mxu0 %v5239
      %5612 = vmatprep.subr.bf16.mxu0 %v5238
      %5613 = vmatpush2.bf16.msra.mxu0 %v5237
      %5614 = vmatprep.subr.bf16.mxu0 %v5236
      %5615 = vmatpush2.bf16.msra.mxu0 %v5235
      %5616 = vmatprep.subr.bf16.mxu0 %v5234
      %5617 = vmatpush2.bf16.msra.mxu0 %v5233
      %5618 = vmatprep.subr.bf16.mxu0 %v5232
      %5619 = vmatpush2.bf16.msra.mxu0 %v5231
      %5620 = vmatprep.subr.bf16.mxu0 %v5230
      %5621 = vmatpush2.bf16.msra.mxu0 %v5229
      %5622 = vmatprep.mubr.bf16.mxu0 %v4516
      %5623 = vmatmul.mubr.bf16.gmra.mxu0 %v4515
      %v5624 = vpop.f32.mrf.mxu0
      %v5625 = vadd.f32 %v5536, %v5624
      %v5626 = vpop.f32.mrf.mxu0
      %v5627 = vadd.f32 %v5538, %v5626
      %v5628 = vpop.f32.mrf.mxu0
      %v5629 = vadd.f32 %v5540, %v5628
      %v5630 = vpop.f32.mrf.mxu0
      %v5631 = vadd.f32 %v5542, %v5630
      %5632 = vmatprep.mubr.bf16.mxu0 %v4518
      %5633 = vmatmul.mubr.bf16.gmra.mxu0 %v4517
      %v5634 = vpop.f32.mrf.mxu0
      %v5635 = vadd.f32 %v5546, %v5634
      %v5636 = vpop.f32.mrf.mxu0
      %v5637 = vadd.f32 %v5548, %v5636
      %v5638 = vpop.f32.mrf.mxu0
      %v5639 = vadd.f32 %v5550, %v5638
      %v5640 = vpop.f32.mrf.mxu0
      %v5641 = vadd.f32 %v5552, %v5640
      %5642 = vmatprep.mubr.bf16.mxu0 %v4520
      %5643 = vmatmul.mubr.bf16.gmra.mxu0 %v4519
      %v5644 = vpop.f32.mrf.mxu0
      %v5645 = vadd.f32 %v5556, %v5644
      %v5646 = vpop.f32.mrf.mxu0
      %v5647 = vadd.f32 %v5558, %v5646
      %v5648 = vpop.f32.mrf.mxu0
      %v5649 = vadd.f32 %v5560, %v5648
      %v5650 = vpop.f32.mrf.mxu0
      %v5651 = vadd.f32 %v5562, %v5650
      %5652 = vmatprep.mubr.bf16.mxu0 %v4522
      %5653 = vmatmul.mubr.bf16.gmra.mxu0 %v4521
      %v5654 = vpop.f32.mrf.mxu0
      %v5655 = vadd.f32 %v5566, %v5654
      %v5656 = vpop.f32.mrf.mxu0
      %v5657 = vadd.f32 %v5568, %v5656
      %v5658 = vpop.f32.mrf.mxu0
      %v5659 = vadd.f32 %v5570, %v5658
      %v5660 = vpop.f32.mrf.mxu0
      %v5661 = vadd.f32 %v5572, %v5660
      %5662 = vmatprep.mubr.bf16.mxu0 %v4524
      %5663 = vmatmul.mubr.bf16.gmra.mxu0 %v4523
      %v5664 = vpop.f32.mrf.mxu0
      %v5665 = vadd.f32 %v5576, %v5664
      %v5666 = vpop.f32.mrf.mxu0
      %v5667 = vadd.f32 %v5578, %v5666
      %v5668 = vpop.f32.mrf.mxu0
      %v5669 = vadd.f32 %v5580, %v5668
      %v5670 = vpop.f32.mrf.mxu0
      %v5671 = vadd.f32 %v5582, %v5670
      %5672 = vmatprep.mubr.bf16.mxu0 %v4526
      %5673 = vmatmul.mubr.bf16.gmra.mxu0 %v4525
      %v5674 = vpop.f32.mrf.mxu0
      %v5675 = vpop.f32.mrf.mxu0
      %v5676 = vpop.f32.mrf.mxu0
      %v5677 = vpop.f32.mrf.mxu0
      %5678 = vdwg.mxu0
      %5679 = vmatprep.subr.bf16.mxu0 %v5260
      %5680 = vmatpush1.bf16.msra.mxu0 %v5259
      %5681 = vmatprep.subr.bf16.mxu0 %v5258
      %5682 = vmatpush1.bf16.msra.mxu0 %v5257
      %5683 = vmatprep.subr.bf16.mxu0 %v5256
      %5684 = vmatpush1.bf16.msra.mxu0 %v5255
      %5685 = vmatprep.subr.bf16.mxu0 %v5254
      %5686 = vmatpush1.bf16.msra.mxu0 %v5253
      %5687 = vmatprep.subr.bf16.mxu0 %v5252
      %5688 = vmatpush1.bf16.msra.mxu0 %v5251
      %5689 = vmatprep.subr.bf16.mxu0 %v5250
      %5690 = vmatpush1.bf16.msra.mxu0 %v5249
      %5691 = vmatprep.subr.bf16.mxu0 %v5248
      %5692 = vmatpush1.bf16.msra.mxu0 %v5247
      %5693 = vmatprep.subr.bf16.mxu0 %v5246
      %5694 = vmatpush1.bf16.msra.mxu0 %v5245
      %5695 = vmatprep.subr.bf16.mxu0 %v5276
      %5696 = vmatpush2.bf16.msra.mxu0 %v5275
      %5697 = vmatprep.subr.bf16.mxu0 %v5274
      %5698 = vmatpush2.bf16.msra.mxu0 %v5273
      %5699 = vmatprep.subr.bf16.mxu0 %v5272
      %5700 = vmatpush2.bf16.msra.mxu0 %v5271
      %5701 = vmatprep.subr.bf16.mxu0 %v5270
      %5702 = vmatpush2.bf16.msra.mxu0 %v5269
      %5703 = vmatprep.subr.bf16.mxu0 %v5268
      %5704 = vmatpush2.bf16.msra.mxu0 %v5267
      %5705 = vmatprep.subr.bf16.mxu0 %v5266
      %5706 = vmatpush2.bf16.msra.mxu0 %v5265
      %5707 = vmatprep.subr.bf16.mxu0 %v5264
      %5708 = vmatpush2.bf16.msra.mxu0 %v5263
      %5709 = vmatprep.subr.bf16.mxu0 %v5262
      %5710 = vmatpush2.bf16.msra.mxu0 %v5261
      %5711 = vmatprep.mubr.bf16.mxu0 %v3650
      %5712 = vmatmul.mubr.bf16.gmra.mxu0 %v3649
      %v5713 = vpop.f32.mrf.mxu0
      %v5714 = vadd.f32 %v5625, %v5713
      %v5715 = vpop.f32.mrf.mxu0
      %v5716 = vadd.f32 %v5627, %v5715
      %v5717 = vpop.f32.mrf.mxu0
      %v5718 = vadd.f32 %v5629, %v5717
      %v5719 = vpop.f32.mrf.mxu0
      %v5720 = vadd.f32 %v5631, %v5719
      %5721 = vmatprep.mubr.bf16.mxu0 %v3652
      %5722 = vmatmul.mubr.bf16.gmra.mxu0 %v3651
      %v5723 = vpop.f32.mrf.mxu0
      %v5724 = vadd.f32 %v5635, %v5723
      %v5725 = vpop.f32.mrf.mxu0
      %v5726 = vadd.f32 %v5637, %v5725
      %v5727 = vpop.f32.mrf.mxu0
      %v5728 = vadd.f32 %v5639, %v5727
      %v5729 = vpop.f32.mrf.mxu0
      %v5730 = vadd.f32 %v5641, %v5729
      %5731 = vmatprep.mubr.bf16.mxu0 %v3654
      %5732 = vmatmul.mubr.bf16.gmra.mxu0 %v3653
      %v5733 = vpop.f32.mrf.mxu0
      %v5734 = vadd.f32 %v5645, %v5733
      %v5735 = vpop.f32.mrf.mxu0
      %v5736 = vadd.f32 %v5647, %v5735
      %v5737 = vpop.f32.mrf.mxu0
      %v5738 = vadd.f32 %v5649, %v5737
      %v5739 = vpop.f32.mrf.mxu0
      %v5740 = vadd.f32 %v5651, %v5739
      %5741 = vmatprep.mubr.bf16.mxu0 %v3656
      %5742 = vmatmul.mubr.bf16.gmra.mxu0 %v3655
      %v5743 = vpop.f32.mrf.mxu0
      %v5744 = vadd.f32 %v5655, %v5743
      %v5745 = vpop.f32.mrf.mxu0
      %v5746 = vadd.f32 %v5657, %v5745
      %v5747 = vpop.f32.mrf.mxu0
      %v5748 = vadd.f32 %v5659, %v5747
      %v5749 = vpop.f32.mrf.mxu0
      %v5750 = vadd.f32 %v5661, %v5749
      %5751 = vmatprep.mubr.bf16.mxu0 %v3658
      %5752 = vmatmul.mubr.bf16.gmra.mxu0 %v3657
      %v5753 = vpop.f32.mrf.mxu0
      %v5754 = vadd.f32 %v5665, %v5753
      %v5755 = vpop.f32.mrf.mxu0
      %v5756 = vadd.f32 %v5667, %v5755
      %v5757 = vpop.f32.mrf.mxu0
      %v5758 = vadd.f32 %v5669, %v5757
      %v5759 = vpop.f32.mrf.mxu0
      %v5760 = vadd.f32 %v5671, %v5759
      %5761 = vmatprep.mubr.bf16.mxu0 %v3660
      %5762 = vmatmul.mubr.bf16.gmra.mxu0 %v3659
      %v5763 = vpop.f32.mrf.mxu0
      %v5764 = vpop.f32.mrf.mxu0
      %v5765 = vpop.f32.mrf.mxu0
      %v5766 = vpop.f32.mrf.mxu0
      %5767 = vdwg.mxu0
      %5768 = vmatprep.subr.bf16.mxu0 %v5292
      %5769 = vmatpush1.bf16.msra.mxu0 %v5291
      %5770 = vmatprep.subr.bf16.mxu0 %v5290
      %5771 = vmatpush1.bf16.msra.mxu0 %v5289
      %5772 = vmatprep.subr.bf16.mxu0 %v5288
      %5773 = vmatpush1.bf16.msra.mxu0 %v5287
      %5774 = vmatprep.subr.bf16.mxu0 %v5286
      %5775 = vmatpush1.bf16.msra.mxu0 %v5285
      %5776 = vmatprep.subr.bf16.mxu0 %v5284
      %5777 = vmatpush1.bf16.msra.mxu0 %v5283
      %5778 = vmatprep.subr.bf16.mxu0 %v5282
      %5779 = vmatpush1.bf16.msra.mxu0 %v5281
      %5780 = vmatprep.subr.bf16.mxu0 %v5280
      %5781 = vmatpush1.bf16.msra.mxu0 %v5279
      %5782 = vmatprep.subr.bf16.mxu0 %v5278
      %5783 = vmatpush1.bf16.msra.mxu0 %v5277
      %5784 = vmatprep.subr.bf16.mxu0 %v5308
      %5785 = vmatpush2.bf16.msra.mxu0 %v5307
      %5786 = vmatprep.subr.bf16.mxu0 %v5306
      %5787 = vmatpush2.bf16.msra.mxu0 %v5305
      %5788 = vmatprep.subr.bf16.mxu0 %v5304
      %5789 = vmatpush2.bf16.msra.mxu0 %v5303
      %5790 = vmatprep.subr.bf16.mxu0 %v5302
      %5791 = vmatpush2.bf16.msra.mxu0 %v5301
      %5792 = vmatprep.subr.bf16.mxu0 %v5300
      %5793 = vmatpush2.bf16.msra.mxu0 %v5299
      %5794 = vmatprep.subr.bf16.mxu0 %v5298
      %5795 = vmatpush2.bf16.msra.mxu0 %v5297
      %5796 = vmatprep.subr.bf16.mxu0 %v5296
      %5797 = vmatpush2.bf16.msra.mxu0 %v5295
      %5798 = vmatprep.subr.bf16.mxu0 %v5294
      %5799 = vmatpush2.bf16.msra.mxu0 %v5293
      %5800 = vmatprep.mubr.bf16.mxu0 %v4518
      %5801 = vmatmul.mubr.bf16.gmra.mxu0 %v4517
      %v5802 = vpop.f32.mrf.mxu0
      %v5803 = vadd.f32 %v5714, %v5802
      %v5804 = vpop.f32.mrf.mxu0
      %v5805 = vadd.f32 %v5716, %v5804
      %v5806 = vpop.f32.mrf.mxu0
      %v5807 = vadd.f32 %v5718, %v5806
      %v5808 = vpop.f32.mrf.mxu0
      %v5809 = vadd.f32 %v5720, %v5808
      %5810 = vmatprep.mubr.bf16.mxu0 %v4520
      %5811 = vmatmul.mubr.bf16.gmra.mxu0 %v4519
      %v5812 = vpop.f32.mrf.mxu0
      %v5813 = vadd.f32 %v5724, %v5812
      %v5814 = vpop.f32.mrf.mxu0
      %v5815 = vadd.f32 %v5726, %v5814
      %v5816 = vpop.f32.mrf.mxu0
      %v5817 = vadd.f32 %v5728, %v5816
      %v5818 = vpop.f32.mrf.mxu0
      %v5819 = vadd.f32 %v5730, %v5818
      %5820 = vmatprep.mubr.bf16.mxu0 %v4522
      %5821 = vmatmul.mubr.bf16.gmra.mxu0 %v4521
      %v5822 = vpop.f32.mrf.mxu0
      %v5823 = vadd.f32 %v5734, %v5822
      %v5824 = vpop.f32.mrf.mxu0
      %v5825 = vadd.f32 %v5736, %v5824
      %v5826 = vpop.f32.mrf.mxu0
      %v5827 = vadd.f32 %v5738, %v5826
      %v5828 = vpop.f32.mrf.mxu0
      %v5829 = vadd.f32 %v5740, %v5828
      %5830 = vmatprep.mubr.bf16.mxu0 %v4524
      %5831 = vmatmul.mubr.bf16.gmra.mxu0 %v4523
      %v5832 = vpop.f32.mrf.mxu0
      %v5833 = vadd.f32 %v5744, %v5832
      %v5834 = vpop.f32.mrf.mxu0
      %v5835 = vadd.f32 %v5746, %v5834
      %v5836 = vpop.f32.mrf.mxu0
      %v5837 = vadd.f32 %v5748, %v5836
      %v5838 = vpop.f32.mrf.mxu0
      %v5839 = vadd.f32 %v5750, %v5838
      %5840 = vmatprep.mubr.bf16.mxu0 %v4526
      %5841 = vmatmul.mubr.bf16.gmra.mxu0 %v4525
      %v5842 = vpop.f32.mrf.mxu0
      %v5843 = vadd.f32 %v5754, %v5842
      %v5844 = vpop.f32.mrf.mxu0
      %v5845 = vadd.f32 %v5756, %v5844
      %v5846 = vpop.f32.mrf.mxu0
      %v5847 = vadd.f32 %v5758, %v5846
      %v5848 = vpop.f32.mrf.mxu0
      %v5849 = vadd.f32 %v5760, %v5848
      %5850 = vmatprep.mubr.bf16.mxu0 %v4528
      %5851 = vmatmul.mubr.bf16.gmra.mxu0 %v4527
      %v5852 = vpop.f32.mrf.mxu0
      %v5853 = vpop.f32.mrf.mxu0
      %v5854 = vpop.f32.mrf.mxu0
      %v5855 = vpop.f32.mrf.mxu0
      %5856 = vdwg.mxu0
      %5857 = vmatprep.subr.bf16.mxu0 %v5324
      %5858 = vmatpush1.bf16.msra.mxu0 %v5323
      %5859 = vmatprep.subr.bf16.mxu0 %v5322
      %5860 = vmatpush1.bf16.msra.mxu0 %v5321
      %5861 = vmatprep.subr.bf16.mxu0 %v5320
      %5862 = vmatpush1.bf16.msra.mxu0 %v5319
      %5863 = vmatprep.subr.bf16.mxu0 %v5318
      %5864 = vmatpush1.bf16.msra.mxu0 %v5317
      %5865 = vmatprep.subr.bf16.mxu0 %v5316
      %5866 = vmatpush1.bf16.msra.mxu0 %v5315
      %5867 = vmatprep.subr.bf16.mxu0 %v5314
      %5868 = vmatpush1.bf16.msra.mxu0 %v5313
      %5869 = vmatprep.subr.bf16.mxu0 %v5312
      %5870 = vmatpush1.bf16.msra.mxu0 %v5311
      %5871 = vmatprep.subr.bf16.mxu0 %v5310
      %5872 = vmatpush1.bf16.msra.mxu0 %v5309
      %5873 = vmatprep.subr.bf16.mxu0 %v5340
      %5874 = vmatpush2.bf16.msra.mxu0 %v5339
      %5875 = vmatprep.subr.bf16.mxu0 %v5338
      %5876 = vmatpush2.bf16.msra.mxu0 %v5337
      %5877 = vmatprep.subr.bf16.mxu0 %v5336
      %5878 = vmatpush2.bf16.msra.mxu0 %v5335
      %5879 = vmatprep.subr.bf16.mxu0 %v5334
      %5880 = vmatpush2.bf16.msra.mxu0 %v5333
      %5881 = vmatprep.subr.bf16.mxu0 %v5332
      %5882 = vmatpush2.bf16.msra.mxu0 %v5331
      %5883 = vmatprep.subr.bf16.mxu0 %v5330
      %5884 = vmatpush2.bf16.msra.mxu0 %v5329
      %5885 = vmatprep.subr.bf16.mxu0 %v5328
      %5886 = vmatpush2.bf16.msra.mxu0 %v5327
      %5887 = vmatprep.subr.bf16.mxu0 %v5326
      %5888 = vmatpush2.bf16.msra.mxu0 %v5325
      %5889 = vmatprep.mubr.bf16.mxu0 %v3652
      %5890 = vmatmul.mubr.bf16.gmra.mxu0 %v3651
      %v5891 = vpop.f32.mrf.mxu0
      %v5892 = vadd.f32 %v5803, %v5891
      %v5893 = vpop.f32.mrf.mxu0
      %v5894 = vadd.f32 %v5805, %v5893
      %v5895 = vpop.f32.mrf.mxu0
      %v5896 = vadd.f32 %v5807, %v5895
      %v5897 = vpop.f32.mrf.mxu0
      %v5898 = vadd.f32 %v5809, %v5897
      %5899 = vmatprep.mubr.bf16.mxu0 %v3654
      %5900 = vmatmul.mubr.bf16.gmra.mxu0 %v3653
      %v5901 = vpop.f32.mrf.mxu0
      %v5902 = vadd.f32 %v5813, %v5901
      %v5903 = vpop.f32.mrf.mxu0
      %v5904 = vadd.f32 %v5815, %v5903
      %v5905 = vpop.f32.mrf.mxu0
      %v5906 = vadd.f32 %v5817, %v5905
      %v5907 = vpop.f32.mrf.mxu0
      %v5908 = vadd.f32 %v5819, %v5907
      %5909 = vmatprep.mubr.bf16.mxu0 %v3656
      %5910 = vmatmul.mubr.bf16.gmra.mxu0 %v3655
      %v5911 = vpop.f32.mrf.mxu0
      %v5912 = vadd.f32 %v5823, %v5911
      %v5913 = vpop.f32.mrf.mxu0
      %v5914 = vadd.f32 %v5825, %v5913
      %v5915 = vpop.f32.mrf.mxu0
      %v5916 = vadd.f32 %v5827, %v5915
      %v5917 = vpop.f32.mrf.mxu0
      %v5918 = vadd.f32 %v5829, %v5917
      %5919 = vmatprep.mubr.bf16.mxu0 %v3658
      %5920 = vmatmul.mubr.bf16.gmra.mxu0 %v3657
      %v5921 = vpop.f32.mrf.mxu0
      %v5922 = vadd.f32 %v5833, %v5921
      %v5923 = vpop.f32.mrf.mxu0
      %v5924 = vadd.f32 %v5835, %v5923
      %v5925 = vpop.f32.mrf.mxu0
      %v5926 = vadd.f32 %v5837, %v5925
      %v5927 = vpop.f32.mrf.mxu0
      %v5928 = vadd.f32 %v5839, %v5927
      %5929 = vmatprep.mubr.bf16.mxu0 %v3660
      %5930 = vmatmul.mubr.bf16.gmra.mxu0 %v3659
      %v5931 = vpop.f32.mrf.mxu0
      %v5932 = vadd.f32 %v5843, %v5931
      %v5933 = vpop.f32.mrf.mxu0
      %v5934 = vadd.f32 %v5845, %v5933
      %v5935 = vpop.f32.mrf.mxu0
      %v5936 = vadd.f32 %v5847, %v5935
      %v5937 = vpop.f32.mrf.mxu0
      %v5938 = vadd.f32 %v5849, %v5937
      %5939 = vmatprep.mubr.bf16.mxu0 %v3662
      %5940 = vmatmul.mubr.bf16.gmra.mxu0 %v3661
      %v5941 = vpop.f32.mrf.mxu0
      %v5942 = vpop.f32.mrf.mxu0
      %v5943 = vpop.f32.mrf.mxu0
      %v5944 = vpop.f32.mrf.mxu0
      %5945 = vdwg.mxu0
      %v5946 = vmax.f32 %v5892, 0.0
      %v5947 = vmax.f32 %v5894, 0.0
      %v5948 = vmax.f32 %v5896, 0.0
      %v5949 = vmax.f32 %v5898, 0.0
      %v5950 = vmax.f32 %v5902, 0.0
      %v5951 = vmax.f32 %v5904, 0.0
      %v5952 = vmax.f32 %v5906, 0.0
      %v5953 = vmax.f32 %v5908, 0.0
      %v5954 = vmax.f32 %v5912, 0.0
      %v5955 = vmax.f32 %v5914, 0.0
      %v5956 = vmax.f32 %v5916, 0.0
      %v5957 = vmax.f32 %v5918, 0.0
      %v5958 = vmax.f32 %v5922, 0.0
      %v5959 = vmax.f32 %v5924, 0.0
      %v5960 = vmax.f32 %v5926, 0.0
      %v5961 = vmax.f32 %v5928, 0.0
      %v5962 = vmax.f32 %v5932, 0.0
      %v5963 = vmax.f32 %v5934, 0.0
      %v5964 = vmax.f32 %v5936, 0.0
      %v5965 = vmax.f32 %v5938, 0.0
      %v5966 = vpack.c.bf16 %v5948, %v5946
      %v5967 = vpack.c.bf16 %v5949, %v5947
      %v5968 = vpack.c.bf16 %v5952, %v5950
      %v5969 = vpack.c.bf16 %v5953, %v5951
      %v5970 = vpack.c.bf16 %v5956, %v5954
      %v5971 = vpack.c.bf16 %v5957, %v5955
      %v5972 = vpack.c.bf16 %v5960, %v5958
      %v5973 = vpack.c.bf16 %v5961, %v5959
      %v5974 = vpack.c.bf16 %v5964, %v5962
      %v5975 = vpack.c.bf16 %v5965, %v5963
      %v5976 = vld [vmem:[%s5] sm:$0xf]
      %v5977 = vld [vmem:[%s5 + $0x4] sm:$0xf]
      %v5978 = vld [vmem:[%s5 + $0x8] sm:$0xf]
      %v5979 = vld [vmem:[%s5 + $0xc] sm:$0xf]
      %v5980 = vld [vmem:[%s5 + $0x10] sm:$0xf]
      %v5981 = vld [vmem:[%s5 + $0x14] sm:$0xf]
      %v5982 = vld [vmem:[%s5 + $0x18] sm:$0xf]
      %v5983 = vld [vmem:[%s5 + $0x1c] sm:$0xf]
      %v5984 = vld [vmem:[%s5 + $0x20] sm:$0xf]
      %v5985 = vld [vmem:[%s5 + $0x24] sm:$0xf]
      %v5986 = vld [vmem:[%s5 + $0x28] sm:$0xf]
      %v5987 = vld [vmem:[%s5 + $0x2c] sm:$0xf]
      %v5988 = vld [vmem:[%s5 + $0x30] sm:$0xf]
      %v5989 = vld [vmem:[%s5 + $0x34] sm:$0xf]
      %v5990 = vld [vmem:[%s5 + $0x38] sm:$0xf]
      %v5991 = vld [vmem:[%s5 + $0x3c] sm:$0xf]
      %v5992 = vld [vmem:[%s5 + $0x40] sm:$0xf]
      %v5993 = vld [vmem:[%s5 + $0x44] sm:$0xf]
      %v5994 = vld [vmem:[%s5 + $0x48] sm:$0xf]
      %v5995 = vld [vmem:[%s5 + $0x4c] sm:$0xf]
      %v5996 = vld [vmem:[%s5 + $0x50] sm:$0xf]
      %v5997 = vld [vmem:[%s5 + $0x54] sm:$0xf]
      %v5998 = vld [vmem:[%s5 + $0x58] sm:$0xf]
      %v5999 = vld [vmem:[%s5 + $0x5c] sm:$0xf]
      %v6000 = vld [vmem:[%s5 + $0x60] sm:$0xf]
      %v6001 = vld [vmem:[%s5 + $0x64] sm:$0xf]
      %v6002 = vld [vmem:[%s5 + $0x68] sm:$0xf]
      %v6003 = vld [vmem:[%s5 + $0x6c] sm:$0xf]
      %v6004 = vld [vmem:[%s5 + $0x70] sm:$0xf]
      %v6005 = vld [vmem:[%s5 + $0x74] sm:$0xf]
      %v6006 = vld [vmem:[%s5 + $0x78] sm:$0xf]
      %v6007 = vld [vmem:[%s5 + $0x7c] sm:$0xf]
      %v6008 = vld [vmem:[%s5 + $0x80] sm:$0xf]
      %v6009 = vld [vmem:[%s5 + $0x84] sm:$0xf]
      %v6010 = vld [vmem:[%s5 + $0x88] sm:$0xf]
      %v6011 = vld [vmem:[%s5 + $0x8c] sm:$0xf]
      %v6012 = vld [vmem:[%s5 + $0x90] sm:$0xf]
      %v6013 = vld [vmem:[%s5 + $0x94] sm:$0xf]
      %v6014 = vld [vmem:[%s5 + $0x98] sm:$0xf]
      %v6015 = vld [vmem:[%s5 + $0x9c] sm:$0xf]
      %v6016 = vld [vmem:[%s5 + $0xa0] sm:$0xf]
      %v6017 = vld [vmem:[%s5 + $0xa4] sm:$0xf]
      %v6018 = vld [vmem:[%s5 + $0xa8] sm:$0xf]
      %v6019 = vld [vmem:[%s5 + $0xac] sm:$0xf]
      %v6020 = vld [vmem:[%s5 + $0xb0] sm:$0xf]
      %v6021 = vld [vmem:[%s5 + $0xb4] sm:$0xf]
      %v6022 = vld [vmem:[%s5 + $0xb8] sm:$0xf]
      %v6023 = vld [vmem:[%s5 + $0xbc] sm:$0xf]
      %v6024 = vld [vmem:[%s5 + $0xc0] sm:$0xf]
      %v6025 = vld [vmem:[%s5 + $0xc4] sm:$0xf]
      %v6026 = vld [vmem:[%s5 + $0xc8] sm:$0xf]
      %v6027 = vld [vmem:[%s5 + $0xcc] sm:$0xf]
      %v6028 = vld [vmem:[%s5 + $0xd0] sm:$0xf]
      %v6029 = vld [vmem:[%s5 + $0xd4] sm:$0xf]
      %v6030 = vld [vmem:[%s5 + $0xd8] sm:$0xf]
      %v6031 = vld [vmem:[%s5 + $0xdc] sm:$0xf]
      %v6032 = vld [vmem:[%s5 + $0xe0] sm:$0xf]
      %v6033 = vld [vmem:[%s5 + $0xe4] sm:$0xf]
      %v6034 = vld [vmem:[%s5 + $0xe8] sm:$0xf]
      %v6035 = vld [vmem:[%s5 + $0xec] sm:$0xf]
      %v6036 = vld [vmem:[%s5 + $0xf0] sm:$0xf]
      %v6037 = vld [vmem:[%s5 + $0xf4] sm:$0xf]
      %v6038 = vld [vmem:[%s5 + $0xf8] sm:$0xf]
      %v6039 = vld [vmem:[%s5 + $0xfc] sm:$0xf]
      %v6040 = vld [vmem:[%s5 + $0x100] sm:$0xf]
      %v6041 = vld [vmem:[%s5 + $0x104] sm:$0xf]
      %v6042 = vld [vmem:[%s5 + $0x108] sm:$0xf]
      %v6043 = vld [vmem:[%s5 + $0x10c] sm:$0xf]
      %v6044 = vld [vmem:[%s5 + $0x110] sm:$0xf]
      %v6045 = vld [vmem:[%s5 + $0x114] sm:$0xf]
      %v6046 = vld [vmem:[%s5 + $0x118] sm:$0xf]
      %v6047 = vld [vmem:[%s5 + $0x11c] sm:$0xf]
      %v6048 = vld [vmem:[%s5 + $0x120] sm:$0xf]
      %v6049 = vld [vmem:[%s5 + $0x124] sm:$0xf]
      %v6050 = vld [vmem:[%s5 + $0x128] sm:$0xf]
      %v6051 = vld [vmem:[%s5 + $0x12c] sm:$0xf]
      %v6052 = vld [vmem:[%s5 + $0x130] sm:$0xf]
      %v6053 = vld [vmem:[%s5 + $0x134] sm:$0xf]
      %v6054 = vld [vmem:[%s5 + $0x138] sm:$0xf]
      %v6055 = vld [vmem:[%s5 + $0x13c] sm:$0xf]
      %v6056 = vld [vmem:[%s5 + $0x140] sm:$0xf]
      %v6057 = vld [vmem:[%s5 + $0x144] sm:$0xf]
      %v6058 = vld [vmem:[%s5 + $0x148] sm:$0xf]
      %v6059 = vld [vmem:[%s5 + $0x14c] sm:$0xf]
      %v6060 = vld [vmem:[%s5 + $0x150] sm:$0xf]
      %v6061 = vld [vmem:[%s5 + $0x154] sm:$0xf]
      %v6062 = vld [vmem:[%s5 + $0x158] sm:$0xf]
      %v6063 = vld [vmem:[%s5 + $0x15c] sm:$0xf]
      %v6064 = vld [vmem:[%s5 + $0x160] sm:$0xf]
      %v6065 = vld [vmem:[%s5 + $0x164] sm:$0xf]
      %v6066 = vld [vmem:[%s5 + $0x168] sm:$0xf]
      %v6067 = vld [vmem:[%s5 + $0x16c] sm:$0xf]
      %v6068 = vld [vmem:[%s5 + $0x170] sm:$0xf]
      %v6069 = vld [vmem:[%s5 + $0x174] sm:$0xf]
      %v6070 = vld [vmem:[%s5 + $0x178] sm:$0xf]
      %v6071 = vld [vmem:[%s5 + $0x17c] sm:$0xf]
      %v6072 = vld [vmem:[%s5 + $0x180] sm:$0xf]
      %v6073 = vld [vmem:[%s5 + $0x184] sm:$0xf]
      %v6074 = vld [vmem:[%s5 + $0x188] sm:$0xf]
      %v6075 = vld [vmem:[%s5 + $0x18c] sm:$0xf]
      %v6076 = vld [vmem:[%s5 + $0x190] sm:$0xf]
      %v6077 = vld [vmem:[%s5 + $0x194] sm:$0xf]
      %v6078 = vld [vmem:[%s5 + $0x198] sm:$0xf]
      %v6079 = vld [vmem:[%s5 + $0x19c] sm:$0xf]
      %v6080 = vld [vmem:[%s5 + $0x1a0] sm:$0xf]
      %v6081 = vld [vmem:[%s5 + $0x1a4] sm:$0xf]
      %v6082 = vld [vmem:[%s5 + $0x1a8] sm:$0xf]
      %v6083 = vld [vmem:[%s5 + $0x1ac] sm:$0xf]
      %v6084 = vld [vmem:[%s5 + $0x1b0] sm:$0xf]
      %v6085 = vld [vmem:[%s5 + $0x1b4] sm:$0xf]
      %v6086 = vld [vmem:[%s5 + $0x1b8] sm:$0xf]
      %v6087 = vld [vmem:[%s5 + $0x1bc] sm:$0xf]
      %v6088 = vld [vmem:[%s5 + $0x1c0] sm:$0xf]
      %v6089 = vld [vmem:[%s5 + $0x1c4] sm:$0xf]
      %v6090 = vld [vmem:[%s5 + $0x1c8] sm:$0xf]
      %v6091 = vld [vmem:[%s5 + $0x1cc] sm:$0xf]
      %v6092 = vld [vmem:[%s5 + $0x1d0] sm:$0xf]
      %v6093 = vld [vmem:[%s5 + $0x1d4] sm:$0xf]
      %v6094 = vld [vmem:[%s5 + $0x1d8] sm:$0xf]
      %v6095 = vld [vmem:[%s5 + $0x1dc] sm:$0xf]
      %v6096 = vld [vmem:[%s5 + $0x1e0] sm:$0xf]
      %v6097 = vld [vmem:[%s5 + $0x1e4] sm:$0xf]
      %v6098 = vld [vmem:[%s5 + $0x1e8] sm:$0xf]
      %v6099 = vld [vmem:[%s5 + $0x1ec] sm:$0xf]
      %v6100 = vld [vmem:[%s5 + $0x1f0] sm:$0xf]
      %v6101 = vld [vmem:[%s5 + $0x1f4] sm:$0xf]
      %v6102 = vld [vmem:[%s5 + $0x1f8] sm:$0xf]
      %v6103 = vld [vmem:[%s5 + $0x1fc] sm:$0xf]
      %v6104 = vld [vmem:[%s5 + $0x200] sm:$0xf]
      %v6105 = vld [vmem:[%s5 + $0x204] sm:$0xf]
      %v6106 = vld [vmem:[%s5 + $0x208] sm:$0xf]
      %v6107 = vld [vmem:[%s5 + $0x20c] sm:$0xf]
      %v6108 = vld [vmem:[%s5 + $0x210] sm:$0xf]
      %v6109 = vld [vmem:[%s5 + $0x214] sm:$0xf]
      %v6110 = vld [vmem:[%s5 + $0x218] sm:$0xf]
      %v6111 = vld [vmem:[%s5 + $0x21c] sm:$0xf]
      %v6112 = vld [vmem:[%s5 + $0x220] sm:$0xf]
      %v6113 = vld [vmem:[%s5 + $0x224] sm:$0xf]
      %v6114 = vld [vmem:[%s5 + $0x228] sm:$0xf]
      %v6115 = vld [vmem:[%s5 + $0x22c] sm:$0xf]
      %v6116 = vld [vmem:[%s5 + $0x230] sm:$0xf]
      %v6117 = vld [vmem:[%s5 + $0x234] sm:$0xf]
      %v6118 = vld [vmem:[%s5 + $0x238] sm:$0xf]
      %v6119 = vld [vmem:[%s5 + $0x23c] sm:$0xf]
      %v6120 = vld [vmem:[%s5 + $0x240] sm:$0xf]
      %v6121 = vld [vmem:[%s5 + $0x244] sm:$0xf]
      %v6122 = vld [vmem:[%s5 + $0x248] sm:$0xf]
      %v6123 = vld [vmem:[%s5 + $0x24c] sm:$0xf]
      %v6124 = vld [vmem:[%s5 + $0x250] sm:$0xf]
      %v6125 = vld [vmem:[%s5 + $0x254] sm:$0xf]
      %v6126 = vld [vmem:[%s5 + $0x258] sm:$0xf]
      %v6127 = vld [vmem:[%s5 + $0x25c] sm:$0xf]
      %v6128 = vld [vmem:[%s5 + $0x260] sm:$0xf]
      %v6129 = vld [vmem:[%s5 + $0x264] sm:$0xf]
      %v6130 = vld [vmem:[%s5 + $0x268] sm:$0xf]
      %v6131 = vld [vmem:[%s5 + $0x26c] sm:$0xf]
      %v6132 = vld [vmem:[%s5 + $0x270] sm:$0xf]
      %v6133 = vld [vmem:[%s5 + $0x274] sm:$0xf]
      %v6134 = vld [vmem:[%s5 + $0x278] sm:$0xf]
      %v6135 = vld [vmem:[%s5 + $0x27c] sm:$0xf]
      %v6136 = vld [vmem:[%s6] sm:$0x1]
      %v6138 = vlaneseq
      %v6139 = vshrl.u32 %v6138, 7
      %v6140 = vsub.s32 0, %v6139
      %v6141 = vrot.slane %v6136, %v6140
      %v6303 = vunpack.c.l.b16 %v5976
      %v6304 = vunpack.c.l.b16 %v5977
      %v6305 = vunpack.c.l.b16 %v5978
      %v6306 = vunpack.c.l.b16 %v5979
      %v6307 = vunpack.c.l.b16 %v5980
      %v6308 = vunpack.c.l.b16 %v5981
      %v6309 = vunpack.c.l.b16 %v5982
      %v6310 = vunpack.c.l.b16 %v5983
      %v6311 = vunpack.c.l.b16 %v5984
      %v6312 = vunpack.c.l.b16 %v5985
      %v6313 = vunpack.c.l.b16 %v5986
      %v6314 = vunpack.c.l.b16 %v5987
      %v6315 = vunpack.c.l.b16 %v5988
      %v6316 = vunpack.c.l.b16 %v5989
      %v6317 = vunpack.c.l.b16 %v5990
      %v6318 = vunpack.c.l.b16 %v5991
      %v6319 = vunpack.c.l.b16 %v5992
      %v6320 = vunpack.c.l.b16 %v5993
      %v6321 = vunpack.c.l.b16 %v5994
      %v6322 = vunpack.c.l.b16 %v5995
      %v6323 = vunpack.c.l.b16 %v5996
      %v6324 = vunpack.c.l.b16 %v5997
      %v6325 = vunpack.c.l.b16 %v5998
      %v6326 = vunpack.c.l.b16 %v5999
      %v6327 = vunpack.c.l.b16 %v6000
      %v6328 = vunpack.c.l.b16 %v6001
      %v6329 = vunpack.c.l.b16 %v6002
      %v6330 = vunpack.c.l.b16 %v6003
      %v6331 = vunpack.c.l.b16 %v6004
      %v6332 = vunpack.c.l.b16 %v6005
      %v6333 = vunpack.c.l.b16 %v6006
      %v6334 = vunpack.c.l.b16 %v6007
      %v6335 = vunpack.c.l.b16 %v6008
      %v6336 = vunpack.c.l.b16 %v6009
      %v6337 = vunpack.c.l.b16 %v6010
      %v6338 = vunpack.c.l.b16 %v6011
      %v6339 = vunpack.c.l.b16 %v6012
      %v6340 = vunpack.c.l.b16 %v6013
      %v6341 = vunpack.c.l.b16 %v6014
      %v6342 = vunpack.c.l.b16 %v6015
      %v6343 = vunpack.c.l.b16 %v6016
      %v6344 = vunpack.c.l.b16 %v6017
      %v6345 = vunpack.c.l.b16 %v6018
      %v6346 = vunpack.c.l.b16 %v6019
      %v6347 = vunpack.c.l.b16 %v6020
      %v6348 = vunpack.c.l.b16 %v6021
      %v6349 = vunpack.c.l.b16 %v6022
      %v6350 = vunpack.c.l.b16 %v6023
      %v6351 = vunpack.c.l.b16 %v6024
      %v6352 = vunpack.c.l.b16 %v6025
      %v6353 = vunpack.c.l.b16 %v6026
      %v6354 = vunpack.c.l.b16 %v6027
      %v6355 = vunpack.c.l.b16 %v6028
      %v6356 = vunpack.c.l.b16 %v6029
      %v6357 = vunpack.c.l.b16 %v6030
      %v6358 = vunpack.c.l.b16 %v6031
      %v6359 = vunpack.c.l.b16 %v6032
      %v6360 = vunpack.c.l.b16 %v6033
      %v6361 = vunpack.c.l.b16 %v6034
      %v6362 = vunpack.c.l.b16 %v6035
      %v6363 = vunpack.c.l.b16 %v6036
      %v6364 = vunpack.c.l.b16 %v6037
      %v6365 = vunpack.c.l.b16 %v6038
      %v6366 = vunpack.c.l.b16 %v6039
      %v6367 = vunpack.c.l.b16 %v6040
      %v6368 = vunpack.c.l.b16 %v6041
      %v6369 = vunpack.c.l.b16 %v6042
      %v6370 = vunpack.c.l.b16 %v6043
      %v6371 = vunpack.c.l.b16 %v6044
      %v6372 = vunpack.c.l.b16 %v6045
      %v6373 = vunpack.c.l.b16 %v6046
      %v6374 = vunpack.c.l.b16 %v6047
      %v6375 = vunpack.c.l.b16 %v6048
      %v6376 = vunpack.c.l.b16 %v6049
      %v6377 = vunpack.c.l.b16 %v6050
      %v6378 = vunpack.c.l.b16 %v6051
      %v6379 = vunpack.c.l.b16 %v6052
      %v6380 = vunpack.c.l.b16 %v6053
      %v6381 = vunpack.c.l.b16 %v6054
      %v6382 = vunpack.c.l.b16 %v6055
      %v6383 = vunpack.c.l.b16 %v6056
      %v6384 = vunpack.c.l.b16 %v6057
      %v6385 = vunpack.c.l.b16 %v6058
      %v6386 = vunpack.c.l.b16 %v6059
      %v6387 = vunpack.c.l.b16 %v6060
      %v6388 = vunpack.c.l.b16 %v6061
      %v6389 = vunpack.c.l.b16 %v6062
      %v6390 = vunpack.c.l.b16 %v6063
      %v6391 = vunpack.c.l.b16 %v6064
      %v6392 = vunpack.c.l.b16 %v6065
      %v6393 = vunpack.c.l.b16 %v6066
      %v6394 = vunpack.c.l.b16 %v6067
      %v6395 = vunpack.c.l.b16 %v6068
      %v6396 = vunpack.c.l.b16 %v6069
      %v6397 = vunpack.c.l.b16 %v6070
      %v6398 = vunpack.c.l.b16 %v6071
      %v6399 = vunpack.c.l.b16 %v6072
      %v6400 = vunpack.c.l.b16 %v6073
      %v6401 = vunpack.c.l.b16 %v6074
      %v6402 = vunpack.c.l.b16 %v6075
      %v6403 = vunpack.c.l.b16 %v6076
      %v6404 = vunpack.c.l.b16 %v6077
      %v6405 = vunpack.c.l.b16 %v6078
      %v6406 = vunpack.c.l.b16 %v6079
      %v6407 = vunpack.c.l.b16 %v6080
      %v6408 = vunpack.c.l.b16 %v6081
      %v6409 = vunpack.c.l.b16 %v6082
      %v6410 = vunpack.c.l.b16 %v6083
      %v6411 = vunpack.c.l.b16 %v6084
      %v6412 = vunpack.c.l.b16 %v6085
      %v6413 = vunpack.c.l.b16 %v6086
      %v6414 = vunpack.c.l.b16 %v6087
      %v6415 = vunpack.c.l.b16 %v6088
      %v6416 = vunpack.c.l.b16 %v6089
      %v6417 = vunpack.c.l.b16 %v6090
      %v6418 = vunpack.c.l.b16 %v6091
      %v6419 = vunpack.c.l.b16 %v6092
      %v6420 = vunpack.c.l.b16 %v6093
      %v6421 = vunpack.c.l.b16 %v6094
      %v6422 = vunpack.c.l.b16 %v6095
      %v6423 = vunpack.c.l.b16 %v6096
      %v6424 = vunpack.c.l.b16 %v6097
      %v6425 = vunpack.c.l.b16 %v6098
      %v6426 = vunpack.c.l.b16 %v6099
      %v6427 = vunpack.c.l.b16 %v6100
      %v6428 = vunpack.c.l.b16 %v6101
      %v6429 = vunpack.c.l.b16 %v6102
      %v6430 = vunpack.c.l.b16 %v6103
      %v6431 = vunpack.c.l.b16 %v6104
      %v6432 = vunpack.c.l.b16 %v6105
      %v6433 = vunpack.c.l.b16 %v6106
      %v6434 = vunpack.c.l.b16 %v6107
      %v6435 = vunpack.c.l.b16 %v6108
      %v6436 = vunpack.c.l.b16 %v6109
      %v6437 = vunpack.c.l.b16 %v6110
      %v6438 = vunpack.c.l.b16 %v6111
      %v6439 = vunpack.c.l.b16 %v6112
      %v6440 = vunpack.c.l.b16 %v6113
      %v6441 = vunpack.c.l.b16 %v6114
      %v6442 = vunpack.c.l.b16 %v6115
      %v6443 = vunpack.c.l.b16 %v6116
      %v6444 = vunpack.c.l.b16 %v6117
      %v6445 = vunpack.c.l.b16 %v6118
      %v6446 = vunpack.c.l.b16 %v6119
      %v6447 = vunpack.c.l.b16 %v6120
      %v6448 = vunpack.c.l.b16 %v6121
      %v6449 = vunpack.c.l.b16 %v6122
      %v6450 = vunpack.c.l.b16 %v6123
      %v6451 = vunpack.c.l.b16 %v6124
      %v6452 = vunpack.c.l.b16 %v6125
      %v6453 = vunpack.c.l.b16 %v6126
      %v6454 = vunpack.c.l.b16 %v6127
      %v6455 = vunpack.c.l.b16 %v6128
      %v6456 = vunpack.c.l.b16 %v6129
      %v6457 = vunpack.c.l.b16 %v6130
      %v6458 = vunpack.c.l.b16 %v6131
      %v6459 = vunpack.c.l.b16 %v6132
      %v6460 = vunpack.c.l.b16 %v6133
      %v6461 = vunpack.c.l.b16 %v6134
      %v6462 = vunpack.c.l.b16 %v6135
      %v6463 = vpack.c.b16 %v6304, %v6303
      %v6464 = vpack.c.b16 %v6306, %v6305
      %v6465 = vpack.c.b16 %v6308, %v6307
      %v6466 = vpack.c.b16 %v6310, %v6309
      %v6467 = vpack.c.b16 %v6312, %v6311
      %v6468 = vpack.c.b16 %v6314, %v6313
      %v6469 = vpack.c.b16 %v6316, %v6315
      %v6470 = vpack.c.b16 %v6318, %v6317
      %v6471 = vpack.c.b16 %v6320, %v6319
      %v6472 = vpack.c.b16 %v6322, %v6321
      %v6473 = vpack.c.b16 %v6324, %v6323
      %v6474 = vpack.c.b16 %v6326, %v6325
      %v6475 = vpack.c.b16 %v6328, %v6327
      %v6476 = vpack.c.b16 %v6330, %v6329
      %v6477 = vpack.c.b16 %v6332, %v6331
      %v6478 = vpack.c.b16 %v6334, %v6333
      %v6479 = vpack.c.b16 %v6336, %v6335
      %v6480 = vpack.c.b16 %v6338, %v6337
      %v6481 = vpack.c.b16 %v6340, %v6339
      %v6482 = vpack.c.b16 %v6342, %v6341
      %v6483 = vpack.c.b16 %v6344, %v6343
      %v6484 = vpack.c.b16 %v6346, %v6345
      %v6485 = vpack.c.b16 %v6348, %v6347
      %v6486 = vpack.c.b16 %v6350, %v6349
      %v6487 = vpack.c.b16 %v6352, %v6351
      %v6488 = vpack.c.b16 %v6354, %v6353
      %v6489 = vpack.c.b16 %v6356, %v6355
      %v6490 = vpack.c.b16 %v6358, %v6357
      %v6491 = vpack.c.b16 %v6360, %v6359
      %v6492 = vpack.c.b16 %v6362, %v6361
      %v6493 = vpack.c.b16 %v6364, %v6363
      %v6494 = vpack.c.b16 %v6366, %v6365
      %v6495 = vpack.c.b16 %v6368, %v6367
      %v6496 = vpack.c.b16 %v6370, %v6369
      %v6497 = vpack.c.b16 %v6372, %v6371
      %v6498 = vpack.c.b16 %v6374, %v6373
      %v6499 = vpack.c.b16 %v6376, %v6375
      %v6500 = vpack.c.b16 %v6378, %v6377
      %v6501 = vpack.c.b16 %v6380, %v6379
      %v6502 = vpack.c.b16 %v6382, %v6381
      %v6503 = vpack.c.b16 %v6384, %v6383
      %v6504 = vpack.c.b16 %v6386, %v6385
      %v6505 = vpack.c.b16 %v6388, %v6387
      %v6506 = vpack.c.b16 %v6390, %v6389
      %v6507 = vpack.c.b16 %v6392, %v6391
      %v6508 = vpack.c.b16 %v6394, %v6393
      %v6509 = vpack.c.b16 %v6396, %v6395
      %v6510 = vpack.c.b16 %v6398, %v6397
      %v6511 = vpack.c.b16 %v6400, %v6399
      %v6512 = vpack.c.b16 %v6402, %v6401
      %v6513 = vpack.c.b16 %v6404, %v6403
      %v6514 = vpack.c.b16 %v6406, %v6405
      %v6515 = vpack.c.b16 %v6408, %v6407
      %v6516 = vpack.c.b16 %v6410, %v6409
      %v6517 = vpack.c.b16 %v6412, %v6411
      %v6518 = vpack.c.b16 %v6414, %v6413
      %v6519 = vpack.c.b16 %v6416, %v6415
      %v6520 = vpack.c.b16 %v6418, %v6417
      %v6521 = vpack.c.b16 %v6420, %v6419
      %v6522 = vpack.c.b16 %v6422, %v6421
      %v6523 = vpack.c.b16 %v6424, %v6423
      %v6524 = vpack.c.b16 %v6426, %v6425
      %v6525 = vpack.c.b16 %v6428, %v6427
      %v6526 = vpack.c.b16 %v6430, %v6429
      %v6527 = vpack.c.b16 %v6432, %v6431
      %v6528 = vpack.c.b16 %v6434, %v6433
      %v6529 = vpack.c.b16 %v6436, %v6435
      %v6530 = vpack.c.b16 %v6438, %v6437
      %v6531 = vpack.c.b16 %v6440, %v6439
      %v6532 = vpack.c.b16 %v6442, %v6441
      %v6533 = vpack.c.b16 %v6444, %v6443
      %v6534 = vpack.c.b16 %v6446, %v6445
      %v6535 = vpack.c.b16 %v6448, %v6447
      %v6536 = vpack.c.b16 %v6450, %v6449
      %v6537 = vpack.c.b16 %v6452, %v6451
      %v6538 = vpack.c.b16 %v6454, %v6453
      %v6539 = vpack.c.b16 %v6456, %v6455
      %v6540 = vpack.c.b16 %v6458, %v6457
      %v6541 = vpack.c.b16 %v6460, %v6459
      %v6542 = vpack.c.b16 %v6462, %v6461
      %6623 = vmatprep.subr.bf16.mxu0 0
      %6624 = vmatpush1.bf16.msra.mxu0 %v6470
      %6625 = vmatprep.subr.bf16.mxu0 0
      %6626 = vmatpush1.bf16.msra.mxu0 %v6469
      %6627 = vmatprep.subr.bf16.mxu0 0
      %6628 = vmatpush1.bf16.msra.mxu0 %v6468
      %6629 = vmatprep.subr.bf16.mxu0 0
      %6630 = vmatpush1.bf16.msra.mxu0 %v6467
      %6631 = vmatprep.subr.bf16.mxu0 0
      %6632 = vmatpush1.bf16.msra.mxu0 %v6466
      %6633 = vmatprep.subr.bf16.mxu0 0
      %6634 = vmatpush1.bf16.msra.mxu0 %v6465
      %6635 = vmatprep.subr.bf16.mxu0 0
      %6636 = vmatpush1.bf16.msra.mxu0 %v6464
      %6637 = vmatprep.subr.bf16.mxu0 0
      %6638 = vmatpush1.bf16.msra.mxu0 %v6463
      %6639 = vmatprep.subr.bf16.mxu0 0
      %6640 = vmatpush2.bf16.msra.mxu0 %v6478
      %6641 = vmatprep.subr.bf16.mxu0 0
      %6642 = vmatpush2.bf16.msra.mxu0 %v6477
      %6643 = vmatprep.subr.bf16.mxu0 0
      %6644 = vmatpush2.bf16.msra.mxu0 %v6476
      %6645 = vmatprep.subr.bf16.mxu0 0
      %6646 = vmatpush2.bf16.msra.mxu0 %v6475
      %6647 = vmatprep.subr.bf16.mxu0 0
      %6648 = vmatpush2.bf16.msra.mxu0 %v6474
      %6649 = vmatprep.subr.bf16.mxu0 0
      %6650 = vmatpush2.bf16.msra.mxu0 %v6473
      %6651 = vmatprep.subr.bf16.mxu0 0
      %6652 = vmatpush2.bf16.msra.mxu0 %v6472
      %6653 = vmatprep.subr.bf16.mxu0 0
      %6654 = vmatpush2.bf16.msra.mxu0 %v6471
      %6655 = vmatprep.mubr.bf16.mxu0 %v5967
      %6656 = vmatmul.mubr.bf16.gmra.mxu0 %v5966
      %v6657 = vpop.f32.mrf.mxu0
      %v6658 = vadd.f32 %v6141, %v6657
      %v6659 = vpop.f32.mrf.mxu0
      %v6660 = vpop.f32.mrf.mxu0
      %v6661 = vadd.f32 %v6141, %v6660
      %v6662 = vpop.f32.mrf.mxu0
      %6663 = vdwg.mxu0
      %6664 = vmatprep.subr.bf16.mxu0 0
      %6665 = vmatpush1.bf16.msra.mxu0 %v6486
      %6666 = vmatprep.subr.bf16.mxu0 0
      %6667 = vmatpush1.bf16.msra.mxu0 %v6485
      %6668 = vmatprep.subr.bf16.mxu0 0
      %6669 = vmatpush1.bf16.msra.mxu0 %v6484
      %6670 = vmatprep.subr.bf16.mxu0 0
      %6671 = vmatpush1.bf16.msra.mxu0 %v6483
      %6672 = vmatprep.subr.bf16.mxu0 0
      %6673 = vmatpush1.bf16.msra.mxu0 %v6482
      %6674 = vmatprep.subr.bf16.mxu0 0
      %6675 = vmatpush1.bf16.msra.mxu0 %v6481
      %6676 = vmatprep.subr.bf16.mxu0 0
      %6677 = vmatpush1.bf16.msra.mxu0 %v6480
      %6678 = vmatprep.subr.bf16.mxu0 0
      %6679 = vmatpush1.bf16.msra.mxu0 %v6479
      %6680 = vmatprep.subr.bf16.mxu0 0
      %6681 = vmatpush2.bf16.msra.mxu0 %v6494
      %6682 = vmatprep.subr.bf16.mxu0 0
      %6683 = vmatpush2.bf16.msra.mxu0 %v6493
      %6684 = vmatprep.subr.bf16.mxu0 0
      %6685 = vmatpush2.bf16.msra.mxu0 %v6492
      %6686 = vmatprep.subr.bf16.mxu0 0
      %6687 = vmatpush2.bf16.msra.mxu0 %v6491
      %6688 = vmatprep.subr.bf16.mxu0 0
      %6689 = vmatpush2.bf16.msra.mxu0 %v6490
      %6690 = vmatprep.subr.bf16.mxu0 0
      %6691 = vmatpush2.bf16.msra.mxu0 %v6489
      %6692 = vmatprep.subr.bf16.mxu0 0
      %6693 = vmatpush2.bf16.msra.mxu0 %v6488
      %6694 = vmatprep.subr.bf16.mxu0 0
      %6695 = vmatpush2.bf16.msra.mxu0 %v6487
      %6696 = vmatprep.mubr.bf16.mxu0 %v5969
      %6697 = vmatmul.mubr.bf16.gmra.mxu0 %v5968
      %v6698 = vpop.f32.mrf.mxu0
      %v6699 = vadd.f32 %v6658, %v6698
      %v6700 = vpop.f32.mrf.mxu0
      %v6701 = vpop.f32.mrf.mxu0
      %v6702 = vadd.f32 %v6661, %v6701
      %v6703 = vpop.f32.mrf.mxu0
      %6704 = vdwg.mxu0
      %6705 = vmatprep.subr.bf16.mxu0 0
      %6706 = vmatpush1.bf16.msra.mxu0 %v6502
      %6707 = vmatprep.subr.bf16.mxu0 0
      %6708 = vmatpush1.bf16.msra.mxu0 %v6501
      %6709 = vmatprep.subr.bf16.mxu0 0
      %6710 = vmatpush1.bf16.msra.mxu0 %v6500
      %6711 = vmatprep.subr.bf16.mxu0 0
      %6712 = vmatpush1.bf16.msra.mxu0 %v6499
      %6713 = vmatprep.subr.bf16.mxu0 0
      %6714 = vmatpush1.bf16.msra.mxu0 %v6498
      %6715 = vmatprep.subr.bf16.mxu0 0
      %6716 = vmatpush1.bf16.msra.mxu0 %v6497
      %6717 = vmatprep.subr.bf16.mxu0 0
      %6718 = vmatpush1.bf16.msra.mxu0 %v6496
      %6719 = vmatprep.subr.bf16.mxu0 0
      %6720 = vmatpush1.bf16.msra.mxu0 %v6495
      %6721 = vmatprep.subr.bf16.mxu0 0
      %6722 = vmatpush2.bf16.msra.mxu0 %v6510
      %6723 = vmatprep.subr.bf16.mxu0 0
      %6724 = vmatpush2.bf16.msra.mxu0 %v6509
      %6725 = vmatprep.subr.bf16.mxu0 0
      %6726 = vmatpush2.bf16.msra.mxu0 %v6508
      %6727 = vmatprep.subr.bf16.mxu0 0
      %6728 = vmatpush2.bf16.msra.mxu0 %v6507
      %6729 = vmatprep.subr.bf16.mxu0 0
      %6730 = vmatpush2.bf16.msra.mxu0 %v6506
      %6731 = vmatprep.subr.bf16.mxu0 0
      %6732 = vmatpush2.bf16.msra.mxu0 %v6505
      %6733 = vmatprep.subr.bf16.mxu0 0
      %6734 = vmatpush2.bf16.msra.mxu0 %v6504
      %6735 = vmatprep.subr.bf16.mxu0 0
      %6736 = vmatpush2.bf16.msra.mxu0 %v6503
      %6737 = vmatprep.mubr.bf16.mxu0 %v5971
      %6738 = vmatmul.mubr.bf16.gmra.mxu0 %v5970
      %v6739 = vpop.f32.mrf.mxu0
      %v6740 = vadd.f32 %v6699, %v6739
      %v6741 = vpop.f32.mrf.mxu0
      %v6742 = vpop.f32.mrf.mxu0
      %v6743 = vadd.f32 %v6702, %v6742
      %v6744 = vpop.f32.mrf.mxu0
      %6745 = vdwg.mxu0
      %6746 = vmatprep.subr.bf16.mxu0 0
      %6747 = vmatpush1.bf16.msra.mxu0 %v6518
      %6748 = vmatprep.subr.bf16.mxu0 0
      %6749 = vmatpush1.bf16.msra.mxu0 %v6517
      %6750 = vmatprep.subr.bf16.mxu0 0
      %6751 = vmatpush1.bf16.msra.mxu0 %v6516
      %6752 = vmatprep.subr.bf16.mxu0 0
      %6753 = vmatpush1.bf16.msra.mxu0 %v6515
      %6754 = vmatprep.subr.bf16.mxu0 0
      %6755 = vmatpush1.bf16.msra.mxu0 %v6514
      %6756 = vmatprep.subr.bf16.mxu0 0
      %6757 = vmatpush1.bf16.msra.mxu0 %v6513
      %6758 = vmatprep.subr.bf16.mxu0 0
      %6759 = vmatpush1.bf16.msra.mxu0 %v6512
      %6760 = vmatprep.subr.bf16.mxu0 0
      %6761 = vmatpush1.bf16.msra.mxu0 %v6511
      %6762 = vmatprep.subr.bf16.mxu0 0
      %6763 = vmatpush2.bf16.msra.mxu0 %v6526
      %6764 = vmatprep.subr.bf16.mxu0 0
      %6765 = vmatpush2.bf16.msra.mxu0 %v6525
      %6766 = vmatprep.subr.bf16.mxu0 0
      %6767 = vmatpush2.bf16.msra.mxu0 %v6524
      %6768 = vmatprep.subr.bf16.mxu0 0
      %6769 = vmatpush2.bf16.msra.mxu0 %v6523
      %6770 = vmatprep.subr.bf16.mxu0 0
      %6771 = vmatpush2.bf16.msra.mxu0 %v6522
      %6772 = vmatprep.subr.bf16.mxu0 0
      %6773 = vmatpush2.bf16.msra.mxu0 %v6521
      %6774 = vmatprep.subr.bf16.mxu0 0
      %6775 = vmatpush2.bf16.msra.mxu0 %v6520
      %6776 = vmatprep.subr.bf16.mxu0 0
      %6777 = vmatpush2.bf16.msra.mxu0 %v6519
      %6778 = vmatprep.mubr.bf16.mxu0 %v5973
      %6779 = vmatmul.mubr.bf16.gmra.mxu0 %v5972
      %v6780 = vpop.f32.mrf.mxu0
      %v6781 = vadd.f32 %v6740, %v6780
      %v6782 = vpop.f32.mrf.mxu0
      %v6783 = vpop.f32.mrf.mxu0
      %v6784 = vadd.f32 %v6743, %v6783
      %v6785 = vpop.f32.mrf.mxu0
      %6786 = vdwg.mxu0
      %6787 = vmatprep.subr.bf16.mxu0 0
      %6788 = vmatpush1.bf16.msra.mxu0 %v6534
      %6789 = vmatprep.subr.bf16.mxu0 0
      %6790 = vmatpush1.bf16.msra.mxu0 %v6533
      %6791 = vmatprep.subr.bf16.mxu0 0
      %6792 = vmatpush1.bf16.msra.mxu0 %v6532
      %6793 = vmatprep.subr.bf16.mxu0 0
      %6794 = vmatpush1.bf16.msra.mxu0 %v6531
      %6795 = vmatprep.subr.bf16.mxu0 0
      %6796 = vmatpush1.bf16.msra.mxu0 %v6530
      %6797 = vmatprep.subr.bf16.mxu0 0
      %6798 = vmatpush1.bf16.msra.mxu0 %v6529
      %6799 = vmatprep.subr.bf16.mxu0 0
      %6800 = vmatpush1.bf16.msra.mxu0 %v6528
      %6801 = vmatprep.subr.bf16.mxu0 0
      %6802 = vmatpush1.bf16.msra.mxu0 %v6527
      %6803 = vmatprep.subr.bf16.mxu0 0
      %6804 = vmatpush2.bf16.msra.mxu0 %v6542
      %6805 = vmatprep.subr.bf16.mxu0 0
      %6806 = vmatpush2.bf16.msra.mxu0 %v6541
      %6807 = vmatprep.subr.bf16.mxu0 0
      %6808 = vmatpush2.bf16.msra.mxu0 %v6540
      %6809 = vmatprep.subr.bf16.mxu0 0
      %6810 = vmatpush2.bf16.msra.mxu0 %v6539
      %6811 = vmatprep.subr.bf16.mxu0 0
      %6812 = vmatpush2.bf16.msra.mxu0 %v6538
      %6813 = vmatprep.subr.bf16.mxu0 0
      %6814 = vmatpush2.bf16.msra.mxu0 %v6537
      %6815 = vmatprep.subr.bf16.mxu0 0
      %6816 = vmatpush2.bf16.msra.mxu0 %v6536
      %6817 = vmatprep.subr.bf16.mxu0 0
      %6818 = vmatpush2.bf16.msra.mxu0 %v6535
      %6819 = vmatprep.mubr.bf16.mxu0 %v5975
      %6820 = vmatmul.mubr.bf16.gmra.mxu0 %v5974
      %v6821 = vpop.f32.mrf.mxu0
      %v6822 = vadd.f32 %v6781, %v6821
      %v6823 = vpop.f32.mrf.mxu0
      %v6824 = vpop.f32.mrf.mxu0
      %v6825 = vadd.f32 %v6784, %v6824
      %v6826 = vpop.f32.mrf.mxu0
      %6827 = vdwg.mxu0
      %v6828 = vmax.f32 %v6822, 0.0
      %v6829 = vmax.f32 %v6825, 0.0
      %v6830 = vpack.c.bf16 %v6829, %v6828
      %v6831 = vld [vmem:[%s7] sm:$0xff]
      %v6832 = vld [vmem:[%s7 + $0x8] sm:$0xff]
      %v6833 = vld [vmem:[%s7 + $0x10] sm:$0xff]
      %v6834 = vld [vmem:[%s7 + $0x18] sm:$0xff]
      %v6835 = vld [vmem:[%s7 + $0x20] sm:$0xff]
      %v6836 = vld [vmem:[%s7 + $0x28] sm:$0xff]
      %v6837 = vld [vmem:[%s7 + $0x30] sm:$0xff]
      %v6838 = vld [vmem:[%s7 + $0x38] sm:$0xff]
      %v6839 = vld [vmem:[%s7 + $0x40] sm:$0xff]
      %v6840 = vld [vmem:[%s7 + $0x48] sm:$0xff]
      %v6841 = vld [vmem:[%s7 + $0x50] sm:$0xff]
      %v6842 = vld [vmem:[%s7 + $0x58] sm:$0xff]
      %v6843 = vld [vmem:[%s7 + $0x60] sm:$0xff]
      %v6844 = vld [vmem:[%s7 + $0x68] sm:$0xff]
      %v6845 = vld [vmem:[%s7 + $0x70] sm:$0xff]
      %v6846 = vld [vmem:[%s7 + $0x78] sm:$0xff]
      %v6847 = vld [vmem:[%s7 + $0x80] sm:$0xff]
      %v6848 = vld [vmem:[%s7 + $0x88] sm:$0xff]
      %v6849 = vld [vmem:[%s7 + $0x90] sm:$0xff]
      %v6850 = vld [vmem:[%s7 + $0x98] sm:$0xff]
      %v6851 = vld [vmem:[%s7 + $0xa0] sm:$0xff]
      %v6852 = vld [vmem:[%s7 + $0xa8] sm:$0xff]
      %v6853 = vld [vmem:[%s7 + $0xb0] sm:$0xff]
      %v6854 = vld [vmem:[%s7 + $0xb8] sm:$0xff]
      %v6855 = vld [vmem:[%s7 + $0xc0] sm:$0xff]
      %v6856 = vld [vmem:[%s7 + $0xc8] sm:$0xff]
      %v6857 = vld [vmem:[%s7 + $0xd0] sm:$0xff]
      %v6858 = vld [vmem:[%s7 + $0xd8] sm:$0xff]
      %v6859 = vld [vmem:[%s7 + $0xe0] sm:$0xff]
      %v6860 = vld [vmem:[%s7 + $0xe8] sm:$0xff]
      %v6861 = vld [vmem:[%s7 + $0xf0] sm:$0xff]
      %v6862 = vld [vmem:[%s7 + $0xf8] sm:$0xff]
      %v6863 = vld [vmem:[%s8] sm:$0xf]
      %v6865 = vlaneseq
      %v6866 = vshrl.u32 %v6865, 7
      %v6867 = vsub.s32 0, %v6866
      %v6868 = vrot.slane %v6863, %v6867
      %v6869 = vlaneseq
      %v6870 = vshrl.u32 %v6869, 7
      %v6871 = vsub.s32 1, %v6870
      %v6872 = vrot.slane %v6863, %v6871
      %v6873 = vlaneseq
      %v6874 = vshrl.u32 %v6873, 7
      %v6875 = vsub.s32 2, %v6874
      %v6876 = vrot.slane %v6863, %v6875
      %v6877 = vlaneseq
      %v6878 = vshrl.u32 %v6877, 7
      %v6879 = vsub.s32 3, %v6878
      %v6880 = vrot.slane %v6863, %v6879
      %v6917 = vunpack.c.l.b16 %v6831
      %v6918 = vunpack.c.h.b16 %v6831
      %v6919 = vunpack.c.l.b16 %v6832
      %v6920 = vunpack.c.h.b16 %v6832
      %v6921 = vunpack.c.l.b16 %v6833
      %v6922 = vunpack.c.h.b16 %v6833
      %v6923 = vunpack.c.l.b16 %v6834
      %v6924 = vunpack.c.h.b16 %v6834
      %v6925 = vunpack.c.l.b16 %v6835
      %v6926 = vunpack.c.h.b16 %v6835
      %v6927 = vunpack.c.l.b16 %v6836
      %v6928 = vunpack.c.h.b16 %v6836
      %v6929 = vunpack.c.l.b16 %v6837
      %v6930 = vunpack.c.h.b16 %v6837
      %v6931 = vunpack.c.l.b16 %v6838
      %v6932 = vunpack.c.h.b16 %v6838
      %v6933 = vunpack.c.l.b16 %v6839
      %v6934 = vunpack.c.h.b16 %v6839
      %v6935 = vunpack.c.l.b16 %v6840
      %v6936 = vunpack.c.h.b16 %v6840
      %v6937 = vunpack.c.l.b16 %v6841
      %v6938 = vunpack.c.h.b16 %v6841
      %v6939 = vunpack.c.l.b16 %v6842
      %v6940 = vunpack.c.h.b16 %v6842
      %v6941 = vunpack.c.l.b16 %v6843
      %v6942 = vunpack.c.h.b16 %v6843
      %v6943 = vunpack.c.l.b16 %v6844
      %v6944 = vunpack.c.h.b16 %v6844
      %v6945 = vunpack.c.l.b16 %v6845
      %v6946 = vunpack.c.h.b16 %v6845
      %v6947 = vunpack.c.l.b16 %v6846
      %v6948 = vunpack.c.h.b16 %v6846
      %v6949 = vunpack.c.l.b16 %v6847
      %v6950 = vunpack.c.h.b16 %v6847
      %v6951 = vunpack.c.l.b16 %v6848
      %v6952 = vunpack.c.h.b16 %v6848
      %v6953 = vunpack.c.l.b16 %v6849
      %v6954 = vunpack.c.h.b16 %v6849
      %v6955 = vunpack.c.l.b16 %v6850
      %v6956 = vunpack.c.h.b16 %v6850
      %v6957 = vunpack.c.l.b16 %v6851
      %v6958 = vunpack.c.h.b16 %v6851
      %v6959 = vunpack.c.l.b16 %v6852
      %v6960 = vunpack.c.h.b16 %v6852
      %v6961 = vunpack.c.l.b16 %v6853
      %v6962 = vunpack.c.h.b16 %v6853
      %v6963 = vunpack.c.l.b16 %v6854
      %v6964 = vunpack.c.h.b16 %v6854
      %v6965 = vunpack.c.l.b16 %v6855
      %v6966 = vunpack.c.h.b16 %v6855
      %v6967 = vunpack.c.l.b16 %v6856
      %v6968 = vunpack.c.h.b16 %v6856
      %v6969 = vunpack.c.l.b16 %v6857
      %v6970 = vunpack.c.h.b16 %v6857
      %v6971 = vunpack.c.l.b16 %v6858
      %v6972 = vunpack.c.h.b16 %v6858
      %v6973 = vunpack.c.l.b16 %v6859
      %v6974 = vunpack.c.h.b16 %v6859
      %v6975 = vunpack.c.l.b16 %v6860
      %v6976 = vunpack.c.h.b16 %v6860
      %v6977 = vunpack.c.l.b16 %v6861
      %v6978 = vunpack.c.h.b16 %v6861
      %v6979 = vunpack.c.l.b16 %v6862
      %v6980 = vunpack.c.h.b16 %v6862
      %v6981 = vpack.c.b16 %v6921, %v6917
      %v6982 = vpack.c.b16 %v6922, %v6918
      %v6983 = vpack.c.b16 %v6923, %v6919
      %v6984 = vpack.c.b16 %v6924, %v6920
      %v6985 = vpack.c.b16 %v6929, %v6925
      %v6986 = vpack.c.b16 %v6930, %v6926
      %v6987 = vpack.c.b16 %v6931, %v6927
      %v6988 = vpack.c.b16 %v6932, %v6928
      %v6989 = vpack.c.b16 %v6937, %v6933
      %v6990 = vpack.c.b16 %v6938, %v6934
      %v6991 = vpack.c.b16 %v6939, %v6935
      %v6992 = vpack.c.b16 %v6940, %v6936
      %v6993 = vpack.c.b16 %v6945, %v6941
      %v6994 = vpack.c.b16 %v6946, %v6942
      %v6995 = vpack.c.b16 %v6947, %v6943
      %v6996 = vpack.c.b16 %v6948, %v6944
      %v6997 = vpack.c.b16 %v6953, %v6949
      %v6998 = vpack.c.b16 %v6954, %v6950
      %v6999 = vpack.c.b16 %v6955, %v6951
      %v7000 = vpack.c.b16 %v6956, %v6952
      %v7001 = vpack.c.b16 %v6961, %v6957
      %v7002 = vpack.c.b16 %v6962, %v6958
      %v7003 = vpack.c.b16 %v6963, %v6959
      %v7004 = vpack.c.b16 %v6964, %v6960
      %v7005 = vpack.c.b16 %v6969, %v6965
      %v7006 = vpack.c.b16 %v6970, %v6966
      %v7007 = vpack.c.b16 %v6971, %v6967
      %v7008 = vpack.c.b16 %v6972, %v6968
      %v7009 = vpack.c.b16 %v6977, %v6973
      %v7010 = vpack.c.b16 %v6978, %v6974
      %v7011 = vpack.c.b16 %v6979, %v6975
      %v7012 = vpack.c.b16 %v6980, %v6976
      %7045 = vmatprep.subr.bf16.mxu0 %v7010
      %7046 = vmatpush1.bf16.msra.mxu0 %v7009
      %7047 = vmatprep.subr.bf16.mxu0 %v7006
      %7048 = vmatpush1.bf16.msra.mxu0 %v7005
      %7049 = vmatprep.subr.bf16.mxu0 %v7002
      %7050 = vmatpush1.bf16.msra.mxu0 %v7001
      %7051 = vmatprep.subr.bf16.mxu0 %v6998
      %7052 = vmatpush1.bf16.msra.mxu0 %v6997
      %7053 = vmatprep.subr.bf16.mxu0 %v6994
      %7054 = vmatpush1.bf16.msra.mxu0 %v6993
      %7055 = vmatprep.subr.bf16.mxu0 %v6990
      %7056 = vmatpush1.bf16.msra.mxu0 %v6989
      %7057 = vmatprep.subr.bf16.mxu0 %v6986
      %7058 = vmatpush1.bf16.msra.mxu0 %v6985
      %7059 = vmatprep.subr.bf16.mxu0 %v6982
      %7060 = vmatpush1.bf16.msra.mxu0 %v6981
      %7061 = vmatprep.subr.bf16.mxu0 0
      %7062 = vmatpush2.bf16.msra.mxu0 0
      %7063 = vmatprep.subr.bf16.mxu0 0
      %7064 = vmatpush2.bf16.msra.mxu0 0
      %7065 = vmatprep.subr.bf16.mxu0 0
      %7066 = vmatpush2.bf16.msra.mxu0 0
      %7067 = vmatprep.subr.bf16.mxu0 0
      %7068 = vmatpush2.bf16.msra.mxu0 0
      %7069 = vmatprep.subr.bf16.mxu0 0
      %7070 = vmatpush2.bf16.msra.mxu0 0
      %7071 = vmatprep.subr.bf16.mxu0 0
      %7072 = vmatpush2.bf16.msra.mxu0 0
      %7073 = vmatprep.subr.bf16.mxu0 0
      %7074 = vmatpush2.bf16.msra.mxu0 0
      %7075 = vmatprep.subr.bf16.mxu0 0
      %7076 = vmatpush2.bf16.msra.mxu0 0
      %7077 = vmatprep.mubr.bf16.mxu0 0
      %7078 = vmatmul.mubr.bf16.gmra.mxu0 %v6830
      %v7079 = vpop.f32.mrf.mxu0
      %v7080 = vadd.f32 %v6868, %v7079
      %v7081 = vpop.f32.mrf.mxu0
      %v7082 = vadd.f32 %v6872, %v7081
      %v7083 = vpop.f32.mrf.mxu0
      %v7084 = vadd.f32 %v6868, %v7083
      %v7085 = vpop.f32.mrf.mxu0
      %v7086 = vadd.f32 %v6872, %v7085
      %7087 = vdwg.mxu0
      %7088 = vmatprep.subr.bf16.mxu0 %v7012
      %7089 = vmatpush1.bf16.msra.mxu0 %v7011
      %7090 = vmatprep.subr.bf16.mxu0 %v7008
      %7091 = vmatpush1.bf16.msra.mxu0 %v7007
      %7092 = vmatprep.subr.bf16.mxu0 %v7004
      %7093 = vmatpush1.bf16.msra.mxu0 %v7003
      %7094 = vmatprep.subr.bf16.mxu0 %v7000
      %7095 = vmatpush1.bf16.msra.mxu0 %v6999
      %7096 = vmatprep.subr.bf16.mxu0 %v6996
      %7097 = vmatpush1.bf16.msra.mxu0 %v6995
      %7098 = vmatprep.subr.bf16.mxu0 %v6992
      %7099 = vmatpush1.bf16.msra.mxu0 %v6991
      %7100 = vmatprep.subr.bf16.mxu0 %v6988
      %7101 = vmatpush1.bf16.msra.mxu0 %v6987
      %7102 = vmatprep.subr.bf16.mxu0 %v6984
      %7103 = vmatpush1.bf16.msra.mxu0 %v6983
      %7104 = vmatprep.subr.bf16.mxu0 0
      %7105 = vmatpush2.bf16.msra.mxu0 0
      %7106 = vmatprep.subr.bf16.mxu0 0
      %7107 = vmatpush2.bf16.msra.mxu0 0
      %7108 = vmatprep.subr.bf16.mxu0 0
      %7109 = vmatpush2.bf16.msra.mxu0 0
      %7110 = vmatprep.subr.bf16.mxu0 0
      %7111 = vmatpush2.bf16.msra.mxu0 0
      %7112 = vmatprep.subr.bf16.mxu0 0
      %7113 = vmatpush2.bf16.msra.mxu0 0
      %7114 = vmatprep.subr.bf16.mxu0 0
      %7115 = vmatpush2.bf16.msra.mxu0 0
      %7116 = vmatprep.subr.bf16.mxu0 0
      %7117 = vmatpush2.bf16.msra.mxu0 0
      %7118 = vmatprep.subr.bf16.mxu0 0
      %7119 = vmatpush2.bf16.msra.mxu0 0
      %7120 = vmatprep.mubr.bf16.mxu0 0
      %7121 = vmatmul.mubr.bf16.gmra.mxu0 %v6830
      %v7122 = vpop.f32.mrf.mxu0
      %v7123 = vadd.f32 %v6876, %v7122
      %v7124 = vpop.f32.mrf.mxu0
      %v7125 = vadd.f32 %v6880, %v7124
      %v7126 = vpop.f32.mrf.mxu0
      %v7127 = vadd.f32 %v6876, %v7126
      %v7128 = vpop.f32.mrf.mxu0
      %v7129 = vadd.f32 %v6880, %v7128
      %7130 = vdwg.mxu0
      %v7131 = vmax.f32 %v7080, 0.0
      %v7132 = vmax.f32 %v7082, 0.0
      %v7133 = vmax.f32 %v7123, 0.0
      %v7134 = vmax.f32 %v7125, 0.0
      %v7135 = vmax.f32 %v7084, 0.0
      %v7136 = vmax.f32 %v7086, 0.0
      %v7137 = vmax.f32 %v7127, 0.0
      %v7138 = vmax.f32 %v7129, 0.0
      %v7139 = vpack.c.bf16 %v7135, %v7131
      %v7140 = vpack.c.bf16 %v7136, %v7132
      %v7141 = vpack.c.bf16 %v7137, %v7133
      %v7142 = vpack.c.bf16 %v7138, %v7134
      %v7143 = vld [vmem:[%s9] sm:$0xf]
      %v7144 = vld [vmem:[%s9 + $0x4] sm:$0xf]
      %v7145 = vld [vmem:[%s9 + $0x8] sm:$0xf]
      %v7146 = vld [vmem:[%s9 + $0xc] sm:$0xf]
      %v7147 = vld [vmem:[%s9 + $0x10] sm:$0xf]
      %v7148 = vld [vmem:[%s9 + $0x14] sm:$0xf]
      %v7149 = vld [vmem:[%s9 + $0x18] sm:$0xf]
      %v7150 = vld [vmem:[%s9 + $0x1c] sm:$0xf]
      %v7151 = vld [vmem:[%s9 + $0x20] sm:$0xf]
      %v7152 = vld [vmem:[%s9 + $0x24] sm:$0xf]
      %v7153 = vld [vmem:[%s9 + $0x28] sm:$0xf]
      %v7154 = vld [vmem:[%s9 + $0x2c] sm:$0xf]
      %v7155 = vld [vmem:[%s9 + $0x30] sm:$0xf]
      %v7156 = vld [vmem:[%s9 + $0x34] sm:$0xf]
      %v7157 = vld [vmem:[%s9 + $0x38] sm:$0xf]
      %v7158 = vld [vmem:[%s9 + $0x3c] sm:$0xf]
      %v7159 = vld [vmem:[%s9 + $0x40] sm:$0xf]
      %v7160 = vld [vmem:[%s9 + $0x44] sm:$0xf]
      %v7161 = vld [vmem:[%s9 + $0x48] sm:$0xf]
      %v7162 = vld [vmem:[%s9 + $0x4c] sm:$0xf]
      %v7163 = vld [vmem:[%s9 + $0x50] sm:$0xf]
      %v7164 = vld [vmem:[%s9 + $0x54] sm:$0xf]
      %v7165 = vld [vmem:[%s9 + $0x58] sm:$0xf]
      %v7166 = vld [vmem:[%s9 + $0x5c] sm:$0xf]
      %v7167 = vld [vmem:[%s9 + $0x60] sm:$0xf]
      %v7168 = vld [vmem:[%s9 + $0x64] sm:$0xf]
      %v7169 = vld [vmem:[%s9 + $0x68] sm:$0xf]
      %v7170 = vld [vmem:[%s9 + $0x6c] sm:$0xf]
      %v7171 = vld [vmem:[%s9 + $0x70] sm:$0xf]
      %v7172 = vld [vmem:[%s9 + $0x74] sm:$0xf]
      %v7173 = vld [vmem:[%s9 + $0x78] sm:$0xf]
      %v7174 = vld [vmem:[%s9 + $0x7c] sm:$0xf]
      %v7175 = vld [vmem:[%s9 + $0x80] sm:$0xf]
      %v7176 = vld [vmem:[%s9 + $0x84] sm:$0xf]
      %v7177 = vld [vmem:[%s9 + $0x88] sm:$0xf]
      %v7178 = vld [vmem:[%s9 + $0x8c] sm:$0xf]
      %v7179 = vld [vmem:[%s9 + $0x90] sm:$0xf]
      %v7180 = vld [vmem:[%s9 + $0x94] sm:$0xf]
      %v7181 = vld [vmem:[%s9 + $0x98] sm:$0xf]
      %v7182 = vld [vmem:[%s9 + $0x9c] sm:$0xf]
      %v7183 = vld [vmem:[%s9 + $0xa0] sm:$0xf]
      %v7184 = vld [vmem:[%s9 + $0xa4] sm:$0xf]
      %v7185 = vld [vmem:[%s9 + $0xa8] sm:$0xf]
      %v7186 = vld [vmem:[%s9 + $0xac] sm:$0xf]
      %v7187 = vld [vmem:[%s9 + $0xb0] sm:$0xf]
      %v7188 = vld [vmem:[%s9 + $0xb4] sm:$0xf]
      %v7189 = vld [vmem:[%s9 + $0xb8] sm:$0xf]
      %v7190 = vld [vmem:[%s9 + $0xbc] sm:$0xf]
      %v7191 = vld [vmem:[%s9 + $0xc0] sm:$0xf]
      %v7192 = vld [vmem:[%s9 + $0xc4] sm:$0xf]
      %v7193 = vld [vmem:[%s9 + $0xc8] sm:$0xf]
      %v7194 = vld [vmem:[%s9 + $0xcc] sm:$0xf]
      %v7195 = vld [vmem:[%s9 + $0xd0] sm:$0xf]
      %v7196 = vld [vmem:[%s9 + $0xd4] sm:$0xf]
      %v7197 = vld [vmem:[%s9 + $0xd8] sm:$0xf]
      %v7198 = vld [vmem:[%s9 + $0xdc] sm:$0xf]
      %v7199 = vld [vmem:[%s9 + $0xe0] sm:$0xf]
      %v7200 = vld [vmem:[%s9 + $0xe4] sm:$0xf]
      %v7201 = vld [vmem:[%s9 + $0xe8] sm:$0xf]
      %v7202 = vld [vmem:[%s9 + $0xec] sm:$0xf]
      %v7203 = vld [vmem:[%s9 + $0xf0] sm:$0xf]
      %v7204 = vld [vmem:[%s9 + $0xf4] sm:$0xf]
      %v7205 = vld [vmem:[%s9 + $0xf8] sm:$0xf]
      %v7206 = vld [vmem:[%s9 + $0xfc] sm:$0xf]
      %s7207 = sld [smem:[#allocation2]]
      %v7208 = vstv %s7207
      %v7273 = vunpack.c.l.b16 %v7143
      %v7274 = vunpack.c.l.b16 %v7144
      %v7275 = vunpack.c.l.b16 %v7145
      %v7276 = vunpack.c.l.b16 %v7146
      %v7277 = vunpack.c.l.b16 %v7147
      %v7278 = vunpack.c.l.b16 %v7148
      %v7279 = vunpack.c.l.b16 %v7149
      %v7280 = vunpack.c.l.b16 %v7150
      %v7281 = vunpack.c.l.b16 %v7151
      %v7282 = vunpack.c.l.b16 %v7152
      %v7283 = vunpack.c.l.b16 %v7153
      %v7284 = vunpack.c.l.b16 %v7154
      %v7285 = vunpack.c.l.b16 %v7155
      %v7286 = vunpack.c.l.b16 %v7156
      %v7287 = vunpack.c.l.b16 %v7157
      %v7288 = vunpack.c.l.b16 %v7158
      %v7289 = vunpack.c.l.b16 %v7159
      %v7290 = vunpack.c.l.b16 %v7160
      %v7291 = vunpack.c.l.b16 %v7161
      %v7292 = vunpack.c.l.b16 %v7162
      %v7293 = vunpack.c.l.b16 %v7163
      %v7294 = vunpack.c.l.b16 %v7164
      %v7295 = vunpack.c.l.b16 %v7165
      %v7296 = vunpack.c.l.b16 %v7166
      %v7297 = vunpack.c.l.b16 %v7167
      %v7298 = vunpack.c.l.b16 %v7168
      %v7299 = vunpack.c.l.b16 %v7169
      %v7300 = vunpack.c.l.b16 %v7170
      %v7301 = vunpack.c.l.b16 %v7171
      %v7302 = vunpack.c.l.b16 %v7172
      %v7303 = vunpack.c.l.b16 %v7173
      %v7304 = vunpack.c.l.b16 %v7174
      %v7305 = vunpack.c.l.b16 %v7175
      %v7306 = vunpack.c.l.b16 %v7176
      %v7307 = vunpack.c.l.b16 %v7177
      %v7308 = vunpack.c.l.b16 %v7178
      %v7309 = vunpack.c.l.b16 %v7179
      %v7310 = vunpack.c.l.b16 %v7180
      %v7311 = vunpack.c.l.b16 %v7181
      %v7312 = vunpack.c.l.b16 %v7182
      %v7313 = vunpack.c.l.b16 %v7183
      %v7314 = vunpack.c.l.b16 %v7184
      %v7315 = vunpack.c.l.b16 %v7185
      %v7316 = vunpack.c.l.b16 %v7186
      %v7317 = vunpack.c.l.b16 %v7187
      %v7318 = vunpack.c.l.b16 %v7188
      %v7319 = vunpack.c.l.b16 %v7189
      %v7320 = vunpack.c.l.b16 %v7190
      %v7321 = vunpack.c.l.b16 %v7191
      %v7322 = vunpack.c.l.b16 %v7192
      %v7323 = vunpack.c.l.b16 %v7193
      %v7324 = vunpack.c.l.b16 %v7194
      %v7325 = vunpack.c.l.b16 %v7195
      %v7326 = vunpack.c.l.b16 %v7196
      %v7327 = vunpack.c.l.b16 %v7197
      %v7328 = vunpack.c.l.b16 %v7198
      %v7329 = vunpack.c.l.b16 %v7199
      %v7330 = vunpack.c.l.b16 %v7200
      %v7331 = vunpack.c.l.b16 %v7201
      %v7332 = vunpack.c.l.b16 %v7202
      %v7333 = vunpack.c.l.b16 %v7203
      %v7334 = vunpack.c.l.b16 %v7204
      %v7335 = vunpack.c.l.b16 %v7205
      %v7336 = vunpack.c.l.b16 %v7206
      %v7337 = vpack.c.b16 %v7274, %v7273
      %v7338 = vpack.c.b16 %v7276, %v7275
      %v7339 = vpack.c.b16 %v7278, %v7277
      %v7340 = vpack.c.b16 %v7280, %v7279
      %v7341 = vpack.c.b16 %v7282, %v7281
      %v7342 = vpack.c.b16 %v7284, %v7283
      %v7343 = vpack.c.b16 %v7286, %v7285
      %v7344 = vpack.c.b16 %v7288, %v7287
      %v7345 = vpack.c.b16 %v7290, %v7289
      %v7346 = vpack.c.b16 %v7292, %v7291
      %v7347 = vpack.c.b16 %v7294, %v7293
      %v7348 = vpack.c.b16 %v7296, %v7295
      %v7349 = vpack.c.b16 %v7298, %v7297
      %v7350 = vpack.c.b16 %v7300, %v7299
      %v7351 = vpack.c.b16 %v7302, %v7301
      %v7352 = vpack.c.b16 %v7304, %v7303
      %v7353 = vpack.c.b16 %v7306, %v7305
      %v7354 = vpack.c.b16 %v7308, %v7307
      %v7355 = vpack.c.b16 %v7310, %v7309
      %v7356 = vpack.c.b16 %v7312, %v7311
      %v7357 = vpack.c.b16 %v7314, %v7313
      %v7358 = vpack.c.b16 %v7316, %v7315
      %v7359 = vpack.c.b16 %v7318, %v7317
      %v7360 = vpack.c.b16 %v7320, %v7319
      %v7361 = vpack.c.b16 %v7322, %v7321
      %v7362 = vpack.c.b16 %v7324, %v7323
      %v7363 = vpack.c.b16 %v7326, %v7325
      %v7364 = vpack.c.b16 %v7328, %v7327
      %v7365 = vpack.c.b16 %v7330, %v7329
      %v7366 = vpack.c.b16 %v7332, %v7331
      %v7367 = vpack.c.b16 %v7334, %v7333
      %v7368 = vpack.c.b16 %v7336, %v7335
      %7401 = vmatprep.subr.bf16.mxu0 0
      %7402 = vmatpush1.bf16.msra.mxu0 %v7344
      %7403 = vmatprep.subr.bf16.mxu0 0
      %7404 = vmatpush1.bf16.msra.mxu0 %v7343
      %7405 = vmatprep.subr.bf16.mxu0 0
      %7406 = vmatpush1.bf16.msra.mxu0 %v7342
      %7407 = vmatprep.subr.bf16.mxu0 0
      %7408 = vmatpush1.bf16.msra.mxu0 %v7341
      %7409 = vmatprep.subr.bf16.mxu0 0
      %7410 = vmatpush1.bf16.msra.mxu0 %v7340
      %7411 = vmatprep.subr.bf16.mxu0 0
      %7412 = vmatpush1.bf16.msra.mxu0 %v7339
      %7413 = vmatprep.subr.bf16.mxu0 0
      %7414 = vmatpush1.bf16.msra.mxu0 %v7338
      %7415 = vmatprep.subr.bf16.mxu0 0
      %7416 = vmatpush1.bf16.msra.mxu0 %v7337
      %7417 = vmatprep.subr.bf16.mxu0 0
      %7418 = vmatpush2.bf16.msra.mxu0 %v7352
      %7419 = vmatprep.subr.bf16.mxu0 0
      %7420 = vmatpush2.bf16.msra.mxu0 %v7351
      %7421 = vmatprep.subr.bf16.mxu0 0
      %7422 = vmatpush2.bf16.msra.mxu0 %v7350
      %7423 = vmatprep.subr.bf16.mxu0 0
      %7424 = vmatpush2.bf16.msra.mxu0 %v7349
      %7425 = vmatprep.subr.bf16.mxu0 0
      %7426 = vmatpush2.bf16.msra.mxu0 %v7348
      %7427 = vmatprep.subr.bf16.mxu0 0
      %7428 = vmatpush2.bf16.msra.mxu0 %v7347
      %7429 = vmatprep.subr.bf16.mxu0 0
      %7430 = vmatpush2.bf16.msra.mxu0 %v7346
      %7431 = vmatprep.subr.bf16.mxu0 0
      %7432 = vmatpush2.bf16.msra.mxu0 %v7345
      %7433 = vmatprep.mubr.bf16.mxu0 %v7140
      %7434 = vmatmul.mubr.bf16.gmra.mxu0 %v7139
      %v7435 = vpop.f32.mrf.mxu0
      %v7436 = vadd.f32 %v7208, %v7435
      %v7437 = vpop.f32.mrf.mxu0
      %v7438 = vpop.f32.mrf.mxu0
      %v7439 = vadd.f32 %v7208, %v7438
      %v7440 = vpop.f32.mrf.mxu0
      %7441 = vdwg.mxu0
      %7442 = vmatprep.subr.bf16.mxu0 0
      %7443 = vmatpush1.bf16.msra.mxu0 %v7360
      %7444 = vmatprep.subr.bf16.mxu0 0
      %7445 = vmatpush1.bf16.msra.mxu0 %v7359
      %7446 = vmatprep.subr.bf16.mxu0 0
      %7447 = vmatpush1.bf16.msra.mxu0 %v7358
      %7448 = vmatprep.subr.bf16.mxu0 0
      %7449 = vmatpush1.bf16.msra.mxu0 %v7357
      %7450 = vmatprep.subr.bf16.mxu0 0
      %7451 = vmatpush1.bf16.msra.mxu0 %v7356
      %7452 = vmatprep.subr.bf16.mxu0 0
      %7453 = vmatpush1.bf16.msra.mxu0 %v7355
      %7454 = vmatprep.subr.bf16.mxu0 0
      %7455 = vmatpush1.bf16.msra.mxu0 %v7354
      %7456 = vmatprep.subr.bf16.mxu0 0
      %7457 = vmatpush1.bf16.msra.mxu0 %v7353
      %7458 = vmatprep.subr.bf16.mxu0 0
      %7459 = vmatpush2.bf16.msra.mxu0 %v7368
      %7460 = vmatprep.subr.bf16.mxu0 0
      %7461 = vmatpush2.bf16.msra.mxu0 %v7367
      %7462 = vmatprep.subr.bf16.mxu0 0
      %7463 = vmatpush2.bf16.msra.mxu0 %v7366
      %7464 = vmatprep.subr.bf16.mxu0 0
      %7465 = vmatpush2.bf16.msra.mxu0 %v7365
      %7466 = vmatprep.subr.bf16.mxu0 0
      %7467 = vmatpush2.bf16.msra.mxu0 %v7364
      %7468 = vmatprep.subr.bf16.mxu0 0
      %7469 = vmatpush2.bf16.msra.mxu0 %v7363
      %7470 = vmatprep.subr.bf16.mxu0 0
      %7471 = vmatpush2.bf16.msra.mxu0 %v7362
      %7472 = vmatprep.subr.bf16.mxu0 0
      %7473 = vmatpush2.bf16.msra.mxu0 %v7361
      %7474 = vmatprep.mubr.bf16.mxu0 %v7142
      %7475 = vmatmul.mubr.bf16.gmra.mxu0 %v7141
      %v7476 = vpop.f32.mrf.mxu0
      %v7477 = vadd.f32 %v7436, %v7476
      %v7478 = vpop.f32.mrf.mxu0
      %v7479 = vpop.f32.mrf.mxu0
      %v7480 = vadd.f32 %v7439, %v7479
      %v7481 = vpop.f32.mrf.mxu0
      %7482 = vdwg.mxu0
      %vm7483 = vcmp.lt.f32.partialorder %v7477, 0.0
      %vm7484 = vcmp.lt.f32.partialorder %v7480, 0.0
      %v7485 = vsel %vm7483, -1.0, 1.0
      %v7486 = vsel %vm7484, -1.0, 1.0
      %v7487 = vand.u32 2147483647, %v7477
      %v7488 = vand.u32 2147483647, %v7480
      %vm7489 = vcmp.gt.f32.partialorder %v7487, 2.4142137
      %vm7490 = vcmp.gt.f32.partialorder %v7488, 2.4142137
      %vm7491 = vcmp.gt.f32.partialorder %v7487, 0.41421357
      %vm7492 = vcmp.gt.f32.partialorder %v7488, 0.41421357
      %vm7493 = vmxor %vm7489, 1
      %vm7494 = vmxor %vm7490, 1
      %vm7495 = vmand %vm7491, %vm7493
      %vm7496 = vmand %vm7492, %vm7494
      %v7497 = vsel %vm7489, %v7487, 1.0
      %v7498 = vsel %vm7490, %v7488, 1.0
      %v7499 = vrcp.pop %v7497
      %v7500 = vmul.f32 -1.0, %v7499
      %v7501 = vrcp.pop %v7498
      %v7502 = vmul.f32 -1.0, %v7501
      %v7503 = vsub.f32 %v7487, 1.0
      %v7504 = vsub.f32 %v7488, 1.0
      %v7505 = vadd.f32 %v7487, 1.0
      %v7506 = vadd.f32 %v7488, 1.0
      %v7507 = vrcp.pop %v7505
      %v7508 = vmul.f32 %v7503, %v7507
      %v7509 = vrcp.pop %v7506
      %v7510 = vmul.f32 %v7504, %v7509
      %v7511 = vsel %vm7495, %v7508, %v7487
      %v7512 = vsel %vm7496, %v7510, %v7488
      %v7513 = vsel %vm7489, %v7500, %v7511
      %v7514 = vsel %vm7490, %v7502, %v7512
      %v7515 = vsel %vm7495, 0.7853982, 0.0
      %v7516 = vsel %vm7496, 0.7853982, 0.0
      %v7517 = vsel %vm7489, 1.5707964, %v7515
      %v7518 = vsel %vm7490, 1.5707964, %v7516
      %v7519 = vmul.f32 %v7513, %v7513
      %v7520 = vmul.f32 %v7514, %v7514
      %v7521 = vmul.f32 %v7519, 0.080537446
      %v7522 = vmul.f32 %v7520, 0.080537446
      %v7523 = vsub.f32 %v7521, 0.13877685
      %v7524 = vsub.f32 %v7522, 0.13877685
      %v7525 = vmul.f32 %v7523, %v7519
      %v7526 = vmul.f32 %v7524, %v7520
      %v7527 = vadd.f32 %v7525, 0.19977711
      %v7528 = vadd.f32 %v7526, 0.19977711
      %v7529 = vmul.f32 %v7527, %v7519
      %v7530 = vmul.f32 %v7528, %v7520
      %v7531 = vsub.f32 %v7529, 0.3333295
      %v7532 = vsub.f32 %v7530, 0.3333295
      %v7533 = vmul.f32 %v7531, %v7519
      %v7534 = vmul.f32 %v7532, %v7520
      %v7535 = vmul.f32 %v7533, %v7513
      %v7536 = vmul.f32 %v7534, %v7514
      %v7537 = vadd.f32 %v7535, %v7513
      %v7538 = vadd.f32 %v7536, %v7514
      %v7539 = vmul.f32 %v7485, 2.0
      %v7540 = vmul.f32 %v7486, 2.0
      %v7541 = vadd.f32 %v7517, %v7537
      %v7542 = vadd.f32 %v7518, %v7538
      %v7543 = vmul.f32 %v7539, %v7541
      %v7544 = vmul.f32 %v7540, %v7542
      %vm7545 = vcmask 7168
      %7546 = vst.msk [vmem:[%s392] sm:$0xff] %vm7545, %v7543
      %7547 = vst.msk [vmem:[%s392 + $0x8] sm:$0xff] %vm7545, %v7544
      %s7548 = smul.u32 2, %s23
      %p7549 = scmp.lt.s32.totalorder %s7548, 3
      %s7550 = scalar_select %p7549, %s7548, 3
      %s7551 = smul.addr %s7550, 8
      %s7552 = scalar_lea.vmem %s11, %s7551
      // Predicated region
      $region65: #{comma_ai_forward.1} parent=63 // pred_check
        %p7553 = pneg %p277
      $region66: #{comma_ai_forward.1} parent=63 // pred_check_branch
        %7555 = sbr.rel (%p7553) target = $region68
      $region67: #{comma_ai_forward.1} parent=63 // pred_region
        %s7556 = smul.u32 2, %s23
      $region68: #{comma_ai_forward.1} parent=63 // pred_fallthru
        _
    $region64: #{comma_ai_forward.1} parent=5 // pred_fallthru
      _
    %p7557 = scmp.le.s32.totalorder 2, %s18
    // Predicated region
    $region69: #{comma_ai_forward.1} parent=5 // pred_check
      %p7558 = pneg %p7557
    $region70: #{comma_ai_forward.1} parent=5 // pred_check_branch
      %7560 = sbr.rel (%p7558) target = $region72
    $region71: #{comma_ai_forward.1} parent=5 // pred_region
      %s7561 = ssub.s32 %s18, 2
      // Predicated region
      $region73: #{comma_ai_forward.1} parent=71 // pred_check
        %p7562 = pneg %p283
      $region74: #{comma_ai_forward.1} parent=71 // pred_check_branch
        %7564 = sbr.rel (%p7562) target = $region76
      $region75: #{comma_ai_forward.1} parent=71 // pred_region
        %s7565 = smul.u32 2, %s24
        %p7566 = scmp.lt.s32.totalorder %s7565, 3
        %s7567 = scalar_select %p7566, %s7565, 3
        %s7568 = smul.addr %s7567, 8
        %s7569 = scalar_lea.vmem %s11, %s7568
      $region76: #{comma_ai_forward.1} parent=71 // pred_fallthru
        _
    $region72: #{comma_ai_forward.1} parent=5 // pred_fallthru
      _
  $region6: #{comma_ai_forward.1} parent=0 // loop_footer
    %s22 = sadd.s32 1, %s18
  $region7: #{comma_ai_forward.1} parent=0 // loop_footer_branch
    %17 = sbr.rel target = $region3
  $region8: #{comma_ai_forward.1} parent=0 // loop_exit
    _

</llo_original>
